<compile_context>
chip_gen: v6e
topology: v6e:2x2x1
jax: 0.10.0
libtpu: 0.0.40
codegen_flags: <defaults>
</compile_context>

<pallas_src>
import functools

import jax
import jax.numpy as jnp
from jax.experimental import pallas as pl
from jax.experimental.pallas import tpu as pltpu


# ----------------------------------------------------------------------------
# Fused kernel: one grid step == one image.
# ----------------------------------------------------------------------------
def _fused_kernel(x_ref, w1_ref, b1_ref, w2_ref, b2_ref, fcw_ref, fcb_ref,
                  o_ref, row1_ref, h1_ref, row2_ref):
    # x_ref   : (H, W, C)            bf16   one image (NHWC)
    # w1_ref  : (9*C, 64)            bf16   conv1 taps concatenated along K
    # b1_ref  : (1, 64)              f32
    # w2_ref  : (9*64, 128)          bf16
    # b2_ref  : (1, 128)             f32
    # fcw_ref : (PH2*PW2, 128, NPAD) bf16   per-spatial-position fc blocks
    # fcb_ref : (1, NPAD)            f32
    # o_ref   : (2, NPAD)            f32    row0 = mean, row1 = log_var
    # row1_ref: (OW1, 64)   f32 scratch (one conv-row band, pre column-pool)
    # h1_ref  : (PH1, PW1, 64) bf16 scratch (stage-1 pooled output)
    # row2_ref: (OW2, 128)  f32 scratch
    H, W, C = x_ref.shape
    OW1, OC1 = row1_ref.shape
    PH1, PW1, _ = h1_ref.shape
    OW2, OC2 = row2_ref.shape
    PH2 = (PH1 - 2) // 3
    PW2 = (PW1 - 2) // 3
    NPAD = o_ref.shape[-1]

    # ---------------- stage 1: conv3x3 + ReLU + MaxPool2d(3) ----------------
    # Horizontal tap concat per input row (kw = 0,1,2), built once per image.
    rows1 = [jnp.concatenate(
                 [x_ref[r, pl.ds(kw, OW1), :] for kw in range(3)], axis=-1)
             for r in range(3 * PH1 + 2)]                  # each (OW1, 3*C)

    for ph in range(PH1):
        rowmax = None
        for j in range(3):                                 # conv row 3*ph + j
            r = 3 * ph + j
            # im2col patch: K = 9*C, single MXU dot per conv row.
            patch = jnp.concatenate([rows1[r], rows1[r + 1], rows1[r + 2]],
                                    axis=-1)               # (OW1, 9*C)
            cr = jnp.dot(patch, w1_ref[...],
                         preferred_element_type=jnp.float32)   # (OW1, OC1)
            # row-direction pooling = elementwise max (no sublane slicing)
            rowmax = cr if rowmax is None else jnp.maximum(rowmax, cr)
        row1_ref[...] = rowmax
        # column pooling: 3 stride-3 sublane reads + 2 maxes
        m = jnp.maximum(
            jnp.maximum(row1_ref[pl.ds(0, PW1, stride=3), :],
                        row1_ref[pl.ds(1, PW1, stride=3), :]),
            row1_ref[pl.ds(2, PW1, stride=3), :])          # (PW1, OC1)
        # bias + ReLU commute with the window max -> applied on 9x smaller tile
        h1_ref[ph] = jnp.maximum(m + b1_ref[...], 0.0).astype(jnp.bfloat16)

    # ---------------- stage 2: conv3x3 + ReLU + MaxPool2d(3) ----------------
    rows2 = [jnp.concatenate(
                 [h1_ref[r, pl.ds(kw, OW2), :] for kw in range(3)], axis=-1)
             for r in range(3 * PH2 + 2)]                  # each (OW2, 3*OC1)

    h2_rows = []
    for ph in range(PH2):
        rowmax = None
        for j in range(3):
            r = 3 * ph + j
            patch = jnp.concatenate([rows2[r], rows2[r + 1], rows2[r + 2]],
                                    axis=-1)               # (OW2, 9*OC1) = (8, 576)
            cr = jnp.dot(patch, w2_ref[...],
                         preferred_element_type=jnp.float32)   # (OW2, OC2)
            rowmax = cr if rowmax is None else jnp.maximum(rowmax, cr)
        row2_ref[...] = rowmax
        m = jnp.maximum(
            jnp.maximum(row2_ref[pl.ds(0, PW2, stride=3), :],
                        row2_ref[pl.ds(1, PW2, stride=3), :]),
            row2_ref[pl.ds(2, PW2, stride=3), :])          # (PW2, OC2)
        h2_rows.append(jnp.maximum(m + b2_ref[...], 0.0))  # f32, (PW2, OC2)

    # ---------------- head: Linear -> sigmoid / positive_elu(0.2) ----------------
    y = fcb_ref[...]                                       # (1, NPAD) f32
    for ph in range(PH2):
        for pw in range(PW2):
            v = h2_rows[ph][pw:pw + 1, :].astype(jnp.bfloat16)     # (1, OC2)
            y = y + jnp.dot(v, fcw_ref[ph * PW2 + pw],
                            preferred_element_type=jnp.float32)    # (1, NPAD)
    # sigmoid via EUP reciprocal (divide rides the free EUP slot)
    mean = pl.reciprocal(1.0 + jnp.exp(-y), approx=True)
    # positive_elu(y, 0.2) = ELU(0.2)(y) + 1.
    # exp(min(y,0)) - 1 instead of expm1 (guaranteed Mosaic lowering; abs error
    # here < 1e-7, irrelevant at the checked tolerance).
    log_var = jnp.where(y > 0.0, y,
                        0.2 * (jnp.exp(jnp.minimum(y, 0.0)) - 1.0)) + 1.0
    # one contiguous, lane-dense (2, NPAD) store per image
    o_ref[...] = jnp.concatenate([mean, log_var], axis=0)


# ----------------------------------------------------------------------------
# Wrapper: single pallas_call for the whole forward pass.
# ----------------------------------------------------------------------------
def autocalibration11_forward(x_nchw, kp, *, output_dim):
    B, C, H, W = x_nchw.shape
    OC1 = kp["w1"].shape[-1]
    OC2 = kp["w2"].shape[-1]
    NPAD = kp["fcw"].shape[-1]
    OW1 = W - 2
    PH1, PW1 = (H - 2) // 3, OW1 // 3
    OW2 = PW1 - 2
    # Single NCHW->NHWC transpose + bf16 cast at the HBM boundary.
    x = jnp.transpose(x_nchw, (0, 2, 3, 1)).astype(jnp.bfloat16)

    out = pl.pallas_call(
        _fused_kernel,
        out_shape=jax.ShapeDtypeStruct((B, 2, NPAD), jnp.float32),
        grid=(B,),
        in_specs=[
            pl.BlockSpec((None, H, W, C), lambda b: (b, 0, 0, 0)),
            pl.BlockSpec(kp["w1"].shape, lambda b: (0, 0)),
            pl.BlockSpec(kp["b1"].shape, lambda b: (0, 0)),
            pl.BlockSpec(kp["w2"].shape, lambda b: (0, 0)),
            pl.BlockSpec(kp["b2"].shape, lambda b: (0, 0)),
            pl.BlockSpec(kp["fcw"].shape, lambda b: (0, 0, 0)),
            pl.BlockSpec(kp["fcb"].shape, lambda b: (0, 0)),
        ],
        out_specs=pl.BlockSpec((None, 2, NPAD), lambda b: (b, 0, 0)),
        scratch_shapes=[
            pltpu.VMEM((OW1, OC1), jnp.float32),          # row1_ref
            pltpu.VMEM((PH1, PW1, OC1), jnp.bfloat16),    # h1_ref
            pltpu.VMEM((OW2, OC2), jnp.float32),          # row2_ref
        ],
        compiler_params=pltpu.CompilerParams(
            dimension_semantics=("parallel",)),           # v7x: 2 TCs share the batch
    )(x, kp["w1"], kp["b1"], kp["w2"], kp["b2"], kp["fcw"], kp["fcb"])

    # (B, 2, NPAD) -> (2, B, output_dim): tiny wrapper-side slice + transpose.
    return jnp.transpose(out[:, :, :output_dim], (1, 0, 2))


# ----------------------------------------------------------------------------
# Parameters: PyTorch layout -> kernel layout (one-time prep)
# ----------------------------------------------------------------------------
def init_torch_params(key, input_channels, cnn_output_dim, output_dim):
    ks = jax.random.split(key, 6)
    s = 0.05
    return {
        "conv1_w": s * jax.random.normal(ks[0], (64, input_channels, 3, 3), jnp.float32),
        "conv1_b": s * jax.random.normal(ks[1], (64,), jnp.float32),
        "conv2_w": s * jax.random.normal(ks[2], (128, 64, 3, 3), jnp.float32),
        "conv2_b": s * jax.random.normal(ks[3], (128,), jnp.float32),
        "fc_w": s * jax.random.normal(ks[4], (output_dim, cnn_output_dim), jnp.float32),
        "fc_b": s * jax.random.normal(ks[5], (output_dim,), jnp.float32),
    }


def prepare_params(tp, conv_out_chw):
    """PyTorch-layout params -> kernel-ready params.

    Conv weights become (9*C, OC) bf16 with K ordered (kh, kw, c) to match the
    in-kernel tap concatenation.  The fc weight is split into one (128, NPAD)
    block per spatial position (NHWC order), honouring the NCHW flatten order
    of the reference, and padded to a lane-dense NPAD=128 output.
    """
    C2, PH2, PW2 = conv_out_chw
    out_dim = tp["fc_w"].shape[0]
    npad = max(128, ((out_dim + 127) // 128) * 128)

    def conv_w(w):                       # (OC, C, 3, 3) -> (9*C, OC) bf16
        oc, c = w.shape[0], w.shape[1]
        return jnp.transpose(w, (2, 3, 1, 0)).reshape(9 * c, oc).astype(jnp.bfloat16)

    # NCHW flatten index: f = c*(PH2*PW2) + ph*PW2 + pw
    wf = tp["fc_w"].T.reshape(C2, PH2 * PW2, out_dim)       # [c, pos, n]
    wf = jnp.transpose(wf, (1, 0, 2))                       # (pos, c, n)
    wf = jnp.pad(wf, ((0, 0), (0, 0), (0, npad - out_dim))).astype(jnp.bfloat16)
    fb = jnp.pad(tp["fc_b"], (0, npad - out_dim)).reshape(1, npad).astype(jnp.float32)
    return {
        "w1": conv_w(tp["conv1_w"]),
        "b1": tp["conv1_b"].reshape(1, -1).astype(jnp.float32),
        "w2": conv_w(tp["conv2_w"]),
        "b2": tp["conv2_b"].reshape(1, -1).astype(jnp.float32),
        "fcw": wf,
        "fcb": fb,
    }


# ----------------------------------------------------------------------------
# Pure-JAX (XLA) reference with the original NCHW / f32 semantics
# ----------------------------------------------------------------------------
def torch_reference(x_nchw, tp):
    def conv_relu(x, w, b):
        y = jax.lax.conv_general_dilated(
            x, w, window_strides=(1, 1), padding="VALID",
            dimension_numbers=("NCHW", "OIHW", "NCHW"))
        return jnp.maximum(y + b[None, :, None, None], 0.0)

    def pool(x):
        return jax.lax.reduce_window(x, -jnp.inf, jax.lax.max,
                                     (1, 1, 3, 3), (1, 1, 3, 3), "VALID")

    h = pool(conv_relu(x_nchw, tp["conv1_w"], tp["conv1_b"]))
    h = pool(conv_relu(h, tp["conv2_w"], tp["conv2_b"]))
    feat = h.reshape(x_nchw.shape[0], -1)
    y = feat @ tp["fc_w"].T + tp["fc_b"]
    mean = jax.nn.sigmoid(y)
    log_var = jnp.where(y > 0.0, y, 0.2 * jnp.expm1(y)) + 1.0
    return jnp.stack([mean, log_var], axis=0)


if __name__ == "__main__":
    # input_shape = (C, H, W) = (4, 32, 32): two conv(3)+pool(3) stages give
    # 32 -> 30 -> 10 -> 8 -> 2, so cnn_output_dim = 128 * 2 * 2 = 512.
    B, C, H, W = 2, 4, 32, 32
    output_dim = 8
    s1 = (H - 2) // 3
    s2 = (s1 - 2) // 3
    cnn_output_dim = 128 * s2 * s2

    key = jax.random.PRNGKey(0)
    k_x, k_p = jax.random.split(key)
    x = jax.random.normal(k_x, (B, C, H, W), jnp.float32)
    torch_params = init_torch_params(k_p, C, cnn_output_dim, output_dim)
    kernel_params = prepare_params(torch_params, (128, s2, s2))

    fwd = jax.jit(functools.partial(autocalibration11_forward,
                                    output_dim=output_dim))
    out = jax.block_until_ready(fwd(x, kernel_params))

    assert out.shape == (2, B, output_dim), out.shape
    assert bool(jnp.all(jnp.isfinite(out)))
    assert bool(jnp.all((out[0] >= 0.0) & (out[0] <= 1.0)))   # sigmoid range
    assert bool(jnp.all(out[1] > 0.0))                        # positive_elu > 0

    ref = jax.block_until_ready(jax.jit(torch_reference)(x, torch_params))
    assert bool(jnp.allclose(out, ref, rtol=5e-2, atol=5e-2)), (
        float(jnp.max(jnp.abs(out - ref))))

    print("KERNEL_OK")
</pallas_src>

<mosaic_0001>
module attributes {stable_mosaic.version = 11 : i64} {
  func.func @_fused_kernel(%arg0: i32, %arg1: memref<1x32x32x4xbf16, #tpu.memory_space<vmem>>, %arg2: memref<36x64xbf16, #tpu.memory_space<vmem>>, %arg3: memref<1x64xf32, #tpu.memory_space<vmem>>, %arg4: memref<576x128xbf16, #tpu.memory_space<vmem>>, %arg5: memref<1x128xf32, #tpu.memory_space<vmem>>, %arg6: memref<4x128x128xbf16, #tpu.memory_space<vmem>>, %arg7: memref<1x128xf32, #tpu.memory_space<vmem>>, %arg8: memref<1x2x128xf32, #tpu.memory_space<vmem>>, %arg9: memref<30x64xf32, #tpu.memory_space<vmem>>, %arg10: memref<10x10x64xbf16, #tpu.memory_space<vmem>>, %arg11: memref<8x128xf32, #tpu.memory_space<vmem>>) attributes {dimension_semantics = [#tpu.dimension_semantics<parallel>], iteration_bounds = array<i64: 2>, scalar_prefetch = 0 : i64, scratch_operands = 3 : i64, tpu.core_type = #tpu.core_type<tc>, window_params = [{transform_indices = @transform_0, window_bounds = array<i64: 1, 32, 32, 4>}, {pipeline_mode = #tpu.pipeline_mode<synchronous>, transform_indices = @transform_1, window_bounds = array<i64: 36, 64>}, {pipeline_mode = #tpu.pipeline_mode<synchronous>, transform_indices = @transform_2, window_bounds = array<i64: 1, 64>}, {pipeline_mode = #tpu.pipeline_mode<synchronous>, transform_indices = @transform_3, window_bounds = array<i64: 576, 128>}, {pipeline_mode = #tpu.pipeline_mode<synchronous>, transform_indices = @transform_4, window_bounds = array<i64: 1, 128>}, {pipeline_mode = #tpu.pipeline_mode<synchronous>, transform_indices = @transform_5, window_bounds = array<i64: 4, 128, 128>}, {pipeline_mode = #tpu.pipeline_mode<synchronous>, transform_indices = @transform_6, window_bounds = array<i64: 1, 128>}, {transform_indices = @transform_7, window_bounds = array<i64: 1, 2, 128>}]} {
    %c0 = arith.constant 0 : index
    %c0_0 = arith.constant 0 : index
    %c0_1 = arith.constant 0 : index
    %c0_2 = arith.constant 0 : index
    %0 = vector.load %arg1[%c0, %c0_0, %c0_1, %c0_2] : memref<1x32x32x4xbf16, #tpu.memory_space<vmem>>, vector<1x1x30x4xbf16>
    %1 = vector.shape_cast %0 : vector<1x1x30x4xbf16> to vector<30x4xbf16>
    %c0_3 = arith.constant 0 : index
    %c0_4 = arith.constant 0 : index
    %c1 = arith.constant 1 : index
    %c0_5 = arith.constant 0 : index
    %2 = vector.load %arg1[%c0_3, %c0_4, %c1, %c0_5] : memref<1x32x32x4xbf16, #tpu.memory_space<vmem>>, vector<1x1x30x4xbf16>
    %3 = vector.shape_cast %2 : vector<1x1x30x4xbf16> to vector<30x4xbf16>
    %c0_6 = arith.constant 0 : index
    %c0_7 = arith.constant 0 : index
    %c2 = arith.constant 2 : index
    %c0_8 = arith.constant 0 : index
    %4 = vector.load %arg1[%c0_6, %c0_7, %c2, %c0_8] : memref<1x32x32x4xbf16, #tpu.memory_space<vmem>>, vector<1x1x30x4xbf16>
    %5 = vector.shape_cast %4 : vector<1x1x30x4xbf16> to vector<30x4xbf16>
    %6 = tpu.concatenate %1, %3, %5 in 1 : vector<30x4xbf16>, vector<30x4xbf16>, vector<30x4xbf16> -> vector<30x12xbf16>
    %c0_9 = arith.constant 0 : index
    %c1_10 = arith.constant 1 : index
    %c0_11 = arith.constant 0 : index
    %c0_12 = arith.constant 0 : index
    %7 = vector.load %arg1[%c0_9, %c1_10, %c0_11, %c0_12] : memref<1x32x32x4xbf16, #tpu.memory_space<vmem>>, vector<1x1x30x4xbf16>
    %8 = vector.shape_cast %7 : vector<1x1x30x4xbf16> to vector<30x4xbf16>
    %c0_13 = arith.constant 0 : index
    %c1_14 = arith.constant 1 : index
    %c1_15 = arith.constant 1 : index
    %c0_16 = arith.constant 0 : index
    %9 = vector.load %arg1[%c0_13, %c1_14, %c1_15, %c0_16] : memref<1x32x32x4xbf16, #tpu.memory_space<vmem>>, vector<1x1x30x4xbf16>
    %10 = vector.shape_cast %9 : vector<1x1x30x4xbf16> to vector<30x4xbf16>
    %c0_17 = arith.constant 0 : index
    %c1_18 = arith.constant 1 : index
    %c2_19 = arith.constant 2 : index
    %c0_20 = arith.constant 0 : index
    %11 = vector.load %arg1[%c0_17, %c1_18, %c2_19, %c0_20] : memref<1x32x32x4xbf16, #tpu.memory_space<vmem>>, vector<1x1x30x4xbf16>
    %12 = vector.shape_cast %11 : vector<1x1x30x4xbf16> to vector<30x4xbf16>
    %13 = tpu.concatenate %8, %10, %12 in 1 : vector<30x4xbf16>, vector<30x4xbf16>, vector<30x4xbf16> -> vector<30x12xbf16>
    %c0_21 = arith.constant 0 : index
    %c2_22 = arith.constant 2 : index
    %c0_23 = arith.constant 0 : index
    %c0_24 = arith.constant 0 : index
    %14 = vector.load %arg1[%c0_21, %c2_22, %c0_23, %c0_24] : memref<1x32x32x4xbf16, #tpu.memory_space<vmem>>, vector<1x1x30x4xbf16>
    %15 = vector.shape_cast %14 : vector<1x1x30x4xbf16> to vector<30x4xbf16>
    %c0_25 = arith.constant 0 : index
    %c2_26 = arith.constant 2 : index
    %c1_27 = arith.constant 1 : index
    %c0_28 = arith.constant 0 : index
    %16 = vector.load %arg1[%c0_25, %c2_26, %c1_27, %c0_28] : memref<1x32x32x4xbf16, #tpu.memory_space<vmem>>, vector<1x1x30x4xbf16>
    %17 = vector.shape_cast %16 : vector<1x1x30x4xbf16> to vector<30x4xbf16>
    %c0_29 = arith.constant 0 : index
    %c2_30 = arith.constant 2 : index
    %c2_31 = arith.constant 2 : index
    %c0_32 = arith.constant 0 : index
    %18 = vector.load %arg1[%c0_29, %c2_30, %c2_31, %c0_32] : memref<1x32x32x4xbf16, #tpu.memory_space<vmem>>, vector<1x1x30x4xbf16>
    %19 = vector.shape_cast %18 : vector<1x1x30x4xbf16> to vector<30x4xbf16>
    %20 = tpu.concatenate %15, %17, %19 in 1 : vector<30x4xbf16>, vector<30x4xbf16>, vector<30x4xbf16> -> vector<30x12xbf16>
    %c0_33 = arith.constant 0 : index
    %c3 = arith.constant 3 : index
    %c0_34 = arith.constant 0 : index
    %c0_35 = arith.constant 0 : index
    %21 = vector.load %arg1[%c0_33, %c3, %c0_34, %c0_35] : memref<1x32x32x4xbf16, #tpu.memory_space<vmem>>, vector<1x1x30x4xbf16>
    %22 = vector.shape_cast %21 : vector<1x1x30x4xbf16> to vector<30x4xbf16>
    %c0_36 = arith.constant 0 : index
    %c3_37 = arith.constant 3 : index
    %c1_38 = arith.constant 1 : index
    %c0_39 = arith.constant 0 : index
    %23 = vector.load %arg1[%c0_36, %c3_37, %c1_38, %c0_39] : memref<1x32x32x4xbf16, #tpu.memory_space<vmem>>, vector<1x1x30x4xbf16>
    %24 = vector.shape_cast %23 : vector<1x1x30x4xbf16> to vector<30x4xbf16>
    %c0_40 = arith.constant 0 : index
    %c3_41 = arith.constant 3 : index
    %c2_42 = arith.constant 2 : index
    %c0_43 = arith.constant 0 : index
    %25 = vector.load %arg1[%c0_40, %c3_41, %c2_42, %c0_43] : memref<1x32x32x4xbf16, #tpu.memory_space<vmem>>, vector<1x1x30x4xbf16>
    %26 = vector.shape_cast %25 : vector<1x1x30x4xbf16> to vector<30x4xbf16>
    %27 = tpu.concatenate %22, %24, %26 in 1 : vector<30x4xbf16>, vector<30x4xbf16>, vector<30x4xbf16> -> vector<30x12xbf16>
    %c0_44 = arith.constant 0 : index
    %c4 = arith.constant 4 : index
    %c0_45 = arith.constant 0 : index
    %c0_46 = arith.constant 0 : index
    %28 = vector.load %arg1[%c0_44, %c4, %c0_45, %c0_46] : memref<1x32x32x4xbf16, #tpu.memory_space<vmem>>, vector<1x1x30x4xbf16>
    %29 = vector.shape_cast %28 : vector<1x1x30x4xbf16> to vector<30x4xbf16>
    %c0_47 = arith.constant 0 : index
    %c4_48 = arith.constant 4 : index
    %c1_49 = arith.constant 1 : index
    %c0_50 = arith.constant 0 : index
    %30 = vector.load %arg1[%c0_47, %c4_48, %c1_49, %c0_50] : memref<1x32x32x4xbf16, #tpu.memory_space<vmem>>, vector<1x1x30x4xbf16>
    %31 = vector.shape_cast %30 : vector<1x1x30x4xbf16> to vector<30x4xbf16>
    %c0_51 = arith.constant 0 : index
    %c4_52 = arith.constant 4 : index
    %c2_53 = arith.constant 2 : index
    %c0_54 = arith.constant 0 : index
    %32 = vector.load %arg1[%c0_51, %c4_52, %c2_53, %c0_54] : memref<1x32x32x4xbf16, #tpu.memory_space<vmem>>, vector<1x1x30x4xbf16>
    %33 = vector.shape_cast %32 : vector<1x1x30x4xbf16> to vector<30x4xbf16>
    %34 = tpu.concatenate %29, %31, %33 in 1 : vector<30x4xbf16>, vector<30x4xbf16>, vector<30x4xbf16> -> vector<30x12xbf16>
    %c0_55 = arith.constant 0 : index
    %c5 = arith.constant 5 : index
    %c0_56 = arith.constant 0 : index
    %c0_57 = arith.constant 0 : index
    %35 = vector.load %arg1[%c0_55, %c5, %c0_56, %c0_57] : memref<1x32x32x4xbf16, #tpu.memory_space<vmem>>, vector<1x1x30x4xbf16>
    %36 = vector.shape_cast %35 : vector<1x1x30x4xbf16> to vector<30x4xbf16>
    %c0_58 = arith.constant 0 : index
    %c5_59 = arith.constant 5 : index
    %c1_60 = arith.constant 1 : index
    %c0_61 = arith.constant 0 : index
    %37 = vector.load %arg1[%c0_58, %c5_59, %c1_60, %c0_61] : memref<1x32x32x4xbf16, #tpu.memory_space<vmem>>, vector<1x1x30x4xbf16>
    %38 = vector.shape_cast %37 : vector<1x1x30x4xbf16> to vector<30x4xbf16>
    %c0_62 = arith.constant 0 : index
    %c5_63 = arith.constant 5 : index
    %c2_64 = arith.constant 2 : index
    %c0_65 = arith.constant 0 : index
    %39 = vector.load %arg1[%c0_62, %c5_63, %c2_64, %c0_65] : memref<1x32x32x4xbf16, #tpu.memory_space<vmem>>, vector<1x1x30x4xbf16>
    %40 = vector.shape_cast %39 : vector<1x1x30x4xbf16> to vector<30x4xbf16>
    %41 = tpu.concatenate %36, %38, %40 in 1 : vector<30x4xbf16>, vector<30x4xbf16>, vector<30x4xbf16> -> vector<30x12xbf16>
    %c0_66 = arith.constant 0 : index
    %c6 = arith.constant 6 : index
    %c0_67 = arith.constant 0 : index
    %c0_68 = arith.constant 0 : index
    %42 = vector.load %arg1[%c0_66, %c6, %c0_67, %c0_68] : memref<1x32x32x4xbf16, #tpu.memory_space<vmem>>, vector<1x1x30x4xbf16>
    %43 = vector.shape_cast %42 : vector<1x1x30x4xbf16> to vector<30x4xbf16>
    %c0_69 = arith.constant 0 : index
    %c6_70 = arith.constant 6 : index
    %c1_71 = arith.constant 1 : index
    %c0_72 = arith.constant 0 : index
    %44 = vector.load %arg1[%c0_69, %c6_70, %c1_71, %c0_72] : memref<1x32x32x4xbf16, #tpu.memory_space<vmem>>, vector<1x1x30x4xbf16>
    %45 = vector.shape_cast %44 : vector<1x1x30x4xbf16> to vector<30x4xbf16>
    %c0_73 = arith.constant 0 : index
    %c6_74 = arith.constant 6 : index
    %c2_75 = arith.constant 2 : index
    %c0_76 = arith.constant 0 : index
    %46 = vector.load %arg1[%c0_73, %c6_74, %c2_75, %c0_76] : memref<1x32x32x4xbf16, #tpu.memory_space<vmem>>, vector<1x1x30x4xbf16>
    %47 = vector.shape_cast %46 : vector<1x1x30x4xbf16> to vector<30x4xbf16>
    %48 = tpu.concatenate %43, %45, %47 in 1 : vector<30x4xbf16>, vector<30x4xbf16>, vector<30x4xbf16> -> vector<30x12xbf16>
    %c0_77 = arith.constant 0 : index
    %c7 = arith.constant 7 : index
    %c0_78 = arith.constant 0 : index
    %c0_79 = arith.constant 0 : index
    %49 = vector.load %arg1[%c0_77, %c7, %c0_78, %c0_79] : memref<1x32x32x4xbf16, #tpu.memory_space<vmem>>, vector<1x1x30x4xbf16>
    %50 = vector.shape_cast %49 : vector<1x1x30x4xbf16> to vector<30x4xbf16>
    %c0_80 = arith.constant 0 : index
    %c7_81 = arith.constant 7 : index
    %c1_82 = arith.constant 1 : index
    %c0_83 = arith.constant 0 : index
    %51 = vector.load %arg1[%c0_80, %c7_81, %c1_82, %c0_83] : memref<1x32x32x4xbf16, #tpu.memory_space<vmem>>, vector<1x1x30x4xbf16>
    %52 = vector.shape_cast %51 : vector<1x1x30x4xbf16> to vector<30x4xbf16>
    %c0_84 = arith.constant 0 : index
    %c7_85 = arith.constant 7 : index
    %c2_86 = arith.constant 2 : index
    %c0_87 = arith.constant 0 : index
    %53 = vector.load %arg1[%c0_84, %c7_85, %c2_86, %c0_87] : memref<1x32x32x4xbf16, #tpu.memory_space<vmem>>, vector<1x1x30x4xbf16>
    %54 = vector.shape_cast %53 : vector<1x1x30x4xbf16> to vector<30x4xbf16>
    %55 = tpu.concatenate %50, %52, %54 in 1 : vector<30x4xbf16>, vector<30x4xbf16>, vector<30x4xbf16> -> vector<30x12xbf16>
    %c0_88 = arith.constant 0 : index
    %c8 = arith.constant 8 : index
    %c0_89 = arith.constant 0 : index
    %c0_90 = arith.constant 0 : index
    %56 = vector.load %arg1[%c0_88, %c8, %c0_89, %c0_90] : memref<1x32x32x4xbf16, #tpu.memory_space<vmem>>, vector<1x1x30x4xbf16>
    %57 = vector.shape_cast %56 : vector<1x1x30x4xbf16> to vector<30x4xbf16>
    %c0_91 = arith.constant 0 : index
    %c8_92 = arith.constant 8 : index
    %c1_93 = arith.constant 1 : index
    %c0_94 = arith.constant 0 : index
    %58 = vector.load %arg1[%c0_91, %c8_92, %c1_93, %c0_94] : memref<1x32x32x4xbf16, #tpu.memory_space<vmem>>, vector<1x1x30x4xbf16>
    %59 = vector.shape_cast %58 : vector<1x1x30x4xbf16> to vector<30x4xbf16>
    %c0_95 = arith.constant 0 : index
    %c8_96 = arith.constant 8 : index
    %c2_97 = arith.constant 2 : index
    %c0_98 = arith.constant 0 : index
    %60 = vector.load %arg1[%c0_95, %c8_96, %c2_97, %c0_98] : memref<1x32x32x4xbf16, #tpu.memory_space<vmem>>, vector<1x1x30x4xbf16>
    %61 = vector.shape_cast %60 : vector<1x1x30x4xbf16> to vector<30x4xbf16>
    %62 = tpu.concatenate %57, %59, %61 in 1 : vector<30x4xbf16>, vector<30x4xbf16>, vector<30x4xbf16> -> vector<30x12xbf16>
    %c0_99 = arith.constant 0 : index
    %c9 = arith.constant 9 : index
    %c0_100 = arith.constant 0 : index
    %c0_101 = arith.constant 0 : index
    %63 = vector.load %arg1[%c0_99, %c9, %c0_100, %c0_101] : memref<1x32x32x4xbf16, #tpu.memory_space<vmem>>, vector<1x1x30x4xbf16>
    %64 = vector.shape_cast %63 : vector<1x1x30x4xbf16> to vector<30x4xbf16>
    %c0_102 = arith.constant 0 : index
    %c9_103 = arith.constant 9 : index
    %c1_104 = arith.constant 1 : index
    %c0_105 = arith.constant 0 : index
    %65 = vector.load %arg1[%c0_102, %c9_103, %c1_104, %c0_105] : memref<1x32x32x4xbf16, #tpu.memory_space<vmem>>, vector<1x1x30x4xbf16>
    %66 = vector.shape_cast %65 : vector<1x1x30x4xbf16> to vector<30x4xbf16>
    %c0_106 = arith.constant 0 : index
    %c9_107 = arith.constant 9 : index
    %c2_108 = arith.constant 2 : index
    %c0_109 = arith.constant 0 : index
    %67 = vector.load %arg1[%c0_106, %c9_107, %c2_108, %c0_109] : memref<1x32x32x4xbf16, #tpu.memory_space<vmem>>, vector<1x1x30x4xbf16>
    %68 = vector.shape_cast %67 : vector<1x1x30x4xbf16> to vector<30x4xbf16>
    %69 = tpu.concatenate %64, %66, %68 in 1 : vector<30x4xbf16>, vector<30x4xbf16>, vector<30x4xbf16> -> vector<30x12xbf16>
    %c0_110 = arith.constant 0 : index
    %c10 = arith.constant 10 : index
    %c0_111 = arith.constant 0 : index
    %c0_112 = arith.constant 0 : index
    %70 = vector.load %arg1[%c0_110, %c10, %c0_111, %c0_112] : memref<1x32x32x4xbf16, #tpu.memory_space<vmem>>, vector<1x1x30x4xbf16>
    %71 = vector.shape_cast %70 : vector<1x1x30x4xbf16> to vector<30x4xbf16>
    %c0_113 = arith.constant 0 : index
    %c10_114 = arith.constant 10 : index
    %c1_115 = arith.constant 1 : index
    %c0_116 = arith.constant 0 : index
    %72 = vector.load %arg1[%c0_113, %c10_114, %c1_115, %c0_116] : memref<1x32x32x4xbf16, #tpu.memory_space<vmem>>, vector<1x1x30x4xbf16>
    %73 = vector.shape_cast %72 : vector<1x1x30x4xbf16> to vector<30x4xbf16>
    %c0_117 = arith.constant 0 : index
    %c10_118 = arith.constant 10 : index
    %c2_119 = arith.constant 2 : index
    %c0_120 = arith.constant 0 : index
    %74 = vector.load %arg1[%c0_117, %c10_118, %c2_119, %c0_120] : memref<1x32x32x4xbf16, #tpu.memory_space<vmem>>, vector<1x1x30x4xbf16>
    %75 = vector.shape_cast %74 : vector<1x1x30x4xbf16> to vector<30x4xbf16>
    %76 = tpu.concatenate %71, %73, %75 in 1 : vector<30x4xbf16>, vector<30x4xbf16>, vector<30x4xbf16> -> vector<30x12xbf16>
    %c0_121 = arith.constant 0 : index
    %c11 = arith.constant 11 : index
    %c0_122 = arith.constant 0 : index
    %c0_123 = arith.constant 0 : index
    %77 = vector.load %arg1[%c0_121, %c11, %c0_122, %c0_123] : memref<1x32x32x4xbf16, #tpu.memory_space<vmem>>, vector<1x1x30x4xbf16>
    %78 = vector.shape_cast %77 : vector<1x1x30x4xbf16> to vector<30x4xbf16>
    %c0_124 = arith.constant 0 : index
    %c11_125 = arith.constant 11 : index
    %c1_126 = arith.constant 1 : index
    %c0_127 = arith.constant 0 : index
    %79 = vector.load %arg1[%c0_124, %c11_125, %c1_126, %c0_127] : memref<1x32x32x4xbf16, #tpu.memory_space<vmem>>, vector<1x1x30x4xbf16>
    %80 = vector.shape_cast %79 : vector<1x1x30x4xbf16> to vector<30x4xbf16>
    %c0_128 = arith.constant 0 : index
    %c11_129 = arith.constant 11 : index
    %c2_130 = arith.constant 2 : index
    %c0_131 = arith.constant 0 : index
    %81 = vector.load %arg1[%c0_128, %c11_129, %c2_130, %c0_131] : memref<1x32x32x4xbf16, #tpu.memory_space<vmem>>, vector<1x1x30x4xbf16>
    %82 = vector.shape_cast %81 : vector<1x1x30x4xbf16> to vector<30x4xbf16>
    %83 = tpu.concatenate %78, %80, %82 in 1 : vector<30x4xbf16>, vector<30x4xbf16>, vector<30x4xbf16> -> vector<30x12xbf16>
    %c0_132 = arith.constant 0 : index
    %c12 = arith.constant 12 : index
    %c0_133 = arith.constant 0 : index
    %c0_134 = arith.constant 0 : index
    %84 = vector.load %arg1[%c0_132, %c12, %c0_133, %c0_134] : memref<1x32x32x4xbf16, #tpu.memory_space<vmem>>, vector<1x1x30x4xbf16>
    %85 = vector.shape_cast %84 : vector<1x1x30x4xbf16> to vector<30x4xbf16>
    %c0_135 = arith.constant 0 : index
    %c12_136 = arith.constant 12 : index
    %c1_137 = arith.constant 1 : index
    %c0_138 = arith.constant 0 : index
    %86 = vector.load %arg1[%c0_135, %c12_136, %c1_137, %c0_138] : memref<1x32x32x4xbf16, #tpu.memory_space<vmem>>, vector<1x1x30x4xbf16>
    %87 = vector.shape_cast %86 : vector<1x1x30x4xbf16> to vector<30x4xbf16>
    %c0_139 = arith.constant 0 : index
    %c12_140 = arith.constant 12 : index
    %c2_141 = arith.constant 2 : index
    %c0_142 = arith.constant 0 : index
    %88 = vector.load %arg1[%c0_139, %c12_140, %c2_141, %c0_142] : memref<1x32x32x4xbf16, #tpu.memory_space<vmem>>, vector<1x1x30x4xbf16>
    %89 = vector.shape_cast %88 : vector<1x1x30x4xbf16> to vector<30x4xbf16>
    %90 = tpu.concatenate %85, %87, %89 in 1 : vector<30x4xbf16>, vector<30x4xbf16>, vector<30x4xbf16> -> vector<30x12xbf16>
    %c0_143 = arith.constant 0 : index
    %c13 = arith.constant 13 : index
    %c0_144 = arith.constant 0 : index
    %c0_145 = arith.constant 0 : index
    %91 = vector.load %arg1[%c0_143, %c13, %c0_144, %c0_145] : memref<1x32x32x4xbf16, #tpu.memory_space<vmem>>, vector<1x1x30x4xbf16>
    %92 = vector.shape_cast %91 : vector<1x1x30x4xbf16> to vector<30x4xbf16>
    %c0_146 = arith.constant 0 : index
    %c13_147 = arith.constant 13 : index
    %c1_148 = arith.constant 1 : index
    %c0_149 = arith.constant 0 : index
    %93 = vector.load %arg1[%c0_146, %c13_147, %c1_148, %c0_149] : memref<1x32x32x4xbf16, #tpu.memory_space<vmem>>, vector<1x1x30x4xbf16>
    %94 = vector.shape_cast %93 : vector<1x1x30x4xbf16> to vector<30x4xbf16>
    %c0_150 = arith.constant 0 : index
    %c13_151 = arith.constant 13 : index
    %c2_152 = arith.constant 2 : index
    %c0_153 = arith.constant 0 : index
    %95 = vector.load %arg1[%c0_150, %c13_151, %c2_152, %c0_153] : memref<1x32x32x4xbf16, #tpu.memory_space<vmem>>, vector<1x1x30x4xbf16>
    %96 = vector.shape_cast %95 : vector<1x1x30x4xbf16> to vector<30x4xbf16>
    %97 = tpu.concatenate %92, %94, %96 in 1 : vector<30x4xbf16>, vector<30x4xbf16>, vector<30x4xbf16> -> vector<30x12xbf16>
    %c0_154 = arith.constant 0 : index
    %c14 = arith.constant 14 : index
    %c0_155 = arith.constant 0 : index
    %c0_156 = arith.constant 0 : index
    %98 = vector.load %arg1[%c0_154, %c14, %c0_155, %c0_156] : memref<1x32x32x4xbf16, #tpu.memory_space<vmem>>, vector<1x1x30x4xbf16>
    %99 = vector.shape_cast %98 : vector<1x1x30x4xbf16> to vector<30x4xbf16>
    %c0_157 = arith.constant 0 : index
    %c14_158 = arith.constant 14 : index
    %c1_159 = arith.constant 1 : index
    %c0_160 = arith.constant 0 : index
    %100 = vector.load %arg1[%c0_157, %c14_158, %c1_159, %c0_160] : memref<1x32x32x4xbf16, #tpu.memory_space<vmem>>, vector<1x1x30x4xbf16>
    %101 = vector.shape_cast %100 : vector<1x1x30x4xbf16> to vector<30x4xbf16>
    %c0_161 = arith.constant 0 : index
    %c14_162 = arith.constant 14 : index
    %c2_163 = arith.constant 2 : index
    %c0_164 = arith.constant 0 : index
    %102 = vector.load %arg1[%c0_161, %c14_162, %c2_163, %c0_164] : memref<1x32x32x4xbf16, #tpu.memory_space<vmem>>, vector<1x1x30x4xbf16>
    %103 = vector.shape_cast %102 : vector<1x1x30x4xbf16> to vector<30x4xbf16>
    %104 = tpu.concatenate %99, %101, %103 in 1 : vector<30x4xbf16>, vector<30x4xbf16>, vector<30x4xbf16> -> vector<30x12xbf16>
    %c0_165 = arith.constant 0 : index
    %c15 = arith.constant 15 : index
    %c0_166 = arith.constant 0 : index
    %c0_167 = arith.constant 0 : index
    %105 = vector.load %arg1[%c0_165, %c15, %c0_166, %c0_167] : memref<1x32x32x4xbf16, #tpu.memory_space<vmem>>, vector<1x1x30x4xbf16>
    %106 = vector.shape_cast %105 : vector<1x1x30x4xbf16> to vector<30x4xbf16>
    %c0_168 = arith.constant 0 : index
    %c15_169 = arith.constant 15 : index
    %c1_170 = arith.constant 1 : index
    %c0_171 = arith.constant 0 : index
    %107 = vector.load %arg1[%c0_168, %c15_169, %c1_170, %c0_171] : memref<1x32x32x4xbf16, #tpu.memory_space<vmem>>, vector<1x1x30x4xbf16>
    %108 = vector.shape_cast %107 : vector<1x1x30x4xbf16> to vector<30x4xbf16>
    %c0_172 = arith.constant 0 : index
    %c15_173 = arith.constant 15 : index
    %c2_174 = arith.constant 2 : index
    %c0_175 = arith.constant 0 : index
    %109 = vector.load %arg1[%c0_172, %c15_173, %c2_174, %c0_175] : memref<1x32x32x4xbf16, #tpu.memory_space<vmem>>, vector<1x1x30x4xbf16>
    %110 = vector.shape_cast %109 : vector<1x1x30x4xbf16> to vector<30x4xbf16>
    %111 = tpu.concatenate %106, %108, %110 in 1 : vector<30x4xbf16>, vector<30x4xbf16>, vector<30x4xbf16> -> vector<30x12xbf16>
    %c0_176 = arith.constant 0 : index
    %c16 = arith.constant 16 : index
    %c0_177 = arith.constant 0 : index
    %c0_178 = arith.constant 0 : index
    %112 = vector.load %arg1[%c0_176, %c16, %c0_177, %c0_178] : memref<1x32x32x4xbf16, #tpu.memory_space<vmem>>, vector<1x1x30x4xbf16>
    %113 = vector.shape_cast %112 : vector<1x1x30x4xbf16> to vector<30x4xbf16>
    %c0_179 = arith.constant 0 : index
    %c16_180 = arith.constant 16 : index
    %c1_181 = arith.constant 1 : index
    %c0_182 = arith.constant 0 : index
    %114 = vector.load %arg1[%c0_179, %c16_180, %c1_181, %c0_182] : memref<1x32x32x4xbf16, #tpu.memory_space<vmem>>, vector<1x1x30x4xbf16>
    %115 = vector.shape_cast %114 : vector<1x1x30x4xbf16> to vector<30x4xbf16>
    %c0_183 = arith.constant 0 : index
    %c16_184 = arith.constant 16 : index
    %c2_185 = arith.constant 2 : index
    %c0_186 = arith.constant 0 : index
    %116 = vector.load %arg1[%c0_183, %c16_184, %c2_185, %c0_186] : memref<1x32x32x4xbf16, #tpu.memory_space<vmem>>, vector<1x1x30x4xbf16>
    %117 = vector.shape_cast %116 : vector<1x1x30x4xbf16> to vector<30x4xbf16>
    %118 = tpu.concatenate %113, %115, %117 in 1 : vector<30x4xbf16>, vector<30x4xbf16>, vector<30x4xbf16> -> vector<30x12xbf16>
    %c0_187 = arith.constant 0 : index
    %c17 = arith.constant 17 : index
    %c0_188 = arith.constant 0 : index
    %c0_189 = arith.constant 0 : index
    %119 = vector.load %arg1[%c0_187, %c17, %c0_188, %c0_189] : memref<1x32x32x4xbf16, #tpu.memory_space<vmem>>, vector<1x1x30x4xbf16>
    %120 = vector.shape_cast %119 : vector<1x1x30x4xbf16> to vector<30x4xbf16>
    %c0_190 = arith.constant 0 : index
    %c17_191 = arith.constant 17 : index
    %c1_192 = arith.constant 1 : index
    %c0_193 = arith.constant 0 : index
    %121 = vector.load %arg1[%c0_190, %c17_191, %c1_192, %c0_193] : memref<1x32x32x4xbf16, #tpu.memory_space<vmem>>, vector<1x1x30x4xbf16>
    %122 = vector.shape_cast %121 : vector<1x1x30x4xbf16> to vector<30x4xbf16>
    %c0_194 = arith.constant 0 : index
    %c17_195 = arith.constant 17 : index
    %c2_196 = arith.constant 2 : index
    %c0_197 = arith.constant 0 : index
    %123 = vector.load %arg1[%c0_194, %c17_195, %c2_196, %c0_197] : memref<1x32x32x4xbf16, #tpu.memory_space<vmem>>, vector<1x1x30x4xbf16>
    %124 = vector.shape_cast %123 : vector<1x1x30x4xbf16> to vector<30x4xbf16>
    %125 = tpu.concatenate %120, %122, %124 in 1 : vector<30x4xbf16>, vector<30x4xbf16>, vector<30x4xbf16> -> vector<30x12xbf16>
    %c0_198 = arith.constant 0 : index
    %c18 = arith.constant 18 : index
    %c0_199 = arith.constant 0 : index
    %c0_200 = arith.constant 0 : index
    %126 = vector.load %arg1[%c0_198, %c18, %c0_199, %c0_200] : memref<1x32x32x4xbf16, #tpu.memory_space<vmem>>, vector<1x1x30x4xbf16>
    %127 = vector.shape_cast %126 : vector<1x1x30x4xbf16> to vector<30x4xbf16>
    %c0_201 = arith.constant 0 : index
    %c18_202 = arith.constant 18 : index
    %c1_203 = arith.constant 1 : index
    %c0_204 = arith.constant 0 : index
    %128 = vector.load %arg1[%c0_201, %c18_202, %c1_203, %c0_204] : memref<1x32x32x4xbf16, #tpu.memory_space<vmem>>, vector<1x1x30x4xbf16>
    %129 = vector.shape_cast %128 : vector<1x1x30x4xbf16> to vector<30x4xbf16>
    %c0_205 = arith.constant 0 : index
    %c18_206 = arith.constant 18 : index
    %c2_207 = arith.constant 2 : index
    %c0_208 = arith.constant 0 : index
    %130 = vector.load %arg1[%c0_205, %c18_206, %c2_207, %c0_208] : memref<1x32x32x4xbf16, #tpu.memory_space<vmem>>, vector<1x1x30x4xbf16>
    %131 = vector.shape_cast %130 : vector<1x1x30x4xbf16> to vector<30x4xbf16>
    %132 = tpu.concatenate %127, %129, %131 in 1 : vector<30x4xbf16>, vector<30x4xbf16>, vector<30x4xbf16> -> vector<30x12xbf16>
    %c0_209 = arith.constant 0 : index
    %c19 = arith.constant 19 : index
    %c0_210 = arith.constant 0 : index
    %c0_211 = arith.constant 0 : index
    %133 = vector.load %arg1[%c0_209, %c19, %c0_210, %c0_211] : memref<1x32x32x4xbf16, #tpu.memory_space<vmem>>, vector<1x1x30x4xbf16>
    %134 = vector.shape_cast %133 : vector<1x1x30x4xbf16> to vector<30x4xbf16>
    %c0_212 = arith.constant 0 : index
    %c19_213 = arith.constant 19 : index
    %c1_214 = arith.constant 1 : index
    %c0_215 = arith.constant 0 : index
    %135 = vector.load %arg1[%c0_212, %c19_213, %c1_214, %c0_215] : memref<1x32x32x4xbf16, #tpu.memory_space<vmem>>, vector<1x1x30x4xbf16>
    %136 = vector.shape_cast %135 : vector<1x1x30x4xbf16> to vector<30x4xbf16>
    %c0_216 = arith.constant 0 : index
    %c19_217 = arith.constant 19 : index
    %c2_218 = arith.constant 2 : index
    %c0_219 = arith.constant 0 : index
    %137 = vector.load %arg1[%c0_216, %c19_217, %c2_218, %c0_219] : memref<1x32x32x4xbf16, #tpu.memory_space<vmem>>, vector<1x1x30x4xbf16>
    %138 = vector.shape_cast %137 : vector<1x1x30x4xbf16> to vector<30x4xbf16>
    %139 = tpu.concatenate %134, %136, %138 in 1 : vector<30x4xbf16>, vector<30x4xbf16>, vector<30x4xbf16> -> vector<30x12xbf16>
    %c0_220 = arith.constant 0 : index
    %c20 = arith.constant 20 : index
    %c0_221 = arith.constant 0 : index
    %c0_222 = arith.constant 0 : index
    %140 = vector.load %arg1[%c0_220, %c20, %c0_221, %c0_222] : memref<1x32x32x4xbf16, #tpu.memory_space<vmem>>, vector<1x1x30x4xbf16>
    %141 = vector.shape_cast %140 : vector<1x1x30x4xbf16> to vector<30x4xbf16>
    %c0_223 = arith.constant 0 : index
    %c20_224 = arith.constant 20 : index
    %c1_225 = arith.constant 1 : index
    %c0_226 = arith.constant 0 : index
    %142 = vector.load %arg1[%c0_223, %c20_224, %c1_225, %c0_226] : memref<1x32x32x4xbf16, #tpu.memory_space<vmem>>, vector<1x1x30x4xbf16>
    %143 = vector.shape_cast %142 : vector<1x1x30x4xbf16> to vector<30x4xbf16>
    %c0_227 = arith.constant 0 : index
    %c20_228 = arith.constant 20 : index
    %c2_229 = arith.constant 2 : index
    %c0_230 = arith.constant 0 : index
    %144 = vector.load %arg1[%c0_227, %c20_228, %c2_229, %c0_230] : memref<1x32x32x4xbf16, #tpu.memory_space<vmem>>, vector<1x1x30x4xbf16>
    %145 = vector.shape_cast %144 : vector<1x1x30x4xbf16> to vector<30x4xbf16>
    %146 = tpu.concatenate %141, %143, %145 in 1 : vector<30x4xbf16>, vector<30x4xbf16>, vector<30x4xbf16> -> vector<30x12xbf16>
    %c0_231 = arith.constant 0 : index
    %c21 = arith.constant 21 : index
    %c0_232 = arith.constant 0 : index
    %c0_233 = arith.constant 0 : index
    %147 = vector.load %arg1[%c0_231, %c21, %c0_232, %c0_233] : memref<1x32x32x4xbf16, #tpu.memory_space<vmem>>, vector<1x1x30x4xbf16>
    %148 = vector.shape_cast %147 : vector<1x1x30x4xbf16> to vector<30x4xbf16>
    %c0_234 = arith.constant 0 : index
    %c21_235 = arith.constant 21 : index
    %c1_236 = arith.constant 1 : index
    %c0_237 = arith.constant 0 : index
    %149 = vector.load %arg1[%c0_234, %c21_235, %c1_236, %c0_237] : memref<1x32x32x4xbf16, #tpu.memory_space<vmem>>, vector<1x1x30x4xbf16>
    %150 = vector.shape_cast %149 : vector<1x1x30x4xbf16> to vector<30x4xbf16>
    %c0_238 = arith.constant 0 : index
    %c21_239 = arith.constant 21 : index
    %c2_240 = arith.constant 2 : index
    %c0_241 = arith.constant 0 : index
    %151 = vector.load %arg1[%c0_238, %c21_239, %c2_240, %c0_241] : memref<1x32x32x4xbf16, #tpu.memory_space<vmem>>, vector<1x1x30x4xbf16>
    %152 = vector.shape_cast %151 : vector<1x1x30x4xbf16> to vector<30x4xbf16>
    %153 = tpu.concatenate %148, %150, %152 in 1 : vector<30x4xbf16>, vector<30x4xbf16>, vector<30x4xbf16> -> vector<30x12xbf16>
    %c0_242 = arith.constant 0 : index
    %c22 = arith.constant 22 : index
    %c0_243 = arith.constant 0 : index
    %c0_244 = arith.constant 0 : index
    %154 = vector.load %arg1[%c0_242, %c22, %c0_243, %c0_244] : memref<1x32x32x4xbf16, #tpu.memory_space<vmem>>, vector<1x1x30x4xbf16>
    %155 = vector.shape_cast %154 : vector<1x1x30x4xbf16> to vector<30x4xbf16>
    %c0_245 = arith.constant 0 : index
    %c22_246 = arith.constant 22 : index
    %c1_247 = arith.constant 1 : index
    %c0_248 = arith.constant 0 : index
    %156 = vector.load %arg1[%c0_245, %c22_246, %c1_247, %c0_248] : memref<1x32x32x4xbf16, #tpu.memory_space<vmem>>, vector<1x1x30x4xbf16>
    %157 = vector.shape_cast %156 : vector<1x1x30x4xbf16> to vector<30x4xbf16>
    %c0_249 = arith.constant 0 : index
    %c22_250 = arith.constant 22 : index
    %c2_251 = arith.constant 2 : index
    %c0_252 = arith.constant 0 : index
    %158 = vector.load %arg1[%c0_249, %c22_250, %c2_251, %c0_252] : memref<1x32x32x4xbf16, #tpu.memory_space<vmem>>, vector<1x1x30x4xbf16>
    %159 = vector.shape_cast %158 : vector<1x1x30x4xbf16> to vector<30x4xbf16>
    %160 = tpu.concatenate %155, %157, %159 in 1 : vector<30x4xbf16>, vector<30x4xbf16>, vector<30x4xbf16> -> vector<30x12xbf16>
    %c0_253 = arith.constant 0 : index
    %c23 = arith.constant 23 : index
    %c0_254 = arith.constant 0 : index
    %c0_255 = arith.constant 0 : index
    %161 = vector.load %arg1[%c0_253, %c23, %c0_254, %c0_255] : memref<1x32x32x4xbf16, #tpu.memory_space<vmem>>, vector<1x1x30x4xbf16>
    %162 = vector.shape_cast %161 : vector<1x1x30x4xbf16> to vector<30x4xbf16>
    %c0_256 = arith.constant 0 : index
    %c23_257 = arith.constant 23 : index
    %c1_258 = arith.constant 1 : index
    %c0_259 = arith.constant 0 : index
    %163 = vector.load %arg1[%c0_256, %c23_257, %c1_258, %c0_259] : memref<1x32x32x4xbf16, #tpu.memory_space<vmem>>, vector<1x1x30x4xbf16>
    %164 = vector.shape_cast %163 : vector<1x1x30x4xbf16> to vector<30x4xbf16>
    %c0_260 = arith.constant 0 : index
    %c23_261 = arith.constant 23 : index
    %c2_262 = arith.constant 2 : index
    %c0_263 = arith.constant 0 : index
    %165 = vector.load %arg1[%c0_260, %c23_261, %c2_262, %c0_263] : memref<1x32x32x4xbf16, #tpu.memory_space<vmem>>, vector<1x1x30x4xbf16>
    %166 = vector.shape_cast %165 : vector<1x1x30x4xbf16> to vector<30x4xbf16>
    %167 = tpu.concatenate %162, %164, %166 in 1 : vector<30x4xbf16>, vector<30x4xbf16>, vector<30x4xbf16> -> vector<30x12xbf16>
    %c0_264 = arith.constant 0 : index
    %c24 = arith.constant 24 : index
    %c0_265 = arith.constant 0 : index
    %c0_266 = arith.constant 0 : index
    %168 = vector.load %arg1[%c0_264, %c24, %c0_265, %c0_266] : memref<1x32x32x4xbf16, #tpu.memory_space<vmem>>, vector<1x1x30x4xbf16>
    %169 = vector.shape_cast %168 : vector<1x1x30x4xbf16> to vector<30x4xbf16>
    %c0_267 = arith.constant 0 : index
    %c24_268 = arith.constant 24 : index
    %c1_269 = arith.constant 1 : index
    %c0_270 = arith.constant 0 : index
    %170 = vector.load %arg1[%c0_267, %c24_268, %c1_269, %c0_270] : memref<1x32x32x4xbf16, #tpu.memory_space<vmem>>, vector<1x1x30x4xbf16>
    %171 = vector.shape_cast %170 : vector<1x1x30x4xbf16> to vector<30x4xbf16>
    %c0_271 = arith.constant 0 : index
    %c24_272 = arith.constant 24 : index
    %c2_273 = arith.constant 2 : index
    %c0_274 = arith.constant 0 : index
    %172 = vector.load %arg1[%c0_271, %c24_272, %c2_273, %c0_274] : memref<1x32x32x4xbf16, #tpu.memory_space<vmem>>, vector<1x1x30x4xbf16>
    %173 = vector.shape_cast %172 : vector<1x1x30x4xbf16> to vector<30x4xbf16>
    %174 = tpu.concatenate %169, %171, %173 in 1 : vector<30x4xbf16>, vector<30x4xbf16>, vector<30x4xbf16> -> vector<30x12xbf16>
    %c0_275 = arith.constant 0 : index
    %c25 = arith.constant 25 : index
    %c0_276 = arith.constant 0 : index
    %c0_277 = arith.constant 0 : index
    %175 = vector.load %arg1[%c0_275, %c25, %c0_276, %c0_277] : memref<1x32x32x4xbf16, #tpu.memory_space<vmem>>, vector<1x1x30x4xbf16>
    %176 = vector.shape_cast %175 : vector<1x1x30x4xbf16> to vector<30x4xbf16>
    %c0_278 = arith.constant 0 : index
    %c25_279 = arith.constant 25 : index
    %c1_280 = arith.constant 1 : index
    %c0_281 = arith.constant 0 : index
    %177 = vector.load %arg1[%c0_278, %c25_279, %c1_280, %c0_281] : memref<1x32x32x4xbf16, #tpu.memory_space<vmem>>, vector<1x1x30x4xbf16>
    %178 = vector.shape_cast %177 : vector<1x1x30x4xbf16> to vector<30x4xbf16>
    %c0_282 = arith.constant 0 : index
    %c25_283 = arith.constant 25 : index
    %c2_284 = arith.constant 2 : index
    %c0_285 = arith.constant 0 : index
    %179 = vector.load %arg1[%c0_282, %c25_283, %c2_284, %c0_285] : memref<1x32x32x4xbf16, #tpu.memory_space<vmem>>, vector<1x1x30x4xbf16>
    %180 = vector.shape_cast %179 : vector<1x1x30x4xbf16> to vector<30x4xbf16>
    %181 = tpu.concatenate %176, %178, %180 in 1 : vector<30x4xbf16>, vector<30x4xbf16>, vector<30x4xbf16> -> vector<30x12xbf16>
    %c0_286 = arith.constant 0 : index
    %c26 = arith.constant 26 : index
    %c0_287 = arith.constant 0 : index
    %c0_288 = arith.constant 0 : index
    %182 = vector.load %arg1[%c0_286, %c26, %c0_287, %c0_288] : memref<1x32x32x4xbf16, #tpu.memory_space<vmem>>, vector<1x1x30x4xbf16>
    %183 = vector.shape_cast %182 : vector<1x1x30x4xbf16> to vector<30x4xbf16>
    %c0_289 = arith.constant 0 : index
    %c26_290 = arith.constant 26 : index
    %c1_291 = arith.constant 1 : index
    %c0_292 = arith.constant 0 : index
    %184 = vector.load %arg1[%c0_289, %c26_290, %c1_291, %c0_292] : memref<1x32x32x4xbf16, #tpu.memory_space<vmem>>, vector<1x1x30x4xbf16>
    %185 = vector.shape_cast %184 : vector<1x1x30x4xbf16> to vector<30x4xbf16>
    %c0_293 = arith.constant 0 : index
    %c26_294 = arith.constant 26 : index
    %c2_295 = arith.constant 2 : index
    %c0_296 = arith.constant 0 : index
    %186 = vector.load %arg1[%c0_293, %c26_294, %c2_295, %c0_296] : memref<1x32x32x4xbf16, #tpu.memory_space<vmem>>, vector<1x1x30x4xbf16>
    %187 = vector.shape_cast %186 : vector<1x1x30x4xbf16> to vector<30x4xbf16>
    %188 = tpu.concatenate %183, %185, %187 in 1 : vector<30x4xbf16>, vector<30x4xbf16>, vector<30x4xbf16> -> vector<30x12xbf16>
    %c0_297 = arith.constant 0 : index
    %c27 = arith.constant 27 : index
    %c0_298 = arith.constant 0 : index
    %c0_299 = arith.constant 0 : index
    %189 = vector.load %arg1[%c0_297, %c27, %c0_298, %c0_299] : memref<1x32x32x4xbf16, #tpu.memory_space<vmem>>, vector<1x1x30x4xbf16>
    %190 = vector.shape_cast %189 : vector<1x1x30x4xbf16> to vector<30x4xbf16>
    %c0_300 = arith.constant 0 : index
    %c27_301 = arith.constant 27 : index
    %c1_302 = arith.constant 1 : index
    %c0_303 = arith.constant 0 : index
    %191 = vector.load %arg1[%c0_300, %c27_301, %c1_302, %c0_303] : memref<1x32x32x4xbf16, #tpu.memory_space<vmem>>, vector<1x1x30x4xbf16>
    %192 = vector.shape_cast %191 : vector<1x1x30x4xbf16> to vector<30x4xbf16>
    %c0_304 = arith.constant 0 : index
    %c27_305 = arith.constant 27 : index
    %c2_306 = arith.constant 2 : index
    %c0_307 = arith.constant 0 : index
    %193 = vector.load %arg1[%c0_304, %c27_305, %c2_306, %c0_307] : memref<1x32x32x4xbf16, #tpu.memory_space<vmem>>, vector<1x1x30x4xbf16>
    %194 = vector.shape_cast %193 : vector<1x1x30x4xbf16> to vector<30x4xbf16>
    %195 = tpu.concatenate %190, %192, %194 in 1 : vector<30x4xbf16>, vector<30x4xbf16>, vector<30x4xbf16> -> vector<30x12xbf16>
    %c0_308 = arith.constant 0 : index
    %c28 = arith.constant 28 : index
    %c0_309 = arith.constant 0 : index
    %c0_310 = arith.constant 0 : index
    %196 = vector.load %arg1[%c0_308, %c28, %c0_309, %c0_310] : memref<1x32x32x4xbf16, #tpu.memory_space<vmem>>, vector<1x1x30x4xbf16>
    %197 = vector.shape_cast %196 : vector<1x1x30x4xbf16> to vector<30x4xbf16>
    %c0_311 = arith.constant 0 : index
    %c28_312 = arith.constant 28 : index
    %c1_313 = arith.constant 1 : index
    %c0_314 = arith.constant 0 : index
    %198 = vector.load %arg1[%c0_311, %c28_312, %c1_313, %c0_314] : memref<1x32x32x4xbf16, #tpu.memory_space<vmem>>, vector<1x1x30x4xbf16>
    %199 = vector.shape_cast %198 : vector<1x1x30x4xbf16> to vector<30x4xbf16>
    %c0_315 = arith.constant 0 : index
    %c28_316 = arith.constant 28 : index
    %c2_317 = arith.constant 2 : index
    %c0_318 = arith.constant 0 : index
    %200 = vector.load %arg1[%c0_315, %c28_316, %c2_317, %c0_318] : memref<1x32x32x4xbf16, #tpu.memory_space<vmem>>, vector<1x1x30x4xbf16>
    %201 = vector.shape_cast %200 : vector<1x1x30x4xbf16> to vector<30x4xbf16>
    %202 = tpu.concatenate %197, %199, %201 in 1 : vector<30x4xbf16>, vector<30x4xbf16>, vector<30x4xbf16> -> vector<30x12xbf16>
    %c0_319 = arith.constant 0 : index
    %c29 = arith.constant 29 : index
    %c0_320 = arith.constant 0 : index
    %c0_321 = arith.constant 0 : index
    %203 = vector.load %arg1[%c0_319, %c29, %c0_320, %c0_321] : memref<1x32x32x4xbf16, #tpu.memory_space<vmem>>, vector<1x1x30x4xbf16>
    %204 = vector.shape_cast %203 : vector<1x1x30x4xbf16> to vector<30x4xbf16>
    %c0_322 = arith.constant 0 : index
    %c29_323 = arith.constant 29 : index
    %c1_324 = arith.constant 1 : index
    %c0_325 = arith.constant 0 : index
    %205 = vector.load %arg1[%c0_322, %c29_323, %c1_324, %c0_325] : memref<1x32x32x4xbf16, #tpu.memory_space<vmem>>, vector<1x1x30x4xbf16>
    %206 = vector.shape_cast %205 : vector<1x1x30x4xbf16> to vector<30x4xbf16>
    %c0_326 = arith.constant 0 : index
    %c29_327 = arith.constant 29 : index
    %c2_328 = arith.constant 2 : index
    %c0_329 = arith.constant 0 : index
    %207 = vector.load %arg1[%c0_326, %c29_327, %c2_328, %c0_329] : memref<1x32x32x4xbf16, #tpu.memory_space<vmem>>, vector<1x1x30x4xbf16>
    %208 = vector.shape_cast %207 : vector<1x1x30x4xbf16> to vector<30x4xbf16>
    %209 = tpu.concatenate %204, %206, %208 in 1 : vector<30x4xbf16>, vector<30x4xbf16>, vector<30x4xbf16> -> vector<30x12xbf16>
    %c0_330 = arith.constant 0 : index
    %c30 = arith.constant 30 : index
    %c0_331 = arith.constant 0 : index
    %c0_332 = arith.constant 0 : index
    %210 = vector.load %arg1[%c0_330, %c30, %c0_331, %c0_332] : memref<1x32x32x4xbf16, #tpu.memory_space<vmem>>, vector<1x1x30x4xbf16>
    %211 = vector.shape_cast %210 : vector<1x1x30x4xbf16> to vector<30x4xbf16>
    %c0_333 = arith.constant 0 : index
    %c30_334 = arith.constant 30 : index
    %c1_335 = arith.constant 1 : index
    %c0_336 = arith.constant 0 : index
    %212 = vector.load %arg1[%c0_333, %c30_334, %c1_335, %c0_336] : memref<1x32x32x4xbf16, #tpu.memory_space<vmem>>, vector<1x1x30x4xbf16>
    %213 = vector.shape_cast %212 : vector<1x1x30x4xbf16> to vector<30x4xbf16>
    %c0_337 = arith.constant 0 : index
    %c30_338 = arith.constant 30 : index
    %c2_339 = arith.constant 2 : index
    %c0_340 = arith.constant 0 : index
    %214 = vector.load %arg1[%c0_337, %c30_338, %c2_339, %c0_340] : memref<1x32x32x4xbf16, #tpu.memory_space<vmem>>, vector<1x1x30x4xbf16>
    %215 = vector.shape_cast %214 : vector<1x1x30x4xbf16> to vector<30x4xbf16>
    %216 = tpu.concatenate %211, %213, %215 in 1 : vector<30x4xbf16>, vector<30x4xbf16>, vector<30x4xbf16> -> vector<30x12xbf16>
    %c0_341 = arith.constant 0 : index
    %c31 = arith.constant 31 : index
    %c0_342 = arith.constant 0 : index
    %c0_343 = arith.constant 0 : index
    %217 = vector.load %arg1[%c0_341, %c31, %c0_342, %c0_343] : memref<1x32x32x4xbf16, #tpu.memory_space<vmem>>, vector<1x1x30x4xbf16>
    %218 = vector.shape_cast %217 : vector<1x1x30x4xbf16> to vector<30x4xbf16>
    %c0_344 = arith.constant 0 : index
    %c31_345 = arith.constant 31 : index
    %c1_346 = arith.constant 1 : index
    %c0_347 = arith.constant 0 : index
    %219 = vector.load %arg1[%c0_344, %c31_345, %c1_346, %c0_347] : memref<1x32x32x4xbf16, #tpu.memory_space<vmem>>, vector<1x1x30x4xbf16>
    %220 = vector.shape_cast %219 : vector<1x1x30x4xbf16> to vector<30x4xbf16>
    %c0_348 = arith.constant 0 : index
    %c31_349 = arith.constant 31 : index
    %c2_350 = arith.constant 2 : index
    %c0_351 = arith.constant 0 : index
    %221 = vector.load %arg1[%c0_348, %c31_349, %c2_350, %c0_351] : memref<1x32x32x4xbf16, #tpu.memory_space<vmem>>, vector<1x1x30x4xbf16>
    %222 = vector.shape_cast %221 : vector<1x1x30x4xbf16> to vector<30x4xbf16>
    %223 = tpu.concatenate %218, %220, %222 in 1 : vector<30x4xbf16>, vector<30x4xbf16>, vector<30x4xbf16> -> vector<30x12xbf16>
    %224 = tpu.concatenate %6, %13, %20 in 1 : vector<30x12xbf16>, vector<30x12xbf16>, vector<30x12xbf16> -> vector<30x36xbf16>
    %c0_352 = arith.constant 0 : index
    %c0_353 = arith.constant 0 : index
    %225 = vector.load %arg2[%c0_352, %c0_353] : memref<36x64xbf16, #tpu.memory_space<vmem>>, vector<36x64xbf16>
    %cst = arith.constant dense<0.000000e+00> : vector<30x64xf32>
    %226 = tpu.matmul %224, %225, %cst {dimension_numbers = #tpu.dot_dimension_numbers<[1], [0], [0], [1], [0, 0, 1, 1], [], []>} : vector<30x36xbf16>, vector<36x64xbf16>, vector<30x64xf32> -> vector<30x64xf32>
    %227 = tpu.concatenate %13, %20, %27 in 1 : vector<30x12xbf16>, vector<30x12xbf16>, vector<30x12xbf16> -> vector<30x36xbf16>
    %c0_354 = arith.constant 0 : index
    %c0_355 = arith.constant 0 : index
    %228 = vector.load %arg2[%c0_354, %c0_355] : memref<36x64xbf16, #tpu.memory_space<vmem>>, vector<36x64xbf16>
    %cst_356 = arith.constant dense<0.000000e+00> : vector<30x64xf32>
    %229 = tpu.matmul %227, %228, %cst_356 {dimension_numbers = #tpu.dot_dimension_numbers<[1], [0], [0], [1], [0, 0, 1, 1], [], []>} : vector<30x36xbf16>, vector<36x64xbf16>, vector<30x64xf32> -> vector<30x64xf32>
    %230 = arith.maximumf %226, %229 : vector<30x64xf32>
    %231 = tpu.concatenate %20, %27, %34 in 1 : vector<30x12xbf16>, vector<30x12xbf16>, vector<30x12xbf16> -> vector<30x36xbf16>
    %c0_357 = arith.constant 0 : index
    %c0_358 = arith.constant 0 : index
    %232 = vector.load %arg2[%c0_357, %c0_358] : memref<36x64xbf16, #tpu.memory_space<vmem>>, vector<36x64xbf16>
    %cst_359 = arith.constant dense<0.000000e+00> : vector<30x64xf32>
    %233 = tpu.matmul %231, %232, %cst_359 {dimension_numbers = #tpu.dot_dimension_numbers<[1], [0], [0], [1], [0, 0, 1, 1], [], []>} : vector<30x36xbf16>, vector<36x64xbf16>, vector<30x64xf32> -> vector<30x64xf32>
    %234 = arith.maximumf %230, %233 : vector<30x64xf32>
    %c0_360 = arith.constant 0 : index
    %c0_361 = arith.constant 0 : index
    %235 = vector.load %arg9[%c0_360, %c0_361] : memref<30x64xf32, #tpu.memory_space<vmem>>, vector<30x64xf32>
    tpu.vector_store %arg9[%c0_360, %c0_361], %234 {strides = array<i32>} : memref<30x64xf32, #tpu.memory_space<vmem>>, vector<30x64xf32>,
    %c0_362 = arith.constant 0 : index
    %c0_363 = arith.constant 0 : index
    %236 = tpu.strided_load %arg9[%c0_362, %c0_363] {strides = array<i32: 3, 1>} : memref<30x64xf32, #tpu.memory_space<vmem>>, vector<10x64xf32>
    %c1_364 = arith.constant 1 : index
    %c0_365 = arith.constant 0 : index
    %237 = tpu.strided_load %arg9[%c1_364, %c0_365] {strides = array<i32: 3, 1>} : memref<30x64xf32, #tpu.memory_space<vmem>>, vector<10x64xf32>
    %238 = arith.maximumf %236, %237 : vector<10x64xf32>
    %c2_366 = arith.constant 2 : index
    %c0_367 = arith.constant 0 : index
    %239 = tpu.strided_load %arg9[%c2_366, %c0_367] {strides = array<i32: 3, 1>} : memref<30x64xf32, #tpu.memory_space<vmem>>, vector<10x64xf32>
    %240 = arith.maximumf %238, %239 : vector<10x64xf32>
    %c0_368 = arith.constant 0 : index
    %c0_369 = arith.constant 0 : index
    %241 = vector.load %arg3[%c0_368, %c0_369] : memref<1x64xf32, #tpu.memory_space<vmem>>, vector<1x64xf32>
    %242 = vector.broadcast %241 : vector<1x64xf32> to vector<10x64xf32>
    %243 = arith.addf %240, %242 : vector<10x64xf32>
    %cst_370 = arith.constant 0.000000e+00 : f32
    %244 = vector.broadcast %cst_370 : f32 to vector<10x64xf32>
    %245 = arith.maximumf %243, %244 : vector<10x64xf32>
    %246 = arith.truncf %245 : vector<10x64xf32> to vector<10x64xbf16>
    %c0_371 = arith.constant 0 : index
    %c0_372 = arith.constant 0 : index
    %c0_373 = arith.constant 0 : index
    %247 = vector.load %arg10[%c0_371, %c0_372, %c0_373] : memref<10x10x64xbf16, #tpu.memory_space<vmem>>, vector<1x10x64xbf16>
    %248 = vector.shape_cast %247 : vector<1x10x64xbf16> to vector<10x64xbf16>
    %249 = vector.shape_cast %246 : vector<10x64xbf16> to vector<1x10x64xbf16>
    tpu.vector_store %arg10[%c0_371, %c0_372, %c0_373], %249 {strides = array<i32>} : memref<10x10x64xbf16, #tpu.memory_space<vmem>>, vector<1x10x64xbf16>,
    %250 = tpu.concatenate %27, %34, %41 in 1 : vector<30x12xbf16>, vector<30x12xbf16>, vector<30x12xbf16> -> vector<30x36xbf16>
    %c0_374 = arith.constant 0 : index
    %c0_375 = arith.constant 0 : index
    %251 = vector.load %arg2[%c0_374, %c0_375] : memref<36x64xbf16, #tpu.memory_space<vmem>>, vector<36x64xbf16>
    %cst_376 = arith.constant dense<0.000000e+00> : vector<30x64xf32>
    %252 = tpu.matmul %250, %251, %cst_376 {dimension_numbers = #tpu.dot_dimension_numbers<[1], [0], [0], [1], [0, 0, 1, 1], [], []>} : vector<30x36xbf16>, vector<36x64xbf16>, vector<30x64xf32> -> vector<30x64xf32>
    %253 = tpu.concatenate %34, %41, %48 in 1 : vector<30x12xbf16>, vector<30x12xbf16>, vector<30x12xbf16> -> vector<30x36xbf16>
    %c0_377 = arith.constant 0 : index
    %c0_378 = arith.constant 0 : index
    %254 = vector.load %arg2[%c0_377, %c0_378] : memref<36x64xbf16, #tpu.memory_space<vmem>>, vector<36x64xbf16>
    %cst_379 = arith.constant dense<0.000000e+00> : vector<30x64xf32>
    %255 = tpu.matmul %253, %254, %cst_379 {dimension_numbers = #tpu.dot_dimension_numbers<[1], [0], [0], [1], [0, 0, 1, 1], [], []>} : vector<30x36xbf16>, vector<36x64xbf16>, vector<30x64xf32> -> vector<30x64xf32>
    %256 = arith.maximumf %252, %255 : vector<30x64xf32>
    %257 = tpu.concatenate %41, %48, %55 in 1 : vector<30x12xbf16>, vector<30x12xbf16>, vector<30x12xbf16> -> vector<30x36xbf16>
    %c0_380 = arith.constant 0 : index
    %c0_381 = arith.constant 0 : index
    %258 = vector.load %arg2[%c0_380, %c0_381] : memref<36x64xbf16, #tpu.memory_space<vmem>>, vector<36x64xbf16>
    %cst_382 = arith.constant dense<0.000000e+00> : vector<30x64xf32>
    %259 = tpu.matmul %257, %258, %cst_382 {dimension_numbers = #tpu.dot_dimension_numbers<[1], [0], [0], [1], [0, 0, 1, 1], [], []>} : vector<30x36xbf16>, vector<36x64xbf16>, vector<30x64xf32> -> vector<30x64xf32>
    %260 = arith.maximumf %256, %259 : vector<30x64xf32>
    %c0_383 = arith.constant 0 : index
    %c0_384 = arith.constant 0 : index
    %261 = vector.load %arg9[%c0_383, %c0_384] : memref<30x64xf32, #tpu.memory_space<vmem>>, vector<30x64xf32>
    tpu.vector_store %arg9[%c0_383, %c0_384], %260 {strides = array<i32>} : memref<30x64xf32, #tpu.memory_space<vmem>>, vector<30x64xf32>,
    %c0_385 = arith.constant 0 : index
    %c0_386 = arith.constant 0 : index
    %262 = tpu.strided_load %arg9[%c0_385, %c0_386] {strides = array<i32: 3, 1>} : memref<30x64xf32, #tpu.memory_space<vmem>>, vector<10x64xf32>
    %c1_387 = arith.constant 1 : index
    %c0_388 = arith.constant 0 : index
    %263 = tpu.strided_load %arg9[%c1_387, %c0_388] {strides = array<i32: 3, 1>} : memref<30x64xf32, #tpu.memory_space<vmem>>, vector<10x64xf32>
    %264 = arith.maximumf %262, %263 : vector<10x64xf32>
    %c2_389 = arith.constant 2 : index
    %c0_390 = arith.constant 0 : index
    %265 = tpu.strided_load %arg9[%c2_389, %c0_390] {strides = array<i32: 3, 1>} : memref<30x64xf32, #tpu.memory_space<vmem>>, vector<10x64xf32>
    %266 = arith.maximumf %264, %265 : vector<10x64xf32>
    %c0_391 = arith.constant 0 : index
    %c0_392 = arith.constant 0 : index
    %267 = vector.load %arg3[%c0_391, %c0_392] : memref<1x64xf32, #tpu.memory_space<vmem>>, vector<1x64xf32>
    %268 = vector.broadcast %267 : vector<1x64xf32> to vector<10x64xf32>
    %269 = arith.addf %266, %268 : vector<10x64xf32>
    %cst_393 = arith.constant 0.000000e+00 : f32
    %270 = vector.broadcast %cst_393 : f32 to vector<10x64xf32>
    %271 = arith.maximumf %269, %270 : vector<10x64xf32>
    %272 = arith.truncf %271 : vector<10x64xf32> to vector<10x64xbf16>
    %c1_394 = arith.constant 1 : index
    %c0_395 = arith.constant 0 : index
    %c0_396 = arith.constant 0 : index
    %273 = vector.load %arg10[%c1_394, %c0_395, %c0_396] : memref<10x10x64xbf16, #tpu.memory_space<vmem>>, vector<1x10x64xbf16>
    %274 = vector.shape_cast %273 : vector<1x10x64xbf16> to vector<10x64xbf16>
    %275 = vector.shape_cast %272 : vector<10x64xbf16> to vector<1x10x64xbf16>
    tpu.vector_store %arg10[%c1_394, %c0_395, %c0_396], %275 {strides = array<i32>} : memref<10x10x64xbf16, #tpu.memory_space<vmem>>, vector<1x10x64xbf16>,
    %276 = tpu.concatenate %48, %55, %62 in 1 : vector<30x12xbf16>, vector<30x12xbf16>, vector<30x12xbf16> -> vector<30x36xbf16>
    %c0_397 = arith.constant 0 : index
    %c0_398 = arith.constant 0 : index
    %277 = vector.load %arg2[%c0_397, %c0_398] : memref<36x64xbf16, #tpu.memory_space<vmem>>, vector<36x64xbf16>
    %cst_399 = arith.constant dense<0.000000e+00> : vector<30x64xf32>
    %278 = tpu.matmul %276, %277, %cst_399 {dimension_numbers = #tpu.dot_dimension_numbers<[1], [0], [0], [1], [0, 0, 1, 1], [], []>} : vector<30x36xbf16>, vector<36x64xbf16>, vector<30x64xf32> -> vector<30x64xf32>
    %279 = tpu.concatenate %55, %62, %69 in 1 : vector<30x12xbf16>, vector<30x12xbf16>, vector<30x12xbf16> -> vector<30x36xbf16>
    %c0_400 = arith.constant 0 : index
    %c0_401 = arith.constant 0 : index
    %280 = vector.load %arg2[%c0_400, %c0_401] : memref<36x64xbf16, #tpu.memory_space<vmem>>, vector<36x64xbf16>
    %cst_402 = arith.constant dense<0.000000e+00> : vector<30x64xf32>
    %281 = tpu.matmul %279, %280, %cst_402 {dimension_numbers = #tpu.dot_dimension_numbers<[1], [0], [0], [1], [0, 0, 1, 1], [], []>} : vector<30x36xbf16>, vector<36x64xbf16>, vector<30x64xf32> -> vector<30x64xf32>
    %282 = arith.maximumf %278, %281 : vector<30x64xf32>
    %283 = tpu.concatenate %62, %69, %76 in 1 : vector<30x12xbf16>, vector<30x12xbf16>, vector<30x12xbf16> -> vector<30x36xbf16>
    %c0_403 = arith.constant 0 : index
    %c0_404 = arith.constant 0 : index
    %284 = vector.load %arg2[%c0_403, %c0_404] : memref<36x64xbf16, #tpu.memory_space<vmem>>, vector<36x64xbf16>
    %cst_405 = arith.constant dense<0.000000e+00> : vector<30x64xf32>
    %285 = tpu.matmul %283, %284, %cst_405 {dimension_numbers = #tpu.dot_dimension_numbers<[1], [0], [0], [1], [0, 0, 1, 1], [], []>} : vector<30x36xbf16>, vector<36x64xbf16>, vector<30x64xf32> -> vector<30x64xf32>
    %286 = arith.maximumf %282, %285 : vector<30x64xf32>
    %c0_406 = arith.constant 0 : index
    %c0_407 = arith.constant 0 : index
    %287 = vector.load %arg9[%c0_406, %c0_407] : memref<30x64xf32, #tpu.memory_space<vmem>>, vector<30x64xf32>
    tpu.vector_store %arg9[%c0_406, %c0_407], %286 {strides = array<i32>} : memref<30x64xf32, #tpu.memory_space<vmem>>, vector<30x64xf32>,
    %c0_408 = arith.constant 0 : index
    %c0_409 = arith.constant 0 : index
    %288 = tpu.strided_load %arg9[%c0_408, %c0_409] {strides = array<i32: 3, 1>} : memref<30x64xf32, #tpu.memory_space<vmem>>, vector<10x64xf32>
    %c1_410 = arith.constant 1 : index
    %c0_411 = arith.constant 0 : index
    %289 = tpu.strided_load %arg9[%c1_410, %c0_411] {strides = array<i32: 3, 1>} : memref<30x64xf32, #tpu.memory_space<vmem>>, vector<10x64xf32>
    %290 = arith.maximumf %288, %289 : vector<10x64xf32>
    %c2_412 = arith.constant 2 : index
    %c0_413 = arith.constant 0 : index
    %291 = tpu.strided_load %arg9[%c2_412, %c0_413] {strides = array<i32: 3, 1>} : memref<30x64xf32, #tpu.memory_space<vmem>>, vector<10x64xf32>
    %292 = arith.maximumf %290, %291 : vector<10x64xf32>
    %c0_414 = arith.constant 0 : index
    %c0_415 = arith.constant 0 : index
    %293 = vector.load %arg3[%c0_414, %c0_415] : memref<1x64xf32, #tpu.memory_space<vmem>>, vector<1x64xf32>
    %294 = vector.broadcast %293 : vector<1x64xf32> to vector<10x64xf32>
    %295 = arith.addf %292, %294 : vector<10x64xf32>
    %cst_416 = arith.constant 0.000000e+00 : f32
    %296 = vector.broadcast %cst_416 : f32 to vector<10x64xf32>
    %297 = arith.maximumf %295, %296 : vector<10x64xf32>
    %298 = arith.truncf %297 : vector<10x64xf32> to vector<10x64xbf16>
    %c2_417 = arith.constant 2 : index
    %c0_418 = arith.constant 0 : index
    %c0_419 = arith.constant 0 : index
    %299 = vector.load %arg10[%c2_417, %c0_418, %c0_419] : memref<10x10x64xbf16, #tpu.memory_space<vmem>>, vector<1x10x64xbf16>
    %300 = vector.shape_cast %299 : vector<1x10x64xbf16> to vector<10x64xbf16>
    %301 = vector.shape_cast %298 : vector<10x64xbf16> to vector<1x10x64xbf16>
    tpu.vector_store %arg10[%c2_417, %c0_418, %c0_419], %301 {strides = array<i32>} : memref<10x10x64xbf16, #tpu.memory_space<vmem>>, vector<1x10x64xbf16>,
    %302 = tpu.concatenate %69, %76, %83 in 1 : vector<30x12xbf16>, vector<30x12xbf16>, vector<30x12xbf16> -> vector<30x36xbf16>
    %c0_420 = arith.constant 0 : index
    %c0_421 = arith.constant 0 : index
    %303 = vector.load %arg2[%c0_420, %c0_421] : memref<36x64xbf16, #tpu.memory_space<vmem>>, vector<36x64xbf16>
    %cst_422 = arith.constant dense<0.000000e+00> : vector<30x64xf32>
    %304 = tpu.matmul %302, %303, %cst_422 {dimension_numbers = #tpu.dot_dimension_numbers<[1], [0], [0], [1], [0, 0, 1, 1], [], []>} : vector<30x36xbf16>, vector<36x64xbf16>, vector<30x64xf32> -> vector<30x64xf32>
    %305 = tpu.concatenate %76, %83, %90 in 1 : vector<30x12xbf16>, vector<30x12xbf16>, vector<30x12xbf16> -> vector<30x36xbf16>
    %c0_423 = arith.constant 0 : index
    %c0_424 = arith.constant 0 : index
    %306 = vector.load %arg2[%c0_423, %c0_424] : memref<36x64xbf16, #tpu.memory_space<vmem>>, vector<36x64xbf16>
    %cst_425 = arith.constant dense<0.000000e+00> : vector<30x64xf32>
    %307 = tpu.matmul %305, %306, %cst_425 {dimension_numbers = #tpu.dot_dimension_numbers<[1], [0], [0], [1], [0, 0, 1, 1], [], []>} : vector<30x36xbf16>, vector<36x64xbf16>, vector<30x64xf32> -> vector<30x64xf32>
    %308 = arith.maximumf %304, %307 : vector<30x64xf32>
    %309 = tpu.concatenate %83, %90, %97 in 1 : vector<30x12xbf16>, vector<30x12xbf16>, vector<30x12xbf16> -> vector<30x36xbf16>
    %c0_426 = arith.constant 0 : index
    %c0_427 = arith.constant 0 : index
    %310 = vector.load %arg2[%c0_426, %c0_427] : memref<36x64xbf16, #tpu.memory_space<vmem>>, vector<36x64xbf16>
    %cst_428 = arith.constant dense<0.000000e+00> : vector<30x64xf32>
    %311 = tpu.matmul %309, %310, %cst_428 {dimension_numbers = #tpu.dot_dimension_numbers<[1], [0], [0], [1], [0, 0, 1, 1], [], []>} : vector<30x36xbf16>, vector<36x64xbf16>, vector<30x64xf32> -> vector<30x64xf32>
    %312 = arith.maximumf %308, %311 : vector<30x64xf32>
    %c0_429 = arith.constant 0 : index
    %c0_430 = arith.constant 0 : index
    %313 = vector.load %arg9[%c0_429, %c0_430] : memref<30x64xf32, #tpu.memory_space<vmem>>, vector<30x64xf32>
    tpu.vector_store %arg9[%c0_429, %c0_430], %312 {strides = array<i32>} : memref<30x64xf32, #tpu.memory_space<vmem>>, vector<30x64xf32>,
    %c0_431 = arith.constant 0 : index
    %c0_432 = arith.constant 0 : index
    %314 = tpu.strided_load %arg9[%c0_431, %c0_432] {strides = array<i32: 3, 1>} : memref<30x64xf32, #tpu.memory_space<vmem>>, vector<10x64xf32>
    %c1_433 = arith.constant 1 : index
    %c0_434 = arith.constant 0 : index
    %315 = tpu.strided_load %arg9[%c1_433, %c0_434] {strides = array<i32: 3, 1>} : memref<30x64xf32, #tpu.memory_space<vmem>>, vector<10x64xf32>
    %316 = arith.maximumf %314, %315 : vector<10x64xf32>
    %c2_435 = arith.constant 2 : index
    %c0_436 = arith.constant 0 : index
    %317 = tpu.strided_load %arg9[%c2_435, %c0_436] {strides = array<i32: 3, 1>} : memref<30x64xf32, #tpu.memory_space<vmem>>, vector<10x64xf32>
    %318 = arith.maximumf %316, %317 : vector<10x64xf32>
    %c0_437 = arith.constant 0 : index
    %c0_438 = arith.constant 0 : index
    %319 = vector.load %arg3[%c0_437, %c0_438] : memref<1x64xf32, #tpu.memory_space<vmem>>, vector<1x64xf32>
    %320 = vector.broadcast %319 : vector<1x64xf32> to vector<10x64xf32>
    %321 = arith.addf %318, %320 : vector<10x64xf32>
    %cst_439 = arith.constant 0.000000e+00 : f32
    %322 = vector.broadcast %cst_439 : f32 to vector<10x64xf32>
    %323 = arith.maximumf %321, %322 : vector<10x64xf32>
    %324 = arith.truncf %323 : vector<10x64xf32> to vector<10x64xbf16>
    %c3_440 = arith.constant 3 : index
    %c0_441 = arith.constant 0 : index
    %c0_442 = arith.constant 0 : index
    %325 = vector.load %arg10[%c3_440, %c0_441, %c0_442] : memref<10x10x64xbf16, #tpu.memory_space<vmem>>, vector<1x10x64xbf16>
    %326 = vector.shape_cast %325 : vector<1x10x64xbf16> to vector<10x64xbf16>
    %327 = vector.shape_cast %324 : vector<10x64xbf16> to vector<1x10x64xbf16>
    tpu.vector_store %arg10[%c3_440, %c0_441, %c0_442], %327 {strides = array<i32>} : memref<10x10x64xbf16, #tpu.memory_space<vmem>>, vector<1x10x64xbf16>,
    %328 = tpu.concatenate %90, %97, %104 in 1 : vector<30x12xbf16>, vector<30x12xbf16>, vector<30x12xbf16> -> vector<30x36xbf16>
    %c0_443 = arith.constant 0 : index
    %c0_444 = arith.constant 0 : index
    %329 = vector.load %arg2[%c0_443, %c0_444] : memref<36x64xbf16, #tpu.memory_space<vmem>>, vector<36x64xbf16>
    %cst_445 = arith.constant dense<0.000000e+00> : vector<30x64xf32>
    %330 = tpu.matmul %328, %329, %cst_445 {dimension_numbers = #tpu.dot_dimension_numbers<[1], [0], [0], [1], [0, 0, 1, 1], [], []>} : vector<30x36xbf16>, vector<36x64xbf16>, vector<30x64xf32> -> vector<30x64xf32>
    %331 = tpu.concatenate %97, %104, %111 in 1 : vector<30x12xbf16>, vector<30x12xbf16>, vector<30x12xbf16> -> vector<30x36xbf16>
    %c0_446 = arith.constant 0 : index
    %c0_447 = arith.constant 0 : index
    %332 = vector.load %arg2[%c0_446, %c0_447] : memref<36x64xbf16, #tpu.memory_space<vmem>>, vector<36x64xbf16>
    %cst_448 = arith.constant dense<0.000000e+00> : vector<30x64xf32>
    %333 = tpu.matmul %331, %332, %cst_448 {dimension_numbers = #tpu.dot_dimension_numbers<[1], [0], [0], [1], [0, 0, 1, 1], [], []>} : vector<30x36xbf16>, vector<36x64xbf16>, vector<30x64xf32> -> vector<30x64xf32>
    %334 = arith.maximumf %330, %333 : vector<30x64xf32>
    %335 = tpu.concatenate %104, %111, %118 in 1 : vector<30x12xbf16>, vector<30x12xbf16>, vector<30x12xbf16> -> vector<30x36xbf16>
    %c0_449 = arith.constant 0 : index
    %c0_450 = arith.constant 0 : index
    %336 = vector.load %arg2[%c0_449, %c0_450] : memref<36x64xbf16, #tpu.memory_space<vmem>>, vector<36x64xbf16>
    %cst_451 = arith.constant dense<0.000000e+00> : vector<30x64xf32>
    %337 = tpu.matmul %335, %336, %cst_451 {dimension_numbers = #tpu.dot_dimension_numbers<[1], [0], [0], [1], [0, 0, 1, 1], [], []>} : vector<30x36xbf16>, vector<36x64xbf16>, vector<30x64xf32> -> vector<30x64xf32>
    %338 = arith.maximumf %334, %337 : vector<30x64xf32>
    %c0_452 = arith.constant 0 : index
    %c0_453 = arith.constant 0 : index
    %339 = vector.load %arg9[%c0_452, %c0_453] : memref<30x64xf32, #tpu.memory_space<vmem>>, vector<30x64xf32>
    tpu.vector_store %arg9[%c0_452, %c0_453], %338 {strides = array<i32>} : memref<30x64xf32, #tpu.memory_space<vmem>>, vector<30x64xf32>,
    %c0_454 = arith.constant 0 : index
    %c0_455 = arith.constant 0 : index
    %340 = tpu.strided_load %arg9[%c0_454, %c0_455] {strides = array<i32: 3, 1>} : memref<30x64xf32, #tpu.memory_space<vmem>>, vector<10x64xf32>
    %c1_456 = arith.constant 1 : index
    %c0_457 = arith.constant 0 : index
    %341 = tpu.strided_load %arg9[%c1_456, %c0_457] {strides = array<i32: 3, 1>} : memref<30x64xf32, #tpu.memory_space<vmem>>, vector<10x64xf32>
    %342 = arith.maximumf %340, %341 : vector<10x64xf32>
    %c2_458 = arith.constant 2 : index
    %c0_459 = arith.constant 0 : index
    %343 = tpu.strided_load %arg9[%c2_458, %c0_459] {strides = array<i32: 3, 1>} : memref<30x64xf32, #tpu.memory_space<vmem>>, vector<10x64xf32>
    %344 = arith.maximumf %342, %343 : vector<10x64xf32>
    %c0_460 = arith.constant 0 : index
    %c0_461 = arith.constant 0 : index
    %345 = vector.load %arg3[%c0_460, %c0_461] : memref<1x64xf32, #tpu.memory_space<vmem>>, vector<1x64xf32>
    %346 = vector.broadcast %345 : vector<1x64xf32> to vector<10x64xf32>
    %347 = arith.addf %344, %346 : vector<10x64xf32>
    %cst_462 = arith.constant 0.000000e+00 : f32
    %348 = vector.broadcast %cst_462 : f32 to vector<10x64xf32>
    %349 = arith.maximumf %347, %348 : vector<10x64xf32>
    %350 = arith.truncf %349 : vector<10x64xf32> to vector<10x64xbf16>
    %c4_463 = arith.constant 4 : index
    %c0_464 = arith.constant 0 : index
    %c0_465 = arith.constant 0 : index
    %351 = vector.load %arg10[%c4_463, %c0_464, %c0_465] : memref<10x10x64xbf16, #tpu.memory_space<vmem>>, vector<1x10x64xbf16>
    %352 = vector.shape_cast %351 : vector<1x10x64xbf16> to vector<10x64xbf16>
    %353 = vector.shape_cast %350 : vector<10x64xbf16> to vector<1x10x64xbf16>
    tpu.vector_store %arg10[%c4_463, %c0_464, %c0_465], %353 {strides = array<i32>} : memref<10x10x64xbf16, #tpu.memory_space<vmem>>, vector<1x10x64xbf16>,
    %354 = tpu.concatenate %111, %118, %125 in 1 : vector<30x12xbf16>, vector<30x12xbf16>, vector<30x12xbf16> -> vector<30x36xbf16>
    %c0_466 = arith.constant 0 : index
    %c0_467 = arith.constant 0 : index
    %355 = vector.load %arg2[%c0_466, %c0_467] : memref<36x64xbf16, #tpu.memory_space<vmem>>, vector<36x64xbf16>
    %cst_468 = arith.constant dense<0.000000e+00> : vector<30x64xf32>
    %356 = tpu.matmul %354, %355, %cst_468 {dimension_numbers = #tpu.dot_dimension_numbers<[1], [0], [0], [1], [0, 0, 1, 1], [], []>} : vector<30x36xbf16>, vector<36x64xbf16>, vector<30x64xf32> -> vector<30x64xf32>
    %357 = tpu.concatenate %118, %125, %132 in 1 : vector<30x12xbf16>, vector<30x12xbf16>, vector<30x12xbf16> -> vector<30x36xbf16>
    %c0_469 = arith.constant 0 : index
    %c0_470 = arith.constant 0 : index
    %358 = vector.load %arg2[%c0_469, %c0_470] : memref<36x64xbf16, #tpu.memory_space<vmem>>, vector<36x64xbf16>
    %cst_471 = arith.constant dense<0.000000e+00> : vector<30x64xf32>
    %359 = tpu.matmul %357, %358, %cst_471 {dimension_numbers = #tpu.dot_dimension_numbers<[1], [0], [0], [1], [0, 0, 1, 1], [], []>} : vector<30x36xbf16>, vector<36x64xbf16>, vector<30x64xf32> -> vector<30x64xf32>
    %360 = arith.maximumf %356, %359 : vector<30x64xf32>
    %361 = tpu.concatenate %125, %132, %139 in 1 : vector<30x12xbf16>, vector<30x12xbf16>, vector<30x12xbf16> -> vector<30x36xbf16>
    %c0_472 = arith.constant 0 : index
    %c0_473 = arith.constant 0 : index
    %362 = vector.load %arg2[%c0_472, %c0_473] : memref<36x64xbf16, #tpu.memory_space<vmem>>, vector<36x64xbf16>
    %cst_474 = arith.constant dense<0.000000e+00> : vector<30x64xf32>
    %363 = tpu.matmul %361, %362, %cst_474 {dimension_numbers = #tpu.dot_dimension_numbers<[1], [0], [0], [1], [0, 0, 1, 1], [], []>} : vector<30x36xbf16>, vector<36x64xbf16>, vector<30x64xf32> -> vector<30x64xf32>
    %364 = arith.maximumf %360, %363 : vector<30x64xf32>
    %c0_475 = arith.constant 0 : index
    %c0_476 = arith.constant 0 : index
    %365 = vector.load %arg9[%c0_475, %c0_476] : memref<30x64xf32, #tpu.memory_space<vmem>>, vector<30x64xf32>
    tpu.vector_store %arg9[%c0_475, %c0_476], %364 {strides = array<i32>} : memref<30x64xf32, #tpu.memory_space<vmem>>, vector<30x64xf32>,
    %c0_477 = arith.constant 0 : index
    %c0_478 = arith.constant 0 : index
    %366 = tpu.strided_load %arg9[%c0_477, %c0_478] {strides = array<i32: 3, 1>} : memref<30x64xf32, #tpu.memory_space<vmem>>, vector<10x64xf32>
    %c1_479 = arith.constant 1 : index
    %c0_480 = arith.constant 0 : index
    %367 = tpu.strided_load %arg9[%c1_479, %c0_480] {strides = array<i32: 3, 1>} : memref<30x64xf32, #tpu.memory_space<vmem>>, vector<10x64xf32>
    %368 = arith.maximumf %366, %367 : vector<10x64xf32>
    %c2_481 = arith.constant 2 : index
    %c0_482 = arith.constant 0 : index
    %369 = tpu.strided_load %arg9[%c2_481, %c0_482] {strides = array<i32: 3, 1>} : memref<30x64xf32, #tpu.memory_space<vmem>>, vector<10x64xf32>
    %370 = arith.maximumf %368, %369 : vector<10x64xf32>
    %c0_483 = arith.constant 0 : index
    %c0_484 = arith.constant 0 : index
    %371 = vector.load %arg3[%c0_483, %c0_484] : memref<1x64xf32, #tpu.memory_space<vmem>>, vector<1x64xf32>
    %372 = vector.broadcast %371 : vector<1x64xf32> to vector<10x64xf32>
    %373 = arith.addf %370, %372 : vector<10x64xf32>
    %cst_485 = arith.constant 0.000000e+00 : f32
    %374 = vector.broadcast %cst_485 : f32 to vector<10x64xf32>
    %375 = arith.maximumf %373, %374 : vector<10x64xf32>
    %376 = arith.truncf %375 : vector<10x64xf32> to vector<10x64xbf16>
    %c5_486 = arith.constant 5 : index
    %c0_487 = arith.constant 0 : index
    %c0_488 = arith.constant 0 : index
    %377 = vector.load %arg10[%c5_486, %c0_487, %c0_488] : memref<10x10x64xbf16, #tpu.memory_space<vmem>>, vector<1x10x64xbf16>
    %378 = vector.shape_cast %377 : vector<1x10x64xbf16> to vector<10x64xbf16>
    %379 = vector.shape_cast %376 : vector<10x64xbf16> to vector<1x10x64xbf16>
    tpu.vector_store %arg10[%c5_486, %c0_487, %c0_488], %379 {strides = array<i32>} : memref<10x10x64xbf16, #tpu.memory_space<vmem>>, vector<1x10x64xbf16>,
    %380 = tpu.concatenate %132, %139, %146 in 1 : vector<30x12xbf16>, vector<30x12xbf16>, vector<30x12xbf16> -> vector<30x36xbf16>
    %c0_489 = arith.constant 0 : index
    %c0_490 = arith.constant 0 : index
    %381 = vector.load %arg2[%c0_489, %c0_490] : memref<36x64xbf16, #tpu.memory_space<vmem>>, vector<36x64xbf16>
    %cst_491 = arith.constant dense<0.000000e+00> : vector<30x64xf32>
    %382 = tpu.matmul %380, %381, %cst_491 {dimension_numbers = #tpu.dot_dimension_numbers<[1], [0], [0], [1], [0, 0, 1, 1], [], []>} : vector<30x36xbf16>, vector<36x64xbf16>, vector<30x64xf32> -> vector<30x64xf32>
    %383 = tpu.concatenate %139, %146, %153 in 1 : vector<30x12xbf16>, vector<30x12xbf16>, vector<30x12xbf16> -> vector<30x36xbf16>
    %c0_492 = arith.constant 0 : index
    %c0_493 = arith.constant 0 : index
    %384 = vector.load %arg2[%c0_492, %c0_493] : memref<36x64xbf16, #tpu.memory_space<vmem>>, vector<36x64xbf16>
    %cst_494 = arith.constant dense<0.000000e+00> : vector<30x64xf32>
    %385 = tpu.matmul %383, %384, %cst_494 {dimension_numbers = #tpu.dot_dimension_numbers<[1], [0], [0], [1], [0, 0, 1, 1], [], []>} : vector<30x36xbf16>, vector<36x64xbf16>, vector<30x64xf32> -> vector<30x64xf32>
    %386 = arith.maximumf %382, %385 : vector<30x64xf32>
    %387 = tpu.concatenate %146, %153, %160 in 1 : vector<30x12xbf16>, vector<30x12xbf16>, vector<30x12xbf16> -> vector<30x36xbf16>
    %c0_495 = arith.constant 0 : index
    %c0_496 = arith.constant 0 : index
    %388 = vector.load %arg2[%c0_495, %c0_496] : memref<36x64xbf16, #tpu.memory_space<vmem>>, vector<36x64xbf16>
    %cst_497 = arith.constant dense<0.000000e+00> : vector<30x64xf32>
    %389 = tpu.matmul %387, %388, %cst_497 {dimension_numbers = #tpu.dot_dimension_numbers<[1], [0], [0], [1], [0, 0, 1, 1], [], []>} : vector<30x36xbf16>, vector<36x64xbf16>, vector<30x64xf32> -> vector<30x64xf32>
    %390 = arith.maximumf %386, %389 : vector<30x64xf32>
    %c0_498 = arith.constant 0 : index
    %c0_499 = arith.constant 0 : index
    %391 = vector.load %arg9[%c0_498, %c0_499] : memref<30x64xf32, #tpu.memory_space<vmem>>, vector<30x64xf32>
    tpu.vector_store %arg9[%c0_498, %c0_499], %390 {strides = array<i32>} : memref<30x64xf32, #tpu.memory_space<vmem>>, vector<30x64xf32>,
    %c0_500 = arith.constant 0 : index
    %c0_501 = arith.constant 0 : index
    %392 = tpu.strided_load %arg9[%c0_500, %c0_501] {strides = array<i32: 3, 1>} : memref<30x64xf32, #tpu.memory_space<vmem>>, vector<10x64xf32>
    %c1_502 = arith.constant 1 : index
    %c0_503 = arith.constant 0 : index
    %393 = tpu.strided_load %arg9[%c1_502, %c0_503] {strides = array<i32: 3, 1>} : memref<30x64xf32, #tpu.memory_space<vmem>>, vector<10x64xf32>
    %394 = arith.maximumf %392, %393 : vector<10x64xf32>
    %c2_504 = arith.constant 2 : index
    %c0_505 = arith.constant 0 : index
    %395 = tpu.strided_load %arg9[%c2_504, %c0_505] {strides = array<i32: 3, 1>} : memref<30x64xf32, #tpu.memory_space<vmem>>, vector<10x64xf32>
    %396 = arith.maximumf %394, %395 : vector<10x64xf32>
    %c0_506 = arith.constant 0 : index
    %c0_507 = arith.constant 0 : index
    %397 = vector.load %arg3[%c0_506, %c0_507] : memref<1x64xf32, #tpu.memory_space<vmem>>, vector<1x64xf32>
    %398 = vector.broadcast %397 : vector<1x64xf32> to vector<10x64xf32>
    %399 = arith.addf %396, %398 : vector<10x64xf32>
    %cst_508 = arith.constant 0.000000e+00 : f32
    %400 = vector.broadcast %cst_508 : f32 to vector<10x64xf32>
    %401 = arith.maximumf %399, %400 : vector<10x64xf32>
    %402 = arith.truncf %401 : vector<10x64xf32> to vector<10x64xbf16>
    %c6_509 = arith.constant 6 : index
    %c0_510 = arith.constant 0 : index
    %c0_511 = arith.constant 0 : index
    %403 = vector.load %arg10[%c6_509, %c0_510, %c0_511] : memref<10x10x64xbf16, #tpu.memory_space<vmem>>, vector<1x10x64xbf16>
    %404 = vector.shape_cast %403 : vector<1x10x64xbf16> to vector<10x64xbf16>
    %405 = vector.shape_cast %402 : vector<10x64xbf16> to vector<1x10x64xbf16>
    tpu.vector_store %arg10[%c6_509, %c0_510, %c0_511], %405 {strides = array<i32>} : memref<10x10x64xbf16, #tpu.memory_space<vmem>>, vector<1x10x64xbf16>,
    %406 = tpu.concatenate %153, %160, %167 in 1 : vector<30x12xbf16>, vector<30x12xbf16>, vector<30x12xbf16> -> vector<30x36xbf16>
    %c0_512 = arith.constant 0 : index
    %c0_513 = arith.constant 0 : index
    %407 = vector.load %arg2[%c0_512, %c0_513] : memref<36x64xbf16, #tpu.memory_space<vmem>>, vector<36x64xbf16>
    %cst_514 = arith.constant dense<0.000000e+00> : vector<30x64xf32>
    %408 = tpu.matmul %406, %407, %cst_514 {dimension_numbers = #tpu.dot_dimension_numbers<[1], [0], [0], [1], [0, 0, 1, 1], [], []>} : vector<30x36xbf16>, vector<36x64xbf16>, vector<30x64xf32> -> vector<30x64xf32>
    %409 = tpu.concatenate %160, %167, %174 in 1 : vector<30x12xbf16>, vector<30x12xbf16>, vector<30x12xbf16> -> vector<30x36xbf16>
    %c0_515 = arith.constant 0 : index
    %c0_516 = arith.constant 0 : index
    %410 = vector.load %arg2[%c0_515, %c0_516] : memref<36x64xbf16, #tpu.memory_space<vmem>>, vector<36x64xbf16>
    %cst_517 = arith.constant dense<0.000000e+00> : vector<30x64xf32>
    %411 = tpu.matmul %409, %410, %cst_517 {dimension_numbers = #tpu.dot_dimension_numbers<[1], [0], [0], [1], [0, 0, 1, 1], [], []>} : vector<30x36xbf16>, vector<36x64xbf16>, vector<30x64xf32> -> vector<30x64xf32>
    %412 = arith.maximumf %408, %411 : vector<30x64xf32>
    %413 = tpu.concatenate %167, %174, %181 in 1 : vector<30x12xbf16>, vector<30x12xbf16>, vector<30x12xbf16> -> vector<30x36xbf16>
    %c0_518 = arith.constant 0 : index
    %c0_519 = arith.constant 0 : index
    %414 = vector.load %arg2[%c0_518, %c0_519] : memref<36x64xbf16, #tpu.memory_space<vmem>>, vector<36x64xbf16>
    %cst_520 = arith.constant dense<0.000000e+00> : vector<30x64xf32>
    %415 = tpu.matmul %413, %414, %cst_520 {dimension_numbers = #tpu.dot_dimension_numbers<[1], [0], [0], [1], [0, 0, 1, 1], [], []>} : vector<30x36xbf16>, vector<36x64xbf16>, vector<30x64xf32> -> vector<30x64xf32>
    %416 = arith.maximumf %412, %415 : vector<30x64xf32>
    %c0_521 = arith.constant 0 : index
    %c0_522 = arith.constant 0 : index
    %417 = vector.load %arg9[%c0_521, %c0_522] : memref<30x64xf32, #tpu.memory_space<vmem>>, vector<30x64xf32>
    tpu.vector_store %arg9[%c0_521, %c0_522], %416 {strides = array<i32>} : memref<30x64xf32, #tpu.memory_space<vmem>>, vector<30x64xf32>,
    %c0_523 = arith.constant 0 : index
    %c0_524 = arith.constant 0 : index
    %418 = tpu.strided_load %arg9[%c0_523, %c0_524] {strides = array<i32: 3, 1>} : memref<30x64xf32, #tpu.memory_space<vmem>>, vector<10x64xf32>
    %c1_525 = arith.constant 1 : index
    %c0_526 = arith.constant 0 : index
    %419 = tpu.strided_load %arg9[%c1_525, %c0_526] {strides = array<i32: 3, 1>} : memref<30x64xf32, #tpu.memory_space<vmem>>, vector<10x64xf32>
    %420 = arith.maximumf %418, %419 : vector<10x64xf32>
    %c2_527 = arith.constant 2 : index
    %c0_528 = arith.constant 0 : index
    %421 = tpu.strided_load %arg9[%c2_527, %c0_528] {strides = array<i32: 3, 1>} : memref<30x64xf32, #tpu.memory_space<vmem>>, vector<10x64xf32>
    %422 = arith.maximumf %420, %421 : vector<10x64xf32>
    %c0_529 = arith.constant 0 : index
    %c0_530 = arith.constant 0 : index
    %423 = vector.load %arg3[%c0_529, %c0_530] : memref<1x64xf32, #tpu.memory_space<vmem>>, vector<1x64xf32>
    %424 = vector.broadcast %423 : vector<1x64xf32> to vector<10x64xf32>
    %425 = arith.addf %422, %424 : vector<10x64xf32>
    %cst_531 = arith.constant 0.000000e+00 : f32
    %426 = vector.broadcast %cst_531 : f32 to vector<10x64xf32>
    %427 = arith.maximumf %425, %426 : vector<10x64xf32>
    %428 = arith.truncf %427 : vector<10x64xf32> to vector<10x64xbf16>
    %c7_532 = arith.constant 7 : index
    %c0_533 = arith.constant 0 : index
    %c0_534 = arith.constant 0 : index
    %429 = vector.load %arg10[%c7_532, %c0_533, %c0_534] : memref<10x10x64xbf16, #tpu.memory_space<vmem>>, vector<1x10x64xbf16>
    %430 = vector.shape_cast %429 : vector<1x10x64xbf16> to vector<10x64xbf16>
    %431 = vector.shape_cast %428 : vector<10x64xbf16> to vector<1x10x64xbf16>
    tpu.vector_store %arg10[%c7_532, %c0_533, %c0_534], %431 {strides = array<i32>} : memref<10x10x64xbf16, #tpu.memory_space<vmem>>, vector<1x10x64xbf16>,
    %432 = tpu.concatenate %174, %181, %188 in 1 : vector<30x12xbf16>, vector<30x12xbf16>, vector<30x12xbf16> -> vector<30x36xbf16>
    %c0_535 = arith.constant 0 : index
    %c0_536 = arith.constant 0 : index
    %433 = vector.load %arg2[%c0_535, %c0_536] : memref<36x64xbf16, #tpu.memory_space<vmem>>, vector<36x64xbf16>
    %cst_537 = arith.constant dense<0.000000e+00> : vector<30x64xf32>
    %434 = tpu.matmul %432, %433, %cst_537 {dimension_numbers = #tpu.dot_dimension_numbers<[1], [0], [0], [1], [0, 0, 1, 1], [], []>} : vector<30x36xbf16>, vector<36x64xbf16>, vector<30x64xf32> -> vector<30x64xf32>
    %435 = tpu.concatenate %181, %188, %195 in 1 : vector<30x12xbf16>, vector<30x12xbf16>, vector<30x12xbf16> -> vector<30x36xbf16>
    %c0_538 = arith.constant 0 : index
    %c0_539 = arith.constant 0 : index
    %436 = vector.load %arg2[%c0_538, %c0_539] : memref<36x64xbf16, #tpu.memory_space<vmem>>, vector<36x64xbf16>
    %cst_540 = arith.constant dense<0.000000e+00> : vector<30x64xf32>
    %437 = tpu.matmul %435, %436, %cst_540 {dimension_numbers = #tpu.dot_dimension_numbers<[1], [0], [0], [1], [0, 0, 1, 1], [], []>} : vector<30x36xbf16>, vector<36x64xbf16>, vector<30x64xf32> -> vector<30x64xf32>
    %438 = arith.maximumf %434, %437 : vector<30x64xf32>
    %439 = tpu.concatenate %188, %195, %202 in 1 : vector<30x12xbf16>, vector<30x12xbf16>, vector<30x12xbf16> -> vector<30x36xbf16>
    %c0_541 = arith.constant 0 : index
    %c0_542 = arith.constant 0 : index
    %440 = vector.load %arg2[%c0_541, %c0_542] : memref<36x64xbf16, #tpu.memory_space<vmem>>, vector<36x64xbf16>
    %cst_543 = arith.constant dense<0.000000e+00> : vector<30x64xf32>
    %441 = tpu.matmul %439, %440, %cst_543 {dimension_numbers = #tpu.dot_dimension_numbers<[1], [0], [0], [1], [0, 0, 1, 1], [], []>} : vector<30x36xbf16>, vector<36x64xbf16>, vector<30x64xf32> -> vector<30x64xf32>
    %442 = arith.maximumf %438, %441 : vector<30x64xf32>
    %c0_544 = arith.constant 0 : index
    %c0_545 = arith.constant 0 : index
    %443 = vector.load %arg9[%c0_544, %c0_545] : memref<30x64xf32, #tpu.memory_space<vmem>>, vector<30x64xf32>
    tpu.vector_store %arg9[%c0_544, %c0_545], %442 {strides = array<i32>} : memref<30x64xf32, #tpu.memory_space<vmem>>, vector<30x64xf32>,
    %c0_546 = arith.constant 0 : index
    %c0_547 = arith.constant 0 : index
    %444 = tpu.strided_load %arg9[%c0_546, %c0_547] {strides = array<i32: 3, 1>} : memref<30x64xf32, #tpu.memory_space<vmem>>, vector<10x64xf32>
    %c1_548 = arith.constant 1 : index
    %c0_549 = arith.constant 0 : index
    %445 = tpu.strided_load %arg9[%c1_548, %c0_549] {strides = array<i32: 3, 1>} : memref<30x64xf32, #tpu.memory_space<vmem>>, vector<10x64xf32>
    %446 = arith.maximumf %444, %445 : vector<10x64xf32>
    %c2_550 = arith.constant 2 : index
    %c0_551 = arith.constant 0 : index
    %447 = tpu.strided_load %arg9[%c2_550, %c0_551] {strides = array<i32: 3, 1>} : memref<30x64xf32, #tpu.memory_space<vmem>>, vector<10x64xf32>
    %448 = arith.maximumf %446, %447 : vector<10x64xf32>
    %c0_552 = arith.constant 0 : index
    %c0_553 = arith.constant 0 : index
    %449 = vector.load %arg3[%c0_552, %c0_553] : memref<1x64xf32, #tpu.memory_space<vmem>>, vector<1x64xf32>
    %450 = vector.broadcast %449 : vector<1x64xf32> to vector<10x64xf32>
    %451 = arith.addf %448, %450 : vector<10x64xf32>
    %cst_554 = arith.constant 0.000000e+00 : f32
    %452 = vector.broadcast %cst_554 : f32 to vector<10x64xf32>
    %453 = arith.maximumf %451, %452 : vector<10x64xf32>
    %454 = arith.truncf %453 : vector<10x64xf32> to vector<10x64xbf16>
    %c8_555 = arith.constant 8 : index
    %c0_556 = arith.constant 0 : index
    %c0_557 = arith.constant 0 : index
    %455 = vector.load %arg10[%c8_555, %c0_556, %c0_557] : memref<10x10x64xbf16, #tpu.memory_space<vmem>>, vector<1x10x64xbf16>
    %456 = vector.shape_cast %455 : vector<1x10x64xbf16> to vector<10x64xbf16>
    %457 = vector.shape_cast %454 : vector<10x64xbf16> to vector<1x10x64xbf16>
    tpu.vector_store %arg10[%c8_555, %c0_556, %c0_557], %457 {strides = array<i32>} : memref<10x10x64xbf16, #tpu.memory_space<vmem>>, vector<1x10x64xbf16>,
    %458 = tpu.concatenate %195, %202, %209 in 1 : vector<30x12xbf16>, vector<30x12xbf16>, vector<30x12xbf16> -> vector<30x36xbf16>
    %c0_558 = arith.constant 0 : index
    %c0_559 = arith.constant 0 : index
    %459 = vector.load %arg2[%c0_558, %c0_559] : memref<36x64xbf16, #tpu.memory_space<vmem>>, vector<36x64xbf16>
    %cst_560 = arith.constant dense<0.000000e+00> : vector<30x64xf32>
    %460 = tpu.matmul %458, %459, %cst_560 {dimension_numbers = #tpu.dot_dimension_numbers<[1], [0], [0], [1], [0, 0, 1, 1], [], []>} : vector<30x36xbf16>, vector<36x64xbf16>, vector<30x64xf32> -> vector<30x64xf32>
    %461 = tpu.concatenate %202, %209, %216 in 1 : vector<30x12xbf16>, vector<30x12xbf16>, vector<30x12xbf16> -> vector<30x36xbf16>
    %c0_561 = arith.constant 0 : index
    %c0_562 = arith.constant 0 : index
    %462 = vector.load %arg2[%c0_561, %c0_562] : memref<36x64xbf16, #tpu.memory_space<vmem>>, vector<36x64xbf16>
    %cst_563 = arith.constant dense<0.000000e+00> : vector<30x64xf32>
    %463 = tpu.matmul %461, %462, %cst_563 {dimension_numbers = #tpu.dot_dimension_numbers<[1], [0], [0], [1], [0, 0, 1, 1], [], []>} : vector<30x36xbf16>, vector<36x64xbf16>, vector<30x64xf32> -> vector<30x64xf32>
    %464 = arith.maximumf %460, %463 : vector<30x64xf32>
    %465 = tpu.concatenate %209, %216, %223 in 1 : vector<30x12xbf16>, vector<30x12xbf16>, vector<30x12xbf16> -> vector<30x36xbf16>
    %c0_564 = arith.constant 0 : index
    %c0_565 = arith.constant 0 : index
    %466 = vector.load %arg2[%c0_564, %c0_565] : memref<36x64xbf16, #tpu.memory_space<vmem>>, vector<36x64xbf16>
    %cst_566 = arith.constant dense<0.000000e+00> : vector<30x64xf32>
    %467 = tpu.matmul %465, %466, %cst_566 {dimension_numbers = #tpu.dot_dimension_numbers<[1], [0], [0], [1], [0, 0, 1, 1], [], []>} : vector<30x36xbf16>, vector<36x64xbf16>, vector<30x64xf32> -> vector<30x64xf32>
    %468 = arith.maximumf %464, %467 : vector<30x64xf32>
    %c0_567 = arith.constant 0 : index
    %c0_568 = arith.constant 0 : index
    %469 = vector.load %arg9[%c0_567, %c0_568] : memref<30x64xf32, #tpu.memory_space<vmem>>, vector<30x64xf32>
    tpu.vector_store %arg9[%c0_567, %c0_568], %468 {strides = array<i32>} : memref<30x64xf32, #tpu.memory_space<vmem>>, vector<30x64xf32>,
    %c0_569 = arith.constant 0 : index
    %c0_570 = arith.constant 0 : index
    %470 = tpu.strided_load %arg9[%c0_569, %c0_570] {strides = array<i32: 3, 1>} : memref<30x64xf32, #tpu.memory_space<vmem>>, vector<10x64xf32>
    %c1_571 = arith.constant 1 : index
    %c0_572 = arith.constant 0 : index
    %471 = tpu.strided_load %arg9[%c1_571, %c0_572] {strides = array<i32: 3, 1>} : memref<30x64xf32, #tpu.memory_space<vmem>>, vector<10x64xf32>
    %472 = arith.maximumf %470, %471 : vector<10x64xf32>
    %c2_573 = arith.constant 2 : index
    %c0_574 = arith.constant 0 : index
    %473 = tpu.strided_load %arg9[%c2_573, %c0_574] {strides = array<i32: 3, 1>} : memref<30x64xf32, #tpu.memory_space<vmem>>, vector<10x64xf32>
    %474 = arith.maximumf %472, %473 : vector<10x64xf32>
    %c0_575 = arith.constant 0 : index
    %c0_576 = arith.constant 0 : index
    %475 = vector.load %arg3[%c0_575, %c0_576] : memref<1x64xf32, #tpu.memory_space<vmem>>, vector<1x64xf32>
    %476 = vector.broadcast %475 : vector<1x64xf32> to vector<10x64xf32>
    %477 = arith.addf %474, %476 : vector<10x64xf32>
    %cst_577 = arith.constant 0.000000e+00 : f32
    %478 = vector.broadcast %cst_577 : f32 to vector<10x64xf32>
    %479 = arith.maximumf %477, %478 : vector<10x64xf32>
    %480 = arith.truncf %479 : vector<10x64xf32> to vector<10x64xbf16>
    %c9_578 = arith.constant 9 : index
    %c0_579 = arith.constant 0 : index
    %c0_580 = arith.constant 0 : index
    %481 = vector.load %arg10[%c9_578, %c0_579, %c0_580] : memref<10x10x64xbf16, #tpu.memory_space<vmem>>, vector<1x10x64xbf16>
    %482 = vector.shape_cast %481 : vector<1x10x64xbf16> to vector<10x64xbf16>
    %483 = vector.shape_cast %480 : vector<10x64xbf16> to vector<1x10x64xbf16>
    tpu.vector_store %arg10[%c9_578, %c0_579, %c0_580], %483 {strides = array<i32>} : memref<10x10x64xbf16, #tpu.memory_space<vmem>>, vector<1x10x64xbf16>,
    %c0_581 = arith.constant 0 : index
    %c0_582 = arith.constant 0 : index
    %c0_583 = arith.constant 0 : index
    %484 = vector.load %arg10[%c0_581, %c0_582, %c0_583] : memref<10x10x64xbf16, #tpu.memory_space<vmem>>, vector<1x8x64xbf16>
    %485 = vector.shape_cast %484 : vector<1x8x64xbf16> to vector<8x64xbf16>
    %c0_584 = arith.constant 0 : index
    %c1_585 = arith.constant 1 : index
    %c0_586 = arith.constant 0 : index
    %486 = vector.load %arg10[%c0_584, %c1_585, %c0_586] : memref<10x10x64xbf16, #tpu.memory_space<vmem>>, vector<1x8x64xbf16>
    %487 = vector.shape_cast %486 : vector<1x8x64xbf16> to vector<8x64xbf16>
    %c0_587 = arith.constant 0 : index
    %c2_588 = arith.constant 2 : index
    %c0_589 = arith.constant 0 : index
    %488 = vector.load %arg10[%c0_587, %c2_588, %c0_589] : memref<10x10x64xbf16, #tpu.memory_space<vmem>>, vector<1x8x64xbf16>
    %489 = vector.shape_cast %488 : vector<1x8x64xbf16> to vector<8x64xbf16>
    %490 = tpu.concatenate %485, %487, %489 in 1 : vector<8x64xbf16>, vector<8x64xbf16>, vector<8x64xbf16> -> vector<8x192xbf16>
    %c1_590 = arith.constant 1 : index
    %c0_591 = arith.constant 0 : index
    %c0_592 = arith.constant 0 : index
    %491 = vector.load %arg10[%c1_590, %c0_591, %c0_592] : memref<10x10x64xbf16, #tpu.memory_space<vmem>>, vector<1x8x64xbf16>
    %492 = vector.shape_cast %491 : vector<1x8x64xbf16> to vector<8x64xbf16>
    %c1_593 = arith.constant 1 : index
    %c1_594 = arith.constant 1 : index
    %c0_595 = arith.constant 0 : index
    %493 = vector.load %arg10[%c1_593, %c1_594, %c0_595] : memref<10x10x64xbf16, #tpu.memory_space<vmem>>, vector<1x8x64xbf16>
    %494 = vector.shape_cast %493 : vector<1x8x64xbf16> to vector<8x64xbf16>
    %c1_596 = arith.constant 1 : index
    %c2_597 = arith.constant 2 : index
    %c0_598 = arith.constant 0 : index
    %495 = vector.load %arg10[%c1_596, %c2_597, %c0_598] : memref<10x10x64xbf16, #tpu.memory_space<vmem>>, vector<1x8x64xbf16>
    %496 = vector.shape_cast %495 : vector<1x8x64xbf16> to vector<8x64xbf16>
    %497 = tpu.concatenate %492, %494, %496 in 1 : vector<8x64xbf16>, vector<8x64xbf16>, vector<8x64xbf16> -> vector<8x192xbf16>
    %c2_599 = arith.constant 2 : index
    %c0_600 = arith.constant 0 : index
    %c0_601 = arith.constant 0 : index
    %498 = vector.load %arg10[%c2_599, %c0_600, %c0_601] : memref<10x10x64xbf16, #tpu.memory_space<vmem>>, vector<1x8x64xbf16>
    %499 = vector.shape_cast %498 : vector<1x8x64xbf16> to vector<8x64xbf16>
    %c2_602 = arith.constant 2 : index
    %c1_603 = arith.constant 1 : index
    %c0_604 = arith.constant 0 : index
    %500 = vector.load %arg10[%c2_602, %c1_603, %c0_604] : memref<10x10x64xbf16, #tpu.memory_space<vmem>>, vector<1x8x64xbf16>
    %501 = vector.shape_cast %500 : vector<1x8x64xbf16> to vector<8x64xbf16>
    %c2_605 = arith.constant 2 : index
    %c2_606 = arith.constant 2 : index
    %c0_607 = arith.constant 0 : index
    %502 = vector.load %arg10[%c2_605, %c2_606, %c0_607] : memref<10x10x64xbf16, #tpu.memory_space<vmem>>, vector<1x8x64xbf16>
    %503 = vector.shape_cast %502 : vector<1x8x64xbf16> to vector<8x64xbf16>
    %504 = tpu.concatenate %499, %501, %503 in 1 : vector<8x64xbf16>, vector<8x64xbf16>, vector<8x64xbf16> -> vector<8x192xbf16>
    %c3_608 = arith.constant 3 : index
    %c0_609 = arith.constant 0 : index
    %c0_610 = arith.constant 0 : index
    %505 = vector.load %arg10[%c3_608, %c0_609, %c0_610] : memref<10x10x64xbf16, #tpu.memory_space<vmem>>, vector<1x8x64xbf16>
    %506 = vector.shape_cast %505 : vector<1x8x64xbf16> to vector<8x64xbf16>
    %c3_611 = arith.constant 3 : index
    %c1_612 = arith.constant 1 : index
    %c0_613 = arith.constant 0 : index
    %507 = vector.load %arg10[%c3_611, %c1_612, %c0_613] : memref<10x10x64xbf16, #tpu.memory_space<vmem>>, vector<1x8x64xbf16>
    %508 = vector.shape_cast %507 : vector<1x8x64xbf16> to vector<8x64xbf16>
    %c3_614 = arith.constant 3 : index
    %c2_615 = arith.constant 2 : index
    %c0_616 = arith.constant 0 : index
    %509 = vector.load %arg10[%c3_614, %c2_615, %c0_616] : memref<10x10x64xbf16, #tpu.memory_space<vmem>>, vector<1x8x64xbf16>
    %510 = vector.shape_cast %509 : vector<1x8x64xbf16> to vector<8x64xbf16>
    %511 = tpu.concatenate %506, %508, %510 in 1 : vector<8x64xbf16>, vector<8x64xbf16>, vector<8x64xbf16> -> vector<8x192xbf16>
    %c4_617 = arith.constant 4 : index
    %c0_618 = arith.constant 0 : index
    %c0_619 = arith.constant 0 : index
    %512 = vector.load %arg10[%c4_617, %c0_618, %c0_619] : memref<10x10x64xbf16, #tpu.memory_space<vmem>>, vector<1x8x64xbf16>
    %513 = vector.shape_cast %512 : vector<1x8x64xbf16> to vector<8x64xbf16>
    %c4_620 = arith.constant 4 : index
    %c1_621 = arith.constant 1 : index
    %c0_622 = arith.constant 0 : index
    %514 = vector.load %arg10[%c4_620, %c1_621, %c0_622] : memref<10x10x64xbf16, #tpu.memory_space<vmem>>, vector<1x8x64xbf16>
    %515 = vector.shape_cast %514 : vector<1x8x64xbf16> to vector<8x64xbf16>
    %c4_623 = arith.constant 4 : index
    %c2_624 = arith.constant 2 : index
    %c0_625 = arith.constant 0 : index
    %516 = vector.load %arg10[%c4_623, %c2_624, %c0_625] : memref<10x10x64xbf16, #tpu.memory_space<vmem>>, vector<1x8x64xbf16>
    %517 = vector.shape_cast %516 : vector<1x8x64xbf16> to vector<8x64xbf16>
    %518 = tpu.concatenate %513, %515, %517 in 1 : vector<8x64xbf16>, vector<8x64xbf16>, vector<8x64xbf16> -> vector<8x192xbf16>
    %c5_626 = arith.constant 5 : index
    %c0_627 = arith.constant 0 : index
    %c0_628 = arith.constant 0 : index
    %519 = vector.load %arg10[%c5_626, %c0_627, %c0_628] : memref<10x10x64xbf16, #tpu.memory_space<vmem>>, vector<1x8x64xbf16>
    %520 = vector.shape_cast %519 : vector<1x8x64xbf16> to vector<8x64xbf16>
    %c5_629 = arith.constant 5 : index
    %c1_630 = arith.constant 1 : index
    %c0_631 = arith.constant 0 : index
    %521 = vector.load %arg10[%c5_629, %c1_630, %c0_631] : memref<10x10x64xbf16, #tpu.memory_space<vmem>>, vector<1x8x64xbf16>
    %522 = vector.shape_cast %521 : vector<1x8x64xbf16> to vector<8x64xbf16>
    %c5_632 = arith.constant 5 : index
    %c2_633 = arith.constant 2 : index
    %c0_634 = arith.constant 0 : index
    %523 = vector.load %arg10[%c5_632, %c2_633, %c0_634] : memref<10x10x64xbf16, #tpu.memory_space<vmem>>, vector<1x8x64xbf16>
    %524 = vector.shape_cast %523 : vector<1x8x64xbf16> to vector<8x64xbf16>
    %525 = tpu.concatenate %520, %522, %524 in 1 : vector<8x64xbf16>, vector<8x64xbf16>, vector<8x64xbf16> -> vector<8x192xbf16>
    %c6_635 = arith.constant 6 : index
    %c0_636 = arith.constant 0 : index
    %c0_637 = arith.constant 0 : index
    %526 = vector.load %arg10[%c6_635, %c0_636, %c0_637] : memref<10x10x64xbf16, #tpu.memory_space<vmem>>, vector<1x8x64xbf16>
    %527 = vector.shape_cast %526 : vector<1x8x64xbf16> to vector<8x64xbf16>
    %c6_638 = arith.constant 6 : index
    %c1_639 = arith.constant 1 : index
    %c0_640 = arith.constant 0 : index
    %528 = vector.load %arg10[%c6_638, %c1_639, %c0_640] : memref<10x10x64xbf16, #tpu.memory_space<vmem>>, vector<1x8x64xbf16>
    %529 = vector.shape_cast %528 : vector<1x8x64xbf16> to vector<8x64xbf16>
    %c6_641 = arith.constant 6 : index
    %c2_642 = arith.constant 2 : index
    %c0_643 = arith.constant 0 : index
    %530 = vector.load %arg10[%c6_641, %c2_642, %c0_643] : memref<10x10x64xbf16, #tpu.memory_space<vmem>>, vector<1x8x64xbf16>
    %531 = vector.shape_cast %530 : vector<1x8x64xbf16> to vector<8x64xbf16>
    %532 = tpu.concatenate %527, %529, %531 in 1 : vector<8x64xbf16>, vector<8x64xbf16>, vector<8x64xbf16> -> vector<8x192xbf16>
    %c7_644 = arith.constant 7 : index
    %c0_645 = arith.constant 0 : index
    %c0_646 = arith.constant 0 : index
    %533 = vector.load %arg10[%c7_644, %c0_645, %c0_646] : memref<10x10x64xbf16, #tpu.memory_space<vmem>>, vector<1x8x64xbf16>
    %534 = vector.shape_cast %533 : vector<1x8x64xbf16> to vector<8x64xbf16>
    %c7_647 = arith.constant 7 : index
    %c1_648 = arith.constant 1 : index
    %c0_649 = arith.constant 0 : index
    %535 = vector.load %arg10[%c7_647, %c1_648, %c0_649] : memref<10x10x64xbf16, #tpu.memory_space<vmem>>, vector<1x8x64xbf16>
    %536 = vector.shape_cast %535 : vector<1x8x64xbf16> to vector<8x64xbf16>
    %c7_650 = arith.constant 7 : index
    %c2_651 = arith.constant 2 : index
    %c0_652 = arith.constant 0 : index
    %537 = vector.load %arg10[%c7_650, %c2_651, %c0_652] : memref<10x10x64xbf16, #tpu.memory_space<vmem>>, vector<1x8x64xbf16>
    %538 = vector.shape_cast %537 : vector<1x8x64xbf16> to vector<8x64xbf16>
    %539 = tpu.concatenate %534, %536, %538 in 1 : vector<8x64xbf16>, vector<8x64xbf16>, vector<8x64xbf16> -> vector<8x192xbf16>
    %540 = tpu.concatenate %490, %497, %504 in 1 : vector<8x192xbf16>, vector<8x192xbf16>, vector<8x192xbf16> -> vector<8x576xbf16>
    %c0_653 = arith.constant 0 : index
    %c0_654 = arith.constant 0 : index
    %541 = vector.load %arg4[%c0_653, %c0_654] : memref<576x128xbf16, #tpu.memory_space<vmem>>, vector<576x128xbf16>
    %cst_655 = arith.constant dense<0.000000e+00> : vector<8x128xf32>
    %542 = tpu.matmul %540, %541, %cst_655 {dimension_numbers = #tpu.dot_dimension_numbers<[1], [0], [0], [1], [0, 0, 1, 1], [], []>} : vector<8x576xbf16>, vector<576x128xbf16>, vector<8x128xf32> -> vector<8x128xf32>
    %543 = tpu.concatenate %497, %504, %511 in 1 : vector<8x192xbf16>, vector<8x192xbf16>, vector<8x192xbf16> -> vector<8x576xbf16>
    %c0_656 = arith.constant 0 : index
    %c0_657 = arith.constant 0 : index
    %544 = vector.load %arg4[%c0_656, %c0_657] : memref<576x128xbf16, #tpu.memory_space<vmem>>, vector<576x128xbf16>
    %cst_658 = arith.constant dense<0.000000e+00> : vector<8x128xf32>
    %545 = tpu.matmul %543, %544, %cst_658 {dimension_numbers = #tpu.dot_dimension_numbers<[1], [0], [0], [1], [0, 0, 1, 1], [], []>} : vector<8x576xbf16>, vector<576x128xbf16>, vector<8x128xf32> -> vector<8x128xf32>
    %546 = arith.maximumf %542, %545 : vector<8x128xf32>
    %547 = tpu.concatenate %504, %511, %518 in 1 : vector<8x192xbf16>, vector<8x192xbf16>, vector<8x192xbf16> -> vector<8x576xbf16>
    %c0_659 = arith.constant 0 : index
    %c0_660 = arith.constant 0 : index
    %548 = vector.load %arg4[%c0_659, %c0_660] : memref<576x128xbf16, #tpu.memory_space<vmem>>, vector<576x128xbf16>
    %cst_661 = arith.constant dense<0.000000e+00> : vector<8x128xf32>
    %549 = tpu.matmul %547, %548, %cst_661 {dimension_numbers = #tpu.dot_dimension_numbers<[1], [0], [0], [1], [0, 0, 1, 1], [], []>} : vector<8x576xbf16>, vector<576x128xbf16>, vector<8x128xf32> -> vector<8x128xf32>
    %550 = arith.maximumf %546, %549 : vector<8x128xf32>
    %c0_662 = arith.constant 0 : index
    %c0_663 = arith.constant 0 : index
    %551 = vector.load %arg11[%c0_662, %c0_663] : memref<8x128xf32, #tpu.memory_space<vmem>>, vector<8x128xf32>
    tpu.vector_store %arg11[%c0_662, %c0_663], %550 {strides = array<i32>} : memref<8x128xf32, #tpu.memory_space<vmem>>, vector<8x128xf32>,
    %c0_664 = arith.constant 0 : index
    %c0_665 = arith.constant 0 : index
    %552 = tpu.strided_load %arg11[%c0_664, %c0_665] {strides = array<i32: 3, 1>} : memref<8x128xf32, #tpu.memory_space<vmem>>, vector<2x128xf32>
    %c1_666 = arith.constant 1 : index
    %c0_667 = arith.constant 0 : index
    %553 = tpu.strided_load %arg11[%c1_666, %c0_667] {strides = array<i32: 3, 1>} : memref<8x128xf32, #tpu.memory_space<vmem>>, vector<2x128xf32>
    %554 = arith.maximumf %552, %553 : vector<2x128xf32>
    %c2_668 = arith.constant 2 : index
    %c0_669 = arith.constant 0 : index
    %555 = tpu.strided_load %arg11[%c2_668, %c0_669] {strides = array<i32: 3, 1>} : memref<8x128xf32, #tpu.memory_space<vmem>>, vector<2x128xf32>
    %556 = arith.maximumf %554, %555 : vector<2x128xf32>
    %c0_670 = arith.constant 0 : index
    %c0_671 = arith.constant 0 : index
    %557 = vector.load %arg5[%c0_670, %c0_671] : memref<1x128xf32, #tpu.memory_space<vmem>>, vector<1x128xf32>
    %558 = vector.broadcast %557 : vector<1x128xf32> to vector<2x128xf32>
    %559 = arith.addf %556, %558 : vector<2x128xf32>
    %cst_672 = arith.constant 0.000000e+00 : f32
    %560 = vector.broadcast %cst_672 : f32 to vector<2x128xf32>
    %561 = arith.maximumf %559, %560 : vector<2x128xf32>
    %562 = tpu.concatenate %511, %518, %525 in 1 : vector<8x192xbf16>, vector<8x192xbf16>, vector<8x192xbf16> -> vector<8x576xbf16>
    %c0_673 = arith.constant 0 : index
    %c0_674 = arith.constant 0 : index
    %563 = vector.load %arg4[%c0_673, %c0_674] : memref<576x128xbf16, #tpu.memory_space<vmem>>, vector<576x128xbf16>
    %cst_675 = arith.constant dense<0.000000e+00> : vector<8x128xf32>
    %564 = tpu.matmul %562, %563, %cst_675 {dimension_numbers = #tpu.dot_dimension_numbers<[1], [0], [0], [1], [0, 0, 1, 1], [], []>} : vector<8x576xbf16>, vector<576x128xbf16>, vector<8x128xf32> -> vector<8x128xf32>
    %565 = tpu.concatenate %518, %525, %532 in 1 : vector<8x192xbf16>, vector<8x192xbf16>, vector<8x192xbf16> -> vector<8x576xbf16>
    %c0_676 = arith.constant 0 : index
    %c0_677 = arith.constant 0 : index
    %566 = vector.load %arg4[%c0_676, %c0_677] : memref<576x128xbf16, #tpu.memory_space<vmem>>, vector<576x128xbf16>
    %cst_678 = arith.constant dense<0.000000e+00> : vector<8x128xf32>
    %567 = tpu.matmul %565, %566, %cst_678 {dimension_numbers = #tpu.dot_dimension_numbers<[1], [0], [0], [1], [0, 0, 1, 1], [], []>} : vector<8x576xbf16>, vector<576x128xbf16>, vector<8x128xf32> -> vector<8x128xf32>
    %568 = arith.maximumf %564, %567 : vector<8x128xf32>
    %569 = tpu.concatenate %525, %532, %539 in 1 : vector<8x192xbf16>, vector<8x192xbf16>, vector<8x192xbf16> -> vector<8x576xbf16>
    %c0_679 = arith.constant 0 : index
    %c0_680 = arith.constant 0 : index
    %570 = vector.load %arg4[%c0_679, %c0_680] : memref<576x128xbf16, #tpu.memory_space<vmem>>, vector<576x128xbf16>
    %cst_681 = arith.constant dense<0.000000e+00> : vector<8x128xf32>
    %571 = tpu.matmul %569, %570, %cst_681 {dimension_numbers = #tpu.dot_dimension_numbers<[1], [0], [0], [1], [0, 0, 1, 1], [], []>} : vector<8x576xbf16>, vector<576x128xbf16>, vector<8x128xf32> -> vector<8x128xf32>
    %572 = arith.maximumf %568, %571 : vector<8x128xf32>
    %c0_682 = arith.constant 0 : index
    %c0_683 = arith.constant 0 : index
    %573 = vector.load %arg11[%c0_682, %c0_683] : memref<8x128xf32, #tpu.memory_space<vmem>>, vector<8x128xf32>
    tpu.vector_store %arg11[%c0_682, %c0_683], %572 {strides = array<i32>} : memref<8x128xf32, #tpu.memory_space<vmem>>, vector<8x128xf32>,
    %c0_684 = arith.constant 0 : index
    %c0_685 = arith.constant 0 : index
    %574 = tpu.strided_load %arg11[%c0_684, %c0_685] {strides = array<i32: 3, 1>} : memref<8x128xf32, #tpu.memory_space<vmem>>, vector<2x128xf32>
    %c1_686 = arith.constant 1 : index
    %c0_687 = arith.constant 0 : index
    %575 = tpu.strided_load %arg11[%c1_686, %c0_687] {strides = array<i32: 3, 1>} : memref<8x128xf32, #tpu.memory_space<vmem>>, vector<2x128xf32>
    %576 = arith.maximumf %574, %575 : vector<2x128xf32>
    %c2_688 = arith.constant 2 : index
    %c0_689 = arith.constant 0 : index
    %577 = tpu.strided_load %arg11[%c2_688, %c0_689] {strides = array<i32: 3, 1>} : memref<8x128xf32, #tpu.memory_space<vmem>>, vector<2x128xf32>
    %578 = arith.maximumf %576, %577 : vector<2x128xf32>
    %c0_690 = arith.constant 0 : index
    %c0_691 = arith.constant 0 : index
    %579 = vector.load %arg5[%c0_690, %c0_691] : memref<1x128xf32, #tpu.memory_space<vmem>>, vector<1x128xf32>
    %580 = vector.broadcast %579 : vector<1x128xf32> to vector<2x128xf32>
    %581 = arith.addf %578, %580 : vector<2x128xf32>
    %cst_692 = arith.constant 0.000000e+00 : f32
    %582 = vector.broadcast %cst_692 : f32 to vector<2x128xf32>
    %583 = arith.maximumf %581, %582 : vector<2x128xf32>
    %c0_693 = arith.constant 0 : index
    %c0_694 = arith.constant 0 : index
    %584 = vector.load %arg7[%c0_693, %c0_694] : memref<1x128xf32, #tpu.memory_space<vmem>>, vector<1x128xf32>
    %585 = vector.extract_strided_slice %561 {offsets = [0, 0], sizes = [1, 128], strides = [1, 1]} : vector<2x128xf32> to vector<1x128xf32>
    %586 = arith.truncf %585 : vector<1x128xf32> to vector<1x128xbf16>
    %c0_695 = arith.constant 0 : index
    %c0_696 = arith.constant 0 : index
    %c0_697 = arith.constant 0 : index
    %587 = vector.load %arg6[%c0_695, %c0_696, %c0_697] : memref<4x128x128xbf16, #tpu.memory_space<vmem>>, vector<1x128x128xbf16>
    %588 = vector.shape_cast %587 : vector<1x128x128xbf16> to vector<128x128xbf16>
    %cst_698 = arith.constant dense<0.000000e+00> : vector<1x128xf32>
    %589 = tpu.matmul %586, %588, %cst_698 {dimension_numbers = #tpu.dot_dimension_numbers<[1], [0], [0], [1], [0, 0, 1, 1], [], []>} : vector<1x128xbf16>, vector<128x128xbf16>, vector<1x128xf32> -> vector<1x128xf32>
    %590 = arith.addf %584, %589 : vector<1x128xf32>
    %591 = vector.extract_strided_slice %561 {offsets = [1, 0], sizes = [1, 128], strides = [1, 1]} : vector<2x128xf32> to vector<1x128xf32>
    %592 = arith.truncf %591 : vector<1x128xf32> to vector<1x128xbf16>
    %c1_699 = arith.constant 1 : index
    %c0_700 = arith.constant 0 : index
    %c0_701 = arith.constant 0 : index
    %593 = vector.load %arg6[%c1_699, %c0_700, %c0_701] : memref<4x128x128xbf16, #tpu.memory_space<vmem>>, vector<1x128x128xbf16>
    %594 = vector.shape_cast %593 : vector<1x128x128xbf16> to vector<128x128xbf16>
    %cst_702 = arith.constant dense<0.000000e+00> : vector<1x128xf32>
    %595 = tpu.matmul %592, %594, %cst_702 {dimension_numbers = #tpu.dot_dimension_numbers<[1], [0], [0], [1], [0, 0, 1, 1], [], []>} : vector<1x128xbf16>, vector<128x128xbf16>, vector<1x128xf32> -> vector<1x128xf32>
    %596 = arith.addf %590, %595 : vector<1x128xf32>
    %597 = vector.extract_strided_slice %583 {offsets = [0, 0], sizes = [1, 128], strides = [1, 1]} : vector<2x128xf32> to vector<1x128xf32>
    %598 = arith.truncf %597 : vector<1x128xf32> to vector<1x128xbf16>
    %c2_703 = arith.constant 2 : index
    %c0_704 = arith.constant 0 : index
    %c0_705 = arith.constant 0 : index
    %599 = vector.load %arg6[%c2_703, %c0_704, %c0_705] : memref<4x128x128xbf16, #tpu.memory_space<vmem>>, vector<1x128x128xbf16>
    %600 = vector.shape_cast %599 : vector<1x128x128xbf16> to vector<128x128xbf16>
    %cst_706 = arith.constant dense<0.000000e+00> : vector<1x128xf32>
    %601 = tpu.matmul %598, %600, %cst_706 {dimension_numbers = #tpu.dot_dimension_numbers<[1], [0], [0], [1], [0, 0, 1, 1], [], []>} : vector<1x128xbf16>, vector<128x128xbf16>, vector<1x128xf32> -> vector<1x128xf32>
    %602 = arith.addf %596, %601 : vector<1x128xf32>
    %603 = vector.extract_strided_slice %583 {offsets = [1, 0], sizes = [1, 128], strides = [1, 1]} : vector<2x128xf32> to vector<1x128xf32>
    %604 = arith.truncf %603 : vector<1x128xf32> to vector<1x128xbf16>
    %c3_707 = arith.constant 3 : index
    %c0_708 = arith.constant 0 : index
    %c0_709 = arith.constant 0 : index
    %605 = vector.load %arg6[%c3_707, %c0_708, %c0_709] : memref<4x128x128xbf16, #tpu.memory_space<vmem>>, vector<1x128x128xbf16>
    %606 = vector.shape_cast %605 : vector<1x128x128xbf16> to vector<128x128xbf16>
    %cst_710 = arith.constant dense<0.000000e+00> : vector<1x128xf32>
    %607 = tpu.matmul %604, %606, %cst_710 {dimension_numbers = #tpu.dot_dimension_numbers<[1], [0], [0], [1], [0, 0, 1, 1], [], []>} : vector<1x128xbf16>, vector<128x128xbf16>, vector<1x128xf32> -> vector<1x128xf32>
    %608 = arith.addf %602, %607 : vector<1x128xf32>
    %cst_711 = arith.constant 0.000000e+00 : f32
    %609 = vector.broadcast %cst_711 : f32 to vector<1x128xf32>
    %610 = arith.subf %609, %608 : vector<1x128xf32>
    %611 = math.exp %610 : vector<1x128xf32>
    %cst_712 = arith.constant 1.000000e+00 : f32
    %612 = vector.broadcast %cst_712 : f32 to vector<1x128xf32>
    %613 = arith.addf %612, %611 : vector<1x128xf32>
    %614 = tpu.reciprocal %613 {approx = true} : vector<1x128xf32> -> vector<1x128xf32>
    %cst_713 = arith.constant 0.000000e+00 : f32
    %615 = vector.broadcast %cst_713 : f32 to vector<1x128xf32>
    %616 = arith.cmpf ogt, %608, %615 : vector<1x128xf32>
    %cst_714 = arith.constant 0.000000e+00 : f32
    %617 = vector.broadcast %cst_714 : f32 to vector<1x128xf32>
    %618 = arith.minimumf %608, %617 : vector<1x128xf32>
    %619 = math.exp %618 : vector<1x128xf32>
    %cst_715 = arith.constant 1.000000e+00 : f32
    %620 = vector.broadcast %cst_715 : f32 to vector<1x128xf32>
    %621 = arith.subf %619, %620 : vector<1x128xf32>
    %cst_716 = arith.constant 2.000000e-01 : f32
    %622 = vector.broadcast %cst_716 : f32 to vector<1x128xf32>
    %623 = arith.mulf %622, %621 : vector<1x128xf32>
    %624 = arith.select %616, %608, %623 : vector<1x128xi1>, vector<1x128xf32>
    %cst_717 = arith.constant 1.000000e+00 : f32
    %625 = vector.broadcast %cst_717 : f32 to vector<1x128xf32>
    %626 = arith.addf %624, %625 : vector<1x128xf32>
    %627 = tpu.concatenate %614, %626 in 0 : vector<1x128xf32>, vector<1x128xf32> -> vector<2x128xf32>
    %c0_718 = arith.constant 0 : index
    %c0_719 = arith.constant 0 : index
    %c0_720 = arith.constant 0 : index
    %628 = vector.load %arg8[%c0_718, %c0_719, %c0_720] : memref<1x2x128xf32, #tpu.memory_space<vmem>>, vector<1x2x128xf32>
    %629 = vector.shape_cast %628 : vector<1x2x128xf32> to vector<2x128xf32>
    %630 = vector.shape_cast %627 : vector<2x128xf32> to vector<1x2x128xf32>
    tpu.vector_store %arg8[%c0_718, %c0_719, %c0_720], %630 {strides = array<i32>} : memref<1x2x128xf32, #tpu.memory_space<vmem>>, vector<1x2x128xf32>,
    return
  }
  func.func @transform_0(%arg0: i32) -> (i32, i32, i32, i32) {
    %c0_i32 = arith.constant 0 : i32
    %c0_i32_0 = arith.constant 0 : i32
    %c0_i32_1 = arith.constant 0 : i32
    %c0_i32_2 = arith.constant 0 : i32
    return %arg0, %c0_i32, %c0_i32_0, %c0_i32_1 : i32, i32, i32, i32
  }
  func.func @transform_1(%arg0: i32) -> (i32, i32) {
    %c0_i32 = arith.constant 0 : i32
    %c0_i32_0 = arith.constant 0 : i32
    %c0_i32_1 = arith.constant 0 : i32
    return %c0_i32, %c0_i32_0 : i32, i32
  }
  func.func @transform_2(%arg0: i32) -> (i32, i32) {
    %c0_i32 = arith.constant 0 : i32
    %c0_i32_0 = arith.constant 0 : i32
    %c0_i32_1 = arith.constant 0 : i32
    return %c0_i32, %c0_i32_0 : i32, i32
  }
  func.func @transform_3(%arg0: i32) -> (i32, i32) {
    %c0_i32 = arith.constant 0 : i32
    %c0_i32_0 = arith.constant 0 : i32
    %c0_i32_1 = arith.constant 0 : i32
    return %c0_i32, %c0_i32_0 : i32, i32
  }
  func.func @transform_4(%arg0: i32) -> (i32, i32) {
    %c0_i32 = arith.constant 0 : i32
    %c0_i32_0 = arith.constant 0 : i32
    %c0_i32_1 = arith.constant 0 : i32
    return %c0_i32, %c0_i32_0 : i32, i32
  }
  func.func @transform_5(%arg0: i32) -> (i32, i32, i32) {
    %c0_i32 = arith.constant 0 : i32
    %c0_i32_0 = arith.constant 0 : i32
    %c0_i32_1 = arith.constant 0 : i32
    %c0_i32_2 = arith.constant 0 : i32
    return %c0_i32, %c0_i32_0, %c0_i32_1 : i32, i32, i32
  }
  func.func @transform_6(%arg0: i32) -> (i32, i32) {
    %c0_i32 = arith.constant 0 : i32
    %c0_i32_0 = arith.constant 0 : i32
    %c0_i32_1 = arith.constant 0 : i32
    return %c0_i32, %c0_i32_0 : i32, i32
  }
  func.func @transform_7(%arg0: i32) -> (i32, i32, i32) {
    %c0_i32 = arith.constant 0 : i32
    %c0_i32_0 = arith.constant 0 : i32
    %c0_i32_1 = arith.constant 0 : i32
    return %arg0, %c0_i32, %c0_i32_0 : i32, i32, i32
  }
}

</mosaic_0001>

<llo_original>
// kernel: autocalibration11_forward.1
$region0: #{autocalibration11_forward.1}
  #allocation0 [shape = 'u32[]', space=smem, size = 0x4, offset = 0x4, fixed_abs, tag = 'smem constant byte address 0x4 - core index']
  #allocation1 [shape = 'u32[144,128]{1,0:T(1,128)}', space=vmem, size = 0x12000, scoped, tag = 'internal scratch']
  #allocation2 [shape = 'f32[30,64]{1,0:T(8,128)}', space=vmem, size = 0x4000, scoped, tag = 'scratch operand']
  #allocation3 [shape = 'bf16[10,10,64]{2,1,0:T(8,128)(2,1)}', space=vmem, size = 0xa000, scoped, tag = 'scratch operand']
  #allocation4 [shape = 'f32[8,128]{1,0:T(8,128)}', space=vmem, size = 0x1000, scoped, tag = 'scratch operand']
  %s0 = inlined_call_operand.vmem [shape: bf16[2,32,32,4], index: 0, kind: input, shape index: {}]
  %s1 = inlined_call_operand.vmem [shape: bf16[36,64], index: 1, kind: input, shape index: {}]
  %s2 = inlined_call_operand.vmem [shape: f32[1,64], index: 2, kind: input, shape index: {}]
  %s3 = inlined_call_operand.vmem [shape: bf16[576,128], index: 3, kind: input, shape index: {}]
  %s4 = inlined_call_operand.vmem [shape: f32[1,128], index: 4, kind: input, shape index: {}]
  %s5 = inlined_call_operand.vmem [shape: bf16[4,128,128], index: 5, kind: input, shape index: {}]
  %s6 = inlined_call_operand.vmem [shape: f32[1,128], index: 6, kind: input, shape index: {}]
  %s7 = inlined_call_operand.vmem [shape: f32[2,2,128], index: 7, kind: output, shape index: {}]
  %s8 = sld [smem:[#allocation0]]
  $region61: #{autocalibration11_forward.1} parent=0
    _
  %s10 = ssub.s32 1, %s8
  %s11 = scalar_select 0, %s10, %s8
  loop: start=0, step=1, limit=4
  $region2: #{autocalibration11_forward.1} parent=0 // loop_pre_header
    _
  $region3: #{autocalibration11_forward.1} parent=0 // loop_header
    %s13 = sphi 0, %s17
    %p14 = scmp.ge.s32.totalorder %s13, 4
    %s23 = sphi 0, %s25
    %s26 = sphi 0, %s23
    %s27 = sphi 0, %s26
    %s43 = sphi 0, %s27
    %s47 = sphi 0, %s47
    %s49 = sphi 0, %s47
    %s50 = sphi 0, %s49
    %s64 = sphi 0, %s50
    %s68 = sphi 0, %s68
    %s70 = sphi 0, %s68
    %s71 = sphi 0, %s70
    %s85 = sphi 0, %s71
    %s89 = sphi 0, %s89
    %s91 = sphi 0, %s89
    %s92 = sphi 0, %s91
    %s106 = sphi 0, %s92
    %s110 = sphi 0, %s110
    %s112 = sphi 0, %s110
    %s113 = sphi 0, %s112
    %s127 = sphi 0, %s113
    %s131 = sphi 0, %s131
    %s133 = sphi 0, %s131
    %s134 = sphi 0, %s133
    %s148 = sphi 0, %s134
    %s152 = sphi 0, %s152
    %s154 = sphi 0, %s152
    %s155 = sphi 0, %s154
    %s169 = sphi 0, %s155
    %s175 = sphi 0, %s177
    %s178 = sphi 0, %s175
    %s179 = sphi 0, %s178
    %s195 = sphi 0, %s179
  $region4: #{autocalibration11_forward.1} parent=0 // loop_header_branch
    %16 = sbr.rel (%p14) target = $region8
  $region5: #{autocalibration11_forward.1} parent=0 // loop_body
    %s18 = ssub.s32 %s13, 1
    %s19 = ssub.s32 %s13, 2
    %s20 = sadd.s32 %s13, 1
    %s21 = ssub.s32 %s13, %s20
    %p22 = scmp.eq.s32.totalorder %s21, 0
    %s24 = sadd.s32 %s23, 1
    %s25 = scalar_select %p22, %s23, %s24
    %p28 = pneg %p22
    %p29 = scmp.eq.s32.totalorder %s13, 1
    %p30 = por %p28, %p29
    %p31 = scmp.ne.s32.totalorder %s23, %s26
    %p32 = scmp.eq.s32.totalorder %s13, 0
    %p33 = por %p31, %p32
    %p34 = scmp.ne.s32.totalorder %s23, %s26
    %p35 = scmp.eq.s32.totalorder %s18, 1
    %p36 = por %p34, %p35
    %p37 = scmp.ne.s32.totalorder %s26, %s27
    %p38 = scmp.eq.s32.totalorder %s18, 0
    %p39 = por %p37, %p38
    %p40 = scmp.ne.s32.totalorder %s26, %s27
    %p41 = scmp.eq.s32.totalorder %s19, 1
    %p42 = por %p40, %p41
    %p44 = scmp.ne.s32.totalorder %s27, %s43
    %p45 = scmp.eq.s32.totalorder %s19, 0
    %p46 = por %p44, %p45
    %s48 = sadd.s32 %s47, 1
    %p51 = scmp.eq.s32.totalorder %s13, 1
    %p52 = scmp.ne.s32.totalorder %s47, %s49
    %p53 = scmp.eq.s32.totalorder %s13, 0
    %p54 = por %p52, %p53
    %p55 = scmp.ne.s32.totalorder %s47, %s49
    %p56 = scmp.eq.s32.totalorder %s18, 1
    %p57 = por %p55, %p56
    %p58 = scmp.ne.s32.totalorder %s49, %s50
    %p59 = scmp.eq.s32.totalorder %s18, 0
    %p60 = por %p58, %p59
    %p61 = scmp.ne.s32.totalorder %s49, %s50
    %p62 = scmp.eq.s32.totalorder %s19, 1
    %p63 = por %p61, %p62
    %p65 = scmp.ne.s32.totalorder %s50, %s64
    %p66 = scmp.eq.s32.totalorder %s19, 0
    %p67 = por %p65, %p66
    %s69 = sadd.s32 %s68, 1
    %p72 = scmp.eq.s32.totalorder %s13, 1
    %p73 = scmp.ne.s32.totalorder %s68, %s70
    %p74 = scmp.eq.s32.totalorder %s13, 0
    %p75 = por %p73, %p74
    %p76 = scmp.ne.s32.totalorder %s68, %s70
    %p77 = scmp.eq.s32.totalorder %s18, 1
    %p78 = por %p76, %p77
    %p79 = scmp.ne.s32.totalorder %s70, %s71
    %p80 = scmp.eq.s32.totalorder %s18, 0
    %p81 = por %p79, %p80
    %p82 = scmp.ne.s32.totalorder %s70, %s71
    %p83 = scmp.eq.s32.totalorder %s19, 1
    %p84 = por %p82, %p83
    %p86 = scmp.ne.s32.totalorder %s71, %s85
    %p87 = scmp.eq.s32.totalorder %s19, 0
    %p88 = por %p86, %p87
    %s90 = sadd.s32 %s89, 1
    %p93 = scmp.eq.s32.totalorder %s13, 1
    %p94 = scmp.ne.s32.totalorder %s89, %s91
    %p95 = scmp.eq.s32.totalorder %s13, 0
    %p96 = por %p94, %p95
    %p97 = scmp.ne.s32.totalorder %s89, %s91
    %p98 = scmp.eq.s32.totalorder %s18, 1
    %p99 = por %p97, %p98
    %p100 = scmp.ne.s32.totalorder %s91, %s92
    %p101 = scmp.eq.s32.totalorder %s18, 0
    %p102 = por %p100, %p101
    %p103 = scmp.ne.s32.totalorder %s91, %s92
    %p104 = scmp.eq.s32.totalorder %s19, 1
    %p105 = por %p103, %p104
    %p107 = scmp.ne.s32.totalorder %s92, %s106
    %p108 = scmp.eq.s32.totalorder %s19, 0
    %p109 = por %p107, %p108
    %s111 = sadd.s32 %s110, 1
    %p114 = scmp.eq.s32.totalorder %s13, 1
    %p115 = scmp.ne.s32.totalorder %s110, %s112
    %p116 = scmp.eq.s32.totalorder %s13, 0
    %p117 = por %p115, %p116
    %p118 = scmp.ne.s32.totalorder %s110, %s112
    %p119 = scmp.eq.s32.totalorder %s18, 1
    %p120 = por %p118, %p119
    %p121 = scmp.ne.s32.totalorder %s112, %s113
    %p122 = scmp.eq.s32.totalorder %s18, 0
    %p123 = por %p121, %p122
    %p124 = scmp.ne.s32.totalorder %s112, %s113
    %p125 = scmp.eq.s32.totalorder %s19, 1
    %p126 = por %p124, %p125
    %p128 = scmp.ne.s32.totalorder %s113, %s127
    %p129 = scmp.eq.s32.totalorder %s19, 0
    %p130 = por %p128, %p129
    %s132 = sadd.s32 %s131, 1
    %p135 = scmp.eq.s32.totalorder %s13, 1
    %p136 = scmp.ne.s32.totalorder %s131, %s133
    %p137 = scmp.eq.s32.totalorder %s13, 0
    %p138 = por %p136, %p137
    %p139 = scmp.ne.s32.totalorder %s131, %s133
    %p140 = scmp.eq.s32.totalorder %s18, 1
    %p141 = por %p139, %p140
    %p142 = scmp.ne.s32.totalorder %s133, %s134
    %p143 = scmp.eq.s32.totalorder %s18, 0
    %p144 = por %p142, %p143
    %p145 = scmp.ne.s32.totalorder %s133, %s134
    %p146 = scmp.eq.s32.totalorder %s19, 1
    %p147 = por %p145, %p146
    %p149 = scmp.ne.s32.totalorder %s134, %s148
    %p150 = scmp.eq.s32.totalorder %s19, 0
    %p151 = por %p149, %p150
    %s153 = sadd.s32 %s152, 1
    %p156 = scmp.eq.s32.totalorder %s13, 1
    %p157 = scmp.ne.s32.totalorder %s152, %s154
    %p158 = scmp.eq.s32.totalorder %s13, 0
    %p159 = por %p157, %p158
    %p160 = scmp.ne.s32.totalorder %s152, %s154
    %p161 = scmp.eq.s32.totalorder %s18, 1
    %p162 = por %p160, %p161
    %p163 = scmp.ne.s32.totalorder %s154, %s155
    %p164 = scmp.eq.s32.totalorder %s18, 0
    %p165 = por %p163, %p164
    %p166 = scmp.ne.s32.totalorder %s154, %s155
    %p167 = scmp.eq.s32.totalorder %s19, 1
    %p168 = por %p166, %p167
    %p170 = scmp.ne.s32.totalorder %s155, %s169
    %p171 = scmp.eq.s32.totalorder %s19, 0
    %p172 = por %p170, %p171
    %s173 = ssub.s32 %s13, %s20
    %p174 = scmp.eq.s32.totalorder %s173, 0
    %s176 = sadd.s32 %s175, 1
    %s177 = scalar_select %p174, %s175, %s176
    %p180 = pneg %p174
    %p181 = scmp.eq.s32.totalorder %s13, 1
    %p182 = por %p180, %p181
    %p183 = scmp.ne.s32.totalorder %s175, %s178
    %p184 = scmp.eq.s32.totalorder %s13, 0
    %p185 = por %p183, %p184
    %p186 = scmp.ne.s32.totalorder %s175, %s178
    %p187 = scmp.eq.s32.totalorder %s18, 1
    %p188 = por %p186, %p187
    %p189 = scmp.ne.s32.totalorder %s178, %s179
    %p190 = scmp.eq.s32.totalorder %s18, 0
    %p191 = por %p189, %p190
    %p192 = scmp.ne.s32.totalorder %s178, %s179
    %p193 = scmp.eq.s32.totalorder %s19, 1
    %p194 = por %p192, %p193
    %p196 = scmp.ne.s32.totalorder %s179, %s195
    %p197 = scmp.eq.s32.totalorder %s19, 0
    %p198 = por %p196, %p197
    %p199 = scmp.le.s32.totalorder 1, %s13
    %p200 = scmp.lt.s32.totalorder %s13, 3
    %p201 = pnand %p199, %p200
    %p202 = pneg %p201
    // Predicated region
    $region9: #{autocalibration11_forward.1} parent=5 // pred_check
      _
    $region10: #{autocalibration11_forward.1} parent=5 // pred_check_branch
      %204 = sbr.rel (%p201) target = $region12
    $region11: #{autocalibration11_forward.1} parent=5 // pred_region
      %s205 = ssub.s32 %s13, 1
      // Predicated region
      $region13: #{autocalibration11_forward.1} parent=11 // pred_check
        %p206 = pneg %p60
      $region14: #{autocalibration11_forward.1} parent=11 // pred_check_branch
        %208 = sbr.rel (%p206) target = $region16
      $region15: #{autocalibration11_forward.1} parent=11 // pred_region
        _
      $region16: #{autocalibration11_forward.1} parent=11 // pred_fallthru
        _
      // Predicated region
      $region17: #{autocalibration11_forward.1} parent=11 // pred_check
        %p209 = pneg %p81
      $region18: #{autocalibration11_forward.1} parent=11 // pred_check_branch
        %211 = sbr.rel (%p209) target = $region20
      $region19: #{autocalibration11_forward.1} parent=11 // pred_region
        _
      $region20: #{autocalibration11_forward.1} parent=11 // pred_fallthru
        _
      // Predicated region
      $region21: #{autocalibration11_forward.1} parent=11 // pred_check
        %p212 = pneg %p102
      $region22: #{autocalibration11_forward.1} parent=11 // pred_check_branch
        %214 = sbr.rel (%p212) target = $region24
      $region23: #{autocalibration11_forward.1} parent=11 // pred_region
        _
      $region24: #{autocalibration11_forward.1} parent=11 // pred_fallthru
        _
      // Predicated region
      $region25: #{autocalibration11_forward.1} parent=11 // pred_check
        %p215 = pneg %p123
      $region26: #{autocalibration11_forward.1} parent=11 // pred_check_branch
        %217 = sbr.rel (%p215) target = $region28
      $region27: #{autocalibration11_forward.1} parent=11 // pred_region
        _
      $region28: #{autocalibration11_forward.1} parent=11 // pred_fallthru
        _
      // Predicated region
      $region29: #{autocalibration11_forward.1} parent=11 // pred_check
        %p218 = pneg %p144
      $region30: #{autocalibration11_forward.1} parent=11 // pred_check_branch
        %220 = sbr.rel (%p218) target = $region32
      $region31: #{autocalibration11_forward.1} parent=11 // pred_region
        _
      $region32: #{autocalibration11_forward.1} parent=11 // pred_fallthru
        _
      // Predicated region
      $region33: #{autocalibration11_forward.1} parent=11 // pred_check
        %p221 = pneg %p165
      $region34: #{autocalibration11_forward.1} parent=11 // pred_check_branch
        %223 = sbr.rel (%p221) target = $region36
      $region35: #{autocalibration11_forward.1} parent=11 // pred_region
        _
      $region36: #{autocalibration11_forward.1} parent=11 // pred_fallthru
        _
    $region12: #{autocalibration11_forward.1} parent=5 // pred_fallthru
      _
    %p224 = scmp.lt.s32.totalorder %s13, 2
    // Predicated region
    $region37: #{autocalibration11_forward.1} parent=5 // pred_check
      %p225 = pneg %p224
    $region38: #{autocalibration11_forward.1} parent=5 // pred_check_branch
      %227 = sbr.rel (%p225) target = $region40
    $region39: #{autocalibration11_forward.1} parent=5 // pred_region
      // Predicated region
      $region41: #{autocalibration11_forward.1} parent=39 // pred_check
        %p228 = pneg %p33
      $region42: #{autocalibration11_forward.1} parent=39 // pred_check_branch
        %230 = sbr.rel (%p228) target = $region44
      $region43: #{autocalibration11_forward.1} parent=39 // pred_region
        %p231 = scmp.lt.s32.totalorder %s13, 1
        %s232 = scalar_select %p231, %s13, 1
        %s233 = smul.addr %s232, 128
        %s234 = smul.addr %s233, 4
        %s235 = scalar_lea.vmem %s0, %s234
      $region44: #{autocalibration11_forward.1} parent=39 // pred_fallthru
        _
    $region40: #{autocalibration11_forward.1} parent=5 // pred_fallthru
      _
    %p236 = scmp.le.s32.totalorder 1, %s13
    %p237 = scmp.lt.s32.totalorder %s13, 3
    %p238 = pnand %p236, %p237
    %p239 = pneg %p238
    // Predicated region
    $region45: #{autocalibration11_forward.1} parent=5 // pred_check
      _
    $region46: #{autocalibration11_forward.1} parent=5 // pred_check_branch
      %241 = sbr.rel (%p238) target = $region48
    $region47: #{autocalibration11_forward.1} parent=5 // pred_region
      %s242 = ssub.s32 %s13, 1
      %p243 = scmp.lt.s32.totalorder %s18, 1
      %s244 = scalar_select %p243, %s18, 1
      %s245 = smul.addr %s244, 128
      %s246 = smul.addr %s245, 4
      %s247 = scalar_lea.vmem %s0, %s246
      %p248 = pneg %p39
      %p249 = pneg %p36
      %p250 = pneg %p60
      %p251 = pneg %p57
      %p252 = pneg %p81
      %p253 = pneg %p78
      %p254 = pneg %p102
      %p255 = pneg %p99
      %p256 = pneg %p123
      %p257 = pneg %p120
      %p258 = pneg %p144
      %p259 = pneg %p141
      %p260 = pneg %p165
      %p261 = pneg %p162
      %p262 = pneg %p191
      %p263 = pneg %p188
      %p264 = scmp.lt.s32.totalorder %s18, 1
      %s265 = scalar_select %p264, %s18, 1
      %s266 = smul.addr %s265, 2
      %s267 = scalar_lea.vmem %s7, %s266
      %p268 = scmp.lt.s32.totalorder %s18, 1
      %s269 = scalar_select %p268, %s18, 1
      %s270 = smul.addr %s269, 128
      %s271 = smul.addr %s270, 4
      %s272 = scalar_lea.vmem %s0, %s271
      %p273 = scmp.lt.s32.totalorder %s18, 1
      %s274 = scalar_select %p273, %s18, 1
      %s275 = smul.addr %s274, 2
      %s276 = scalar_lea.vmem %s7, %s275
      %v278 = vld [vmem:[%s272] sm:$0xf]
      %v279 = vld [vmem:[%s272 + $0x4] sm:$0xf]
      %v280 = vld [vmem:[%s272 + $0x8] sm:$0xf]
      %v281 = vld [vmem:[%s272 + $0xc] sm:$0x7]
      %v282 = vld [vmem:[%s272 + $0xc] sm:$0xf]
      %v283 = vld [vmem:[%s272] sm:$0xe]
      %v288 = vunpack.c.l.b16 %v278
      %v289 = vunpack.c.l.b16 %v279
      %v290 = vunpack.c.l.b16 %v280
      %v291 = vunpack.c.l.b16 %v281
      %v292 = vpack.c.b16 %v289, %v288
      %v293 = vpack.c.b16 %v291, %v290
      %v295 = vunpack.c.l.b16 %v282
      %v296 = vpack.c.b16 %v295, %v290
      %vm297 = vsmask.f32 7424
      %v299 = vshrl.u32 %v292, 16
      %v301 = vshll.u32 %v292, 16
      %v303 = vrot.slane %v301, 1
      %v304 = vor.u32 %v299, %v303
      %v306 = vshll.u32 %v296, 16
      %v308 = vrot.slane %v306, 1
      %v309 = vsel %vm297, %v304, %v308
      %v310 = vshrl.u32 %v296, 16
      %v312 = vor.u32 %v310, %v308
      %313 = vrot.lane.b32.xlu0 %v309, 4
      %v314 = vpop.permute.xlu0 %313
      %315 = vrot.lane.b32.xlu0 %v312, 4
      %v316 = vpop.permute.xlu0 %315
      %v318 = vunpack.c.l.b16 %v283
      %v319 = vpack.c.b16 %v289, %v318
      %vm320 = vcmask 1046528
      %v321 = vrot.slane %v319, 1
      %v322 = vrot.slane %v296, 1
      %v323 = vsel %vm320, %v321, %v322
      %324 = vrot.lane.b32.xlu0 %v323, 8
      %v325 = vpop.permute.xlu0 %324
      %326 = vrot.lane.b32.xlu0 %v322, 8
      %v327 = vpop.permute.xlu0 %326
      %vm328 = vcmask 31744
      %v330 = vsel %vm328, %v292, %v314
      %v333 = vsel %vm328, %v293, %v316
      %vm334 = vcmask 64512
      %v336 = vsel %vm334, %v330, %v325
      %v338 = vsel %vm334, %v333, %v327
      %s339 = scalar_lea.vmem %s272, 16
      %v340 = vld [vmem:[%s339] sm:$0xf]
      %v341 = vld [vmem:[%s339 + $0x4] sm:$0xf]
      %v342 = vld [vmem:[%s339 + $0x8] sm:$0xf]
      %v343 = vld [vmem:[%s339 + $0xc] sm:$0x7]
      %v344 = vld [vmem:[%s339 + $0xc] sm:$0xf]
      %v345 = vld [vmem:[%s339] sm:$0xe]
      %v350 = vunpack.c.l.b16 %v340
      %v351 = vunpack.c.l.b16 %v341
      %v352 = vunpack.c.l.b16 %v342
      %v353 = vunpack.c.l.b16 %v343
      %v354 = vpack.c.b16 %v351, %v350
      %v355 = vpack.c.b16 %v353, %v352
      %v357 = vunpack.c.l.b16 %v344
      %v358 = vpack.c.b16 %v357, %v352
      %v360 = vshrl.u32 %v354, 16
      %v362 = vshll.u32 %v354, 16
      %v364 = vrot.slane %v362, 1
      %v365 = vor.u32 %v360, %v364
      %v367 = vshll.u32 %v358, 16
      %v369 = vrot.slane %v367, 1
      %v370 = vsel %vm297, %v365, %v369
      %v371 = vshrl.u32 %v358, 16
      %v373 = vor.u32 %v371, %v369
      %374 = vrot.lane.b32.xlu0 %v370, 4
      %v375 = vpop.permute.xlu0 %374
      %376 = vrot.lane.b32.xlu0 %v373, 4
      %v377 = vpop.permute.xlu0 %376
      %v379 = vunpack.c.l.b16 %v345
      %v380 = vpack.c.b16 %v351, %v379
      %v381 = vrot.slane %v380, 1
      %v382 = vrot.slane %v358, 1
      %v383 = vsel %vm320, %v381, %v382
      %384 = vrot.lane.b32.xlu0 %v383, 8
      %v385 = vpop.permute.xlu0 %384
      %386 = vrot.lane.b32.xlu0 %v382, 8
      %v387 = vpop.permute.xlu0 %386
      %v389 = vsel %vm328, %v354, %v375
      %v392 = vsel %vm328, %v355, %v377
      %v394 = vsel %vm334, %v389, %v385
      %v396 = vsel %vm334, %v392, %v387
      %s397 = scalar_lea.vmem %s272, 32
      %v398 = vld [vmem:[%s397] sm:$0xf]
      %v399 = vld [vmem:[%s397 + $0x4] sm:$0xf]
      %v400 = vld [vmem:[%s397 + $0x8] sm:$0xf]
      %v401 = vld [vmem:[%s397 + $0xc] sm:$0x7]
      %v402 = vld [vmem:[%s397 + $0xc] sm:$0xf]
      %v403 = vld [vmem:[%s397] sm:$0xe]
      %v408 = vunpack.c.l.b16 %v398
      %v409 = vunpack.c.l.b16 %v399
      %v410 = vunpack.c.l.b16 %v400
      %v411 = vunpack.c.l.b16 %v401
      %v412 = vpack.c.b16 %v409, %v408
      %v413 = vpack.c.b16 %v411, %v410
      %v415 = vunpack.c.l.b16 %v402
      %v416 = vpack.c.b16 %v415, %v410
      %v418 = vshrl.u32 %v412, 16
      %v420 = vshll.u32 %v412, 16
      %v422 = vrot.slane %v420, 1
      %v423 = vor.u32 %v418, %v422
      %v425 = vshll.u32 %v416, 16
      %v427 = vrot.slane %v425, 1
      %v428 = vsel %vm297, %v423, %v427
      %v429 = vshrl.u32 %v416, 16
      %v431 = vor.u32 %v429, %v427
      %432 = vrot.lane.b32.xlu0 %v428, 4
      %v433 = vpop.permute.xlu0 %432
      %434 = vrot.lane.b32.xlu0 %v431, 4
      %v435 = vpop.permute.xlu0 %434
      %v437 = vunpack.c.l.b16 %v403
      %v438 = vpack.c.b16 %v409, %v437
      %v439 = vrot.slane %v438, 1
      %v440 = vrot.slane %v416, 1
      %v441 = vsel %vm320, %v439, %v440
      %442 = vrot.lane.b32.xlu0 %v441, 8
      %v443 = vpop.permute.xlu0 %442
      %444 = vrot.lane.b32.xlu0 %v440, 8
      %v445 = vpop.permute.xlu0 %444
      %v447 = vsel %vm328, %v412, %v433
      %v450 = vsel %vm328, %v413, %v435
      %v452 = vsel %vm334, %v447, %v443
      %v454 = vsel %vm334, %v450, %v445
      %s455 = scalar_lea.vmem %s272, 48
      %v456 = vld [vmem:[%s455] sm:$0xf]
      %v457 = vld [vmem:[%s455 + $0x4] sm:$0xf]
      %v458 = vld [vmem:[%s455 + $0x8] sm:$0xf]
      %v459 = vld [vmem:[%s455 + $0xc] sm:$0x7]
      %v460 = vld [vmem:[%s455 + $0xc] sm:$0xf]
      %v461 = vld [vmem:[%s455] sm:$0xe]
      %v466 = vunpack.c.l.b16 %v456
      %v467 = vunpack.c.l.b16 %v457
      %v468 = vunpack.c.l.b16 %v458
      %v469 = vunpack.c.l.b16 %v459
      %v470 = vpack.c.b16 %v467, %v466
      %v471 = vpack.c.b16 %v469, %v468
      %v473 = vunpack.c.l.b16 %v460
      %v474 = vpack.c.b16 %v473, %v468
      %v476 = vshrl.u32 %v470, 16
      %v478 = vshll.u32 %v470, 16
      %v480 = vrot.slane %v478, 1
      %v481 = vor.u32 %v476, %v480
      %v483 = vshll.u32 %v474, 16
      %v485 = vrot.slane %v483, 1
      %v486 = vsel %vm297, %v481, %v485
      %v487 = vshrl.u32 %v474, 16
      %v489 = vor.u32 %v487, %v485
      %490 = vrot.lane.b32.xlu0 %v486, 4
      %v491 = vpop.permute.xlu0 %490
      %492 = vrot.lane.b32.xlu0 %v489, 4
      %v493 = vpop.permute.xlu0 %492
      %v495 = vunpack.c.l.b16 %v461
      %v496 = vpack.c.b16 %v467, %v495
      %v497 = vrot.slane %v496, 1
      %v498 = vrot.slane %v474, 1
      %v499 = vsel %vm320, %v497, %v498
      %500 = vrot.lane.b32.xlu0 %v499, 8
      %v501 = vpop.permute.xlu0 %500
      %502 = vrot.lane.b32.xlu0 %v498, 8
      %v503 = vpop.permute.xlu0 %502
      %v505 = vsel %vm328, %v470, %v491
      %v508 = vsel %vm328, %v471, %v493
      %v510 = vsel %vm334, %v505, %v501
      %v512 = vsel %vm334, %v508, %v503
      %s513 = scalar_lea.vmem %s272, 64
      %v514 = vld [vmem:[%s513] sm:$0xf]
      %v515 = vld [vmem:[%s513 + $0x4] sm:$0xf]
      %v516 = vld [vmem:[%s513 + $0x8] sm:$0xf]
      %v517 = vld [vmem:[%s513 + $0xc] sm:$0x7]
      %v518 = vld [vmem:[%s513 + $0xc] sm:$0xf]
      %v519 = vld [vmem:[%s513] sm:$0xe]
      %v524 = vunpack.c.l.b16 %v514
      %v525 = vunpack.c.l.b16 %v515
      %v526 = vunpack.c.l.b16 %v516
      %v527 = vunpack.c.l.b16 %v517
      %v528 = vpack.c.b16 %v525, %v524
      %v529 = vpack.c.b16 %v527, %v526
      %v531 = vunpack.c.l.b16 %v518
      %v532 = vpack.c.b16 %v531, %v526
      %v534 = vshrl.u32 %v528, 16
      %v536 = vshll.u32 %v528, 16
      %v538 = vrot.slane %v536, 1
      %v539 = vor.u32 %v534, %v538
      %v541 = vshll.u32 %v532, 16
      %v543 = vrot.slane %v541, 1
      %v544 = vsel %vm297, %v539, %v543
      %v545 = vshrl.u32 %v532, 16
      %v547 = vor.u32 %v545, %v543
      %548 = vrot.lane.b32.xlu0 %v544, 4
      %v549 = vpop.permute.xlu0 %548
      %550 = vrot.lane.b32.xlu0 %v547, 4
      %v551 = vpop.permute.xlu0 %550
      %v553 = vunpack.c.l.b16 %v519
      %v554 = vpack.c.b16 %v525, %v553
      %v555 = vrot.slane %v554, 1
      %v556 = vrot.slane %v532, 1
      %v557 = vsel %vm320, %v555, %v556
      %558 = vrot.lane.b32.xlu0 %v557, 8
      %v559 = vpop.permute.xlu0 %558
      %560 = vrot.lane.b32.xlu0 %v556, 8
      %v561 = vpop.permute.xlu0 %560
      %v563 = vsel %vm328, %v528, %v549
      %v566 = vsel %vm328, %v529, %v551
      %v568 = vsel %vm334, %v563, %v559
      %v570 = vsel %vm334, %v566, %v561
      %s571 = scalar_lea.vmem %s272, 80
      %v572 = vld [vmem:[%s571] sm:$0xf]
      %v573 = vld [vmem:[%s571 + $0x4] sm:$0xf]
      %v574 = vld [vmem:[%s571 + $0x8] sm:$0xf]
      %v575 = vld [vmem:[%s571 + $0xc] sm:$0x7]
      %v576 = vld [vmem:[%s571 + $0xc] sm:$0xf]
      %v577 = vld [vmem:[%s571] sm:$0xe]
      %v582 = vunpack.c.l.b16 %v572
      %v583 = vunpack.c.l.b16 %v573
      %v584 = vunpack.c.l.b16 %v574
      %v585 = vunpack.c.l.b16 %v575
      %v586 = vpack.c.b16 %v583, %v582
      %v587 = vpack.c.b16 %v585, %v584
      %v589 = vunpack.c.l.b16 %v576
      %v590 = vpack.c.b16 %v589, %v584
      %v592 = vshrl.u32 %v586, 16
      %v594 = vshll.u32 %v586, 16
      %v596 = vrot.slane %v594, 1
      %v597 = vor.u32 %v592, %v596
      %v599 = vshll.u32 %v590, 16
      %v601 = vrot.slane %v599, 1
      %v602 = vsel %vm297, %v597, %v601
      %v603 = vshrl.u32 %v590, 16
      %v605 = vor.u32 %v603, %v601
      %606 = vrot.lane.b32.xlu0 %v602, 4
      %v607 = vpop.permute.xlu0 %606
      %608 = vrot.lane.b32.xlu0 %v605, 4
      %v609 = vpop.permute.xlu0 %608
      %v611 = vunpack.c.l.b16 %v577
      %v612 = vpack.c.b16 %v583, %v611
      %v613 = vrot.slane %v612, 1
      %v614 = vrot.slane %v590, 1
      %v615 = vsel %vm320, %v613, %v614
      %616 = vrot.lane.b32.xlu0 %v615, 8
      %v617 = vpop.permute.xlu0 %616
      %618 = vrot.lane.b32.xlu0 %v614, 8
      %v619 = vpop.permute.xlu0 %618
      %v621 = vsel %vm328, %v586, %v607
      %v624 = vsel %vm328, %v587, %v609
      %v626 = vsel %vm334, %v621, %v617
      %v628 = vsel %vm334, %v624, %v619
      %s629 = scalar_lea.vmem %s272, 96
      %v630 = vld [vmem:[%s629] sm:$0xf]
      %v631 = vld [vmem:[%s629 + $0x4] sm:$0xf]
      %v632 = vld [vmem:[%s629 + $0x8] sm:$0xf]
      %v633 = vld [vmem:[%s629 + $0xc] sm:$0x7]
      %v634 = vld [vmem:[%s629 + $0xc] sm:$0xf]
      %v635 = vld [vmem:[%s629] sm:$0xe]
      %v640 = vunpack.c.l.b16 %v630
      %v641 = vunpack.c.l.b16 %v631
      %v642 = vunpack.c.l.b16 %v632
      %v643 = vunpack.c.l.b16 %v633
      %v644 = vpack.c.b16 %v641, %v640
      %v645 = vpack.c.b16 %v643, %v642
      %v647 = vunpack.c.l.b16 %v634
      %v648 = vpack.c.b16 %v647, %v642
      %v650 = vshrl.u32 %v644, 16
      %v652 = vshll.u32 %v644, 16
      %v654 = vrot.slane %v652, 1
      %v655 = vor.u32 %v650, %v654
      %v657 = vshll.u32 %v648, 16
      %v659 = vrot.slane %v657, 1
      %v660 = vsel %vm297, %v655, %v659
      %v661 = vshrl.u32 %v648, 16
      %v663 = vor.u32 %v661, %v659
      %664 = vrot.lane.b32.xlu0 %v660, 4
      %v665 = vpop.permute.xlu0 %664
      %666 = vrot.lane.b32.xlu0 %v663, 4
      %v667 = vpop.permute.xlu0 %666
      %v669 = vunpack.c.l.b16 %v635
      %v670 = vpack.c.b16 %v641, %v669
      %v671 = vrot.slane %v670, 1
      %v672 = vrot.slane %v648, 1
      %v673 = vsel %vm320, %v671, %v672
      %674 = vrot.lane.b32.xlu0 %v673, 8
      %v675 = vpop.permute.xlu0 %674
      %676 = vrot.lane.b32.xlu0 %v672, 8
      %v677 = vpop.permute.xlu0 %676
      %v679 = vsel %vm328, %v644, %v665
      %v682 = vsel %vm328, %v645, %v667
      %v684 = vsel %vm334, %v679, %v675
      %v686 = vsel %vm334, %v682, %v677
      %s687 = scalar_lea.vmem %s272, 112
      %v688 = vld [vmem:[%s687] sm:$0xf]
      %v689 = vld [vmem:[%s687 + $0x4] sm:$0xf]
      %v690 = vld [vmem:[%s687 + $0x8] sm:$0xf]
      %v691 = vld [vmem:[%s687 + $0xc] sm:$0x7]
      %v692 = vld [vmem:[%s687 + $0xc] sm:$0xf]
      %v693 = vld [vmem:[%s687] sm:$0xe]
      %v698 = vunpack.c.l.b16 %v688
      %v699 = vunpack.c.l.b16 %v689
      %v700 = vunpack.c.l.b16 %v690
      %v701 = vunpack.c.l.b16 %v691
      %v702 = vpack.c.b16 %v699, %v698
      %v703 = vpack.c.b16 %v701, %v700
      %v705 = vunpack.c.l.b16 %v692
      %v706 = vpack.c.b16 %v705, %v700
      %v708 = vshrl.u32 %v702, 16
      %v710 = vshll.u32 %v702, 16
      %v712 = vrot.slane %v710, 1
      %v713 = vor.u32 %v708, %v712
      %v715 = vshll.u32 %v706, 16
      %v717 = vrot.slane %v715, 1
      %v718 = vsel %vm297, %v713, %v717
      %v719 = vshrl.u32 %v706, 16
      %v721 = vor.u32 %v719, %v717
      %722 = vrot.lane.b32.xlu0 %v718, 4
      %v723 = vpop.permute.xlu0 %722
      %724 = vrot.lane.b32.xlu0 %v721, 4
      %v725 = vpop.permute.xlu0 %724
      %v727 = vunpack.c.l.b16 %v693
      %v728 = vpack.c.b16 %v699, %v727
      %v729 = vrot.slane %v728, 1
      %v730 = vrot.slane %v706, 1
      %v731 = vsel %vm320, %v729, %v730
      %732 = vrot.lane.b32.xlu0 %v731, 8
      %v733 = vpop.permute.xlu0 %732
      %734 = vrot.lane.b32.xlu0 %v730, 8
      %v735 = vpop.permute.xlu0 %734
      %v737 = vsel %vm328, %v702, %v723
      %v740 = vsel %vm328, %v703, %v725
      %v742 = vsel %vm334, %v737, %v733
      %v744 = vsel %vm334, %v740, %v735
      %s745 = scalar_lea.vmem %s272, 128
      %v746 = vld [vmem:[%s745] sm:$0xf]
      %v747 = vld [vmem:[%s745 + $0x4] sm:$0xf]
      %v748 = vld [vmem:[%s745 + $0x8] sm:$0xf]
      %v749 = vld [vmem:[%s745 + $0xc] sm:$0x7]
      %v750 = vld [vmem:[%s745 + $0xc] sm:$0xf]
      %v751 = vld [vmem:[%s745] sm:$0xe]
      %v756 = vunpack.c.l.b16 %v746
      %v757 = vunpack.c.l.b16 %v747
      %v758 = vunpack.c.l.b16 %v748
      %v759 = vunpack.c.l.b16 %v749
      %v760 = vpack.c.b16 %v757, %v756
      %v761 = vpack.c.b16 %v759, %v758
      %v763 = vunpack.c.l.b16 %v750
      %v764 = vpack.c.b16 %v763, %v758
      %v766 = vshrl.u32 %v760, 16
      %v768 = vshll.u32 %v760, 16
      %v770 = vrot.slane %v768, 1
      %v771 = vor.u32 %v766, %v770
      %v773 = vshll.u32 %v764, 16
      %v775 = vrot.slane %v773, 1
      %v776 = vsel %vm297, %v771, %v775
      %v777 = vshrl.u32 %v764, 16
      %v779 = vor.u32 %v777, %v775
      %780 = vrot.lane.b32.xlu0 %v776, 4
      %v781 = vpop.permute.xlu0 %780
      %782 = vrot.lane.b32.xlu0 %v779, 4
      %v783 = vpop.permute.xlu0 %782
      %v785 = vunpack.c.l.b16 %v751
      %v786 = vpack.c.b16 %v757, %v785
      %v787 = vrot.slane %v786, 1
      %v788 = vrot.slane %v764, 1
      %v789 = vsel %vm320, %v787, %v788
      %790 = vrot.lane.b32.xlu0 %v789, 8
      %v791 = vpop.permute.xlu0 %790
      %792 = vrot.lane.b32.xlu0 %v788, 8
      %v793 = vpop.permute.xlu0 %792
      %v795 = vsel %vm328, %v760, %v781
      %v798 = vsel %vm328, %v761, %v783
      %v800 = vsel %vm334, %v795, %v791
      %v802 = vsel %vm334, %v798, %v793
      %s803 = scalar_lea.vmem %s272, 144
      %v804 = vld [vmem:[%s803] sm:$0xf]
      %v805 = vld [vmem:[%s803 + $0x4] sm:$0xf]
      %v806 = vld [vmem:[%s803 + $0x8] sm:$0xf]
      %v807 = vld [vmem:[%s803 + $0xc] sm:$0x7]
      %v808 = vld [vmem:[%s803 + $0xc] sm:$0xf]
      %v809 = vld [vmem:[%s803] sm:$0xe]
      %v814 = vunpack.c.l.b16 %v804
      %v815 = vunpack.c.l.b16 %v805
      %v816 = vunpack.c.l.b16 %v806
      %v817 = vunpack.c.l.b16 %v807
      %v818 = vpack.c.b16 %v815, %v814
      %v819 = vpack.c.b16 %v817, %v816
      %v821 = vunpack.c.l.b16 %v808
      %v822 = vpack.c.b16 %v821, %v816
      %v824 = vshrl.u32 %v818, 16
      %v826 = vshll.u32 %v818, 16
      %v828 = vrot.slane %v826, 1
      %v829 = vor.u32 %v824, %v828
      %v831 = vshll.u32 %v822, 16
      %v833 = vrot.slane %v831, 1
      %v834 = vsel %vm297, %v829, %v833
      %v835 = vshrl.u32 %v822, 16
      %v837 = vor.u32 %v835, %v833
      %838 = vrot.lane.b32.xlu0 %v834, 4
      %v839 = vpop.permute.xlu0 %838
      %840 = vrot.lane.b32.xlu0 %v837, 4
      %v841 = vpop.permute.xlu0 %840
      %v843 = vunpack.c.l.b16 %v809
      %v844 = vpack.c.b16 %v815, %v843
      %v845 = vrot.slane %v844, 1
      %v846 = vrot.slane %v822, 1
      %v847 = vsel %vm320, %v845, %v846
      %848 = vrot.lane.b32.xlu0 %v847, 8
      %v849 = vpop.permute.xlu0 %848
      %850 = vrot.lane.b32.xlu0 %v846, 8
      %v851 = vpop.permute.xlu0 %850
      %v853 = vsel %vm328, %v818, %v839
      %v856 = vsel %vm328, %v819, %v841
      %v858 = vsel %vm334, %v853, %v849
      %v860 = vsel %vm334, %v856, %v851
      %s861 = scalar_lea.vmem %s272, 160
      %v862 = vld [vmem:[%s861] sm:$0xf]
      %v863 = vld [vmem:[%s861 + $0x4] sm:$0xf]
      %v864 = vld [vmem:[%s861 + $0x8] sm:$0xf]
      %v865 = vld [vmem:[%s861 + $0xc] sm:$0x7]
      %v866 = vld [vmem:[%s861 + $0xc] sm:$0xf]
      %v867 = vld [vmem:[%s861] sm:$0xe]
      %v872 = vunpack.c.l.b16 %v862
      %v873 = vunpack.c.l.b16 %v863
      %v874 = vunpack.c.l.b16 %v864
      %v875 = vunpack.c.l.b16 %v865
      %v876 = vpack.c.b16 %v873, %v872
      %v877 = vpack.c.b16 %v875, %v874
      %v879 = vunpack.c.l.b16 %v866
      %v880 = vpack.c.b16 %v879, %v874
      %v882 = vshrl.u32 %v876, 16
      %v884 = vshll.u32 %v876, 16
      %v886 = vrot.slane %v884, 1
      %v887 = vor.u32 %v882, %v886
      %v889 = vshll.u32 %v880, 16
      %v891 = vrot.slane %v889, 1
      %v892 = vsel %vm297, %v887, %v891
      %v893 = vshrl.u32 %v880, 16
      %v895 = vor.u32 %v893, %v891
      %896 = vrot.lane.b32.xlu0 %v892, 4
      %v897 = vpop.permute.xlu0 %896
      %898 = vrot.lane.b32.xlu0 %v895, 4
      %v899 = vpop.permute.xlu0 %898
      %v901 = vunpack.c.l.b16 %v867
      %v902 = vpack.c.b16 %v873, %v901
      %v903 = vrot.slane %v902, 1
      %v904 = vrot.slane %v880, 1
      %v905 = vsel %vm320, %v903, %v904
      %906 = vrot.lane.b32.xlu0 %v905, 8
      %v907 = vpop.permute.xlu0 %906
      %908 = vrot.lane.b32.xlu0 %v904, 8
      %v909 = vpop.permute.xlu0 %908
      %v911 = vsel %vm328, %v876, %v897
      %v914 = vsel %vm328, %v877, %v899
      %v916 = vsel %vm334, %v911, %v907
      %v918 = vsel %vm334, %v914, %v909
      %s919 = scalar_lea.vmem %s272, 176
      %v920 = vld [vmem:[%s919] sm:$0xf]
      %v921 = vld [vmem:[%s919 + $0x4] sm:$0xf]
      %v922 = vld [vmem:[%s919 + $0x8] sm:$0xf]
      %v923 = vld [vmem:[%s919 + $0xc] sm:$0x7]
      %v924 = vld [vmem:[%s919 + $0xc] sm:$0xf]
      %v925 = vld [vmem:[%s919] sm:$0xe]
      %v930 = vunpack.c.l.b16 %v920
      %v931 = vunpack.c.l.b16 %v921
      %v932 = vunpack.c.l.b16 %v922
      %v933 = vunpack.c.l.b16 %v923
      %v934 = vpack.c.b16 %v931, %v930
      %v935 = vpack.c.b16 %v933, %v932
      %v937 = vunpack.c.l.b16 %v924
      %v938 = vpack.c.b16 %v937, %v932
      %v940 = vshrl.u32 %v934, 16
      %v942 = vshll.u32 %v934, 16
      %v944 = vrot.slane %v942, 1
      %v945 = vor.u32 %v940, %v944
      %v947 = vshll.u32 %v938, 16
      %v949 = vrot.slane %v947, 1
      %v950 = vsel %vm297, %v945, %v949
      %v951 = vshrl.u32 %v938, 16
      %v953 = vor.u32 %v951, %v949
      %954 = vrot.lane.b32.xlu0 %v950, 4
      %v955 = vpop.permute.xlu0 %954
      %956 = vrot.lane.b32.xlu0 %v953, 4
      %v957 = vpop.permute.xlu0 %956
      %v959 = vunpack.c.l.b16 %v925
      %v960 = vpack.c.b16 %v931, %v959
      %v961 = vrot.slane %v960, 1
      %v962 = vrot.slane %v938, 1
      %v963 = vsel %vm320, %v961, %v962
      %964 = vrot.lane.b32.xlu0 %v963, 8
      %v965 = vpop.permute.xlu0 %964
      %966 = vrot.lane.b32.xlu0 %v962, 8
      %v967 = vpop.permute.xlu0 %966
      %v969 = vsel %vm328, %v934, %v955
      %v972 = vsel %vm328, %v935, %v957
      %v974 = vsel %vm334, %v969, %v965
      %v976 = vsel %vm334, %v972, %v967
      %s977 = scalar_lea.vmem %s272, 192
      %v978 = vld [vmem:[%s977] sm:$0xf]
      %v979 = vld [vmem:[%s977 + $0x4] sm:$0xf]
      %v980 = vld [vmem:[%s977 + $0x8] sm:$0xf]
      %v981 = vld [vmem:[%s977 + $0xc] sm:$0x7]
      %v982 = vld [vmem:[%s977 + $0xc] sm:$0xf]
      %v983 = vld [vmem:[%s977] sm:$0xe]
      %v988 = vunpack.c.l.b16 %v978
      %v989 = vunpack.c.l.b16 %v979
      %v990 = vunpack.c.l.b16 %v980
      %v991 = vunpack.c.l.b16 %v981
      %v992 = vpack.c.b16 %v989, %v988
      %v993 = vpack.c.b16 %v991, %v990
      %v995 = vunpack.c.l.b16 %v982
      %v996 = vpack.c.b16 %v995, %v990
      %v998 = vshrl.u32 %v992, 16
      %v1000 = vshll.u32 %v992, 16
      %v1002 = vrot.slane %v1000, 1
      %v1003 = vor.u32 %v998, %v1002
      %v1005 = vshll.u32 %v996, 16
      %v1007 = vrot.slane %v1005, 1
      %v1008 = vsel %vm297, %v1003, %v1007
      %v1009 = vshrl.u32 %v996, 16
      %v1011 = vor.u32 %v1009, %v1007
      %1012 = vrot.lane.b32.xlu0 %v1008, 4
      %v1013 = vpop.permute.xlu0 %1012
      %1014 = vrot.lane.b32.xlu0 %v1011, 4
      %v1015 = vpop.permute.xlu0 %1014
      %v1017 = vunpack.c.l.b16 %v983
      %v1018 = vpack.c.b16 %v989, %v1017
      %v1019 = vrot.slane %v1018, 1
      %v1020 = vrot.slane %v996, 1
      %v1021 = vsel %vm320, %v1019, %v1020
      %1022 = vrot.lane.b32.xlu0 %v1021, 8
      %v1023 = vpop.permute.xlu0 %1022
      %1024 = vrot.lane.b32.xlu0 %v1020, 8
      %v1025 = vpop.permute.xlu0 %1024
      %v1027 = vsel %vm328, %v992, %v1013
      %v1030 = vsel %vm328, %v993, %v1015
      %v1032 = vsel %vm334, %v1027, %v1023
      %v1034 = vsel %vm334, %v1030, %v1025
      %s1035 = scalar_lea.vmem %s272, 208
      %v1036 = vld [vmem:[%s1035] sm:$0xf]
      %v1037 = vld [vmem:[%s1035 + $0x4] sm:$0xf]
      %v1038 = vld [vmem:[%s1035 + $0x8] sm:$0xf]
      %v1039 = vld [vmem:[%s1035 + $0xc] sm:$0x7]
      %v1040 = vld [vmem:[%s1035 + $0xc] sm:$0xf]
      %v1041 = vld [vmem:[%s1035] sm:$0xe]
      %v1046 = vunpack.c.l.b16 %v1036
      %v1047 = vunpack.c.l.b16 %v1037
      %v1048 = vunpack.c.l.b16 %v1038
      %v1049 = vunpack.c.l.b16 %v1039
      %v1050 = vpack.c.b16 %v1047, %v1046
      %v1051 = vpack.c.b16 %v1049, %v1048
      %v1053 = vunpack.c.l.b16 %v1040
      %v1054 = vpack.c.b16 %v1053, %v1048
      %v1056 = vshrl.u32 %v1050, 16
      %v1058 = vshll.u32 %v1050, 16
      %v1060 = vrot.slane %v1058, 1
      %v1061 = vor.u32 %v1056, %v1060
      %v1063 = vshll.u32 %v1054, 16
      %v1065 = vrot.slane %v1063, 1
      %v1066 = vsel %vm297, %v1061, %v1065
      %v1067 = vshrl.u32 %v1054, 16
      %v1069 = vor.u32 %v1067, %v1065
      %1070 = vrot.lane.b32.xlu0 %v1066, 4
      %v1071 = vpop.permute.xlu0 %1070
      %1072 = vrot.lane.b32.xlu0 %v1069, 4
      %v1073 = vpop.permute.xlu0 %1072
      %v1075 = vunpack.c.l.b16 %v1041
      %v1076 = vpack.c.b16 %v1047, %v1075
      %v1077 = vrot.slane %v1076, 1
      %v1078 = vrot.slane %v1054, 1
      %v1079 = vsel %vm320, %v1077, %v1078
      %1080 = vrot.lane.b32.xlu0 %v1079, 8
      %v1081 = vpop.permute.xlu0 %1080
      %1082 = vrot.lane.b32.xlu0 %v1078, 8
      %v1083 = vpop.permute.xlu0 %1082
      %v1085 = vsel %vm328, %v1050, %v1071
      %v1088 = vsel %vm328, %v1051, %v1073
      %v1090 = vsel %vm334, %v1085, %v1081
      %v1092 = vsel %vm334, %v1088, %v1083
      %s1093 = scalar_lea.vmem %s272, 224
      %v1094 = vld [vmem:[%s1093] sm:$0xf]
      %v1095 = vld [vmem:[%s1093 + $0x4] sm:$0xf]
      %v1096 = vld [vmem:[%s1093 + $0x8] sm:$0xf]
      %v1097 = vld [vmem:[%s1093 + $0xc] sm:$0x7]
      %v1098 = vld [vmem:[%s1093 + $0xc] sm:$0xf]
      %v1099 = vld [vmem:[%s1093] sm:$0xe]
      %v1104 = vunpack.c.l.b16 %v1094
      %v1105 = vunpack.c.l.b16 %v1095
      %v1106 = vunpack.c.l.b16 %v1096
      %v1107 = vunpack.c.l.b16 %v1097
      %v1108 = vpack.c.b16 %v1105, %v1104
      %v1109 = vpack.c.b16 %v1107, %v1106
      %v1111 = vunpack.c.l.b16 %v1098
      %v1112 = vpack.c.b16 %v1111, %v1106
      %v1114 = vshrl.u32 %v1108, 16
      %v1116 = vshll.u32 %v1108, 16
      %v1118 = vrot.slane %v1116, 1
      %v1119 = vor.u32 %v1114, %v1118
      %v1121 = vshll.u32 %v1112, 16
      %v1123 = vrot.slane %v1121, 1
      %v1124 = vsel %vm297, %v1119, %v1123
      %v1125 = vshrl.u32 %v1112, 16
      %v1127 = vor.u32 %v1125, %v1123
      %1128 = vrot.lane.b32.xlu0 %v1124, 4
      %v1129 = vpop.permute.xlu0 %1128
      %1130 = vrot.lane.b32.xlu0 %v1127, 4
      %v1131 = vpop.permute.xlu0 %1130
      %v1133 = vunpack.c.l.b16 %v1099
      %v1134 = vpack.c.b16 %v1105, %v1133
      %v1135 = vrot.slane %v1134, 1
      %v1136 = vrot.slane %v1112, 1
      %v1137 = vsel %vm320, %v1135, %v1136
      %1138 = vrot.lane.b32.xlu0 %v1137, 8
      %v1139 = vpop.permute.xlu0 %1138
      %1140 = vrot.lane.b32.xlu0 %v1136, 8
      %v1141 = vpop.permute.xlu0 %1140
      %v1143 = vsel %vm328, %v1108, %v1129
      %v1146 = vsel %vm328, %v1109, %v1131
      %v1148 = vsel %vm334, %v1143, %v1139
      %v1150 = vsel %vm334, %v1146, %v1141
      %s1151 = scalar_lea.vmem %s272, 240
      %v1152 = vld [vmem:[%s1151] sm:$0xf]
      %v1153 = vld [vmem:[%s1151 + $0x4] sm:$0xf]
      %v1154 = vld [vmem:[%s1151 + $0x8] sm:$0xf]
      %v1155 = vld [vmem:[%s1151 + $0xc] sm:$0x7]
      %v1156 = vld [vmem:[%s1151 + $0xc] sm:$0xf]
      %v1157 = vld [vmem:[%s1151] sm:$0xe]
      %v1162 = vunpack.c.l.b16 %v1152
      %v1163 = vunpack.c.l.b16 %v1153
      %v1164 = vunpack.c.l.b16 %v1154
      %v1165 = vunpack.c.l.b16 %v1155
      %v1166 = vpack.c.b16 %v1163, %v1162
      %v1167 = vpack.c.b16 %v1165, %v1164
      %v1169 = vunpack.c.l.b16 %v1156
      %v1170 = vpack.c.b16 %v1169, %v1164
      %v1172 = vshrl.u32 %v1166, 16
      %v1174 = vshll.u32 %v1166, 16
      %v1176 = vrot.slane %v1174, 1
      %v1177 = vor.u32 %v1172, %v1176
      %v1179 = vshll.u32 %v1170, 16
      %v1181 = vrot.slane %v1179, 1
      %v1182 = vsel %vm297, %v1177, %v1181
      %v1183 = vshrl.u32 %v1170, 16
      %v1185 = vor.u32 %v1183, %v1181
      %1186 = vrot.lane.b32.xlu0 %v1182, 4
      %v1187 = vpop.permute.xlu0 %1186
      %1188 = vrot.lane.b32.xlu0 %v1185, 4
      %v1189 = vpop.permute.xlu0 %1188
      %v1191 = vunpack.c.l.b16 %v1157
      %v1192 = vpack.c.b16 %v1163, %v1191
      %v1193 = vrot.slane %v1192, 1
      %v1194 = vrot.slane %v1170, 1
      %v1195 = vsel %vm320, %v1193, %v1194
      %1196 = vrot.lane.b32.xlu0 %v1195, 8
      %v1197 = vpop.permute.xlu0 %1196
      %1198 = vrot.lane.b32.xlu0 %v1194, 8
      %v1199 = vpop.permute.xlu0 %1198
      %v1201 = vsel %vm328, %v1166, %v1187
      %v1204 = vsel %vm328, %v1167, %v1189
      %v1206 = vsel %vm334, %v1201, %v1197
      %v1208 = vsel %vm334, %v1204, %v1199
      %s1209 = scalar_lea.vmem %s272, 256
      %v1210 = vld [vmem:[%s1209] sm:$0xf]
      %v1211 = vld [vmem:[%s1209 + $0x4] sm:$0xf]
      %v1212 = vld [vmem:[%s1209 + $0x8] sm:$0xf]
      %v1213 = vld [vmem:[%s1209 + $0xc] sm:$0x7]
      %v1214 = vld [vmem:[%s1209 + $0xc] sm:$0xf]
      %v1215 = vld [vmem:[%s1209] sm:$0xe]
      %v1220 = vunpack.c.l.b16 %v1210
      %v1221 = vunpack.c.l.b16 %v1211
      %v1222 = vunpack.c.l.b16 %v1212
      %v1223 = vunpack.c.l.b16 %v1213
      %v1224 = vpack.c.b16 %v1221, %v1220
      %v1225 = vpack.c.b16 %v1223, %v1222
      %v1227 = vunpack.c.l.b16 %v1214
      %v1228 = vpack.c.b16 %v1227, %v1222
      %v1230 = vshrl.u32 %v1224, 16
      %v1232 = vshll.u32 %v1224, 16
      %v1234 = vrot.slane %v1232, 1
      %v1235 = vor.u32 %v1230, %v1234
      %v1237 = vshll.u32 %v1228, 16
      %v1239 = vrot.slane %v1237, 1
      %v1240 = vsel %vm297, %v1235, %v1239
      %v1241 = vshrl.u32 %v1228, 16
      %v1243 = vor.u32 %v1241, %v1239
      %1244 = vrot.lane.b32.xlu0 %v1240, 4
      %v1245 = vpop.permute.xlu0 %1244
      %1246 = vrot.lane.b32.xlu0 %v1243, 4
      %v1247 = vpop.permute.xlu0 %1246
      %v1249 = vunpack.c.l.b16 %v1215
      %v1250 = vpack.c.b16 %v1221, %v1249
      %v1251 = vrot.slane %v1250, 1
      %v1252 = vrot.slane %v1228, 1
      %v1253 = vsel %vm320, %v1251, %v1252
      %1254 = vrot.lane.b32.xlu0 %v1253, 8
      %v1255 = vpop.permute.xlu0 %1254
      %1256 = vrot.lane.b32.xlu0 %v1252, 8
      %v1257 = vpop.permute.xlu0 %1256
      %v1259 = vsel %vm328, %v1224, %v1245
      %v1262 = vsel %vm328, %v1225, %v1247
      %v1264 = vsel %vm334, %v1259, %v1255
      %v1266 = vsel %vm334, %v1262, %v1257
      %s1267 = scalar_lea.vmem %s272, 272
      %v1268 = vld [vmem:[%s1267] sm:$0xf]
      %v1269 = vld [vmem:[%s1267 + $0x4] sm:$0xf]
      %v1270 = vld [vmem:[%s1267 + $0x8] sm:$0xf]
      %v1271 = vld [vmem:[%s1267 + $0xc] sm:$0x7]
      %v1272 = vld [vmem:[%s1267 + $0xc] sm:$0xf]
      %v1273 = vld [vmem:[%s1267] sm:$0xe]
      %v1278 = vunpack.c.l.b16 %v1268
      %v1279 = vunpack.c.l.b16 %v1269
      %v1280 = vunpack.c.l.b16 %v1270
      %v1281 = vunpack.c.l.b16 %v1271
      %v1282 = vpack.c.b16 %v1279, %v1278
      %v1283 = vpack.c.b16 %v1281, %v1280
      %v1285 = vunpack.c.l.b16 %v1272
      %v1286 = vpack.c.b16 %v1285, %v1280
      %v1288 = vshrl.u32 %v1282, 16
      %v1290 = vshll.u32 %v1282, 16
      %v1292 = vrot.slane %v1290, 1
      %v1293 = vor.u32 %v1288, %v1292
      %v1295 = vshll.u32 %v1286, 16
      %v1297 = vrot.slane %v1295, 1
      %v1298 = vsel %vm297, %v1293, %v1297
      %v1299 = vshrl.u32 %v1286, 16
      %v1301 = vor.u32 %v1299, %v1297
      %1302 = vrot.lane.b32.xlu0 %v1298, 4
      %v1303 = vpop.permute.xlu0 %1302
      %1304 = vrot.lane.b32.xlu0 %v1301, 4
      %v1305 = vpop.permute.xlu0 %1304
      %v1307 = vunpack.c.l.b16 %v1273
      %v1308 = vpack.c.b16 %v1279, %v1307
      %v1309 = vrot.slane %v1308, 1
      %v1310 = vrot.slane %v1286, 1
      %v1311 = vsel %vm320, %v1309, %v1310
      %1312 = vrot.lane.b32.xlu0 %v1311, 8
      %v1313 = vpop.permute.xlu0 %1312
      %1314 = vrot.lane.b32.xlu0 %v1310, 8
      %v1315 = vpop.permute.xlu0 %1314
      %v1317 = vsel %vm328, %v1282, %v1303
      %v1320 = vsel %vm328, %v1283, %v1305
      %v1322 = vsel %vm334, %v1317, %v1313
      %v1324 = vsel %vm334, %v1320, %v1315
      %s1325 = scalar_lea.vmem %s272, 288
      %v1326 = vld [vmem:[%s1325] sm:$0xf]
      %v1327 = vld [vmem:[%s1325 + $0x4] sm:$0xf]
      %v1328 = vld [vmem:[%s1325 + $0x8] sm:$0xf]
      %v1329 = vld [vmem:[%s1325 + $0xc] sm:$0x7]
      %v1330 = vld [vmem:[%s1325 + $0xc] sm:$0xf]
      %v1331 = vld [vmem:[%s1325] sm:$0xe]
      %v1336 = vunpack.c.l.b16 %v1326
      %v1337 = vunpack.c.l.b16 %v1327
      %v1338 = vunpack.c.l.b16 %v1328
      %v1339 = vunpack.c.l.b16 %v1329
      %v1340 = vpack.c.b16 %v1337, %v1336
      %v1341 = vpack.c.b16 %v1339, %v1338
      %v1343 = vunpack.c.l.b16 %v1330
      %v1344 = vpack.c.b16 %v1343, %v1338
      %v1346 = vshrl.u32 %v1340, 16
      %v1348 = vshll.u32 %v1340, 16
      %v1350 = vrot.slane %v1348, 1
      %v1351 = vor.u32 %v1346, %v1350
      %v1353 = vshll.u32 %v1344, 16
      %v1355 = vrot.slane %v1353, 1
      %v1356 = vsel %vm297, %v1351, %v1355
      %v1357 = vshrl.u32 %v1344, 16
      %v1359 = vor.u32 %v1357, %v1355
      %1360 = vrot.lane.b32.xlu0 %v1356, 4
      %v1361 = vpop.permute.xlu0 %1360
      %1362 = vrot.lane.b32.xlu0 %v1359, 4
      %v1363 = vpop.permute.xlu0 %1362
      %v1365 = vunpack.c.l.b16 %v1331
      %v1366 = vpack.c.b16 %v1337, %v1365
      %v1367 = vrot.slane %v1366, 1
      %v1368 = vrot.slane %v1344, 1
      %v1369 = vsel %vm320, %v1367, %v1368
      %1370 = vrot.lane.b32.xlu0 %v1369, 8
      %v1371 = vpop.permute.xlu0 %1370
      %1372 = vrot.lane.b32.xlu0 %v1368, 8
      %v1373 = vpop.permute.xlu0 %1372
      %v1375 = vsel %vm328, %v1340, %v1361
      %v1378 = vsel %vm328, %v1341, %v1363
      %v1380 = vsel %vm334, %v1375, %v1371
      %v1382 = vsel %vm334, %v1378, %v1373
      %s1383 = scalar_lea.vmem %s272, 304
      %v1384 = vld [vmem:[%s1383] sm:$0xf]
      %v1385 = vld [vmem:[%s1383 + $0x4] sm:$0xf]
      %v1386 = vld [vmem:[%s1383 + $0x8] sm:$0xf]
      %v1387 = vld [vmem:[%s1383 + $0xc] sm:$0x7]
      %v1388 = vld [vmem:[%s1383 + $0xc] sm:$0xf]
      %v1389 = vld [vmem:[%s1383] sm:$0xe]
      %v1394 = vunpack.c.l.b16 %v1384
      %v1395 = vunpack.c.l.b16 %v1385
      %v1396 = vunpack.c.l.b16 %v1386
      %v1397 = vunpack.c.l.b16 %v1387
      %v1398 = vpack.c.b16 %v1395, %v1394
      %v1399 = vpack.c.b16 %v1397, %v1396
      %v1401 = vunpack.c.l.b16 %v1388
      %v1402 = vpack.c.b16 %v1401, %v1396
      %v1404 = vshrl.u32 %v1398, 16
      %v1406 = vshll.u32 %v1398, 16
      %v1408 = vrot.slane %v1406, 1
      %v1409 = vor.u32 %v1404, %v1408
      %v1411 = vshll.u32 %v1402, 16
      %v1413 = vrot.slane %v1411, 1
      %v1414 = vsel %vm297, %v1409, %v1413
      %v1415 = vshrl.u32 %v1402, 16
      %v1417 = vor.u32 %v1415, %v1413
      %1418 = vrot.lane.b32.xlu0 %v1414, 4
      %v1419 = vpop.permute.xlu0 %1418
      %1420 = vrot.lane.b32.xlu0 %v1417, 4
      %v1421 = vpop.permute.xlu0 %1420
      %v1423 = vunpack.c.l.b16 %v1389
      %v1424 = vpack.c.b16 %v1395, %v1423
      %v1425 = vrot.slane %v1424, 1
      %v1426 = vrot.slane %v1402, 1
      %v1427 = vsel %vm320, %v1425, %v1426
      %1428 = vrot.lane.b32.xlu0 %v1427, 8
      %v1429 = vpop.permute.xlu0 %1428
      %1430 = vrot.lane.b32.xlu0 %v1426, 8
      %v1431 = vpop.permute.xlu0 %1430
      %v1433 = vsel %vm328, %v1398, %v1419
      %v1436 = vsel %vm328, %v1399, %v1421
      %v1438 = vsel %vm334, %v1433, %v1429
      %v1440 = vsel %vm334, %v1436, %v1431
      %s1441 = scalar_lea.vmem %s272, 320
      %v1442 = vld [vmem:[%s1441] sm:$0xf]
      %v1443 = vld [vmem:[%s1441 + $0x4] sm:$0xf]
      %v1444 = vld [vmem:[%s1441 + $0x8] sm:$0xf]
      %v1445 = vld [vmem:[%s1441 + $0xc] sm:$0x7]
      %v1446 = vld [vmem:[%s1441 + $0xc] sm:$0xf]
      %v1447 = vld [vmem:[%s1441] sm:$0xe]
      %v1452 = vunpack.c.l.b16 %v1442
      %v1453 = vunpack.c.l.b16 %v1443
      %v1454 = vunpack.c.l.b16 %v1444
      %v1455 = vunpack.c.l.b16 %v1445
      %v1456 = vpack.c.b16 %v1453, %v1452
      %v1457 = vpack.c.b16 %v1455, %v1454
      %v1459 = vunpack.c.l.b16 %v1446
      %v1460 = vpack.c.b16 %v1459, %v1454
      %v1462 = vshrl.u32 %v1456, 16
      %v1464 = vshll.u32 %v1456, 16
      %v1466 = vrot.slane %v1464, 1
      %v1467 = vor.u32 %v1462, %v1466
      %v1469 = vshll.u32 %v1460, 16
      %v1471 = vrot.slane %v1469, 1
      %v1472 = vsel %vm297, %v1467, %v1471
      %v1473 = vshrl.u32 %v1460, 16
      %v1475 = vor.u32 %v1473, %v1471
      %1476 = vrot.lane.b32.xlu0 %v1472, 4
      %v1477 = vpop.permute.xlu0 %1476
      %1478 = vrot.lane.b32.xlu0 %v1475, 4
      %v1479 = vpop.permute.xlu0 %1478
      %v1481 = vunpack.c.l.b16 %v1447
      %v1482 = vpack.c.b16 %v1453, %v1481
      %v1483 = vrot.slane %v1482, 1
      %v1484 = vrot.slane %v1460, 1
      %v1485 = vsel %vm320, %v1483, %v1484
      %1486 = vrot.lane.b32.xlu0 %v1485, 8
      %v1487 = vpop.permute.xlu0 %1486
      %1488 = vrot.lane.b32.xlu0 %v1484, 8
      %v1489 = vpop.permute.xlu0 %1488
      %v1491 = vsel %vm328, %v1456, %v1477
      %v1494 = vsel %vm328, %v1457, %v1479
      %v1496 = vsel %vm334, %v1491, %v1487
      %v1498 = vsel %vm334, %v1494, %v1489
      %s1499 = scalar_lea.vmem %s272, 336
      %v1500 = vld [vmem:[%s1499] sm:$0xf]
      %v1501 = vld [vmem:[%s1499 + $0x4] sm:$0xf]
      %v1502 = vld [vmem:[%s1499 + $0x8] sm:$0xf]
      %v1503 = vld [vmem:[%s1499 + $0xc] sm:$0x7]
      %v1504 = vld [vmem:[%s1499 + $0xc] sm:$0xf]
      %v1505 = vld [vmem:[%s1499] sm:$0xe]
      %v1510 = vunpack.c.l.b16 %v1500
      %v1511 = vunpack.c.l.b16 %v1501
      %v1512 = vunpack.c.l.b16 %v1502
      %v1513 = vunpack.c.l.b16 %v1503
      %v1514 = vpack.c.b16 %v1511, %v1510
      %v1515 = vpack.c.b16 %v1513, %v1512
      %v1517 = vunpack.c.l.b16 %v1504
      %v1518 = vpack.c.b16 %v1517, %v1512
      %v1520 = vshrl.u32 %v1514, 16
      %v1522 = vshll.u32 %v1514, 16
      %v1524 = vrot.slane %v1522, 1
      %v1525 = vor.u32 %v1520, %v1524
      %v1527 = vshll.u32 %v1518, 16
      %v1529 = vrot.slane %v1527, 1
      %v1530 = vsel %vm297, %v1525, %v1529
      %v1531 = vshrl.u32 %v1518, 16
      %v1533 = vor.u32 %v1531, %v1529
      %1534 = vrot.lane.b32.xlu0 %v1530, 4
      %v1535 = vpop.permute.xlu0 %1534
      %1536 = vrot.lane.b32.xlu0 %v1533, 4
      %v1537 = vpop.permute.xlu0 %1536
      %v1539 = vunpack.c.l.b16 %v1505
      %v1540 = vpack.c.b16 %v1511, %v1539
      %v1541 = vrot.slane %v1540, 1
      %v1542 = vrot.slane %v1518, 1
      %v1543 = vsel %vm320, %v1541, %v1542
      %1544 = vrot.lane.b32.xlu0 %v1543, 8
      %v1545 = vpop.permute.xlu0 %1544
      %1546 = vrot.lane.b32.xlu0 %v1542, 8
      %v1547 = vpop.permute.xlu0 %1546
      %v1549 = vsel %vm328, %v1514, %v1535
      %v1552 = vsel %vm328, %v1515, %v1537
      %v1554 = vsel %vm334, %v1549, %v1545
      %v1556 = vsel %vm334, %v1552, %v1547
      %s1557 = scalar_lea.vmem %s272, 352
      %v1558 = vld [vmem:[%s1557] sm:$0xf]
      %v1559 = vld [vmem:[%s1557 + $0x4] sm:$0xf]
      %v1560 = vld [vmem:[%s1557 + $0x8] sm:$0xf]
      %v1561 = vld [vmem:[%s1557 + $0xc] sm:$0x7]
      %v1562 = vld [vmem:[%s1557 + $0xc] sm:$0xf]
      %v1563 = vld [vmem:[%s1557] sm:$0xe]
      %v1568 = vunpack.c.l.b16 %v1558
      %v1569 = vunpack.c.l.b16 %v1559
      %v1570 = vunpack.c.l.b16 %v1560
      %v1571 = vunpack.c.l.b16 %v1561
      %v1572 = vpack.c.b16 %v1569, %v1568
      %v1573 = vpack.c.b16 %v1571, %v1570
      %v1575 = vunpack.c.l.b16 %v1562
      %v1576 = vpack.c.b16 %v1575, %v1570
      %v1578 = vshrl.u32 %v1572, 16
      %v1580 = vshll.u32 %v1572, 16
      %v1582 = vrot.slane %v1580, 1
      %v1583 = vor.u32 %v1578, %v1582
      %v1585 = vshll.u32 %v1576, 16
      %v1587 = vrot.slane %v1585, 1
      %v1588 = vsel %vm297, %v1583, %v1587
      %v1589 = vshrl.u32 %v1576, 16
      %v1591 = vor.u32 %v1589, %v1587
      %1592 = vrot.lane.b32.xlu0 %v1588, 4
      %v1593 = vpop.permute.xlu0 %1592
      %1594 = vrot.lane.b32.xlu0 %v1591, 4
      %v1595 = vpop.permute.xlu0 %1594
      %v1597 = vunpack.c.l.b16 %v1563
      %v1598 = vpack.c.b16 %v1569, %v1597
      %v1599 = vrot.slane %v1598, 1
      %v1600 = vrot.slane %v1576, 1
      %v1601 = vsel %vm320, %v1599, %v1600
      %1602 = vrot.lane.b32.xlu0 %v1601, 8
      %v1603 = vpop.permute.xlu0 %1602
      %1604 = vrot.lane.b32.xlu0 %v1600, 8
      %v1605 = vpop.permute.xlu0 %1604
      %v1607 = vsel %vm328, %v1572, %v1593
      %v1610 = vsel %vm328, %v1573, %v1595
      %v1612 = vsel %vm334, %v1607, %v1603
      %v1614 = vsel %vm334, %v1610, %v1605
      %s1615 = scalar_lea.vmem %s272, 368
      %v1616 = vld [vmem:[%s1615] sm:$0xf]
      %v1617 = vld [vmem:[%s1615 + $0x4] sm:$0xf]
      %v1618 = vld [vmem:[%s1615 + $0x8] sm:$0xf]
      %v1619 = vld [vmem:[%s1615 + $0xc] sm:$0x7]
      %v1620 = vld [vmem:[%s1615 + $0xc] sm:$0xf]
      %v1621 = vld [vmem:[%s1615] sm:$0xe]
      %v1626 = vunpack.c.l.b16 %v1616
      %v1627 = vunpack.c.l.b16 %v1617
      %v1628 = vunpack.c.l.b16 %v1618
      %v1629 = vunpack.c.l.b16 %v1619
      %v1630 = vpack.c.b16 %v1627, %v1626
      %v1631 = vpack.c.b16 %v1629, %v1628
      %v1633 = vunpack.c.l.b16 %v1620
      %v1634 = vpack.c.b16 %v1633, %v1628
      %v1636 = vshrl.u32 %v1630, 16
      %v1638 = vshll.u32 %v1630, 16
      %v1640 = vrot.slane %v1638, 1
      %v1641 = vor.u32 %v1636, %v1640
      %v1643 = vshll.u32 %v1634, 16
      %v1645 = vrot.slane %v1643, 1
      %v1646 = vsel %vm297, %v1641, %v1645
      %v1647 = vshrl.u32 %v1634, 16
      %v1649 = vor.u32 %v1647, %v1645
      %1650 = vrot.lane.b32.xlu0 %v1646, 4
      %v1651 = vpop.permute.xlu0 %1650
      %1652 = vrot.lane.b32.xlu0 %v1649, 4
      %v1653 = vpop.permute.xlu0 %1652
      %v1655 = vunpack.c.l.b16 %v1621
      %v1656 = vpack.c.b16 %v1627, %v1655
      %v1657 = vrot.slane %v1656, 1
      %v1658 = vrot.slane %v1634, 1
      %v1659 = vsel %vm320, %v1657, %v1658
      %1660 = vrot.lane.b32.xlu0 %v1659, 8
      %v1661 = vpop.permute.xlu0 %1660
      %1662 = vrot.lane.b32.xlu0 %v1658, 8
      %v1663 = vpop.permute.xlu0 %1662
      %v1665 = vsel %vm328, %v1630, %v1651
      %v1668 = vsel %vm328, %v1631, %v1653
      %v1670 = vsel %vm334, %v1665, %v1661
      %v1672 = vsel %vm334, %v1668, %v1663
      %s1673 = scalar_lea.vmem %s272, 384
      %v1674 = vld [vmem:[%s1673] sm:$0xf]
      %v1675 = vld [vmem:[%s1673 + $0x4] sm:$0xf]
      %v1676 = vld [vmem:[%s1673 + $0x8] sm:$0xf]
      %v1677 = vld [vmem:[%s1673 + $0xc] sm:$0x7]
      %v1678 = vld [vmem:[%s1673 + $0xc] sm:$0xf]
      %v1679 = vld [vmem:[%s1673] sm:$0xe]
      %v1684 = vunpack.c.l.b16 %v1674
      %v1685 = vunpack.c.l.b16 %v1675
      %v1686 = vunpack.c.l.b16 %v1676
      %v1687 = vunpack.c.l.b16 %v1677
      %v1688 = vpack.c.b16 %v1685, %v1684
      %v1689 = vpack.c.b16 %v1687, %v1686
      %v1691 = vunpack.c.l.b16 %v1678
      %v1692 = vpack.c.b16 %v1691, %v1686
      %v1694 = vshrl.u32 %v1688, 16
      %v1696 = vshll.u32 %v1688, 16
      %v1698 = vrot.slane %v1696, 1
      %v1699 = vor.u32 %v1694, %v1698
      %v1701 = vshll.u32 %v1692, 16
      %v1703 = vrot.slane %v1701, 1
      %v1704 = vsel %vm297, %v1699, %v1703
      %v1705 = vshrl.u32 %v1692, 16
      %v1707 = vor.u32 %v1705, %v1703
      %1708 = vrot.lane.b32.xlu0 %v1704, 4
      %v1709 = vpop.permute.xlu0 %1708
      %1710 = vrot.lane.b32.xlu0 %v1707, 4
      %v1711 = vpop.permute.xlu0 %1710
      %v1713 = vunpack.c.l.b16 %v1679
      %v1714 = vpack.c.b16 %v1685, %v1713
      %v1715 = vrot.slane %v1714, 1
      %v1716 = vrot.slane %v1692, 1
      %v1717 = vsel %vm320, %v1715, %v1716
      %1718 = vrot.lane.b32.xlu0 %v1717, 8
      %v1719 = vpop.permute.xlu0 %1718
      %1720 = vrot.lane.b32.xlu0 %v1716, 8
      %v1721 = vpop.permute.xlu0 %1720
      %v1723 = vsel %vm328, %v1688, %v1709
      %v1726 = vsel %vm328, %v1689, %v1711
      %v1728 = vsel %vm334, %v1723, %v1719
      %v1730 = vsel %vm334, %v1726, %v1721
      %s1731 = scalar_lea.vmem %s272, 400
      %v1732 = vld [vmem:[%s1731] sm:$0xf]
      %v1733 = vld [vmem:[%s1731 + $0x4] sm:$0xf]
      %v1734 = vld [vmem:[%s1731 + $0x8] sm:$0xf]
      %v1735 = vld [vmem:[%s1731 + $0xc] sm:$0x7]
      %v1736 = vld [vmem:[%s1731 + $0xc] sm:$0xf]
      %v1737 = vld [vmem:[%s1731] sm:$0xe]
      %v1742 = vunpack.c.l.b16 %v1732
      %v1743 = vunpack.c.l.b16 %v1733
      %v1744 = vunpack.c.l.b16 %v1734
      %v1745 = vunpack.c.l.b16 %v1735
      %v1746 = vpack.c.b16 %v1743, %v1742
      %v1747 = vpack.c.b16 %v1745, %v1744
      %v1749 = vunpack.c.l.b16 %v1736
      %v1750 = vpack.c.b16 %v1749, %v1744
      %v1752 = vshrl.u32 %v1746, 16
      %v1754 = vshll.u32 %v1746, 16
      %v1756 = vrot.slane %v1754, 1
      %v1757 = vor.u32 %v1752, %v1756
      %v1759 = vshll.u32 %v1750, 16
      %v1761 = vrot.slane %v1759, 1
      %v1762 = vsel %vm297, %v1757, %v1761
      %v1763 = vshrl.u32 %v1750, 16
      %v1765 = vor.u32 %v1763, %v1761
      %1766 = vrot.lane.b32.xlu0 %v1762, 4
      %v1767 = vpop.permute.xlu0 %1766
      %1768 = vrot.lane.b32.xlu0 %v1765, 4
      %v1769 = vpop.permute.xlu0 %1768
      %v1771 = vunpack.c.l.b16 %v1737
      %v1772 = vpack.c.b16 %v1743, %v1771
      %v1773 = vrot.slane %v1772, 1
      %v1774 = vrot.slane %v1750, 1
      %v1775 = vsel %vm320, %v1773, %v1774
      %1776 = vrot.lane.b32.xlu0 %v1775, 8
      %v1777 = vpop.permute.xlu0 %1776
      %1778 = vrot.lane.b32.xlu0 %v1774, 8
      %v1779 = vpop.permute.xlu0 %1778
      %v1781 = vsel %vm328, %v1746, %v1767
      %v1784 = vsel %vm328, %v1747, %v1769
      %v1786 = vsel %vm334, %v1781, %v1777
      %v1788 = vsel %vm334, %v1784, %v1779
      %s1789 = scalar_lea.vmem %s272, 416
      %v1790 = vld [vmem:[%s1789] sm:$0xf]
      %v1791 = vld [vmem:[%s1789 + $0x4] sm:$0xf]
      %v1792 = vld [vmem:[%s1789 + $0x8] sm:$0xf]
      %v1793 = vld [vmem:[%s1789 + $0xc] sm:$0x7]
      %v1794 = vld [vmem:[%s1789 + $0xc] sm:$0xf]
      %v1795 = vld [vmem:[%s1789] sm:$0xe]
      %v1800 = vunpack.c.l.b16 %v1790
      %v1801 = vunpack.c.l.b16 %v1791
      %v1802 = vunpack.c.l.b16 %v1792
      %v1803 = vunpack.c.l.b16 %v1793
      %v1804 = vpack.c.b16 %v1801, %v1800
      %v1805 = vpack.c.b16 %v1803, %v1802
      %v1807 = vunpack.c.l.b16 %v1794
      %v1808 = vpack.c.b16 %v1807, %v1802
      %v1810 = vshrl.u32 %v1804, 16
      %v1812 = vshll.u32 %v1804, 16
      %v1814 = vrot.slane %v1812, 1
      %v1815 = vor.u32 %v1810, %v1814
      %v1817 = vshll.u32 %v1808, 16
      %v1819 = vrot.slane %v1817, 1
      %v1820 = vsel %vm297, %v1815, %v1819
      %v1821 = vshrl.u32 %v1808, 16
      %v1823 = vor.u32 %v1821, %v1819
      %1824 = vrot.lane.b32.xlu0 %v1820, 4
      %v1825 = vpop.permute.xlu0 %1824
      %1826 = vrot.lane.b32.xlu0 %v1823, 4
      %v1827 = vpop.permute.xlu0 %1826
      %v1829 = vunpack.c.l.b16 %v1795
      %v1830 = vpack.c.b16 %v1801, %v1829
      %v1831 = vrot.slane %v1830, 1
      %v1832 = vrot.slane %v1808, 1
      %v1833 = vsel %vm320, %v1831, %v1832
      %1834 = vrot.lane.b32.xlu0 %v1833, 8
      %v1835 = vpop.permute.xlu0 %1834
      %1836 = vrot.lane.b32.xlu0 %v1832, 8
      %v1837 = vpop.permute.xlu0 %1836
      %v1839 = vsel %vm328, %v1804, %v1825
      %v1842 = vsel %vm328, %v1805, %v1827
      %v1844 = vsel %vm334, %v1839, %v1835
      %v1846 = vsel %vm334, %v1842, %v1837
      %s1847 = scalar_lea.vmem %s272, 432
      %v1848 = vld [vmem:[%s1847] sm:$0xf]
      %v1849 = vld [vmem:[%s1847 + $0x4] sm:$0xf]
      %v1850 = vld [vmem:[%s1847 + $0x8] sm:$0xf]
      %v1851 = vld [vmem:[%s1847 + $0xc] sm:$0x7]
      %v1852 = vld [vmem:[%s1847 + $0xc] sm:$0xf]
      %v1853 = vld [vmem:[%s1847] sm:$0xe]
      %v1858 = vunpack.c.l.b16 %v1848
      %v1859 = vunpack.c.l.b16 %v1849
      %v1860 = vunpack.c.l.b16 %v1850
      %v1861 = vunpack.c.l.b16 %v1851
      %v1862 = vpack.c.b16 %v1859, %v1858
      %v1863 = vpack.c.b16 %v1861, %v1860
      %v1865 = vunpack.c.l.b16 %v1852
      %v1866 = vpack.c.b16 %v1865, %v1860
      %v1868 = vshrl.u32 %v1862, 16
      %v1870 = vshll.u32 %v1862, 16
      %v1872 = vrot.slane %v1870, 1
      %v1873 = vor.u32 %v1868, %v1872
      %v1875 = vshll.u32 %v1866, 16
      %v1877 = vrot.slane %v1875, 1
      %v1878 = vsel %vm297, %v1873, %v1877
      %v1879 = vshrl.u32 %v1866, 16
      %v1881 = vor.u32 %v1879, %v1877
      %1882 = vrot.lane.b32.xlu0 %v1878, 4
      %v1883 = vpop.permute.xlu0 %1882
      %1884 = vrot.lane.b32.xlu0 %v1881, 4
      %v1885 = vpop.permute.xlu0 %1884
      %v1887 = vunpack.c.l.b16 %v1853
      %v1888 = vpack.c.b16 %v1859, %v1887
      %v1889 = vrot.slane %v1888, 1
      %v1890 = vrot.slane %v1866, 1
      %v1891 = vsel %vm320, %v1889, %v1890
      %1892 = vrot.lane.b32.xlu0 %v1891, 8
      %v1893 = vpop.permute.xlu0 %1892
      %1894 = vrot.lane.b32.xlu0 %v1890, 8
      %v1895 = vpop.permute.xlu0 %1894
      %v1897 = vsel %vm328, %v1862, %v1883
      %v1900 = vsel %vm328, %v1863, %v1885
      %v1902 = vsel %vm334, %v1897, %v1893
      %v1904 = vsel %vm334, %v1900, %v1895
      %s1905 = scalar_lea.vmem %s272, 448
      %v1906 = vld [vmem:[%s1905] sm:$0xf]
      %v1907 = vld [vmem:[%s1905 + $0x4] sm:$0xf]
      %v1908 = vld [vmem:[%s1905 + $0x8] sm:$0xf]
      %v1909 = vld [vmem:[%s1905 + $0xc] sm:$0x7]
      %v1910 = vld [vmem:[%s1905 + $0xc] sm:$0xf]
      %v1911 = vld [vmem:[%s1905] sm:$0xe]
      %v1916 = vunpack.c.l.b16 %v1906
      %v1917 = vunpack.c.l.b16 %v1907
      %v1918 = vunpack.c.l.b16 %v1908
      %v1919 = vunpack.c.l.b16 %v1909
      %v1920 = vpack.c.b16 %v1917, %v1916
      %v1921 = vpack.c.b16 %v1919, %v1918
      %v1923 = vunpack.c.l.b16 %v1910
      %v1924 = vpack.c.b16 %v1923, %v1918
      %v1926 = vshrl.u32 %v1920, 16
      %v1928 = vshll.u32 %v1920, 16
      %v1930 = vrot.slane %v1928, 1
      %v1931 = vor.u32 %v1926, %v1930
      %v1933 = vshll.u32 %v1924, 16
      %v1935 = vrot.slane %v1933, 1
      %v1936 = vsel %vm297, %v1931, %v1935
      %v1937 = vshrl.u32 %v1924, 16
      %v1939 = vor.u32 %v1937, %v1935
      %1940 = vrot.lane.b32.xlu0 %v1936, 4
      %v1941 = vpop.permute.xlu0 %1940
      %1942 = vrot.lane.b32.xlu0 %v1939, 4
      %v1943 = vpop.permute.xlu0 %1942
      %v1945 = vunpack.c.l.b16 %v1911
      %v1946 = vpack.c.b16 %v1917, %v1945
      %v1947 = vrot.slane %v1946, 1
      %v1948 = vrot.slane %v1924, 1
      %v1949 = vsel %vm320, %v1947, %v1948
      %1950 = vrot.lane.b32.xlu0 %v1949, 8
      %v1951 = vpop.permute.xlu0 %1950
      %1952 = vrot.lane.b32.xlu0 %v1948, 8
      %v1953 = vpop.permute.xlu0 %1952
      %v1955 = vsel %vm328, %v1920, %v1941
      %v1958 = vsel %vm328, %v1921, %v1943
      %v1960 = vsel %vm334, %v1955, %v1951
      %v1962 = vsel %vm334, %v1958, %v1953
      %s1963 = scalar_lea.vmem %s272, 464
      %v1964 = vld [vmem:[%s1963] sm:$0xf]
      %v1965 = vld [vmem:[%s1963 + $0x4] sm:$0xf]
      %v1966 = vld [vmem:[%s1963 + $0x8] sm:$0xf]
      %v1967 = vld [vmem:[%s1963 + $0xc] sm:$0x7]
      %v1968 = vld [vmem:[%s1963 + $0xc] sm:$0xf]
      %v1969 = vld [vmem:[%s1963] sm:$0xe]
      %v1974 = vunpack.c.l.b16 %v1964
      %v1975 = vunpack.c.l.b16 %v1965
      %v1976 = vunpack.c.l.b16 %v1966
      %v1977 = vunpack.c.l.b16 %v1967
      %v1978 = vpack.c.b16 %v1975, %v1974
      %v1979 = vpack.c.b16 %v1977, %v1976
      %v1981 = vunpack.c.l.b16 %v1968
      %v1982 = vpack.c.b16 %v1981, %v1976
      %v1984 = vshrl.u32 %v1978, 16
      %v1986 = vshll.u32 %v1978, 16
      %v1988 = vrot.slane %v1986, 1
      %v1989 = vor.u32 %v1984, %v1988
      %v1991 = vshll.u32 %v1982, 16
      %v1993 = vrot.slane %v1991, 1
      %v1994 = vsel %vm297, %v1989, %v1993
      %v1995 = vshrl.u32 %v1982, 16
      %v1997 = vor.u32 %v1995, %v1993
      %1998 = vrot.lane.b32.xlu0 %v1994, 4
      %v1999 = vpop.permute.xlu0 %1998
      %2000 = vrot.lane.b32.xlu0 %v1997, 4
      %v2001 = vpop.permute.xlu0 %2000
      %v2003 = vunpack.c.l.b16 %v1969
      %v2004 = vpack.c.b16 %v1975, %v2003
      %v2005 = vrot.slane %v2004, 1
      %v2006 = vrot.slane %v1982, 1
      %v2007 = vsel %vm320, %v2005, %v2006
      %2008 = vrot.lane.b32.xlu0 %v2007, 8
      %v2009 = vpop.permute.xlu0 %2008
      %2010 = vrot.lane.b32.xlu0 %v2006, 8
      %v2011 = vpop.permute.xlu0 %2010
      %v2013 = vsel %vm328, %v1978, %v1999
      %v2016 = vsel %vm328, %v1979, %v2001
      %v2018 = vsel %vm334, %v2013, %v2009
      %v2020 = vsel %vm334, %v2016, %v2011
      %s2021 = scalar_lea.vmem %s272, 480
      %v2022 = vld [vmem:[%s2021] sm:$0xf]
      %v2023 = vld [vmem:[%s2021 + $0x4] sm:$0xf]
      %v2024 = vld [vmem:[%s2021 + $0x8] sm:$0xf]
      %v2025 = vld [vmem:[%s2021 + $0xc] sm:$0x7]
      %v2026 = vld [vmem:[%s2021 + $0xc] sm:$0xf]
      %v2027 = vld [vmem:[%s2021] sm:$0xe]
      %v2032 = vunpack.c.l.b16 %v2022
      %v2033 = vunpack.c.l.b16 %v2023
      %v2034 = vunpack.c.l.b16 %v2024
      %v2035 = vunpack.c.l.b16 %v2025
      %v2036 = vpack.c.b16 %v2033, %v2032
      %v2037 = vpack.c.b16 %v2035, %v2034
      %v2039 = vunpack.c.l.b16 %v2026
      %v2040 = vpack.c.b16 %v2039, %v2034
      %v2042 = vshrl.u32 %v2036, 16
      %v2044 = vshll.u32 %v2036, 16
      %v2046 = vrot.slane %v2044, 1
      %v2047 = vor.u32 %v2042, %v2046
      %v2049 = vshll.u32 %v2040, 16
      %v2051 = vrot.slane %v2049, 1
      %v2052 = vsel %vm297, %v2047, %v2051
      %v2053 = vshrl.u32 %v2040, 16
      %v2055 = vor.u32 %v2053, %v2051
      %2056 = vrot.lane.b32.xlu0 %v2052, 4
      %v2057 = vpop.permute.xlu0 %2056
      %2058 = vrot.lane.b32.xlu0 %v2055, 4
      %v2059 = vpop.permute.xlu0 %2058
      %v2061 = vunpack.c.l.b16 %v2027
      %v2062 = vpack.c.b16 %v2033, %v2061
      %v2063 = vrot.slane %v2062, 1
      %v2064 = vrot.slane %v2040, 1
      %v2065 = vsel %vm320, %v2063, %v2064
      %2066 = vrot.lane.b32.xlu0 %v2065, 8
      %v2067 = vpop.permute.xlu0 %2066
      %2068 = vrot.lane.b32.xlu0 %v2064, 8
      %v2069 = vpop.permute.xlu0 %2068
      %v2071 = vsel %vm328, %v2036, %v2057
      %v2074 = vsel %vm328, %v2037, %v2059
      %v2076 = vsel %vm334, %v2071, %v2067
      %v2078 = vsel %vm334, %v2074, %v2069
      %s2079 = scalar_lea.vmem %s272, 496
      %v2080 = vld [vmem:[%s2079] sm:$0xf]
      %v2081 = vld [vmem:[%s2079 + $0x4] sm:$0xf]
      %v2082 = vld [vmem:[%s2079 + $0x8] sm:$0xf]
      %v2083 = vld [vmem:[%s2079 + $0xc] sm:$0x7]
      %v2084 = vld [vmem:[%s2079 + $0xc] sm:$0xf]
      %v2085 = vld [vmem:[%s2079] sm:$0xe]
      %v2090 = vunpack.c.l.b16 %v2080
      %v2091 = vunpack.c.l.b16 %v2081
      %v2092 = vunpack.c.l.b16 %v2082
      %v2093 = vunpack.c.l.b16 %v2083
      %v2094 = vpack.c.b16 %v2091, %v2090
      %v2095 = vpack.c.b16 %v2093, %v2092
      %v2097 = vunpack.c.l.b16 %v2084
      %v2098 = vpack.c.b16 %v2097, %v2092
      %v2100 = vshrl.u32 %v2094, 16
      %v2102 = vshll.u32 %v2094, 16
      %v2104 = vrot.slane %v2102, 1
      %v2105 = vor.u32 %v2100, %v2104
      %v2107 = vshll.u32 %v2098, 16
      %v2109 = vrot.slane %v2107, 1
      %v2110 = vsel %vm297, %v2105, %v2109
      %v2111 = vshrl.u32 %v2098, 16
      %v2113 = vor.u32 %v2111, %v2109
      %2114 = vrot.lane.b32.xlu0 %v2110, 4
      %v2115 = vpop.permute.xlu0 %2114
      %2116 = vrot.lane.b32.xlu0 %v2113, 4
      %v2117 = vpop.permute.xlu0 %2116
      %v2119 = vunpack.c.l.b16 %v2085
      %v2120 = vpack.c.b16 %v2091, %v2119
      %v2121 = vrot.slane %v2120, 1
      %v2122 = vrot.slane %v2098, 1
      %v2123 = vsel %vm320, %v2121, %v2122
      %2124 = vrot.lane.b32.xlu0 %v2123, 8
      %v2125 = vpop.permute.xlu0 %2124
      %2126 = vrot.lane.b32.xlu0 %v2122, 8
      %v2127 = vpop.permute.xlu0 %2126
      %v2129 = vsel %vm328, %v2094, %v2115
      %v2132 = vsel %vm328, %v2095, %v2117
      %v2134 = vsel %vm334, %v2129, %v2125
      %v2136 = vsel %vm334, %v2132, %v2127
      %2139 = vrot.lane.b32.xlu0 %v394, 12
      %v2140 = vpop.permute.xlu0 %2139
      %2141 = vrot.lane.b32.xlu0 %v396, 12
      %v2142 = vpop.permute.xlu0 %2141
      %2145 = vrot.lane.b32.xlu0 %v452, 24
      %v2146 = vpop.permute.xlu0 %2145
      %2147 = vrot.lane.b32.xlu0 %v454, 24
      %v2148 = vpop.permute.xlu0 %2147
      %vm2149 = vcmask 97280
      %v2151 = vsel %vm2149, %v336, %v2140
      %v2153 = vsel %vm2149, %v338, %v2142
      %vm2154 = vcmask 195584
      %v2156 = vsel %vm2154, %v2151, %v2146
      %v2158 = vsel %vm2154, %v2153, %v2148
      %v2159 = vld [vmem:[%s1] sm:$0xf]
      %v2160 = vld [vmem:[%s1 + $0x4] sm:$0xf]
      %v2161 = vld [vmem:[%s1 + $0x8] sm:$0xf]
      %v2162 = vld [vmem:[%s1 + $0xc] sm:$0xf]
      %v2163 = vld [vmem:[%s1 + $0x10] sm:$0x3]
      %v2169 = vunpack.c.l.b16 %v2159
      %v2170 = vunpack.c.l.b16 %v2160
      %v2171 = vunpack.c.l.b16 %v2161
      %v2172 = vunpack.c.l.b16 %v2162
      %v2173 = vunpack.c.l.b16 %v2163
      %v2174 = vpack.c.b16 %v2170, %v2169
      %v2175 = vpack.c.b16 %v2172, %v2171
      %v2176 = vpack.c.b16 %v2173, %v2173
      %vm2179 = vcmask 293888
      %v2180 = vsel %vm2179, %v2156, 0
      %v2182 = vsel %vm2179, %v2158, 0
      %vm2184 = vcmask 1041408
      %v2186 = vsel %vm2184, %v2176, 0
      %2188 = vmatprep.subr.bf16.mxu0 0
      %2189 = vmatpush1.bf16.msra.mxu0 0
      %2190 = vmatprep.subr.bf16.mxu0 0
      %2191 = vmatpush1.bf16.msra.mxu0 0
      %2192 = vmatprep.subr.bf16.mxu0 0
      %2193 = vmatpush1.bf16.msra.mxu0 0
      %2194 = vmatprep.subr.bf16.mxu0 0
      %2195 = vmatpush1.bf16.msra.mxu0 0
      %2196 = vmatprep.subr.bf16.mxu0 0
      %2197 = vmatpush1.bf16.msra.mxu0 0
      %2198 = vmatprep.subr.bf16.mxu0 0
      %2199 = vmatpush1.bf16.msra.mxu0 %v2186
      %2200 = vmatprep.subr.bf16.mxu0 0
      %2201 = vmatpush1.bf16.msra.mxu0 %v2175
      %2202 = vmatprep.subr.bf16.mxu0 0
      %2203 = vmatpush1.bf16.msra.mxu0 %v2174
      %2204 = vmatprep.subr.bf16.mxu0 0
      %2205 = vmatpush2.bf16.msra.mxu0 0
      %2206 = vmatprep.subr.bf16.mxu0 0
      %2207 = vmatpush2.bf16.msra.mxu0 0
      %2208 = vmatprep.subr.bf16.mxu0 0
      %2209 = vmatpush2.bf16.msra.mxu0 0
      %2210 = vmatprep.subr.bf16.mxu0 0
      %2211 = vmatpush2.bf16.msra.mxu0 0
      %2212 = vmatprep.subr.bf16.mxu0 0
      %2213 = vmatpush2.bf16.msra.mxu0 0
      %2214 = vmatprep.subr.bf16.mxu0 0
      %2215 = vmatpush2.bf16.msra.mxu0 0
      %2216 = vmatprep.subr.bf16.mxu0 0
      %2217 = vmatpush2.bf16.msra.mxu0 0
      %2218 = vmatprep.subr.bf16.mxu0 0
      %2219 = vmatpush2.bf16.msra.mxu0 0
      %2220 = vmatprep.mubr.bf16.mxu0 0
      %2221 = vmatmul.mubr.bf16.gmra.mxu0 %v2180
      %v2222 = vpop.f32.mrf.mxu0
      %v2223 = vadd.f32 0.0, %v2222
      %v2224 = vpop.f32.mrf.mxu0
      %v2225 = vpop.f32.mrf.mxu0
      %v2226 = vadd.f32 0.0, %v2225
      %v2227 = vpop.f32.mrf.mxu0
      %2228 = vmatprep.mubr.bf16.mxu0 0
      %2229 = vmatmul.mubr.bf16.gmra.mxu0 %v2182
      %v2230 = vpop.f32.mrf.mxu0
      %v2231 = vadd.f32 0.0, %v2230
      %v2232 = vpop.f32.mrf.mxu0
      %v2233 = vpop.f32.mrf.mxu0
      %v2234 = vadd.f32 0.0, %v2233
      %v2235 = vpop.f32.mrf.mxu0
      %2236 = vdwg.mxu0
      %2237 = vrot.lane.b32.xlu0 %v452, 12
      %v2238 = vpop.permute.xlu0 %2237
      %2239 = vrot.lane.b32.xlu0 %v454, 12
      %v2240 = vpop.permute.xlu0 %2239
      %2243 = vrot.lane.b32.xlu0 %v510, 24
      %v2244 = vpop.permute.xlu0 %2243
      %2245 = vrot.lane.b32.xlu0 %v512, 24
      %v2246 = vpop.permute.xlu0 %2245
      %v2248 = vsel %vm2149, %v394, %v2238
      %v2250 = vsel %vm2149, %v396, %v2240
      %v2252 = vsel %vm2154, %v2248, %v2244
      %v2254 = vsel %vm2154, %v2250, %v2246
      %v2255 = vsel %vm2179, %v2252, 0
      %v2257 = vsel %vm2179, %v2254, 0
      %2259 = vmatprep.subr.bf16.mxu0 0
      %2260 = vmatpush1.bf16.msra.mxu0 0
      %2261 = vmatprep.subr.bf16.mxu0 0
      %2262 = vmatpush1.bf16.msra.mxu0 0
      %2263 = vmatprep.subr.bf16.mxu0 0
      %2264 = vmatpush1.bf16.msra.mxu0 0
      %2265 = vmatprep.subr.bf16.mxu0 0
      %2266 = vmatpush1.bf16.msra.mxu0 0
      %2267 = vmatprep.subr.bf16.mxu0 0
      %2268 = vmatpush1.bf16.msra.mxu0 0
      %2269 = vmatprep.subr.bf16.mxu0 0
      %2270 = vmatpush1.bf16.msra.mxu0 %v2186
      %2271 = vmatprep.subr.bf16.mxu0 0
      %2272 = vmatpush1.bf16.msra.mxu0 %v2175
      %2273 = vmatprep.subr.bf16.mxu0 0
      %2274 = vmatpush1.bf16.msra.mxu0 %v2174
      %2275 = vmatprep.subr.bf16.mxu0 0
      %2276 = vmatpush2.bf16.msra.mxu0 0
      %2277 = vmatprep.subr.bf16.mxu0 0
      %2278 = vmatpush2.bf16.msra.mxu0 0
      %2279 = vmatprep.subr.bf16.mxu0 0
      %2280 = vmatpush2.bf16.msra.mxu0 0
      %2281 = vmatprep.subr.bf16.mxu0 0
      %2282 = vmatpush2.bf16.msra.mxu0 0
      %2283 = vmatprep.subr.bf16.mxu0 0
      %2284 = vmatpush2.bf16.msra.mxu0 0
      %2285 = vmatprep.subr.bf16.mxu0 0
      %2286 = vmatpush2.bf16.msra.mxu0 0
      %2287 = vmatprep.subr.bf16.mxu0 0
      %2288 = vmatpush2.bf16.msra.mxu0 0
      %2289 = vmatprep.subr.bf16.mxu0 0
      %2290 = vmatpush2.bf16.msra.mxu0 0
      %2291 = vmatprep.mubr.bf16.mxu0 0
      %2292 = vmatmul.mubr.bf16.gmra.mxu0 %v2255
      %v2293 = vpop.f32.mrf.mxu0
      %v2294 = vadd.f32 0.0, %v2293
      %v2295 = vpop.f32.mrf.mxu0
      %v2296 = vpop.f32.mrf.mxu0
      %v2297 = vadd.f32 0.0, %v2296
      %v2298 = vpop.f32.mrf.mxu0
      %2299 = vmatprep.mubr.bf16.mxu0 0
      %2300 = vmatmul.mubr.bf16.gmra.mxu0 %v2257
      %v2301 = vpop.f32.mrf.mxu0
      %v2302 = vadd.f32 0.0, %v2301
      %v2303 = vpop.f32.mrf.mxu0
      %v2304 = vpop.f32.mrf.mxu0
      %v2305 = vadd.f32 0.0, %v2304
      %v2306 = vpop.f32.mrf.mxu0
      %2307 = vdwg.mxu0
      %v2308 = vmax.f32 %v2223, %v2294
      %v2309 = vmax.f32 %v2226, %v2297
      %v2310 = vmax.f32 %v2231, %v2302
      %v2311 = vmax.f32 %v2234, %v2305
      %2312 = vrot.lane.b32.xlu0 %v510, 12
      %v2313 = vpop.permute.xlu0 %2312
      %2314 = vrot.lane.b32.xlu0 %v512, 12
      %v2315 = vpop.permute.xlu0 %2314
      %2318 = vrot.lane.b32.xlu0 %v568, 24
      %v2319 = vpop.permute.xlu0 %2318
      %2320 = vrot.lane.b32.xlu0 %v570, 24
      %v2321 = vpop.permute.xlu0 %2320
      %v2323 = vsel %vm2149, %v452, %v2313
      %v2325 = vsel %vm2149, %v454, %v2315
      %v2327 = vsel %vm2154, %v2323, %v2319
      %v2329 = vsel %vm2154, %v2325, %v2321
      %v2330 = vsel %vm2179, %v2327, 0
      %v2332 = vsel %vm2179, %v2329, 0
      %2334 = vmatprep.subr.bf16.mxu0 0
      %2335 = vmatpush1.bf16.msra.mxu0 0
      %2336 = vmatprep.subr.bf16.mxu0 0
      %2337 = vmatpush1.bf16.msra.mxu0 0
      %2338 = vmatprep.subr.bf16.mxu0 0
      %2339 = vmatpush1.bf16.msra.mxu0 0
      %2340 = vmatprep.subr.bf16.mxu0 0
      %2341 = vmatpush1.bf16.msra.mxu0 0
      %2342 = vmatprep.subr.bf16.mxu0 0
      %2343 = vmatpush1.bf16.msra.mxu0 0
      %2344 = vmatprep.subr.bf16.mxu0 0
      %2345 = vmatpush1.bf16.msra.mxu0 %v2186
      %2346 = vmatprep.subr.bf16.mxu0 0
      %2347 = vmatpush1.bf16.msra.mxu0 %v2175
      %2348 = vmatprep.subr.bf16.mxu0 0
      %2349 = vmatpush1.bf16.msra.mxu0 %v2174
      %2350 = vmatprep.subr.bf16.mxu0 0
      %2351 = vmatpush2.bf16.msra.mxu0 0
      %2352 = vmatprep.subr.bf16.mxu0 0
      %2353 = vmatpush2.bf16.msra.mxu0 0
      %2354 = vmatprep.subr.bf16.mxu0 0
      %2355 = vmatpush2.bf16.msra.mxu0 0
      %2356 = vmatprep.subr.bf16.mxu0 0
      %2357 = vmatpush2.bf16.msra.mxu0 0
      %2358 = vmatprep.subr.bf16.mxu0 0
      %2359 = vmatpush2.bf16.msra.mxu0 0
      %2360 = vmatprep.subr.bf16.mxu0 0
      %2361 = vmatpush2.bf16.msra.mxu0 0
      %2362 = vmatprep.subr.bf16.mxu0 0
      %2363 = vmatpush2.bf16.msra.mxu0 0
      %2364 = vmatprep.subr.bf16.mxu0 0
      %2365 = vmatpush2.bf16.msra.mxu0 0
      %2366 = vmatprep.mubr.bf16.mxu0 0
      %2367 = vmatmul.mubr.bf16.gmra.mxu0 %v2330
      %v2368 = vpop.f32.mrf.mxu0
      %v2369 = vadd.f32 0.0, %v2368
      %v2370 = vpop.f32.mrf.mxu0
      %v2371 = vpop.f32.mrf.mxu0
      %v2372 = vadd.f32 0.0, %v2371
      %v2373 = vpop.f32.mrf.mxu0
      %2374 = vmatprep.mubr.bf16.mxu0 0
      %2375 = vmatmul.mubr.bf16.gmra.mxu0 %v2332
      %v2376 = vpop.f32.mrf.mxu0
      %v2377 = vadd.f32 0.0, %v2376
      %v2378 = vpop.f32.mrf.mxu0
      %v2379 = vpop.f32.mrf.mxu0
      %v2380 = vadd.f32 0.0, %v2379
      %v2381 = vpop.f32.mrf.mxu0
      %2382 = vdwg.mxu0
      %v2383 = vmax.f32 %v2308, %v2369
      %v2384 = vmax.f32 %v2309, %v2372
      %v2385 = vmax.f32 %v2310, %v2377
      %v2386 = vmax.f32 %v2311, %v2380
      %vm2387 = vcmask 523264
      %2388 = vst.msk [vmem:[#allocation2] sm:$0xff] %vm2387, %v2383
      %2389 = vst.msk [vmem:[#allocation2 + $0x8] sm:$0xff] %vm2387, %v2384
      %2390 = vst.msk [vmem:[#allocation2 + $0x10] sm:$0xff] %vm2387, %v2385
      %vm2391 = vcmask 521216
      %2392 = vst.msk [vmem:[#allocation2 + $0x18] sm:$0x3f] %vm2391, %v2386
      %v2393 = vld [vmem:[#allocation2] ss:$3 sm:$0xff]
      %s2394 = scalar_lea.vmem [#allocation2], 24
      %v2395 = vld [vmem:[%s2394] ss:$3 sm:$0x3]
      %s2396 = scalar_lea.vmem [#allocation2], 1
      %v2397 = vld [vmem:[%s2396] ss:$3 sm:$0xff]
      %s2398 = scalar_lea.vmem [#allocation2], 25
      %v2399 = vld [vmem:[%s2398] ss:$3 sm:$0x3]
      %v2400 = vmax.f32 %v2393, %v2397
      %v2401 = vmax.f32 %v2395, %v2399
      %s2402 = scalar_lea.vmem [#allocation2], 2
      %v2403 = vld [vmem:[%s2402] ss:$3 sm:$0xff]
      %s2404 = scalar_lea.vmem [#allocation2], 26
      %v2405 = vld [vmem:[%s2404] ss:$3 sm:$0x3]
      %v2406 = vmax.f32 %v2400, %v2403
      %v2407 = vmax.f32 %v2401, %v2405
      %v2408 = vld [vmem:[%s2] sm:$0x1]
      %v2410 = vlaneseq
      %v2411 = vshrl.u32 %v2410, 7
      %v2412 = vsub.s32 0, %v2411
      %v2413 = vrot.slane %v2408, %v2412
      %v2415 = vadd.f32 %v2406, %v2413
      %v2416 = vadd.f32 %v2407, %v2413
      %v2417 = vmax.f32 %v2415, 0.0
      %v2418 = vmax.f32 %v2416, 0.0
      %v2419 = vpack.c.bf16 %v2418, %v2417
      %v2421 = vunpack.c.l.b16 %v2419
      %v2422 = vunpack.c.h.b16 %v2419
      %v2423 = vpack.c.b16 %v2421, %v2421
      %v2424 = vpack.c.b16 %v2422, %v2422
      %vm2427 = vcmask 519168
      %2428 = vst.msk [vmem:[#allocation3] sm:$0xf] %vm2427, %v2423
      %vm2429 = vcmask 516096
      %2430 = vst.msk [vmem:[#allocation3 + $0x4] sm:$0x1] %vm2429, %v2424
      %2431 = vrot.lane.b32.xlu0 %v568, 12
      %v2432 = vpop.permute.xlu0 %2431
      %2433 = vrot.lane.b32.xlu0 %v570, 12
      %v2434 = vpop.permute.xlu0 %2433
      %2437 = vrot.lane.b32.xlu0 %v626, 24
      %v2438 = vpop.permute.xlu0 %2437
      %2439 = vrot.lane.b32.xlu0 %v628, 24
      %v2440 = vpop.permute.xlu0 %2439
      %v2442 = vsel %vm2149, %v510, %v2432
      %v2444 = vsel %vm2149, %v512, %v2434
      %v2446 = vsel %vm2154, %v2442, %v2438
      %v2448 = vsel %vm2154, %v2444, %v2440
      %v2449 = vld [vmem:[%s1] sm:$0xf]
      %v2450 = vld [vmem:[%s1 + $0x4] sm:$0xf]
      %v2451 = vld [vmem:[%s1 + $0x8] sm:$0xf]
      %v2452 = vld [vmem:[%s1 + $0xc] sm:$0xf]
      %v2453 = vld [vmem:[%s1 + $0x10] sm:$0x3]
      %v2459 = vunpack.c.l.b16 %v2449
      %v2460 = vunpack.c.l.b16 %v2450
      %v2461 = vunpack.c.l.b16 %v2451
      %v2462 = vunpack.c.l.b16 %v2452
      %v2463 = vunpack.c.l.b16 %v2453
      %v2464 = vpack.c.b16 %v2460, %v2459
      %v2465 = vpack.c.b16 %v2462, %v2461
      %v2466 = vpack.c.b16 %v2463, %v2463
      %v2469 = vsel %vm2179, %v2446, 0
      %v2471 = vsel %vm2179, %v2448, 0
      %v2474 = vsel %vm2184, %v2466, 0
      %2476 = vmatprep.subr.bf16.mxu0 0
      %2477 = vmatpush1.bf16.msra.mxu0 0
      %2478 = vmatprep.subr.bf16.mxu0 0
      %2479 = vmatpush1.bf16.msra.mxu0 0
      %2480 = vmatprep.subr.bf16.mxu0 0
      %2481 = vmatpush1.bf16.msra.mxu0 0
      %2482 = vmatprep.subr.bf16.mxu0 0
      %2483 = vmatpush1.bf16.msra.mxu0 0
      %2484 = vmatprep.subr.bf16.mxu0 0
      %2485 = vmatpush1.bf16.msra.mxu0 0
      %2486 = vmatprep.subr.bf16.mxu0 0
      %2487 = vmatpush1.bf16.msra.mxu0 %v2474
      %2488 = vmatprep.subr.bf16.mxu0 0
      %2489 = vmatpush1.bf16.msra.mxu0 %v2465
      %2490 = vmatprep.subr.bf16.mxu0 0
      %2491 = vmatpush1.bf16.msra.mxu0 %v2464
      %2492 = vmatprep.subr.bf16.mxu0 0
      %2493 = vmatpush2.bf16.msra.mxu0 0
      %2494 = vmatprep.subr.bf16.mxu0 0
      %2495 = vmatpush2.bf16.msra.mxu0 0
      %2496 = vmatprep.subr.bf16.mxu0 0
      %2497 = vmatpush2.bf16.msra.mxu0 0
      %2498 = vmatprep.subr.bf16.mxu0 0
      %2499 = vmatpush2.bf16.msra.mxu0 0
      %2500 = vmatprep.subr.bf16.mxu0 0
      %2501 = vmatpush2.bf16.msra.mxu0 0
      %2502 = vmatprep.subr.bf16.mxu0 0
      %2503 = vmatpush2.bf16.msra.mxu0 0
      %2504 = vmatprep.subr.bf16.mxu0 0
      %2505 = vmatpush2.bf16.msra.mxu0 0
      %2506 = vmatprep.subr.bf16.mxu0 0
      %2507 = vmatpush2.bf16.msra.mxu0 0
      %2508 = vmatprep.mubr.bf16.mxu0 0
      %2509 = vmatmul.mubr.bf16.gmra.mxu0 %v2469
      %v2510 = vpop.f32.mrf.mxu0
      %v2511 = vadd.f32 0.0, %v2510
      %v2512 = vpop.f32.mrf.mxu0
      %v2513 = vpop.f32.mrf.mxu0
      %v2514 = vadd.f32 0.0, %v2513
      %v2515 = vpop.f32.mrf.mxu0
      %2516 = vmatprep.mubr.bf16.mxu0 0
      %2517 = vmatmul.mubr.bf16.gmra.mxu0 %v2471
      %v2518 = vpop.f32.mrf.mxu0
      %v2519 = vadd.f32 0.0, %v2518
      %v2520 = vpop.f32.mrf.mxu0
      %v2521 = vpop.f32.mrf.mxu0
      %v2522 = vadd.f32 0.0, %v2521
      %v2523 = vpop.f32.mrf.mxu0
      %2524 = vdwg.mxu0
      %2525 = vrot.lane.b32.xlu0 %v626, 12
      %v2526 = vpop.permute.xlu0 %2525
      %2527 = vrot.lane.b32.xlu0 %v628, 12
      %v2528 = vpop.permute.xlu0 %2527
      %2531 = vrot.lane.b32.xlu0 %v684, 24
      %v2532 = vpop.permute.xlu0 %2531
      %2533 = vrot.lane.b32.xlu0 %v686, 24
      %v2534 = vpop.permute.xlu0 %2533
      %v2536 = vsel %vm2149, %v568, %v2526
      %v2538 = vsel %vm2149, %v570, %v2528
      %v2540 = vsel %vm2154, %v2536, %v2532
      %v2542 = vsel %vm2154, %v2538, %v2534
      %v2543 = vsel %vm2179, %v2540, 0
      %v2545 = vsel %vm2179, %v2542, 0
      %2547 = vmatprep.subr.bf16.mxu0 0
      %2548 = vmatpush1.bf16.msra.mxu0 0
      %2549 = vmatprep.subr.bf16.mxu0 0
      %2550 = vmatpush1.bf16.msra.mxu0 0
      %2551 = vmatprep.subr.bf16.mxu0 0
      %2552 = vmatpush1.bf16.msra.mxu0 0
      %2553 = vmatprep.subr.bf16.mxu0 0
      %2554 = vmatpush1.bf16.msra.mxu0 0
      %2555 = vmatprep.subr.bf16.mxu0 0
      %2556 = vmatpush1.bf16.msra.mxu0 0
      %2557 = vmatprep.subr.bf16.mxu0 0
      %2558 = vmatpush1.bf16.msra.mxu0 %v2474
      %2559 = vmatprep.subr.bf16.mxu0 0
      %2560 = vmatpush1.bf16.msra.mxu0 %v2465
      %2561 = vmatprep.subr.bf16.mxu0 0
      %2562 = vmatpush1.bf16.msra.mxu0 %v2464
      %2563 = vmatprep.subr.bf16.mxu0 0
      %2564 = vmatpush2.bf16.msra.mxu0 0
      %2565 = vmatprep.subr.bf16.mxu0 0
      %2566 = vmatpush2.bf16.msra.mxu0 0
      %2567 = vmatprep.subr.bf16.mxu0 0
      %2568 = vmatpush2.bf16.msra.mxu0 0
      %2569 = vmatprep.subr.bf16.mxu0 0
      %2570 = vmatpush2.bf16.msra.mxu0 0
      %2571 = vmatprep.subr.bf16.mxu0 0
      %2572 = vmatpush2.bf16.msra.mxu0 0
      %2573 = vmatprep.subr.bf16.mxu0 0
      %2574 = vmatpush2.bf16.msra.mxu0 0
      %2575 = vmatprep.subr.bf16.mxu0 0
      %2576 = vmatpush2.bf16.msra.mxu0 0
      %2577 = vmatprep.subr.bf16.mxu0 0
      %2578 = vmatpush2.bf16.msra.mxu0 0
      %2579 = vmatprep.mubr.bf16.mxu0 0
      %2580 = vmatmul.mubr.bf16.gmra.mxu0 %v2543
      %v2581 = vpop.f32.mrf.mxu0
      %v2582 = vadd.f32 0.0, %v2581
      %v2583 = vpop.f32.mrf.mxu0
      %v2584 = vpop.f32.mrf.mxu0
      %v2585 = vadd.f32 0.0, %v2584
      %v2586 = vpop.f32.mrf.mxu0
      %2587 = vmatprep.mubr.bf16.mxu0 0
      %2588 = vmatmul.mubr.bf16.gmra.mxu0 %v2545
      %v2589 = vpop.f32.mrf.mxu0
      %v2590 = vadd.f32 0.0, %v2589
      %v2591 = vpop.f32.mrf.mxu0
      %v2592 = vpop.f32.mrf.mxu0
      %v2593 = vadd.f32 0.0, %v2592
      %v2594 = vpop.f32.mrf.mxu0
      %2595 = vdwg.mxu0
      %v2596 = vmax.f32 %v2511, %v2582
      %v2597 = vmax.f32 %v2514, %v2585
      %v2598 = vmax.f32 %v2519, %v2590
      %v2599 = vmax.f32 %v2522, %v2593
      %2600 = vrot.lane.b32.xlu0 %v684, 12
      %v2601 = vpop.permute.xlu0 %2600
      %2602 = vrot.lane.b32.xlu0 %v686, 12
      %v2603 = vpop.permute.xlu0 %2602
      %2606 = vrot.lane.b32.xlu0 %v742, 24
      %v2607 = vpop.permute.xlu0 %2606
      %2608 = vrot.lane.b32.xlu0 %v744, 24
      %v2609 = vpop.permute.xlu0 %2608
      %v2611 = vsel %vm2149, %v626, %v2601
      %v2613 = vsel %vm2149, %v628, %v2603
      %v2615 = vsel %vm2154, %v2611, %v2607
      %v2617 = vsel %vm2154, %v2613, %v2609
      %v2618 = vsel %vm2179, %v2615, 0
      %v2620 = vsel %vm2179, %v2617, 0
      %2622 = vmatprep.subr.bf16.mxu0 0
      %2623 = vmatpush1.bf16.msra.mxu0 0
      %2624 = vmatprep.subr.bf16.mxu0 0
      %2625 = vmatpush1.bf16.msra.mxu0 0
      %2626 = vmatprep.subr.bf16.mxu0 0
      %2627 = vmatpush1.bf16.msra.mxu0 0
      %2628 = vmatprep.subr.bf16.mxu0 0
      %2629 = vmatpush1.bf16.msra.mxu0 0
      %2630 = vmatprep.subr.bf16.mxu0 0
      %2631 = vmatpush1.bf16.msra.mxu0 0
      %2632 = vmatprep.subr.bf16.mxu0 0
      %2633 = vmatpush1.bf16.msra.mxu0 %v2474
      %2634 = vmatprep.subr.bf16.mxu0 0
      %2635 = vmatpush1.bf16.msra.mxu0 %v2465
      %2636 = vmatprep.subr.bf16.mxu0 0
      %2637 = vmatpush1.bf16.msra.mxu0 %v2464
      %2638 = vmatprep.subr.bf16.mxu0 0
      %2639 = vmatpush2.bf16.msra.mxu0 0
      %2640 = vmatprep.subr.bf16.mxu0 0
      %2641 = vmatpush2.bf16.msra.mxu0 0
      %2642 = vmatprep.subr.bf16.mxu0 0
      %2643 = vmatpush2.bf16.msra.mxu0 0
      %2644 = vmatprep.subr.bf16.mxu0 0
      %2645 = vmatpush2.bf16.msra.mxu0 0
      %2646 = vmatprep.subr.bf16.mxu0 0
      %2647 = vmatpush2.bf16.msra.mxu0 0
      %2648 = vmatprep.subr.bf16.mxu0 0
      %2649 = vmatpush2.bf16.msra.mxu0 0
      %2650 = vmatprep.subr.bf16.mxu0 0
      %2651 = vmatpush2.bf16.msra.mxu0 0
      %2652 = vmatprep.subr.bf16.mxu0 0
      %2653 = vmatpush2.bf16.msra.mxu0 0
      %2654 = vmatprep.mubr.bf16.mxu0 0
      %2655 = vmatmul.mubr.bf16.gmra.mxu0 %v2618
      %v2656 = vpop.f32.mrf.mxu0
      %v2657 = vadd.f32 0.0, %v2656
      %v2658 = vpop.f32.mrf.mxu0
      %v2659 = vpop.f32.mrf.mxu0
      %v2660 = vadd.f32 0.0, %v2659
      %v2661 = vpop.f32.mrf.mxu0
      %2662 = vmatprep.mubr.bf16.mxu0 0
      %2663 = vmatmul.mubr.bf16.gmra.mxu0 %v2620
      %v2664 = vpop.f32.mrf.mxu0
      %v2665 = vadd.f32 0.0, %v2664
      %v2666 = vpop.f32.mrf.mxu0
      %v2667 = vpop.f32.mrf.mxu0
      %v2668 = vadd.f32 0.0, %v2667
      %v2669 = vpop.f32.mrf.mxu0
      %2670 = vdwg.mxu0
      %v2671 = vmax.f32 %v2596, %v2657
      %v2672 = vmax.f32 %v2597, %v2660
      %v2673 = vmax.f32 %v2598, %v2665
      %v2674 = vmax.f32 %v2599, %v2668
      %2675 = vst.msk [vmem:[#allocation2] sm:$0xff] %vm2387, %v2671
      %2676 = vst.msk [vmem:[#allocation2 + $0x8] sm:$0xff] %vm2387, %v2672
      %2677 = vst.msk [vmem:[#allocation2 + $0x10] sm:$0xff] %vm2387, %v2673
      %2678 = vst.msk [vmem:[#allocation2 + $0x18] sm:$0x3f] %vm2391, %v2674
      %v2679 = vld [vmem:[#allocation2] ss:$3 sm:$0xff]
      %v2680 = vld [vmem:[%s2394] ss:$3 sm:$0x3]
      %v2681 = vld [vmem:[%s2396] ss:$3 sm:$0xff]
      %v2682 = vld [vmem:[%s2398] ss:$3 sm:$0x3]
      %v2683 = vmax.f32 %v2679, %v2681
      %v2684 = vmax.f32 %v2680, %v2682
      %v2685 = vld [vmem:[%s2402] ss:$3 sm:$0xff]
      %v2686 = vld [vmem:[%s2404] ss:$3 sm:$0x3]
      %v2687 = vmax.f32 %v2683, %v2685
      %v2688 = vmax.f32 %v2684, %v2686
      %v2689 = vld [vmem:[%s2] sm:$0x1]
      %v2691 = vlaneseq
      %v2692 = vshrl.u32 %v2691, 7
      %v2693 = vsub.s32 0, %v2692
      %v2694 = vrot.slane %v2689, %v2693
      %v2696 = vadd.f32 %v2687, %v2694
      %v2697 = vadd.f32 %v2688, %v2694
      %v2698 = vmax.f32 %v2696, 0.0
      %v2699 = vmax.f32 %v2697, 0.0
      %v2700 = vpack.c.bf16 %v2699, %v2698
      %v2702 = vunpack.c.l.b16 %v2700
      %v2703 = vunpack.c.h.b16 %v2700
      %v2704 = vpack.c.b16 %v2702, %v2702
      %v2705 = vpack.c.b16 %v2703, %v2703
      %s2708 = scalar_lea.vmem [#allocation3], 8
      %2709 = vst.msk [vmem:[%s2708] sm:$0xf] %vm2427, %v2704
      %2710 = vst.msk [vmem:[%s2708 + $0x4] sm:$0x1] %vm2429, %v2705
      %2711 = vrot.lane.b32.xlu0 %v742, 12
      %v2712 = vpop.permute.xlu0 %2711
      %2713 = vrot.lane.b32.xlu0 %v744, 12
      %v2714 = vpop.permute.xlu0 %2713
      %2717 = vrot.lane.b32.xlu0 %v800, 24
      %v2718 = vpop.permute.xlu0 %2717
      %2719 = vrot.lane.b32.xlu0 %v802, 24
      %v2720 = vpop.permute.xlu0 %2719
      %v2722 = vsel %vm2149, %v684, %v2712
      %v2724 = vsel %vm2149, %v686, %v2714
      %v2726 = vsel %vm2154, %v2722, %v2718
      %v2728 = vsel %vm2154, %v2724, %v2720
      %v2729 = vld [vmem:[%s1] sm:$0xf]
      %v2730 = vld [vmem:[%s1 + $0x4] sm:$0xf]
      %v2731 = vld [vmem:[%s1 + $0x8] sm:$0xf]
      %v2732 = vld [vmem:[%s1 + $0xc] sm:$0xf]
      %v2733 = vld [vmem:[%s1 + $0x10] sm:$0x3]
      %v2739 = vunpack.c.l.b16 %v2729
      %v2740 = vunpack.c.l.b16 %v2730
      %v2741 = vunpack.c.l.b16 %v2731
      %v2742 = vunpack.c.l.b16 %v2732
      %v2743 = vunpack.c.l.b16 %v2733
      %v2744 = vpack.c.b16 %v2740, %v2739
      %v2745 = vpack.c.b16 %v2742, %v2741
      %v2746 = vpack.c.b16 %v2743, %v2743
      %v2749 = vsel %vm2179, %v2726, 0
      %v2751 = vsel %vm2179, %v2728, 0
      %v2754 = vsel %vm2184, %v2746, 0
      %2756 = vmatprep.subr.bf16.mxu0 0
      %2757 = vmatpush1.bf16.msra.mxu0 0
      %2758 = vmatprep.subr.bf16.mxu0 0
      %2759 = vmatpush1.bf16.msra.mxu0 0
      %2760 = vmatprep.subr.bf16.mxu0 0
      %2761 = vmatpush1.bf16.msra.mxu0 0
      %2762 = vmatprep.subr.bf16.mxu0 0
      %2763 = vmatpush1.bf16.msra.mxu0 0
      %2764 = vmatprep.subr.bf16.mxu0 0
      %2765 = vmatpush1.bf16.msra.mxu0 0
      %2766 = vmatprep.subr.bf16.mxu0 0
      %2767 = vmatpush1.bf16.msra.mxu0 %v2754
      %2768 = vmatprep.subr.bf16.mxu0 0
      %2769 = vmatpush1.bf16.msra.mxu0 %v2745
      %2770 = vmatprep.subr.bf16.mxu0 0
      %2771 = vmatpush1.bf16.msra.mxu0 %v2744
      %2772 = vmatprep.subr.bf16.mxu0 0
      %2773 = vmatpush2.bf16.msra.mxu0 0
      %2774 = vmatprep.subr.bf16.mxu0 0
      %2775 = vmatpush2.bf16.msra.mxu0 0
      %2776 = vmatprep.subr.bf16.mxu0 0
      %2777 = vmatpush2.bf16.msra.mxu0 0
      %2778 = vmatprep.subr.bf16.mxu0 0
      %2779 = vmatpush2.bf16.msra.mxu0 0
      %2780 = vmatprep.subr.bf16.mxu0 0
      %2781 = vmatpush2.bf16.msra.mxu0 0
      %2782 = vmatprep.subr.bf16.mxu0 0
      %2783 = vmatpush2.bf16.msra.mxu0 0
      %2784 = vmatprep.subr.bf16.mxu0 0
      %2785 = vmatpush2.bf16.msra.mxu0 0
      %2786 = vmatprep.subr.bf16.mxu0 0
      %2787 = vmatpush2.bf16.msra.mxu0 0
      %2788 = vmatprep.mubr.bf16.mxu0 0
      %2789 = vmatmul.mubr.bf16.gmra.mxu0 %v2749
      %v2790 = vpop.f32.mrf.mxu0
      %v2791 = vadd.f32 0.0, %v2790
      %v2792 = vpop.f32.mrf.mxu0
      %v2793 = vpop.f32.mrf.mxu0
      %v2794 = vadd.f32 0.0, %v2793
      %v2795 = vpop.f32.mrf.mxu0
      %2796 = vmatprep.mubr.bf16.mxu0 0
      %2797 = vmatmul.mubr.bf16.gmra.mxu0 %v2751
      %v2798 = vpop.f32.mrf.mxu0
      %v2799 = vadd.f32 0.0, %v2798
      %v2800 = vpop.f32.mrf.mxu0
      %v2801 = vpop.f32.mrf.mxu0
      %v2802 = vadd.f32 0.0, %v2801
      %v2803 = vpop.f32.mrf.mxu0
      %2804 = vdwg.mxu0
      %2805 = vrot.lane.b32.xlu0 %v800, 12
      %v2806 = vpop.permute.xlu0 %2805
      %2807 = vrot.lane.b32.xlu0 %v802, 12
      %v2808 = vpop.permute.xlu0 %2807
      %2811 = vrot.lane.b32.xlu0 %v858, 24
      %v2812 = vpop.permute.xlu0 %2811
      %2813 = vrot.lane.b32.xlu0 %v860, 24
      %v2814 = vpop.permute.xlu0 %2813
      %v2816 = vsel %vm2149, %v742, %v2806
      %v2818 = vsel %vm2149, %v744, %v2808
      %v2820 = vsel %vm2154, %v2816, %v2812
      %v2822 = vsel %vm2154, %v2818, %v2814
      %v2823 = vsel %vm2179, %v2820, 0
      %v2825 = vsel %vm2179, %v2822, 0
      %2827 = vmatprep.subr.bf16.mxu0 0
      %2828 = vmatpush1.bf16.msra.mxu0 0
      %2829 = vmatprep.subr.bf16.mxu0 0
      %2830 = vmatpush1.bf16.msra.mxu0 0
      %2831 = vmatprep.subr.bf16.mxu0 0
      %2832 = vmatpush1.bf16.msra.mxu0 0
      %2833 = vmatprep.subr.bf16.mxu0 0
      %2834 = vmatpush1.bf16.msra.mxu0 0
      %2835 = vmatprep.subr.bf16.mxu0 0
      %2836 = vmatpush1.bf16.msra.mxu0 0
      %2837 = vmatprep.subr.bf16.mxu0 0
      %2838 = vmatpush1.bf16.msra.mxu0 %v2754
      %2839 = vmatprep.subr.bf16.mxu0 0
      %2840 = vmatpush1.bf16.msra.mxu0 %v2745
      %2841 = vmatprep.subr.bf16.mxu0 0
      %2842 = vmatpush1.bf16.msra.mxu0 %v2744
      %2843 = vmatprep.subr.bf16.mxu0 0
      %2844 = vmatpush2.bf16.msra.mxu0 0
      %2845 = vmatprep.subr.bf16.mxu0 0
      %2846 = vmatpush2.bf16.msra.mxu0 0
      %2847 = vmatprep.subr.bf16.mxu0 0
      %2848 = vmatpush2.bf16.msra.mxu0 0
      %2849 = vmatprep.subr.bf16.mxu0 0
      %2850 = vmatpush2.bf16.msra.mxu0 0
      %2851 = vmatprep.subr.bf16.mxu0 0
      %2852 = vmatpush2.bf16.msra.mxu0 0
      %2853 = vmatprep.subr.bf16.mxu0 0
      %2854 = vmatpush2.bf16.msra.mxu0 0
      %2855 = vmatprep.subr.bf16.mxu0 0
      %2856 = vmatpush2.bf16.msra.mxu0 0
      %2857 = vmatprep.subr.bf16.mxu0 0
      %2858 = vmatpush2.bf16.msra.mxu0 0
      %2859 = vmatprep.mubr.bf16.mxu0 0
      %2860 = vmatmul.mubr.bf16.gmra.mxu0 %v2823
      %v2861 = vpop.f32.mrf.mxu0
      %v2862 = vadd.f32 0.0, %v2861
      %v2863 = vpop.f32.mrf.mxu0
      %v2864 = vpop.f32.mrf.mxu0
      %v2865 = vadd.f32 0.0, %v2864
      %v2866 = vpop.f32.mrf.mxu0
      %2867 = vmatprep.mubr.bf16.mxu0 0
      %2868 = vmatmul.mubr.bf16.gmra.mxu0 %v2825
      %v2869 = vpop.f32.mrf.mxu0
      %v2870 = vadd.f32 0.0, %v2869
      %v2871 = vpop.f32.mrf.mxu0
      %v2872 = vpop.f32.mrf.mxu0
      %v2873 = vadd.f32 0.0, %v2872
      %v2874 = vpop.f32.mrf.mxu0
      %2875 = vdwg.mxu0
      %v2876 = vmax.f32 %v2791, %v2862
      %v2877 = vmax.f32 %v2794, %v2865
      %v2878 = vmax.f32 %v2799, %v2870
      %v2879 = vmax.f32 %v2802, %v2873
      %2880 = vrot.lane.b32.xlu0 %v858, 12
      %v2881 = vpop.permute.xlu0 %2880
      %2882 = vrot.lane.b32.xlu0 %v860, 12
      %v2883 = vpop.permute.xlu0 %2882
      %2886 = vrot.lane.b32.xlu0 %v916, 24
      %v2887 = vpop.permute.xlu0 %2886
      %2888 = vrot.lane.b32.xlu0 %v918, 24
      %v2889 = vpop.permute.xlu0 %2888
      %v2891 = vsel %vm2149, %v800, %v2881
      %v2893 = vsel %vm2149, %v802, %v2883
      %v2895 = vsel %vm2154, %v2891, %v2887
      %v2897 = vsel %vm2154, %v2893, %v2889
      %v2898 = vsel %vm2179, %v2895, 0
      %v2900 = vsel %vm2179, %v2897, 0
      %2902 = vmatprep.subr.bf16.mxu0 0
      %2903 = vmatpush1.bf16.msra.mxu0 0
      %2904 = vmatprep.subr.bf16.mxu0 0
      %2905 = vmatpush1.bf16.msra.mxu0 0
      %2906 = vmatprep.subr.bf16.mxu0 0
      %2907 = vmatpush1.bf16.msra.mxu0 0
      %2908 = vmatprep.subr.bf16.mxu0 0
      %2909 = vmatpush1.bf16.msra.mxu0 0
      %2910 = vmatprep.subr.bf16.mxu0 0
      %2911 = vmatpush1.bf16.msra.mxu0 0
      %2912 = vmatprep.subr.bf16.mxu0 0
      %2913 = vmatpush1.bf16.msra.mxu0 %v2754
      %2914 = vmatprep.subr.bf16.mxu0 0
      %2915 = vmatpush1.bf16.msra.mxu0 %v2745
      %2916 = vmatprep.subr.bf16.mxu0 0
      %2917 = vmatpush1.bf16.msra.mxu0 %v2744
      %2918 = vmatprep.subr.bf16.mxu0 0
      %2919 = vmatpush2.bf16.msra.mxu0 0
      %2920 = vmatprep.subr.bf16.mxu0 0
      %2921 = vmatpush2.bf16.msra.mxu0 0
      %2922 = vmatprep.subr.bf16.mxu0 0
      %2923 = vmatpush2.bf16.msra.mxu0 0
      %2924 = vmatprep.subr.bf16.mxu0 0
      %2925 = vmatpush2.bf16.msra.mxu0 0
      %2926 = vmatprep.subr.bf16.mxu0 0
      %2927 = vmatpush2.bf16.msra.mxu0 0
      %2928 = vmatprep.subr.bf16.mxu0 0
      %2929 = vmatpush2.bf16.msra.mxu0 0
      %2930 = vmatprep.subr.bf16.mxu0 0
      %2931 = vmatpush2.bf16.msra.mxu0 0
      %2932 = vmatprep.subr.bf16.mxu0 0
      %2933 = vmatpush2.bf16.msra.mxu0 0
      %2934 = vmatprep.mubr.bf16.mxu0 0
      %2935 = vmatmul.mubr.bf16.gmra.mxu0 %v2898
      %v2936 = vpop.f32.mrf.mxu0
      %v2937 = vadd.f32 0.0, %v2936
      %v2938 = vpop.f32.mrf.mxu0
      %v2939 = vpop.f32.mrf.mxu0
      %v2940 = vadd.f32 0.0, %v2939
      %v2941 = vpop.f32.mrf.mxu0
      %2942 = vmatprep.mubr.bf16.mxu0 0
      %2943 = vmatmul.mubr.bf16.gmra.mxu0 %v2900
      %v2944 = vpop.f32.mrf.mxu0
      %v2945 = vadd.f32 0.0, %v2944
      %v2946 = vpop.f32.mrf.mxu0
      %v2947 = vpop.f32.mrf.mxu0
      %v2948 = vadd.f32 0.0, %v2947
      %v2949 = vpop.f32.mrf.mxu0
      %2950 = vdwg.mxu0
      %v2951 = vmax.f32 %v2876, %v2937
      %v2952 = vmax.f32 %v2877, %v2940
      %v2953 = vmax.f32 %v2878, %v2945
      %v2954 = vmax.f32 %v2879, %v2948
      %2955 = vst.msk [vmem:[#allocation2] sm:$0xff] %vm2387, %v2951
      %2956 = vst.msk [vmem:[#allocation2 + $0x8] sm:$0xff] %vm2387, %v2952
      %2957 = vst.msk [vmem:[#allocation2 + $0x10] sm:$0xff] %vm2387, %v2953
      %2958 = vst.msk [vmem:[#allocation2 + $0x18] sm:$0x3f] %vm2391, %v2954
      %v2959 = vld [vmem:[#allocation2] ss:$3 sm:$0xff]
      %v2960 = vld [vmem:[%s2394] ss:$3 sm:$0x3]
      %v2961 = vld [vmem:[%s2396] ss:$3 sm:$0xff]
      %v2962 = vld [vmem:[%s2398] ss:$3 sm:$0x3]
      %v2963 = vmax.f32 %v2959, %v2961
      %v2964 = vmax.f32 %v2960, %v2962
      %v2965 = vld [vmem:[%s2402] ss:$3 sm:$0xff]
      %v2966 = vld [vmem:[%s2404] ss:$3 sm:$0x3]
      %v2967 = vmax.f32 %v2963, %v2965
      %v2968 = vmax.f32 %v2964, %v2966
      %v2969 = vld [vmem:[%s2] sm:$0x1]
      %v2971 = vlaneseq
      %v2972 = vshrl.u32 %v2971, 7
      %v2973 = vsub.s32 0, %v2972
      %v2974 = vrot.slane %v2969, %v2973
      %v2976 = vadd.f32 %v2967, %v2974
      %v2977 = vadd.f32 %v2968, %v2974
      %v2978 = vmax.f32 %v2976, 0.0
      %v2979 = vmax.f32 %v2977, 0.0
      %v2980 = vpack.c.bf16 %v2979, %v2978
      %v2982 = vunpack.c.l.b16 %v2980
      %v2983 = vunpack.c.h.b16 %v2980
      %v2984 = vpack.c.b16 %v2982, %v2982
      %v2985 = vpack.c.b16 %v2983, %v2983
      %s2988 = scalar_lea.vmem [#allocation3], 16
      %2989 = vst.msk [vmem:[%s2988] sm:$0xf] %vm2427, %v2984
      %2990 = vst.msk [vmem:[%s2988 + $0x4] sm:$0x1] %vm2429, %v2985
      %2991 = vrot.lane.b32.xlu0 %v916, 12
      %v2992 = vpop.permute.xlu0 %2991
      %2993 = vrot.lane.b32.xlu0 %v918, 12
      %v2994 = vpop.permute.xlu0 %2993
      %2997 = vrot.lane.b32.xlu0 %v974, 24
      %v2998 = vpop.permute.xlu0 %2997
      %2999 = vrot.lane.b32.xlu0 %v976, 24
      %v3000 = vpop.permute.xlu0 %2999
      %v3002 = vsel %vm2149, %v858, %v2992
      %v3004 = vsel %vm2149, %v860, %v2994
      %v3006 = vsel %vm2154, %v3002, %v2998
      %v3008 = vsel %vm2154, %v3004, %v3000
      %v3009 = vld [vmem:[%s1] sm:$0xf]
      %v3010 = vld [vmem:[%s1 + $0x4] sm:$0xf]
      %v3011 = vld [vmem:[%s1 + $0x8] sm:$0xf]
      %v3012 = vld [vmem:[%s1 + $0xc] sm:$0xf]
      %v3013 = vld [vmem:[%s1 + $0x10] sm:$0x3]
      %v3019 = vunpack.c.l.b16 %v3009
      %v3020 = vunpack.c.l.b16 %v3010
      %v3021 = vunpack.c.l.b16 %v3011
      %v3022 = vunpack.c.l.b16 %v3012
      %v3023 = vunpack.c.l.b16 %v3013
      %v3024 = vpack.c.b16 %v3020, %v3019
      %v3025 = vpack.c.b16 %v3022, %v3021
      %v3026 = vpack.c.b16 %v3023, %v3023
      %v3029 = vsel %vm2179, %v3006, 0
      %v3031 = vsel %vm2179, %v3008, 0
      %v3034 = vsel %vm2184, %v3026, 0
      %3036 = vmatprep.subr.bf16.mxu0 0
      %3037 = vmatpush1.bf16.msra.mxu0 0
      %3038 = vmatprep.subr.bf16.mxu0 0
      %3039 = vmatpush1.bf16.msra.mxu0 0
      %3040 = vmatprep.subr.bf16.mxu0 0
      %3041 = vmatpush1.bf16.msra.mxu0 0
      %3042 = vmatprep.subr.bf16.mxu0 0
      %3043 = vmatpush1.bf16.msra.mxu0 0
      %3044 = vmatprep.subr.bf16.mxu0 0
      %3045 = vmatpush1.bf16.msra.mxu0 0
      %3046 = vmatprep.subr.bf16.mxu0 0
      %3047 = vmatpush1.bf16.msra.mxu0 %v3034
      %3048 = vmatprep.subr.bf16.mxu0 0
      %3049 = vmatpush1.bf16.msra.mxu0 %v3025
      %3050 = vmatprep.subr.bf16.mxu0 0
      %3051 = vmatpush1.bf16.msra.mxu0 %v3024
      %3052 = vmatprep.subr.bf16.mxu0 0
      %3053 = vmatpush2.bf16.msra.mxu0 0
      %3054 = vmatprep.subr.bf16.mxu0 0
      %3055 = vmatpush2.bf16.msra.mxu0 0
      %3056 = vmatprep.subr.bf16.mxu0 0
      %3057 = vmatpush2.bf16.msra.mxu0 0
      %3058 = vmatprep.subr.bf16.mxu0 0
      %3059 = vmatpush2.bf16.msra.mxu0 0
      %3060 = vmatprep.subr.bf16.mxu0 0
      %3061 = vmatpush2.bf16.msra.mxu0 0
      %3062 = vmatprep.subr.bf16.mxu0 0
      %3063 = vmatpush2.bf16.msra.mxu0 0
      %3064 = vmatprep.subr.bf16.mxu0 0
      %3065 = vmatpush2.bf16.msra.mxu0 0
      %3066 = vmatprep.subr.bf16.mxu0 0
      %3067 = vmatpush2.bf16.msra.mxu0 0
      %3068 = vmatprep.mubr.bf16.mxu0 0
      %3069 = vmatmul.mubr.bf16.gmra.mxu0 %v3029
      %v3070 = vpop.f32.mrf.mxu0
      %v3071 = vadd.f32 0.0, %v3070
      %v3072 = vpop.f32.mrf.mxu0
      %v3073 = vpop.f32.mrf.mxu0
      %v3074 = vadd.f32 0.0, %v3073
      %v3075 = vpop.f32.mrf.mxu0
      %3076 = vmatprep.mubr.bf16.mxu0 0
      %3077 = vmatmul.mubr.bf16.gmra.mxu0 %v3031
      %v3078 = vpop.f32.mrf.mxu0
      %v3079 = vadd.f32 0.0, %v3078
      %v3080 = vpop.f32.mrf.mxu0
      %v3081 = vpop.f32.mrf.mxu0
      %v3082 = vadd.f32 0.0, %v3081
      %v3083 = vpop.f32.mrf.mxu0
      %3084 = vdwg.mxu0
      %3085 = vrot.lane.b32.xlu0 %v974, 12
      %v3086 = vpop.permute.xlu0 %3085
      %3087 = vrot.lane.b32.xlu0 %v976, 12
      %v3088 = vpop.permute.xlu0 %3087
      %3091 = vrot.lane.b32.xlu0 %v1032, 24
      %v3092 = vpop.permute.xlu0 %3091
      %3093 = vrot.lane.b32.xlu0 %v1034, 24
      %v3094 = vpop.permute.xlu0 %3093
      %v3096 = vsel %vm2149, %v916, %v3086
      %v3098 = vsel %vm2149, %v918, %v3088
      %v3100 = vsel %vm2154, %v3096, %v3092
      %v3102 = vsel %vm2154, %v3098, %v3094
      %v3103 = vsel %vm2179, %v3100, 0
      %v3105 = vsel %vm2179, %v3102, 0
      %3107 = vmatprep.subr.bf16.mxu0 0
      %3108 = vmatpush1.bf16.msra.mxu0 0
      %3109 = vmatprep.subr.bf16.mxu0 0
      %3110 = vmatpush1.bf16.msra.mxu0 0
      %3111 = vmatprep.subr.bf16.mxu0 0
      %3112 = vmatpush1.bf16.msra.mxu0 0
      %3113 = vmatprep.subr.bf16.mxu0 0
      %3114 = vmatpush1.bf16.msra.mxu0 0
      %3115 = vmatprep.subr.bf16.mxu0 0
      %3116 = vmatpush1.bf16.msra.mxu0 0
      %3117 = vmatprep.subr.bf16.mxu0 0
      %3118 = vmatpush1.bf16.msra.mxu0 %v3034
      %3119 = vmatprep.subr.bf16.mxu0 0
      %3120 = vmatpush1.bf16.msra.mxu0 %v3025
      %3121 = vmatprep.subr.bf16.mxu0 0
      %3122 = vmatpush1.bf16.msra.mxu0 %v3024
      %3123 = vmatprep.subr.bf16.mxu0 0
      %3124 = vmatpush2.bf16.msra.mxu0 0
      %3125 = vmatprep.subr.bf16.mxu0 0
      %3126 = vmatpush2.bf16.msra.mxu0 0
      %3127 = vmatprep.subr.bf16.mxu0 0
      %3128 = vmatpush2.bf16.msra.mxu0 0
      %3129 = vmatprep.subr.bf16.mxu0 0
      %3130 = vmatpush2.bf16.msra.mxu0 0
      %3131 = vmatprep.subr.bf16.mxu0 0
      %3132 = vmatpush2.bf16.msra.mxu0 0
      %3133 = vmatprep.subr.bf16.mxu0 0
      %3134 = vmatpush2.bf16.msra.mxu0 0
      %3135 = vmatprep.subr.bf16.mxu0 0
      %3136 = vmatpush2.bf16.msra.mxu0 0
      %3137 = vmatprep.subr.bf16.mxu0 0
      %3138 = vmatpush2.bf16.msra.mxu0 0
      %3139 = vmatprep.mubr.bf16.mxu0 0
      %3140 = vmatmul.mubr.bf16.gmra.mxu0 %v3103
      %v3141 = vpop.f32.mrf.mxu0
      %v3142 = vadd.f32 0.0, %v3141
      %v3143 = vpop.f32.mrf.mxu0
      %v3144 = vpop.f32.mrf.mxu0
      %v3145 = vadd.f32 0.0, %v3144
      %v3146 = vpop.f32.mrf.mxu0
      %3147 = vmatprep.mubr.bf16.mxu0 0
      %3148 = vmatmul.mubr.bf16.gmra.mxu0 %v3105
      %v3149 = vpop.f32.mrf.mxu0
      %v3150 = vadd.f32 0.0, %v3149
      %v3151 = vpop.f32.mrf.mxu0
      %v3152 = vpop.f32.mrf.mxu0
      %v3153 = vadd.f32 0.0, %v3152
      %v3154 = vpop.f32.mrf.mxu0
      %3155 = vdwg.mxu0
      %v3156 = vmax.f32 %v3071, %v3142
      %v3157 = vmax.f32 %v3074, %v3145
      %v3158 = vmax.f32 %v3079, %v3150
      %v3159 = vmax.f32 %v3082, %v3153
      %3160 = vrot.lane.b32.xlu0 %v1032, 12
      %v3161 = vpop.permute.xlu0 %3160
      %3162 = vrot.lane.b32.xlu0 %v1034, 12
      %v3163 = vpop.permute.xlu0 %3162
      %3166 = vrot.lane.b32.xlu0 %v1090, 24
      %v3167 = vpop.permute.xlu0 %3166
      %3168 = vrot.lane.b32.xlu0 %v1092, 24
      %v3169 = vpop.permute.xlu0 %3168
      %v3171 = vsel %vm2149, %v974, %v3161
      %v3173 = vsel %vm2149, %v976, %v3163
      %v3175 = vsel %vm2154, %v3171, %v3167
      %v3177 = vsel %vm2154, %v3173, %v3169
      %v3178 = vsel %vm2179, %v3175, 0
      %v3180 = vsel %vm2179, %v3177, 0
      %3182 = vmatprep.subr.bf16.mxu0 0
      %3183 = vmatpush1.bf16.msra.mxu0 0
      %3184 = vmatprep.subr.bf16.mxu0 0
      %3185 = vmatpush1.bf16.msra.mxu0 0
      %3186 = vmatprep.subr.bf16.mxu0 0
      %3187 = vmatpush1.bf16.msra.mxu0 0
      %3188 = vmatprep.subr.bf16.mxu0 0
      %3189 = vmatpush1.bf16.msra.mxu0 0
      %3190 = vmatprep.subr.bf16.mxu0 0
      %3191 = vmatpush1.bf16.msra.mxu0 0
      %3192 = vmatprep.subr.bf16.mxu0 0
      %3193 = vmatpush1.bf16.msra.mxu0 %v3034
      %3194 = vmatprep.subr.bf16.mxu0 0
      %3195 = vmatpush1.bf16.msra.mxu0 %v3025
      %3196 = vmatprep.subr.bf16.mxu0 0
      %3197 = vmatpush1.bf16.msra.mxu0 %v3024
      %3198 = vmatprep.subr.bf16.mxu0 0
      %3199 = vmatpush2.bf16.msra.mxu0 0
      %3200 = vmatprep.subr.bf16.mxu0 0
      %3201 = vmatpush2.bf16.msra.mxu0 0
      %3202 = vmatprep.subr.bf16.mxu0 0
      %3203 = vmatpush2.bf16.msra.mxu0 0
      %3204 = vmatprep.subr.bf16.mxu0 0
      %3205 = vmatpush2.bf16.msra.mxu0 0
      %3206 = vmatprep.subr.bf16.mxu0 0
      %3207 = vmatpush2.bf16.msra.mxu0 0
      %3208 = vmatprep.subr.bf16.mxu0 0
      %3209 = vmatpush2.bf16.msra.mxu0 0
      %3210 = vmatprep.subr.bf16.mxu0 0
      %3211 = vmatpush2.bf16.msra.mxu0 0
      %3212 = vmatprep.subr.bf16.mxu0 0
      %3213 = vmatpush2.bf16.msra.mxu0 0
      %3214 = vmatprep.mubr.bf16.mxu0 0
      %3215 = vmatmul.mubr.bf16.gmra.mxu0 %v3178
      %v3216 = vpop.f32.mrf.mxu0
      %v3217 = vadd.f32 0.0, %v3216
      %v3218 = vpop.f32.mrf.mxu0
      %v3219 = vpop.f32.mrf.mxu0
      %v3220 = vadd.f32 0.0, %v3219
      %v3221 = vpop.f32.mrf.mxu0
      %3222 = vmatprep.mubr.bf16.mxu0 0
      %3223 = vmatmul.mubr.bf16.gmra.mxu0 %v3180
      %v3224 = vpop.f32.mrf.mxu0
      %v3225 = vadd.f32 0.0, %v3224
      %v3226 = vpop.f32.mrf.mxu0
      %v3227 = vpop.f32.mrf.mxu0
      %v3228 = vadd.f32 0.0, %v3227
      %v3229 = vpop.f32.mrf.mxu0
      %3230 = vdwg.mxu0
      %v3231 = vmax.f32 %v3156, %v3217
      %v3232 = vmax.f32 %v3157, %v3220
      %v3233 = vmax.f32 %v3158, %v3225
      %v3234 = vmax.f32 %v3159, %v3228
      %3235 = vst.msk [vmem:[#allocation2] sm:$0xff] %vm2387, %v3231
      %3236 = vst.msk [vmem:[#allocation2 + $0x8] sm:$0xff] %vm2387, %v3232
      %3237 = vst.msk [vmem:[#allocation2 + $0x10] sm:$0xff] %vm2387, %v3233
      %3238 = vst.msk [vmem:[#allocation2 + $0x18] sm:$0x3f] %vm2391, %v3234
      %v3239 = vld [vmem:[#allocation2] ss:$3 sm:$0xff]
      %v3240 = vld [vmem:[%s2394] ss:$3 sm:$0x3]
      %v3241 = vld [vmem:[%s2396] ss:$3 sm:$0xff]
      %v3242 = vld [vmem:[%s2398] ss:$3 sm:$0x3]
      %v3243 = vmax.f32 %v3239, %v3241
      %v3244 = vmax.f32 %v3240, %v3242
      %v3245 = vld [vmem:[%s2402] ss:$3 sm:$0xff]
      %v3246 = vld [vmem:[%s2404] ss:$3 sm:$0x3]
      %v3247 = vmax.f32 %v3243, %v3245
      %v3248 = vmax.f32 %v3244, %v3246
      %v3249 = vld [vmem:[%s2] sm:$0x1]
      %v3251 = vlaneseq
      %v3252 = vshrl.u32 %v3251, 7
      %v3253 = vsub.s32 0, %v3252
      %v3254 = vrot.slane %v3249, %v3253
      %v3256 = vadd.f32 %v3247, %v3254
      %v3257 = vadd.f32 %v3248, %v3254
      %v3258 = vmax.f32 %v3256, 0.0
      %v3259 = vmax.f32 %v3257, 0.0
      %v3260 = vpack.c.bf16 %v3259, %v3258
      %v3262 = vunpack.c.l.b16 %v3260
      %v3263 = vunpack.c.h.b16 %v3260
      %v3264 = vpack.c.b16 %v3262, %v3262
      %v3265 = vpack.c.b16 %v3263, %v3263
      %s3268 = scalar_lea.vmem [#allocation3], 24
      %3269 = vst.msk [vmem:[%s3268] sm:$0xf] %vm2427, %v3264
      %3270 = vst.msk [vmem:[%s3268 + $0x4] sm:$0x1] %vm2429, %v3265
      %3271 = vrot.lane.b32.xlu0 %v1090, 12
      %v3272 = vpop.permute.xlu0 %3271
      %3273 = vrot.lane.b32.xlu0 %v1092, 12
      %v3274 = vpop.permute.xlu0 %3273
      %3277 = vrot.lane.b32.xlu0 %v1148, 24
      %v3278 = vpop.permute.xlu0 %3277
      %3279 = vrot.lane.b32.xlu0 %v1150, 24
      %v3280 = vpop.permute.xlu0 %3279
      %v3282 = vsel %vm2149, %v1032, %v3272
      %v3284 = vsel %vm2149, %v1034, %v3274
      %v3286 = vsel %vm2154, %v3282, %v3278
      %v3288 = vsel %vm2154, %v3284, %v3280
      %v3289 = vld [vmem:[%s1] sm:$0xf]
      %v3290 = vld [vmem:[%s1 + $0x4] sm:$0xf]
      %v3291 = vld [vmem:[%s1 + $0x8] sm:$0xf]
      %v3292 = vld [vmem:[%s1 + $0xc] sm:$0xf]
      %v3293 = vld [vmem:[%s1 + $0x10] sm:$0x3]
      %v3299 = vunpack.c.l.b16 %v3289
      %v3300 = vunpack.c.l.b16 %v3290
      %v3301 = vunpack.c.l.b16 %v3291
      %v3302 = vunpack.c.l.b16 %v3292
      %v3303 = vunpack.c.l.b16 %v3293
      %v3304 = vpack.c.b16 %v3300, %v3299
      %v3305 = vpack.c.b16 %v3302, %v3301
      %v3306 = vpack.c.b16 %v3303, %v3303
      %v3309 = vsel %vm2179, %v3286, 0
      %v3311 = vsel %vm2179, %v3288, 0
      %v3314 = vsel %vm2184, %v3306, 0
      %3316 = vmatprep.subr.bf16.mxu0 0
      %3317 = vmatpush1.bf16.msra.mxu0 0
      %3318 = vmatprep.subr.bf16.mxu0 0
      %3319 = vmatpush1.bf16.msra.mxu0 0
      %3320 = vmatprep.subr.bf16.mxu0 0
      %3321 = vmatpush1.bf16.msra.mxu0 0
      %3322 = vmatprep.subr.bf16.mxu0 0
      %3323 = vmatpush1.bf16.msra.mxu0 0
      %3324 = vmatprep.subr.bf16.mxu0 0
      %3325 = vmatpush1.bf16.msra.mxu0 0
      %3326 = vmatprep.subr.bf16.mxu0 0
      %3327 = vmatpush1.bf16.msra.mxu0 %v3314
      %3328 = vmatprep.subr.bf16.mxu0 0
      %3329 = vmatpush1.bf16.msra.mxu0 %v3305
      %3330 = vmatprep.subr.bf16.mxu0 0
      %3331 = vmatpush1.bf16.msra.mxu0 %v3304
      %3332 = vmatprep.subr.bf16.mxu0 0
      %3333 = vmatpush2.bf16.msra.mxu0 0
      %3334 = vmatprep.subr.bf16.mxu0 0
      %3335 = vmatpush2.bf16.msra.mxu0 0
      %3336 = vmatprep.subr.bf16.mxu0 0
      %3337 = vmatpush2.bf16.msra.mxu0 0
      %3338 = vmatprep.subr.bf16.mxu0 0
      %3339 = vmatpush2.bf16.msra.mxu0 0
      %3340 = vmatprep.subr.bf16.mxu0 0
      %3341 = vmatpush2.bf16.msra.mxu0 0
      %3342 = vmatprep.subr.bf16.mxu0 0
      %3343 = vmatpush2.bf16.msra.mxu0 0
      %3344 = vmatprep.subr.bf16.mxu0 0
      %3345 = vmatpush2.bf16.msra.mxu0 0
      %3346 = vmatprep.subr.bf16.mxu0 0
      %3347 = vmatpush2.bf16.msra.mxu0 0
      %3348 = vmatprep.mubr.bf16.mxu0 0
      %3349 = vmatmul.mubr.bf16.gmra.mxu0 %v3309
      %v3350 = vpop.f32.mrf.mxu0
      %v3351 = vadd.f32 0.0, %v3350
      %v3352 = vpop.f32.mrf.mxu0
      %v3353 = vpop.f32.mrf.mxu0
      %v3354 = vadd.f32 0.0, %v3353
      %v3355 = vpop.f32.mrf.mxu0
      %3356 = vmatprep.mubr.bf16.mxu0 0
      %3357 = vmatmul.mubr.bf16.gmra.mxu0 %v3311
      %v3358 = vpop.f32.mrf.mxu0
      %v3359 = vadd.f32 0.0, %v3358
      %v3360 = vpop.f32.mrf.mxu0
      %v3361 = vpop.f32.mrf.mxu0
      %v3362 = vadd.f32 0.0, %v3361
      %v3363 = vpop.f32.mrf.mxu0
      %3364 = vdwg.mxu0
      %3365 = vrot.lane.b32.xlu0 %v1148, 12
      %v3366 = vpop.permute.xlu0 %3365
      %3367 = vrot.lane.b32.xlu0 %v1150, 12
      %v3368 = vpop.permute.xlu0 %3367
      %3371 = vrot.lane.b32.xlu0 %v1206, 24
      %v3372 = vpop.permute.xlu0 %3371
      %3373 = vrot.lane.b32.xlu0 %v1208, 24
      %v3374 = vpop.permute.xlu0 %3373
      %v3376 = vsel %vm2149, %v1090, %v3366
      %v3378 = vsel %vm2149, %v1092, %v3368
      %v3380 = vsel %vm2154, %v3376, %v3372
      %v3382 = vsel %vm2154, %v3378, %v3374
      %v3383 = vsel %vm2179, %v3380, 0
      %v3385 = vsel %vm2179, %v3382, 0
      %3387 = vmatprep.subr.bf16.mxu0 0
      %3388 = vmatpush1.bf16.msra.mxu0 0
      %3389 = vmatprep.subr.bf16.mxu0 0
      %3390 = vmatpush1.bf16.msra.mxu0 0
      %3391 = vmatprep.subr.bf16.mxu0 0
      %3392 = vmatpush1.bf16.msra.mxu0 0
      %3393 = vmatprep.subr.bf16.mxu0 0
      %3394 = vmatpush1.bf16.msra.mxu0 0
      %3395 = vmatprep.subr.bf16.mxu0 0
      %3396 = vmatpush1.bf16.msra.mxu0 0
      %3397 = vmatprep.subr.bf16.mxu0 0
      %3398 = vmatpush1.bf16.msra.mxu0 %v3314
      %3399 = vmatprep.subr.bf16.mxu0 0
      %3400 = vmatpush1.bf16.msra.mxu0 %v3305
      %3401 = vmatprep.subr.bf16.mxu0 0
      %3402 = vmatpush1.bf16.msra.mxu0 %v3304
      %3403 = vmatprep.subr.bf16.mxu0 0
      %3404 = vmatpush2.bf16.msra.mxu0 0
      %3405 = vmatprep.subr.bf16.mxu0 0
      %3406 = vmatpush2.bf16.msra.mxu0 0
      %3407 = vmatprep.subr.bf16.mxu0 0
      %3408 = vmatpush2.bf16.msra.mxu0 0
      %3409 = vmatprep.subr.bf16.mxu0 0
      %3410 = vmatpush2.bf16.msra.mxu0 0
      %3411 = vmatprep.subr.bf16.mxu0 0
      %3412 = vmatpush2.bf16.msra.mxu0 0
      %3413 = vmatprep.subr.bf16.mxu0 0
      %3414 = vmatpush2.bf16.msra.mxu0 0
      %3415 = vmatprep.subr.bf16.mxu0 0
      %3416 = vmatpush2.bf16.msra.mxu0 0
      %3417 = vmatprep.subr.bf16.mxu0 0
      %3418 = vmatpush2.bf16.msra.mxu0 0
      %3419 = vmatprep.mubr.bf16.mxu0 0
      %3420 = vmatmul.mubr.bf16.gmra.mxu0 %v3383
      %v3421 = vpop.f32.mrf.mxu0
      %v3422 = vadd.f32 0.0, %v3421
      %v3423 = vpop.f32.mrf.mxu0
      %v3424 = vpop.f32.mrf.mxu0
      %v3425 = vadd.f32 0.0, %v3424
      %v3426 = vpop.f32.mrf.mxu0
      %3427 = vmatprep.mubr.bf16.mxu0 0
      %3428 = vmatmul.mubr.bf16.gmra.mxu0 %v3385
      %v3429 = vpop.f32.mrf.mxu0
      %v3430 = vadd.f32 0.0, %v3429
      %v3431 = vpop.f32.mrf.mxu0
      %v3432 = vpop.f32.mrf.mxu0
      %v3433 = vadd.f32 0.0, %v3432
      %v3434 = vpop.f32.mrf.mxu0
      %3435 = vdwg.mxu0
      %v3436 = vmax.f32 %v3351, %v3422
      %v3437 = vmax.f32 %v3354, %v3425
      %v3438 = vmax.f32 %v3359, %v3430
      %v3439 = vmax.f32 %v3362, %v3433
      %3440 = vrot.lane.b32.xlu0 %v1206, 12
      %v3441 = vpop.permute.xlu0 %3440
      %3442 = vrot.lane.b32.xlu0 %v1208, 12
      %v3443 = vpop.permute.xlu0 %3442
      %3446 = vrot.lane.b32.xlu0 %v1264, 24
      %v3447 = vpop.permute.xlu0 %3446
      %3448 = vrot.lane.b32.xlu0 %v1266, 24
      %v3449 = vpop.permute.xlu0 %3448
      %v3451 = vsel %vm2149, %v1148, %v3441
      %v3453 = vsel %vm2149, %v1150, %v3443
      %v3455 = vsel %vm2154, %v3451, %v3447
      %v3457 = vsel %vm2154, %v3453, %v3449
      %v3458 = vsel %vm2179, %v3455, 0
      %v3460 = vsel %vm2179, %v3457, 0
      %3462 = vmatprep.subr.bf16.mxu0 0
      %3463 = vmatpush1.bf16.msra.mxu0 0
      %3464 = vmatprep.subr.bf16.mxu0 0
      %3465 = vmatpush1.bf16.msra.mxu0 0
      %3466 = vmatprep.subr.bf16.mxu0 0
      %3467 = vmatpush1.bf16.msra.mxu0 0
      %3468 = vmatprep.subr.bf16.mxu0 0
      %3469 = vmatpush1.bf16.msra.mxu0 0
      %3470 = vmatprep.subr.bf16.mxu0 0
      %3471 = vmatpush1.bf16.msra.mxu0 0
      %3472 = vmatprep.subr.bf16.mxu0 0
      %3473 = vmatpush1.bf16.msra.mxu0 %v3314
      %3474 = vmatprep.subr.bf16.mxu0 0
      %3475 = vmatpush1.bf16.msra.mxu0 %v3305
      %3476 = vmatprep.subr.bf16.mxu0 0
      %3477 = vmatpush1.bf16.msra.mxu0 %v3304
      %3478 = vmatprep.subr.bf16.mxu0 0
      %3479 = vmatpush2.bf16.msra.mxu0 0
      %3480 = vmatprep.subr.bf16.mxu0 0
      %3481 = vmatpush2.bf16.msra.mxu0 0
      %3482 = vmatprep.subr.bf16.mxu0 0
      %3483 = vmatpush2.bf16.msra.mxu0 0
      %3484 = vmatprep.subr.bf16.mxu0 0
      %3485 = vmatpush2.bf16.msra.mxu0 0
      %3486 = vmatprep.subr.bf16.mxu0 0
      %3487 = vmatpush2.bf16.msra.mxu0 0
      %3488 = vmatprep.subr.bf16.mxu0 0
      %3489 = vmatpush2.bf16.msra.mxu0 0
      %3490 = vmatprep.subr.bf16.mxu0 0
      %3491 = vmatpush2.bf16.msra.mxu0 0
      %3492 = vmatprep.subr.bf16.mxu0 0
      %3493 = vmatpush2.bf16.msra.mxu0 0
      %3494 = vmatprep.mubr.bf16.mxu0 0
      %3495 = vmatmul.mubr.bf16.gmra.mxu0 %v3458
      %v3496 = vpop.f32.mrf.mxu0
      %v3497 = vadd.f32 0.0, %v3496
      %v3498 = vpop.f32.mrf.mxu0
      %v3499 = vpop.f32.mrf.mxu0
      %v3500 = vadd.f32 0.0, %v3499
      %v3501 = vpop.f32.mrf.mxu0
      %3502 = vmatprep.mubr.bf16.mxu0 0
      %3503 = vmatmul.mubr.bf16.gmra.mxu0 %v3460
      %v3504 = vpop.f32.mrf.mxu0
      %v3505 = vadd.f32 0.0, %v3504
      %v3506 = vpop.f32.mrf.mxu0
      %v3507 = vpop.f32.mrf.mxu0
      %v3508 = vadd.f32 0.0, %v3507
      %v3509 = vpop.f32.mrf.mxu0
      %3510 = vdwg.mxu0
      %v3511 = vmax.f32 %v3436, %v3497
      %v3512 = vmax.f32 %v3437, %v3500
      %v3513 = vmax.f32 %v3438, %v3505
      %v3514 = vmax.f32 %v3439, %v3508
      %3515 = vst.msk [vmem:[#allocation2] sm:$0xff] %vm2387, %v3511
      %3516 = vst.msk [vmem:[#allocation2 + $0x8] sm:$0xff] %vm2387, %v3512
      %3517 = vst.msk [vmem:[#allocation2 + $0x10] sm:$0xff] %vm2387, %v3513
      %3518 = vst.msk [vmem:[#allocation2 + $0x18] sm:$0x3f] %vm2391, %v3514
      %v3519 = vld [vmem:[#allocation2] ss:$3 sm:$0xff]
      %v3520 = vld [vmem:[%s2394] ss:$3 sm:$0x3]
      %v3521 = vld [vmem:[%s2396] ss:$3 sm:$0xff]
      %v3522 = vld [vmem:[%s2398] ss:$3 sm:$0x3]
      %v3523 = vmax.f32 %v3519, %v3521
      %v3524 = vmax.f32 %v3520, %v3522
      %v3525 = vld [vmem:[%s2402] ss:$3 sm:$0xff]
      %v3526 = vld [vmem:[%s2404] ss:$3 sm:$0x3]
      %v3527 = vmax.f32 %v3523, %v3525
      %v3528 = vmax.f32 %v3524, %v3526
      %v3529 = vld [vmem:[%s2] sm:$0x1]
      %v3531 = vlaneseq
      %v3532 = vshrl.u32 %v3531, 7
      %v3533 = vsub.s32 0, %v3532
      %v3534 = vrot.slane %v3529, %v3533
      %v3536 = vadd.f32 %v3527, %v3534
      %v3537 = vadd.f32 %v3528, %v3534
      %v3538 = vmax.f32 %v3536, 0.0
      %v3539 = vmax.f32 %v3537, 0.0
      %v3540 = vpack.c.bf16 %v3539, %v3538
      %v3542 = vunpack.c.l.b16 %v3540
      %v3543 = vunpack.c.h.b16 %v3540
      %v3544 = vpack.c.b16 %v3542, %v3542
      %v3545 = vpack.c.b16 %v3543, %v3543
      %s3548 = scalar_lea.vmem [#allocation3], 32
      %3549 = vst.msk [vmem:[%s3548] sm:$0xf] %vm2427, %v3544
      %3550 = vst.msk [vmem:[%s3548 + $0x4] sm:$0x1] %vm2429, %v3545
      %3551 = vrot.lane.b32.xlu0 %v1264, 12
      %v3552 = vpop.permute.xlu0 %3551
      %3553 = vrot.lane.b32.xlu0 %v1266, 12
      %v3554 = vpop.permute.xlu0 %3553
      %3557 = vrot.lane.b32.xlu0 %v1322, 24
      %v3558 = vpop.permute.xlu0 %3557
      %3559 = vrot.lane.b32.xlu0 %v1324, 24
      %v3560 = vpop.permute.xlu0 %3559
      %v3562 = vsel %vm2149, %v1206, %v3552
      %v3564 = vsel %vm2149, %v1208, %v3554
      %v3566 = vsel %vm2154, %v3562, %v3558
      %v3568 = vsel %vm2154, %v3564, %v3560
      %v3569 = vld [vmem:[%s1] sm:$0xf]
      %v3570 = vld [vmem:[%s1 + $0x4] sm:$0xf]
      %v3571 = vld [vmem:[%s1 + $0x8] sm:$0xf]
      %v3572 = vld [vmem:[%s1 + $0xc] sm:$0xf]
      %v3573 = vld [vmem:[%s1 + $0x10] sm:$0x3]
      %v3579 = vunpack.c.l.b16 %v3569
      %v3580 = vunpack.c.l.b16 %v3570
      %v3581 = vunpack.c.l.b16 %v3571
      %v3582 = vunpack.c.l.b16 %v3572
      %v3583 = vunpack.c.l.b16 %v3573
      %v3584 = vpack.c.b16 %v3580, %v3579
      %v3585 = vpack.c.b16 %v3582, %v3581
      %v3586 = vpack.c.b16 %v3583, %v3583
      %v3589 = vsel %vm2179, %v3566, 0
      %v3591 = vsel %vm2179, %v3568, 0
      %v3594 = vsel %vm2184, %v3586, 0
      %3596 = vmatprep.subr.bf16.mxu0 0
      %3597 = vmatpush1.bf16.msra.mxu0 0
      %3598 = vmatprep.subr.bf16.mxu0 0
      %3599 = vmatpush1.bf16.msra.mxu0 0
      %3600 = vmatprep.subr.bf16.mxu0 0
      %3601 = vmatpush1.bf16.msra.mxu0 0
      %3602 = vmatprep.subr.bf16.mxu0 0
      %3603 = vmatpush1.bf16.msra.mxu0 0
      %3604 = vmatprep.subr.bf16.mxu0 0
      %3605 = vmatpush1.bf16.msra.mxu0 0
      %3606 = vmatprep.subr.bf16.mxu0 0
      %3607 = vmatpush1.bf16.msra.mxu0 %v3594
      %3608 = vmatprep.subr.bf16.mxu0 0
      %3609 = vmatpush1.bf16.msra.mxu0 %v3585
      %3610 = vmatprep.subr.bf16.mxu0 0
      %3611 = vmatpush1.bf16.msra.mxu0 %v3584
      %3612 = vmatprep.subr.bf16.mxu0 0
      %3613 = vmatpush2.bf16.msra.mxu0 0
      %3614 = vmatprep.subr.bf16.mxu0 0
      %3615 = vmatpush2.bf16.msra.mxu0 0
      %3616 = vmatprep.subr.bf16.mxu0 0
      %3617 = vmatpush2.bf16.msra.mxu0 0
      %3618 = vmatprep.subr.bf16.mxu0 0
      %3619 = vmatpush2.bf16.msra.mxu0 0
      %3620 = vmatprep.subr.bf16.mxu0 0
      %3621 = vmatpush2.bf16.msra.mxu0 0
      %3622 = vmatprep.subr.bf16.mxu0 0
      %3623 = vmatpush2.bf16.msra.mxu0 0
      %3624 = vmatprep.subr.bf16.mxu0 0
      %3625 = vmatpush2.bf16.msra.mxu0 0
      %3626 = vmatprep.subr.bf16.mxu0 0
      %3627 = vmatpush2.bf16.msra.mxu0 0
      %3628 = vmatprep.mubr.bf16.mxu0 0
      %3629 = vmatmul.mubr.bf16.gmra.mxu0 %v3589
      %v3630 = vpop.f32.mrf.mxu0
      %v3631 = vadd.f32 0.0, %v3630
      %v3632 = vpop.f32.mrf.mxu0
      %v3633 = vpop.f32.mrf.mxu0
      %v3634 = vadd.f32 0.0, %v3633
      %v3635 = vpop.f32.mrf.mxu0
      %3636 = vmatprep.mubr.bf16.mxu0 0
      %3637 = vmatmul.mubr.bf16.gmra.mxu0 %v3591
      %v3638 = vpop.f32.mrf.mxu0
      %v3639 = vadd.f32 0.0, %v3638
      %v3640 = vpop.f32.mrf.mxu0
      %v3641 = vpop.f32.mrf.mxu0
      %v3642 = vadd.f32 0.0, %v3641
      %v3643 = vpop.f32.mrf.mxu0
      %3644 = vdwg.mxu0
      %3645 = vrot.lane.b32.xlu0 %v1322, 12
      %v3646 = vpop.permute.xlu0 %3645
      %3647 = vrot.lane.b32.xlu0 %v1324, 12
      %v3648 = vpop.permute.xlu0 %3647
      %3651 = vrot.lane.b32.xlu0 %v1380, 24
      %v3652 = vpop.permute.xlu0 %3651
      %3653 = vrot.lane.b32.xlu0 %v1382, 24
      %v3654 = vpop.permute.xlu0 %3653
      %v3656 = vsel %vm2149, %v1264, %v3646
      %v3658 = vsel %vm2149, %v1266, %v3648
      %v3660 = vsel %vm2154, %v3656, %v3652
      %v3662 = vsel %vm2154, %v3658, %v3654
      %v3663 = vsel %vm2179, %v3660, 0
      %v3665 = vsel %vm2179, %v3662, 0
      %3667 = vmatprep.subr.bf16.mxu0 0
      %3668 = vmatpush1.bf16.msra.mxu0 0
      %3669 = vmatprep.subr.bf16.mxu0 0
      %3670 = vmatpush1.bf16.msra.mxu0 0
      %3671 = vmatprep.subr.bf16.mxu0 0
      %3672 = vmatpush1.bf16.msra.mxu0 0
      %3673 = vmatprep.subr.bf16.mxu0 0
      %3674 = vmatpush1.bf16.msra.mxu0 0
      %3675 = vmatprep.subr.bf16.mxu0 0
      %3676 = vmatpush1.bf16.msra.mxu0 0
      %3677 = vmatprep.subr.bf16.mxu0 0
      %3678 = vmatpush1.bf16.msra.mxu0 %v3594
      %3679 = vmatprep.subr.bf16.mxu0 0
      %3680 = vmatpush1.bf16.msra.mxu0 %v3585
      %3681 = vmatprep.subr.bf16.mxu0 0
      %3682 = vmatpush1.bf16.msra.mxu0 %v3584
      %3683 = vmatprep.subr.bf16.mxu0 0
      %3684 = vmatpush2.bf16.msra.mxu0 0
      %3685 = vmatprep.subr.bf16.mxu0 0
      %3686 = vmatpush2.bf16.msra.mxu0 0
      %3687 = vmatprep.subr.bf16.mxu0 0
      %3688 = vmatpush2.bf16.msra.mxu0 0
      %3689 = vmatprep.subr.bf16.mxu0 0
      %3690 = vmatpush2.bf16.msra.mxu0 0
      %3691 = vmatprep.subr.bf16.mxu0 0
      %3692 = vmatpush2.bf16.msra.mxu0 0
      %3693 = vmatprep.subr.bf16.mxu0 0
      %3694 = vmatpush2.bf16.msra.mxu0 0
      %3695 = vmatprep.subr.bf16.mxu0 0
      %3696 = vmatpush2.bf16.msra.mxu0 0
      %3697 = vmatprep.subr.bf16.mxu0 0
      %3698 = vmatpush2.bf16.msra.mxu0 0
      %3699 = vmatprep.mubr.bf16.mxu0 0
      %3700 = vmatmul.mubr.bf16.gmra.mxu0 %v3663
      %v3701 = vpop.f32.mrf.mxu0
      %v3702 = vadd.f32 0.0, %v3701
      %v3703 = vpop.f32.mrf.mxu0
      %v3704 = vpop.f32.mrf.mxu0
      %v3705 = vadd.f32 0.0, %v3704
      %v3706 = vpop.f32.mrf.mxu0
      %3707 = vmatprep.mubr.bf16.mxu0 0
      %3708 = vmatmul.mubr.bf16.gmra.mxu0 %v3665
      %v3709 = vpop.f32.mrf.mxu0
      %v3710 = vadd.f32 0.0, %v3709
      %v3711 = vpop.f32.mrf.mxu0
      %v3712 = vpop.f32.mrf.mxu0
      %v3713 = vadd.f32 0.0, %v3712
      %v3714 = vpop.f32.mrf.mxu0
      %3715 = vdwg.mxu0
      %v3716 = vmax.f32 %v3631, %v3702
      %v3717 = vmax.f32 %v3634, %v3705
      %v3718 = vmax.f32 %v3639, %v3710
      %v3719 = vmax.f32 %v3642, %v3713
      %3720 = vrot.lane.b32.xlu0 %v1380, 12
      %v3721 = vpop.permute.xlu0 %3720
      %3722 = vrot.lane.b32.xlu0 %v1382, 12
      %v3723 = vpop.permute.xlu0 %3722
      %3726 = vrot.lane.b32.xlu0 %v1438, 24
      %v3727 = vpop.permute.xlu0 %3726
      %3728 = vrot.lane.b32.xlu0 %v1440, 24
      %v3729 = vpop.permute.xlu0 %3728
      %v3731 = vsel %vm2149, %v1322, %v3721
      %v3733 = vsel %vm2149, %v1324, %v3723
      %v3735 = vsel %vm2154, %v3731, %v3727
      %v3737 = vsel %vm2154, %v3733, %v3729
      %v3738 = vsel %vm2179, %v3735, 0
      %v3740 = vsel %vm2179, %v3737, 0
      %3742 = vmatprep.subr.bf16.mxu0 0
      %3743 = vmatpush1.bf16.msra.mxu0 0
      %3744 = vmatprep.subr.bf16.mxu0 0
      %3745 = vmatpush1.bf16.msra.mxu0 0
      %3746 = vmatprep.subr.bf16.mxu0 0
      %3747 = vmatpush1.bf16.msra.mxu0 0
      %3748 = vmatprep.subr.bf16.mxu0 0
      %3749 = vmatpush1.bf16.msra.mxu0 0
      %3750 = vmatprep.subr.bf16.mxu0 0
      %3751 = vmatpush1.bf16.msra.mxu0 0
      %3752 = vmatprep.subr.bf16.mxu0 0
      %3753 = vmatpush1.bf16.msra.mxu0 %v3594
      %3754 = vmatprep.subr.bf16.mxu0 0
      %3755 = vmatpush1.bf16.msra.mxu0 %v3585
      %3756 = vmatprep.subr.bf16.mxu0 0
      %3757 = vmatpush1.bf16.msra.mxu0 %v3584
      %3758 = vmatprep.subr.bf16.mxu0 0
      %3759 = vmatpush2.bf16.msra.mxu0 0
      %3760 = vmatprep.subr.bf16.mxu0 0
      %3761 = vmatpush2.bf16.msra.mxu0 0
      %3762 = vmatprep.subr.bf16.mxu0 0
      %3763 = vmatpush2.bf16.msra.mxu0 0
      %3764 = vmatprep.subr.bf16.mxu0 0
      %3765 = vmatpush2.bf16.msra.mxu0 0
      %3766 = vmatprep.subr.bf16.mxu0 0
      %3767 = vmatpush2.bf16.msra.mxu0 0
      %3768 = vmatprep.subr.bf16.mxu0 0
      %3769 = vmatpush2.bf16.msra.mxu0 0
      %3770 = vmatprep.subr.bf16.mxu0 0
      %3771 = vmatpush2.bf16.msra.mxu0 0
      %3772 = vmatprep.subr.bf16.mxu0 0
      %3773 = vmatpush2.bf16.msra.mxu0 0
      %3774 = vmatprep.mubr.bf16.mxu0 0
      %3775 = vmatmul.mubr.bf16.gmra.mxu0 %v3738
      %v3776 = vpop.f32.mrf.mxu0
      %v3777 = vadd.f32 0.0, %v3776
      %v3778 = vpop.f32.mrf.mxu0
      %v3779 = vpop.f32.mrf.mxu0
      %v3780 = vadd.f32 0.0, %v3779
      %v3781 = vpop.f32.mrf.mxu0
      %3782 = vmatprep.mubr.bf16.mxu0 0
      %3783 = vmatmul.mubr.bf16.gmra.mxu0 %v3740
      %v3784 = vpop.f32.mrf.mxu0
      %v3785 = vadd.f32 0.0, %v3784
      %v3786 = vpop.f32.mrf.mxu0
      %v3787 = vpop.f32.mrf.mxu0
      %v3788 = vadd.f32 0.0, %v3787
      %v3789 = vpop.f32.mrf.mxu0
      %3790 = vdwg.mxu0
      %v3791 = vmax.f32 %v3716, %v3777
      %v3792 = vmax.f32 %v3717, %v3780
      %v3793 = vmax.f32 %v3718, %v3785
      %v3794 = vmax.f32 %v3719, %v3788
      %3795 = vst.msk [vmem:[#allocation2] sm:$0xff] %vm2387, %v3791
      %3796 = vst.msk [vmem:[#allocation2 + $0x8] sm:$0xff] %vm2387, %v3792
      %3797 = vst.msk [vmem:[#allocation2 + $0x10] sm:$0xff] %vm2387, %v3793
      %3798 = vst.msk [vmem:[#allocation2 + $0x18] sm:$0x3f] %vm2391, %v3794
      %v3799 = vld [vmem:[#allocation2] ss:$3 sm:$0xff]
      %v3800 = vld [vmem:[%s2394] ss:$3 sm:$0x3]
      %v3801 = vld [vmem:[%s2396] ss:$3 sm:$0xff]
      %v3802 = vld [vmem:[%s2398] ss:$3 sm:$0x3]
      %v3803 = vmax.f32 %v3799, %v3801
      %v3804 = vmax.f32 %v3800, %v3802
      %v3805 = vld [vmem:[%s2402] ss:$3 sm:$0xff]
      %v3806 = vld [vmem:[%s2404] ss:$3 sm:$0x3]
      %v3807 = vmax.f32 %v3803, %v3805
      %v3808 = vmax.f32 %v3804, %v3806
      %v3809 = vld [vmem:[%s2] sm:$0x1]
      %v3811 = vlaneseq
      %v3812 = vshrl.u32 %v3811, 7
      %v3813 = vsub.s32 0, %v3812
      %v3814 = vrot.slane %v3809, %v3813
      %v3816 = vadd.f32 %v3807, %v3814
      %v3817 = vadd.f32 %v3808, %v3814
      %v3818 = vmax.f32 %v3816, 0.0
      %v3819 = vmax.f32 %v3817, 0.0
      %v3820 = vpack.c.bf16 %v3819, %v3818
      %v3822 = vunpack.c.l.b16 %v3820
      %v3823 = vunpack.c.h.b16 %v3820
      %v3824 = vpack.c.b16 %v3822, %v3822
      %v3825 = vpack.c.b16 %v3823, %v3823
      %s3828 = scalar_lea.vmem [#allocation3], 40
      %3829 = vst.msk [vmem:[%s3828] sm:$0xf] %vm2427, %v3824
      %3830 = vst.msk [vmem:[%s3828 + $0x4] sm:$0x1] %vm2429, %v3825
      %3831 = vrot.lane.b32.xlu0 %v1438, 12
      %v3832 = vpop.permute.xlu0 %3831
      %3833 = vrot.lane.b32.xlu0 %v1440, 12
      %v3834 = vpop.permute.xlu0 %3833
      %3837 = vrot.lane.b32.xlu0 %v1496, 24
      %v3838 = vpop.permute.xlu0 %3837
      %3839 = vrot.lane.b32.xlu0 %v1498, 24
      %v3840 = vpop.permute.xlu0 %3839
      %v3842 = vsel %vm2149, %v1380, %v3832
      %v3844 = vsel %vm2149, %v1382, %v3834
      %v3846 = vsel %vm2154, %v3842, %v3838
      %v3848 = vsel %vm2154, %v3844, %v3840
      %v3849 = vld [vmem:[%s1] sm:$0xf]
      %v3850 = vld [vmem:[%s1 + $0x4] sm:$0xf]
      %v3851 = vld [vmem:[%s1 + $0x8] sm:$0xf]
      %v3852 = vld [vmem:[%s1 + $0xc] sm:$0xf]
      %v3853 = vld [vmem:[%s1 + $0x10] sm:$0x3]
      %v3859 = vunpack.c.l.b16 %v3849
      %v3860 = vunpack.c.l.b16 %v3850
      %v3861 = vunpack.c.l.b16 %v3851
      %v3862 = vunpack.c.l.b16 %v3852
      %v3863 = vunpack.c.l.b16 %v3853
      %v3864 = vpack.c.b16 %v3860, %v3859
      %v3865 = vpack.c.b16 %v3862, %v3861
      %v3866 = vpack.c.b16 %v3863, %v3863
      %v3869 = vsel %vm2179, %v3846, 0
      %v3871 = vsel %vm2179, %v3848, 0
      %v3874 = vsel %vm2184, %v3866, 0
      %3876 = vmatprep.subr.bf16.mxu0 0
      %3877 = vmatpush1.bf16.msra.mxu0 0
      %3878 = vmatprep.subr.bf16.mxu0 0
      %3879 = vmatpush1.bf16.msra.mxu0 0
      %3880 = vmatprep.subr.bf16.mxu0 0
      %3881 = vmatpush1.bf16.msra.mxu0 0
      %3882 = vmatprep.subr.bf16.mxu0 0
      %3883 = vmatpush1.bf16.msra.mxu0 0
      %3884 = vmatprep.subr.bf16.mxu0 0
      %3885 = vmatpush1.bf16.msra.mxu0 0
      %3886 = vmatprep.subr.bf16.mxu0 0
      %3887 = vmatpush1.bf16.msra.mxu0 %v3874
      %3888 = vmatprep.subr.bf16.mxu0 0
      %3889 = vmatpush1.bf16.msra.mxu0 %v3865
      %3890 = vmatprep.subr.bf16.mxu0 0
      %3891 = vmatpush1.bf16.msra.mxu0 %v3864
      %3892 = vmatprep.subr.bf16.mxu0 0
      %3893 = vmatpush2.bf16.msra.mxu0 0
      %3894 = vmatprep.subr.bf16.mxu0 0
      %3895 = vmatpush2.bf16.msra.mxu0 0
      %3896 = vmatprep.subr.bf16.mxu0 0
      %3897 = vmatpush2.bf16.msra.mxu0 0
      %3898 = vmatprep.subr.bf16.mxu0 0
      %3899 = vmatpush2.bf16.msra.mxu0 0
      %3900 = vmatprep.subr.bf16.mxu0 0
      %3901 = vmatpush2.bf16.msra.mxu0 0
      %3902 = vmatprep.subr.bf16.mxu0 0
      %3903 = vmatpush2.bf16.msra.mxu0 0
      %3904 = vmatprep.subr.bf16.mxu0 0
      %3905 = vmatpush2.bf16.msra.mxu0 0
      %3906 = vmatprep.subr.bf16.mxu0 0
      %3907 = vmatpush2.bf16.msra.mxu0 0
      %3908 = vmatprep.mubr.bf16.mxu0 0
      %3909 = vmatmul.mubr.bf16.gmra.mxu0 %v3869
      %v3910 = vpop.f32.mrf.mxu0
      %v3911 = vadd.f32 0.0, %v3910
      %v3912 = vpop.f32.mrf.mxu0
      %v3913 = vpop.f32.mrf.mxu0
      %v3914 = vadd.f32 0.0, %v3913
      %v3915 = vpop.f32.mrf.mxu0
      %3916 = vmatprep.mubr.bf16.mxu0 0
      %3917 = vmatmul.mubr.bf16.gmra.mxu0 %v3871
      %v3918 = vpop.f32.mrf.mxu0
      %v3919 = vadd.f32 0.0, %v3918
      %v3920 = vpop.f32.mrf.mxu0
      %v3921 = vpop.f32.mrf.mxu0
      %v3922 = vadd.f32 0.0, %v3921
      %v3923 = vpop.f32.mrf.mxu0
      %3924 = vdwg.mxu0
      %3925 = vrot.lane.b32.xlu0 %v1496, 12
      %v3926 = vpop.permute.xlu0 %3925
      %3927 = vrot.lane.b32.xlu0 %v1498, 12
      %v3928 = vpop.permute.xlu0 %3927
      %3931 = vrot.lane.b32.xlu0 %v1554, 24
      %v3932 = vpop.permute.xlu0 %3931
      %3933 = vrot.lane.b32.xlu0 %v1556, 24
      %v3934 = vpop.permute.xlu0 %3933
      %v3936 = vsel %vm2149, %v1438, %v3926
      %v3938 = vsel %vm2149, %v1440, %v3928
      %v3940 = vsel %vm2154, %v3936, %v3932
      %v3942 = vsel %vm2154, %v3938, %v3934
      %v3943 = vsel %vm2179, %v3940, 0
      %v3945 = vsel %vm2179, %v3942, 0
      %3947 = vmatprep.subr.bf16.mxu0 0
      %3948 = vmatpush1.bf16.msra.mxu0 0
      %3949 = vmatprep.subr.bf16.mxu0 0
      %3950 = vmatpush1.bf16.msra.mxu0 0
      %3951 = vmatprep.subr.bf16.mxu0 0
      %3952 = vmatpush1.bf16.msra.mxu0 0
      %3953 = vmatprep.subr.bf16.mxu0 0
      %3954 = vmatpush1.bf16.msra.mxu0 0
      %3955 = vmatprep.subr.bf16.mxu0 0
      %3956 = vmatpush1.bf16.msra.mxu0 0
      %3957 = vmatprep.subr.bf16.mxu0 0
      %3958 = vmatpush1.bf16.msra.mxu0 %v3874
      %3959 = vmatprep.subr.bf16.mxu0 0
      %3960 = vmatpush1.bf16.msra.mxu0 %v3865
      %3961 = vmatprep.subr.bf16.mxu0 0
      %3962 = vmatpush1.bf16.msra.mxu0 %v3864
      %3963 = vmatprep.subr.bf16.mxu0 0
      %3964 = vmatpush2.bf16.msra.mxu0 0
      %3965 = vmatprep.subr.bf16.mxu0 0
      %3966 = vmatpush2.bf16.msra.mxu0 0
      %3967 = vmatprep.subr.bf16.mxu0 0
      %3968 = vmatpush2.bf16.msra.mxu0 0
      %3969 = vmatprep.subr.bf16.mxu0 0
      %3970 = vmatpush2.bf16.msra.mxu0 0
      %3971 = vmatprep.subr.bf16.mxu0 0
      %3972 = vmatpush2.bf16.msra.mxu0 0
      %3973 = vmatprep.subr.bf16.mxu0 0
      %3974 = vmatpush2.bf16.msra.mxu0 0
      %3975 = vmatprep.subr.bf16.mxu0 0
      %3976 = vmatpush2.bf16.msra.mxu0 0
      %3977 = vmatprep.subr.bf16.mxu0 0
      %3978 = vmatpush2.bf16.msra.mxu0 0
      %3979 = vmatprep.mubr.bf16.mxu0 0
      %3980 = vmatmul.mubr.bf16.gmra.mxu0 %v3943
      %v3981 = vpop.f32.mrf.mxu0
      %v3982 = vadd.f32 0.0, %v3981
      %v3983 = vpop.f32.mrf.mxu0
      %v3984 = vpop.f32.mrf.mxu0
      %v3985 = vadd.f32 0.0, %v3984
      %v3986 = vpop.f32.mrf.mxu0
      %3987 = vmatprep.mubr.bf16.mxu0 0
      %3988 = vmatmul.mubr.bf16.gmra.mxu0 %v3945
      %v3989 = vpop.f32.mrf.mxu0
      %v3990 = vadd.f32 0.0, %v3989
      %v3991 = vpop.f32.mrf.mxu0
      %v3992 = vpop.f32.mrf.mxu0
      %v3993 = vadd.f32 0.0, %v3992
      %v3994 = vpop.f32.mrf.mxu0
      %3995 = vdwg.mxu0
      %v3996 = vmax.f32 %v3911, %v3982
      %v3997 = vmax.f32 %v3914, %v3985
      %v3998 = vmax.f32 %v3919, %v3990
      %v3999 = vmax.f32 %v3922, %v3993
      %4000 = vrot.lane.b32.xlu0 %v1554, 12
      %v4001 = vpop.permute.xlu0 %4000
      %4002 = vrot.lane.b32.xlu0 %v1556, 12
      %v4003 = vpop.permute.xlu0 %4002
      %4006 = vrot.lane.b32.xlu0 %v1612, 24
      %v4007 = vpop.permute.xlu0 %4006
      %4008 = vrot.lane.b32.xlu0 %v1614, 24
      %v4009 = vpop.permute.xlu0 %4008
      %v4011 = vsel %vm2149, %v1496, %v4001
      %v4013 = vsel %vm2149, %v1498, %v4003
      %v4015 = vsel %vm2154, %v4011, %v4007
      %v4017 = vsel %vm2154, %v4013, %v4009
      %v4018 = vsel %vm2179, %v4015, 0
      %v4020 = vsel %vm2179, %v4017, 0
      %4022 = vmatprep.subr.bf16.mxu0 0
      %4023 = vmatpush1.bf16.msra.mxu0 0
      %4024 = vmatprep.subr.bf16.mxu0 0
      %4025 = vmatpush1.bf16.msra.mxu0 0
      %4026 = vmatprep.subr.bf16.mxu0 0
      %4027 = vmatpush1.bf16.msra.mxu0 0
      %4028 = vmatprep.subr.bf16.mxu0 0
      %4029 = vmatpush1.bf16.msra.mxu0 0
      %4030 = vmatprep.subr.bf16.mxu0 0
      %4031 = vmatpush1.bf16.msra.mxu0 0
      %4032 = vmatprep.subr.bf16.mxu0 0
      %4033 = vmatpush1.bf16.msra.mxu0 %v3874
      %4034 = vmatprep.subr.bf16.mxu0 0
      %4035 = vmatpush1.bf16.msra.mxu0 %v3865
      %4036 = vmatprep.subr.bf16.mxu0 0
      %4037 = vmatpush1.bf16.msra.mxu0 %v3864
      %4038 = vmatprep.subr.bf16.mxu0 0
      %4039 = vmatpush2.bf16.msra.mxu0 0
      %4040 = vmatprep.subr.bf16.mxu0 0
      %4041 = vmatpush2.bf16.msra.mxu0 0
      %4042 = vmatprep.subr.bf16.mxu0 0
      %4043 = vmatpush2.bf16.msra.mxu0 0
      %4044 = vmatprep.subr.bf16.mxu0 0
      %4045 = vmatpush2.bf16.msra.mxu0 0
      %4046 = vmatprep.subr.bf16.mxu0 0
      %4047 = vmatpush2.bf16.msra.mxu0 0
      %4048 = vmatprep.subr.bf16.mxu0 0
      %4049 = vmatpush2.bf16.msra.mxu0 0
      %4050 = vmatprep.subr.bf16.mxu0 0
      %4051 = vmatpush2.bf16.msra.mxu0 0
      %4052 = vmatprep.subr.bf16.mxu0 0
      %4053 = vmatpush2.bf16.msra.mxu0 0
      %4054 = vmatprep.mubr.bf16.mxu0 0
      %4055 = vmatmul.mubr.bf16.gmra.mxu0 %v4018
      %v4056 = vpop.f32.mrf.mxu0
      %v4057 = vadd.f32 0.0, %v4056
      %v4058 = vpop.f32.mrf.mxu0
      %v4059 = vpop.f32.mrf.mxu0
      %v4060 = vadd.f32 0.0, %v4059
      %v4061 = vpop.f32.mrf.mxu0
      %4062 = vmatprep.mubr.bf16.mxu0 0
      %4063 = vmatmul.mubr.bf16.gmra.mxu0 %v4020
      %v4064 = vpop.f32.mrf.mxu0
      %v4065 = vadd.f32 0.0, %v4064
      %v4066 = vpop.f32.mrf.mxu0
      %v4067 = vpop.f32.mrf.mxu0
      %v4068 = vadd.f32 0.0, %v4067
      %v4069 = vpop.f32.mrf.mxu0
      %4070 = vdwg.mxu0
      %v4071 = vmax.f32 %v3996, %v4057
      %v4072 = vmax.f32 %v3997, %v4060
      %v4073 = vmax.f32 %v3998, %v4065
      %v4074 = vmax.f32 %v3999, %v4068
      %4075 = vst.msk [vmem:[#allocation2] sm:$0xff] %vm2387, %v4071
      %4076 = vst.msk [vmem:[#allocation2 + $0x8] sm:$0xff] %vm2387, %v4072
      %4077 = vst.msk [vmem:[#allocation2 + $0x10] sm:$0xff] %vm2387, %v4073
      %4078 = vst.msk [vmem:[#allocation2 + $0x18] sm:$0x3f] %vm2391, %v4074
      %v4079 = vld [vmem:[#allocation2] ss:$3 sm:$0xff]
      %v4080 = vld [vmem:[%s2394] ss:$3 sm:$0x3]
      %v4081 = vld [vmem:[%s2396] ss:$3 sm:$0xff]
      %v4082 = vld [vmem:[%s2398] ss:$3 sm:$0x3]
      %v4083 = vmax.f32 %v4079, %v4081
      %v4084 = vmax.f32 %v4080, %v4082
      %v4085 = vld [vmem:[%s2402] ss:$3 sm:$0xff]
      %v4086 = vld [vmem:[%s2404] ss:$3 sm:$0x3]
      %v4087 = vmax.f32 %v4083, %v4085
      %v4088 = vmax.f32 %v4084, %v4086
      %v4089 = vld [vmem:[%s2] sm:$0x1]
      %v4091 = vlaneseq
      %v4092 = vshrl.u32 %v4091, 7
      %v4093 = vsub.s32 0, %v4092
      %v4094 = vrot.slane %v4089, %v4093
      %v4096 = vadd.f32 %v4087, %v4094
      %v4097 = vadd.f32 %v4088, %v4094
      %v4098 = vmax.f32 %v4096, 0.0
      %v4099 = vmax.f32 %v4097, 0.0
      %v4100 = vpack.c.bf16 %v4099, %v4098
      %v4102 = vunpack.c.l.b16 %v4100
      %v4103 = vunpack.c.h.b16 %v4100
      %v4104 = vpack.c.b16 %v4102, %v4102
      %v4105 = vpack.c.b16 %v4103, %v4103
      %s4108 = scalar_lea.vmem [#allocation3], 48
      %4109 = vst.msk [vmem:[%s4108] sm:$0xf] %vm2427, %v4104
      %4110 = vst.msk [vmem:[%s4108 + $0x4] sm:$0x1] %vm2429, %v4105
      %4111 = vrot.lane.b32.xlu0 %v1612, 12
      %v4112 = vpop.permute.xlu0 %4111
      %4113 = vrot.lane.b32.xlu0 %v1614, 12
      %v4114 = vpop.permute.xlu0 %4113
      %4117 = vrot.lane.b32.xlu0 %v1670, 24
      %v4118 = vpop.permute.xlu0 %4117
      %4119 = vrot.lane.b32.xlu0 %v1672, 24
      %v4120 = vpop.permute.xlu0 %4119
      %v4122 = vsel %vm2149, %v1554, %v4112
      %v4124 = vsel %vm2149, %v1556, %v4114
      %v4126 = vsel %vm2154, %v4122, %v4118
      %v4128 = vsel %vm2154, %v4124, %v4120
      %v4129 = vld [vmem:[%s1] sm:$0xf]
      %v4130 = vld [vmem:[%s1 + $0x4] sm:$0xf]
      %v4131 = vld [vmem:[%s1 + $0x8] sm:$0xf]
      %v4132 = vld [vmem:[%s1 + $0xc] sm:$0xf]
      %v4133 = vld [vmem:[%s1 + $0x10] sm:$0x3]
      %v4139 = vunpack.c.l.b16 %v4129
      %v4140 = vunpack.c.l.b16 %v4130
      %v4141 = vunpack.c.l.b16 %v4131
      %v4142 = vunpack.c.l.b16 %v4132
      %v4143 = vunpack.c.l.b16 %v4133
      %v4144 = vpack.c.b16 %v4140, %v4139
      %v4145 = vpack.c.b16 %v4142, %v4141
      %v4146 = vpack.c.b16 %v4143, %v4143
      %v4149 = vsel %vm2179, %v4126, 0
      %v4151 = vsel %vm2179, %v4128, 0
      %v4154 = vsel %vm2184, %v4146, 0
      %4156 = vmatprep.subr.bf16.mxu0 0
      %4157 = vmatpush1.bf16.msra.mxu0 0
      %4158 = vmatprep.subr.bf16.mxu0 0
      %4159 = vmatpush1.bf16.msra.mxu0 0
      %4160 = vmatprep.subr.bf16.mxu0 0
      %4161 = vmatpush1.bf16.msra.mxu0 0
      %4162 = vmatprep.subr.bf16.mxu0 0
      %4163 = vmatpush1.bf16.msra.mxu0 0
      %4164 = vmatprep.subr.bf16.mxu0 0
      %4165 = vmatpush1.bf16.msra.mxu0 0
      %4166 = vmatprep.subr.bf16.mxu0 0
      %4167 = vmatpush1.bf16.msra.mxu0 %v4154
      %4168 = vmatprep.subr.bf16.mxu0 0
      %4169 = vmatpush1.bf16.msra.mxu0 %v4145
      %4170 = vmatprep.subr.bf16.mxu0 0
      %4171 = vmatpush1.bf16.msra.mxu0 %v4144
      %4172 = vmatprep.subr.bf16.mxu0 0
      %4173 = vmatpush2.bf16.msra.mxu0 0
      %4174 = vmatprep.subr.bf16.mxu0 0
      %4175 = vmatpush2.bf16.msra.mxu0 0
      %4176 = vmatprep.subr.bf16.mxu0 0
      %4177 = vmatpush2.bf16.msra.mxu0 0
      %4178 = vmatprep.subr.bf16.mxu0 0
      %4179 = vmatpush2.bf16.msra.mxu0 0
      %4180 = vmatprep.subr.bf16.mxu0 0
      %4181 = vmatpush2.bf16.msra.mxu0 0
      %4182 = vmatprep.subr.bf16.mxu0 0
      %4183 = vmatpush2.bf16.msra.mxu0 0
      %4184 = vmatprep.subr.bf16.mxu0 0
      %4185 = vmatpush2.bf16.msra.mxu0 0
      %4186 = vmatprep.subr.bf16.mxu0 0
      %4187 = vmatpush2.bf16.msra.mxu0 0
      %4188 = vmatprep.mubr.bf16.mxu0 0
      %4189 = vmatmul.mubr.bf16.gmra.mxu0 %v4149
      %v4190 = vpop.f32.mrf.mxu0
      %v4191 = vadd.f32 0.0, %v4190
      %v4192 = vpop.f32.mrf.mxu0
      %v4193 = vpop.f32.mrf.mxu0
      %v4194 = vadd.f32 0.0, %v4193
      %v4195 = vpop.f32.mrf.mxu0
      %4196 = vmatprep.mubr.bf16.mxu0 0
      %4197 = vmatmul.mubr.bf16.gmra.mxu0 %v4151
      %v4198 = vpop.f32.mrf.mxu0
      %v4199 = vadd.f32 0.0, %v4198
      %v4200 = vpop.f32.mrf.mxu0
      %v4201 = vpop.f32.mrf.mxu0
      %v4202 = vadd.f32 0.0, %v4201
      %v4203 = vpop.f32.mrf.mxu0
      %4204 = vdwg.mxu0
      %4205 = vrot.lane.b32.xlu0 %v1670, 12
      %v4206 = vpop.permute.xlu0 %4205
      %4207 = vrot.lane.b32.xlu0 %v1672, 12
      %v4208 = vpop.permute.xlu0 %4207
      %4211 = vrot.lane.b32.xlu0 %v1728, 24
      %v4212 = vpop.permute.xlu0 %4211
      %4213 = vrot.lane.b32.xlu0 %v1730, 24
      %v4214 = vpop.permute.xlu0 %4213
      %v4216 = vsel %vm2149, %v1612, %v4206
      %v4218 = vsel %vm2149, %v1614, %v4208
      %v4220 = vsel %vm2154, %v4216, %v4212
      %v4222 = vsel %vm2154, %v4218, %v4214
      %v4223 = vsel %vm2179, %v4220, 0
      %v4225 = vsel %vm2179, %v4222, 0
      %4227 = vmatprep.subr.bf16.mxu0 0
      %4228 = vmatpush1.bf16.msra.mxu0 0
      %4229 = vmatprep.subr.bf16.mxu0 0
      %4230 = vmatpush1.bf16.msra.mxu0 0
      %4231 = vmatprep.subr.bf16.mxu0 0
      %4232 = vmatpush1.bf16.msra.mxu0 0
      %4233 = vmatprep.subr.bf16.mxu0 0
      %4234 = vmatpush1.bf16.msra.mxu0 0
      %4235 = vmatprep.subr.bf16.mxu0 0
      %4236 = vmatpush1.bf16.msra.mxu0 0
      %4237 = vmatprep.subr.bf16.mxu0 0
      %4238 = vmatpush1.bf16.msra.mxu0 %v4154
      %4239 = vmatprep.subr.bf16.mxu0 0
      %4240 = vmatpush1.bf16.msra.mxu0 %v4145
      %4241 = vmatprep.subr.bf16.mxu0 0
      %4242 = vmatpush1.bf16.msra.mxu0 %v4144
      %4243 = vmatprep.subr.bf16.mxu0 0
      %4244 = vmatpush2.bf16.msra.mxu0 0
      %4245 = vmatprep.subr.bf16.mxu0 0
      %4246 = vmatpush2.bf16.msra.mxu0 0
      %4247 = vmatprep.subr.bf16.mxu0 0
      %4248 = vmatpush2.bf16.msra.mxu0 0
      %4249 = vmatprep.subr.bf16.mxu0 0
      %4250 = vmatpush2.bf16.msra.mxu0 0
      %4251 = vmatprep.subr.bf16.mxu0 0
      %4252 = vmatpush2.bf16.msra.mxu0 0
      %4253 = vmatprep.subr.bf16.mxu0 0
      %4254 = vmatpush2.bf16.msra.mxu0 0
      %4255 = vmatprep.subr.bf16.mxu0 0
      %4256 = vmatpush2.bf16.msra.mxu0 0
      %4257 = vmatprep.subr.bf16.mxu0 0
      %4258 = vmatpush2.bf16.msra.mxu0 0
      %4259 = vmatprep.mubr.bf16.mxu0 0
      %4260 = vmatmul.mubr.bf16.gmra.mxu0 %v4223
      %v4261 = vpop.f32.mrf.mxu0
      %v4262 = vadd.f32 0.0, %v4261
      %v4263 = vpop.f32.mrf.mxu0
      %v4264 = vpop.f32.mrf.mxu0
      %v4265 = vadd.f32 0.0, %v4264
      %v4266 = vpop.f32.mrf.mxu0
      %4267 = vmatprep.mubr.bf16.mxu0 0
      %4268 = vmatmul.mubr.bf16.gmra.mxu0 %v4225
      %v4269 = vpop.f32.mrf.mxu0
      %v4270 = vadd.f32 0.0, %v4269
      %v4271 = vpop.f32.mrf.mxu0
      %v4272 = vpop.f32.mrf.mxu0
      %v4273 = vadd.f32 0.0, %v4272
      %v4274 = vpop.f32.mrf.mxu0
      %4275 = vdwg.mxu0
      %v4276 = vmax.f32 %v4191, %v4262
      %v4277 = vmax.f32 %v4194, %v4265
      %v4278 = vmax.f32 %v4199, %v4270
      %v4279 = vmax.f32 %v4202, %v4273
      %4280 = vrot.lane.b32.xlu0 %v1728, 12
      %v4281 = vpop.permute.xlu0 %4280
      %4282 = vrot.lane.b32.xlu0 %v1730, 12
      %v4283 = vpop.permute.xlu0 %4282
      %4286 = vrot.lane.b32.xlu0 %v1786, 24
      %v4287 = vpop.permute.xlu0 %4286
      %4288 = vrot.lane.b32.xlu0 %v1788, 24
      %v4289 = vpop.permute.xlu0 %4288
      %v4291 = vsel %vm2149, %v1670, %v4281
      %v4293 = vsel %vm2149, %v1672, %v4283
      %v4295 = vsel %vm2154, %v4291, %v4287
      %v4297 = vsel %vm2154, %v4293, %v4289
      %v4298 = vsel %vm2179, %v4295, 0
      %v4300 = vsel %vm2179, %v4297, 0
      %4302 = vmatprep.subr.bf16.mxu0 0
      %4303 = vmatpush1.bf16.msra.mxu0 0
      %4304 = vmatprep.subr.bf16.mxu0 0
      %4305 = vmatpush1.bf16.msra.mxu0 0
      %4306 = vmatprep.subr.bf16.mxu0 0
      %4307 = vmatpush1.bf16.msra.mxu0 0
      %4308 = vmatprep.subr.bf16.mxu0 0
      %4309 = vmatpush1.bf16.msra.mxu0 0
      %4310 = vmatprep.subr.bf16.mxu0 0
      %4311 = vmatpush1.bf16.msra.mxu0 0
      %4312 = vmatprep.subr.bf16.mxu0 0
      %4313 = vmatpush1.bf16.msra.mxu0 %v4154
      %4314 = vmatprep.subr.bf16.mxu0 0
      %4315 = vmatpush1.bf16.msra.mxu0 %v4145
      %4316 = vmatprep.subr.bf16.mxu0 0
      %4317 = vmatpush1.bf16.msra.mxu0 %v4144
      %4318 = vmatprep.subr.bf16.mxu0 0
      %4319 = vmatpush2.bf16.msra.mxu0 0
      %4320 = vmatprep.subr.bf16.mxu0 0
      %4321 = vmatpush2.bf16.msra.mxu0 0
      %4322 = vmatprep.subr.bf16.mxu0 0
      %4323 = vmatpush2.bf16.msra.mxu0 0
      %4324 = vmatprep.subr.bf16.mxu0 0
      %4325 = vmatpush2.bf16.msra.mxu0 0
      %4326 = vmatprep.subr.bf16.mxu0 0
      %4327 = vmatpush2.bf16.msra.mxu0 0
      %4328 = vmatprep.subr.bf16.mxu0 0
      %4329 = vmatpush2.bf16.msra.mxu0 0
      %4330 = vmatprep.subr.bf16.mxu0 0
      %4331 = vmatpush2.bf16.msra.mxu0 0
      %4332 = vmatprep.subr.bf16.mxu0 0
      %4333 = vmatpush2.bf16.msra.mxu0 0
      %4334 = vmatprep.mubr.bf16.mxu0 0
      %4335 = vmatmul.mubr.bf16.gmra.mxu0 %v4298
      %v4336 = vpop.f32.mrf.mxu0
      %v4337 = vadd.f32 0.0, %v4336
      %v4338 = vpop.f32.mrf.mxu0
      %v4339 = vpop.f32.mrf.mxu0
      %v4340 = vadd.f32 0.0, %v4339
      %v4341 = vpop.f32.mrf.mxu0
      %4342 = vmatprep.mubr.bf16.mxu0 0
      %4343 = vmatmul.mubr.bf16.gmra.mxu0 %v4300
      %v4344 = vpop.f32.mrf.mxu0
      %v4345 = vadd.f32 0.0, %v4344
      %v4346 = vpop.f32.mrf.mxu0
      %v4347 = vpop.f32.mrf.mxu0
      %v4348 = vadd.f32 0.0, %v4347
      %v4349 = vpop.f32.mrf.mxu0
      %4350 = vdwg.mxu0
      %v4351 = vmax.f32 %v4276, %v4337
      %v4352 = vmax.f32 %v4277, %v4340
      %v4353 = vmax.f32 %v4278, %v4345
      %v4354 = vmax.f32 %v4279, %v4348
      %4355 = vst.msk [vmem:[#allocation2] sm:$0xff] %vm2387, %v4351
      %4356 = vst.msk [vmem:[#allocation2 + $0x8] sm:$0xff] %vm2387, %v4352
      %4357 = vst.msk [vmem:[#allocation2 + $0x10] sm:$0xff] %vm2387, %v4353
      %4358 = vst.msk [vmem:[#allocation2 + $0x18] sm:$0x3f] %vm2391, %v4354
      %v4359 = vld [vmem:[#allocation2] ss:$3 sm:$0xff]
      %v4360 = vld [vmem:[%s2394] ss:$3 sm:$0x3]
      %v4361 = vld [vmem:[%s2396] ss:$3 sm:$0xff]
      %v4362 = vld [vmem:[%s2398] ss:$3 sm:$0x3]
      %v4363 = vmax.f32 %v4359, %v4361
      %v4364 = vmax.f32 %v4360, %v4362
      %v4365 = vld [vmem:[%s2402] ss:$3 sm:$0xff]
      %v4366 = vld [vmem:[%s2404] ss:$3 sm:$0x3]
      %v4367 = vmax.f32 %v4363, %v4365
      %v4368 = vmax.f32 %v4364, %v4366
      %v4369 = vld [vmem:[%s2] sm:$0x1]
      %v4371 = vlaneseq
      %v4372 = vshrl.u32 %v4371, 7
      %v4373 = vsub.s32 0, %v4372
      %v4374 = vrot.slane %v4369, %v4373
      %v4376 = vadd.f32 %v4367, %v4374
      %v4377 = vadd.f32 %v4368, %v4374
      %v4378 = vmax.f32 %v4376, 0.0
      %v4379 = vmax.f32 %v4377, 0.0
      %v4380 = vpack.c.bf16 %v4379, %v4378
      %v4382 = vunpack.c.l.b16 %v4380
      %v4383 = vunpack.c.h.b16 %v4380
      %v4384 = vpack.c.b16 %v4382, %v4382
      %v4385 = vpack.c.b16 %v4383, %v4383
      %s4388 = scalar_lea.vmem [#allocation3], 56
      %4389 = vst.msk [vmem:[%s4388] sm:$0xf] %vm2427, %v4384
      %4390 = vst.msk [vmem:[%s4388 + $0x4] sm:$0x1] %vm2429, %v4385
      %4391 = vrot.lane.b32.xlu0 %v1786, 12
      %v4392 = vpop.permute.xlu0 %4391
      %4393 = vrot.lane.b32.xlu0 %v1788, 12
      %v4394 = vpop.permute.xlu0 %4393
      %4397 = vrot.lane.b32.xlu0 %v1844, 24
      %v4398 = vpop.permute.xlu0 %4397
      %4399 = vrot.lane.b32.xlu0 %v1846, 24
      %v4400 = vpop.permute.xlu0 %4399
      %v4402 = vsel %vm2149, %v1728, %v4392
      %v4404 = vsel %vm2149, %v1730, %v4394
      %v4406 = vsel %vm2154, %v4402, %v4398
      %v4408 = vsel %vm2154, %v4404, %v4400
      %v4409 = vld [vmem:[%s1] sm:$0xf]
      %v4410 = vld [vmem:[%s1 + $0x4] sm:$0xf]
      %v4411 = vld [vmem:[%s1 + $0x8] sm:$0xf]
      %v4412 = vld [vmem:[%s1 + $0xc] sm:$0xf]
      %v4413 = vld [vmem:[%s1 + $0x10] sm:$0x3]
      %v4419 = vunpack.c.l.b16 %v4409
      %v4420 = vunpack.c.l.b16 %v4410
      %v4421 = vunpack.c.l.b16 %v4411
      %v4422 = vunpack.c.l.b16 %v4412
      %v4423 = vunpack.c.l.b16 %v4413
      %v4424 = vpack.c.b16 %v4420, %v4419
      %v4425 = vpack.c.b16 %v4422, %v4421
      %v4426 = vpack.c.b16 %v4423, %v4423
      %v4429 = vsel %vm2179, %v4406, 0
      %v4431 = vsel %vm2179, %v4408, 0
      %v4434 = vsel %vm2184, %v4426, 0
      %4436 = vmatprep.subr.bf16.mxu0 0
      %4437 = vmatpush1.bf16.msra.mxu0 0
      %4438 = vmatprep.subr.bf16.mxu0 0
      %4439 = vmatpush1.bf16.msra.mxu0 0
      %4440 = vmatprep.subr.bf16.mxu0 0
      %4441 = vmatpush1.bf16.msra.mxu0 0
      %4442 = vmatprep.subr.bf16.mxu0 0
      %4443 = vmatpush1.bf16.msra.mxu0 0
      %4444 = vmatprep.subr.bf16.mxu0 0
      %4445 = vmatpush1.bf16.msra.mxu0 0
      %4446 = vmatprep.subr.bf16.mxu0 0
      %4447 = vmatpush1.bf16.msra.mxu0 %v4434
      %4448 = vmatprep.subr.bf16.mxu0 0
      %4449 = vmatpush1.bf16.msra.mxu0 %v4425
      %4450 = vmatprep.subr.bf16.mxu0 0
      %4451 = vmatpush1.bf16.msra.mxu0 %v4424
      %4452 = vmatprep.subr.bf16.mxu0 0
      %4453 = vmatpush2.bf16.msra.mxu0 0
      %4454 = vmatprep.subr.bf16.mxu0 0
      %4455 = vmatpush2.bf16.msra.mxu0 0
      %4456 = vmatprep.subr.bf16.mxu0 0
      %4457 = vmatpush2.bf16.msra.mxu0 0
      %4458 = vmatprep.subr.bf16.mxu0 0
      %4459 = vmatpush2.bf16.msra.mxu0 0
      %4460 = vmatprep.subr.bf16.mxu0 0
      %4461 = vmatpush2.bf16.msra.mxu0 0
      %4462 = vmatprep.subr.bf16.mxu0 0
      %4463 = vmatpush2.bf16.msra.mxu0 0
      %4464 = vmatprep.subr.bf16.mxu0 0
      %4465 = vmatpush2.bf16.msra.mxu0 0
      %4466 = vmatprep.subr.bf16.mxu0 0
      %4467 = vmatpush2.bf16.msra.mxu0 0
      %4468 = vmatprep.mubr.bf16.mxu0 0
      %4469 = vmatmul.mubr.bf16.gmra.mxu0 %v4429
      %v4470 = vpop.f32.mrf.mxu0
      %v4471 = vadd.f32 0.0, %v4470
      %v4472 = vpop.f32.mrf.mxu0
      %v4473 = vpop.f32.mrf.mxu0
      %v4474 = vadd.f32 0.0, %v4473
      %v4475 = vpop.f32.mrf.mxu0
      %4476 = vmatprep.mubr.bf16.mxu0 0
      %4477 = vmatmul.mubr.bf16.gmra.mxu0 %v4431
      %v4478 = vpop.f32.mrf.mxu0
      %v4479 = vadd.f32 0.0, %v4478
      %v4480 = vpop.f32.mrf.mxu0
      %v4481 = vpop.f32.mrf.mxu0
      %v4482 = vadd.f32 0.0, %v4481
      %v4483 = vpop.f32.mrf.mxu0
      %4484 = vdwg.mxu0
      %4485 = vrot.lane.b32.xlu0 %v1844, 12
      %v4486 = vpop.permute.xlu0 %4485
      %4487 = vrot.lane.b32.xlu0 %v1846, 12
      %v4488 = vpop.permute.xlu0 %4487
      %4491 = vrot.lane.b32.xlu0 %v1902, 24
      %v4492 = vpop.permute.xlu0 %4491
      %4493 = vrot.lane.b32.xlu0 %v1904, 24
      %v4494 = vpop.permute.xlu0 %4493
      %v4496 = vsel %vm2149, %v1786, %v4486
      %v4498 = vsel %vm2149, %v1788, %v4488
      %v4500 = vsel %vm2154, %v4496, %v4492
      %v4502 = vsel %vm2154, %v4498, %v4494
      %v4503 = vsel %vm2179, %v4500, 0
      %v4505 = vsel %vm2179, %v4502, 0
      %4507 = vmatprep.subr.bf16.mxu0 0
      %4508 = vmatpush1.bf16.msra.mxu0 0
      %4509 = vmatprep.subr.bf16.mxu0 0
      %4510 = vmatpush1.bf16.msra.mxu0 0
      %4511 = vmatprep.subr.bf16.mxu0 0
      %4512 = vmatpush1.bf16.msra.mxu0 0
      %4513 = vmatprep.subr.bf16.mxu0 0
      %4514 = vmatpush1.bf16.msra.mxu0 0
      %4515 = vmatprep.subr.bf16.mxu0 0
      %4516 = vmatpush1.bf16.msra.mxu0 0
      %4517 = vmatprep.subr.bf16.mxu0 0
      %4518 = vmatpush1.bf16.msra.mxu0 %v4434
      %4519 = vmatprep.subr.bf16.mxu0 0
      %4520 = vmatpush1.bf16.msra.mxu0 %v4425
      %4521 = vmatprep.subr.bf16.mxu0 0
      %4522 = vmatpush1.bf16.msra.mxu0 %v4424
      %4523 = vmatprep.subr.bf16.mxu0 0
      %4524 = vmatpush2.bf16.msra.mxu0 0
      %4525 = vmatprep.subr.bf16.mxu0 0
      %4526 = vmatpush2.bf16.msra.mxu0 0
      %4527 = vmatprep.subr.bf16.mxu0 0
      %4528 = vmatpush2.bf16.msra.mxu0 0
      %4529 = vmatprep.subr.bf16.mxu0 0
      %4530 = vmatpush2.bf16.msra.mxu0 0
      %4531 = vmatprep.subr.bf16.mxu0 0
      %4532 = vmatpush2.bf16.msra.mxu0 0
      %4533 = vmatprep.subr.bf16.mxu0 0
      %4534 = vmatpush2.bf16.msra.mxu0 0
      %4535 = vmatprep.subr.bf16.mxu0 0
      %4536 = vmatpush2.bf16.msra.mxu0 0
      %4537 = vmatprep.subr.bf16.mxu0 0
      %4538 = vmatpush2.bf16.msra.mxu0 0
      %4539 = vmatprep.mubr.bf16.mxu0 0
      %4540 = vmatmul.mubr.bf16.gmra.mxu0 %v4503
      %v4541 = vpop.f32.mrf.mxu0
      %v4542 = vadd.f32 0.0, %v4541
      %v4543 = vpop.f32.mrf.mxu0
      %v4544 = vpop.f32.mrf.mxu0
      %v4545 = vadd.f32 0.0, %v4544
      %v4546 = vpop.f32.mrf.mxu0
      %4547 = vmatprep.mubr.bf16.mxu0 0
      %4548 = vmatmul.mubr.bf16.gmra.mxu0 %v4505
      %v4549 = vpop.f32.mrf.mxu0
      %v4550 = vadd.f32 0.0, %v4549
      %v4551 = vpop.f32.mrf.mxu0
      %v4552 = vpop.f32.mrf.mxu0
      %v4553 = vadd.f32 0.0, %v4552
      %v4554 = vpop.f32.mrf.mxu0
      %4555 = vdwg.mxu0
      %v4556 = vmax.f32 %v4471, %v4542
      %v4557 = vmax.f32 %v4474, %v4545
      %v4558 = vmax.f32 %v4479, %v4550
      %v4559 = vmax.f32 %v4482, %v4553
      %4560 = vrot.lane.b32.xlu0 %v1902, 12
      %v4561 = vpop.permute.xlu0 %4560
      %4562 = vrot.lane.b32.xlu0 %v1904, 12
      %v4563 = vpop.permute.xlu0 %4562
      %4566 = vrot.lane.b32.xlu0 %v1960, 24
      %v4567 = vpop.permute.xlu0 %4566
      %4568 = vrot.lane.b32.xlu0 %v1962, 24
      %v4569 = vpop.permute.xlu0 %4568
      %v4571 = vsel %vm2149, %v1844, %v4561
      %v4573 = vsel %vm2149, %v1846, %v4563
      %v4575 = vsel %vm2154, %v4571, %v4567
      %v4577 = vsel %vm2154, %v4573, %v4569
      %v4578 = vsel %vm2179, %v4575, 0
      %v4580 = vsel %vm2179, %v4577, 0
      %4582 = vmatprep.subr.bf16.mxu0 0
      %4583 = vmatpush1.bf16.msra.mxu0 0
      %4584 = vmatprep.subr.bf16.mxu0 0
      %4585 = vmatpush1.bf16.msra.mxu0 0
      %4586 = vmatprep.subr.bf16.mxu0 0
      %4587 = vmatpush1.bf16.msra.mxu0 0
      %4588 = vmatprep.subr.bf16.mxu0 0
      %4589 = vmatpush1.bf16.msra.mxu0 0
      %4590 = vmatprep.subr.bf16.mxu0 0
      %4591 = vmatpush1.bf16.msra.mxu0 0
      %4592 = vmatprep.subr.bf16.mxu0 0
      %4593 = vmatpush1.bf16.msra.mxu0 %v4434
      %4594 = vmatprep.subr.bf16.mxu0 0
      %4595 = vmatpush1.bf16.msra.mxu0 %v4425
      %4596 = vmatprep.subr.bf16.mxu0 0
      %4597 = vmatpush1.bf16.msra.mxu0 %v4424
      %4598 = vmatprep.subr.bf16.mxu0 0
      %4599 = vmatpush2.bf16.msra.mxu0 0
      %4600 = vmatprep.subr.bf16.mxu0 0
      %4601 = vmatpush2.bf16.msra.mxu0 0
      %4602 = vmatprep.subr.bf16.mxu0 0
      %4603 = vmatpush2.bf16.msra.mxu0 0
      %4604 = vmatprep.subr.bf16.mxu0 0
      %4605 = vmatpush2.bf16.msra.mxu0 0
      %4606 = vmatprep.subr.bf16.mxu0 0
      %4607 = vmatpush2.bf16.msra.mxu0 0
      %4608 = vmatprep.subr.bf16.mxu0 0
      %4609 = vmatpush2.bf16.msra.mxu0 0
      %4610 = vmatprep.subr.bf16.mxu0 0
      %4611 = vmatpush2.bf16.msra.mxu0 0
      %4612 = vmatprep.subr.bf16.mxu0 0
      %4613 = vmatpush2.bf16.msra.mxu0 0
      %4614 = vmatprep.mubr.bf16.mxu0 0
      %4615 = vmatmul.mubr.bf16.gmra.mxu0 %v4578
      %v4616 = vpop.f32.mrf.mxu0
      %v4617 = vadd.f32 0.0, %v4616
      %v4618 = vpop.f32.mrf.mxu0
      %v4619 = vpop.f32.mrf.mxu0
      %v4620 = vadd.f32 0.0, %v4619
      %v4621 = vpop.f32.mrf.mxu0
      %4622 = vmatprep.mubr.bf16.mxu0 0
      %4623 = vmatmul.mubr.bf16.gmra.mxu0 %v4580
      %v4624 = vpop.f32.mrf.mxu0
      %v4625 = vadd.f32 0.0, %v4624
      %v4626 = vpop.f32.mrf.mxu0
      %v4627 = vpop.f32.mrf.mxu0
      %v4628 = vadd.f32 0.0, %v4627
      %v4629 = vpop.f32.mrf.mxu0
      %4630 = vdwg.mxu0
      %v4631 = vmax.f32 %v4556, %v4617
      %v4632 = vmax.f32 %v4557, %v4620
      %v4633 = vmax.f32 %v4558, %v4625
      %v4634 = vmax.f32 %v4559, %v4628
      %4635 = vst.msk [vmem:[#allocation2] sm:$0xff] %vm2387, %v4631
      %4636 = vst.msk [vmem:[#allocation2 + $0x8] sm:$0xff] %vm2387, %v4632
      %4637 = vst.msk [vmem:[#allocation2 + $0x10] sm:$0xff] %vm2387, %v4633
      %4638 = vst.msk [vmem:[#allocation2 + $0x18] sm:$0x3f] %vm2391, %v4634
      %v4639 = vld [vmem:[#allocation2] ss:$3 sm:$0xff]
      %v4640 = vld [vmem:[%s2394] ss:$3 sm:$0x3]
      %v4641 = vld [vmem:[%s2396] ss:$3 sm:$0xff]
      %v4642 = vld [vmem:[%s2398] ss:$3 sm:$0x3]
      %v4643 = vmax.f32 %v4639, %v4641
      %v4644 = vmax.f32 %v4640, %v4642
      %v4645 = vld [vmem:[%s2402] ss:$3 sm:$0xff]
      %v4646 = vld [vmem:[%s2404] ss:$3 sm:$0x3]
      %v4647 = vmax.f32 %v4643, %v4645
      %v4648 = vmax.f32 %v4644, %v4646
      %v4649 = vld [vmem:[%s2] sm:$0x1]
      %v4651 = vlaneseq
      %v4652 = vshrl.u32 %v4651, 7
      %v4653 = vsub.s32 0, %v4652
      %v4654 = vrot.slane %v4649, %v4653
      %v4656 = vadd.f32 %v4647, %v4654
      %v4657 = vadd.f32 %v4648, %v4654
      %v4658 = vmax.f32 %v4656, 0.0
      %v4659 = vmax.f32 %v4657, 0.0
      %v4660 = vpack.c.bf16 %v4659, %v4658
      %v4662 = vunpack.c.l.b16 %v4660
      %v4663 = vunpack.c.h.b16 %v4660
      %v4664 = vpack.c.b16 %v4662, %v4662
      %v4665 = vpack.c.b16 %v4663, %v4663
      %s4668 = scalar_lea.vmem [#allocation3], 64
      %4669 = vst.msk [vmem:[%s4668] sm:$0xf] %vm2427, %v4664
      %4670 = vst.msk [vmem:[%s4668 + $0x4] sm:$0x1] %vm2429, %v4665
      %4671 = vrot.lane.b32.xlu0 %v1960, 12
      %v4672 = vpop.permute.xlu0 %4671
      %4673 = vrot.lane.b32.xlu0 %v1962, 12
      %v4674 = vpop.permute.xlu0 %4673
      %4677 = vrot.lane.b32.xlu0 %v2018, 24
      %v4678 = vpop.permute.xlu0 %4677
      %4679 = vrot.lane.b32.xlu0 %v2020, 24
      %v4680 = vpop.permute.xlu0 %4679
      %v4682 = vsel %vm2149, %v1902, %v4672
      %v4684 = vsel %vm2149, %v1904, %v4674
      %v4686 = vsel %vm2154, %v4682, %v4678
      %v4688 = vsel %vm2154, %v4684, %v4680
      %v4689 = vld [vmem:[%s1] sm:$0xf]
      %v4690 = vld [vmem:[%s1 + $0x4] sm:$0xf]
      %v4691 = vld [vmem:[%s1 + $0x8] sm:$0xf]
      %v4692 = vld [vmem:[%s1 + $0xc] sm:$0xf]
      %v4693 = vld [vmem:[%s1 + $0x10] sm:$0x3]
      %v4699 = vunpack.c.l.b16 %v4689
      %v4700 = vunpack.c.l.b16 %v4690
      %v4701 = vunpack.c.l.b16 %v4691
      %v4702 = vunpack.c.l.b16 %v4692
      %v4703 = vunpack.c.l.b16 %v4693
      %v4704 = vpack.c.b16 %v4700, %v4699
      %v4705 = vpack.c.b16 %v4702, %v4701
      %v4706 = vpack.c.b16 %v4703, %v4703
      %v4709 = vsel %vm2179, %v4686, 0
      %v4711 = vsel %vm2179, %v4688, 0
      %v4714 = vsel %vm2184, %v4706, 0
      %4716 = vmatprep.subr.bf16.mxu0 0
      %4717 = vmatpush1.bf16.msra.mxu0 0
      %4718 = vmatprep.subr.bf16.mxu0 0
      %4719 = vmatpush1.bf16.msra.mxu0 0
      %4720 = vmatprep.subr.bf16.mxu0 0
      %4721 = vmatpush1.bf16.msra.mxu0 0
      %4722 = vmatprep.subr.bf16.mxu0 0
      %4723 = vmatpush1.bf16.msra.mxu0 0
      %4724 = vmatprep.subr.bf16.mxu0 0
      %4725 = vmatpush1.bf16.msra.mxu0 0
      %4726 = vmatprep.subr.bf16.mxu0 0
      %4727 = vmatpush1.bf16.msra.mxu0 %v4714
      %4728 = vmatprep.subr.bf16.mxu0 0
      %4729 = vmatpush1.bf16.msra.mxu0 %v4705
      %4730 = vmatprep.subr.bf16.mxu0 0
      %4731 = vmatpush1.bf16.msra.mxu0 %v4704
      %4732 = vmatprep.subr.bf16.mxu0 0
      %4733 = vmatpush2.bf16.msra.mxu0 0
      %4734 = vmatprep.subr.bf16.mxu0 0
      %4735 = vmatpush2.bf16.msra.mxu0 0
      %4736 = vmatprep.subr.bf16.mxu0 0
      %4737 = vmatpush2.bf16.msra.mxu0 0
      %4738 = vmatprep.subr.bf16.mxu0 0
      %4739 = vmatpush2.bf16.msra.mxu0 0
      %4740 = vmatprep.subr.bf16.mxu0 0
      %4741 = vmatpush2.bf16.msra.mxu0 0
      %4742 = vmatprep.subr.bf16.mxu0 0
      %4743 = vmatpush2.bf16.msra.mxu0 0
      %4744 = vmatprep.subr.bf16.mxu0 0
      %4745 = vmatpush2.bf16.msra.mxu0 0
      %4746 = vmatprep.subr.bf16.mxu0 0
      %4747 = vmatpush2.bf16.msra.mxu0 0
      %4748 = vmatprep.mubr.bf16.mxu0 0
      %4749 = vmatmul.mubr.bf16.gmra.mxu0 %v4709
      %v4750 = vpop.f32.mrf.mxu0
      %v4751 = vadd.f32 0.0, %v4750
      %v4752 = vpop.f32.mrf.mxu0
      %v4753 = vpop.f32.mrf.mxu0
      %v4754 = vadd.f32 0.0, %v4753
      %v4755 = vpop.f32.mrf.mxu0
      %4756 = vmatprep.mubr.bf16.mxu0 0
      %4757 = vmatmul.mubr.bf16.gmra.mxu0 %v4711
      %v4758 = vpop.f32.mrf.mxu0
      %v4759 = vadd.f32 0.0, %v4758
      %v4760 = vpop.f32.mrf.mxu0
      %v4761 = vpop.f32.mrf.mxu0
      %v4762 = vadd.f32 0.0, %v4761
      %v4763 = vpop.f32.mrf.mxu0
      %4764 = vdwg.mxu0
      %4765 = vrot.lane.b32.xlu0 %v2018, 12
      %v4766 = vpop.permute.xlu0 %4765
      %4767 = vrot.lane.b32.xlu0 %v2020, 12
      %v4768 = vpop.permute.xlu0 %4767
      %4771 = vrot.lane.b32.xlu0 %v2076, 24
      %v4772 = vpop.permute.xlu0 %4771
      %4773 = vrot.lane.b32.xlu0 %v2078, 24
      %v4774 = vpop.permute.xlu0 %4773
      %v4776 = vsel %vm2149, %v1960, %v4766
      %v4778 = vsel %vm2149, %v1962, %v4768
      %v4780 = vsel %vm2154, %v4776, %v4772
      %v4782 = vsel %vm2154, %v4778, %v4774
      %v4783 = vsel %vm2179, %v4780, 0
      %v4785 = vsel %vm2179, %v4782, 0
      %4787 = vmatprep.subr.bf16.mxu0 0
      %4788 = vmatpush1.bf16.msra.mxu0 0
      %4789 = vmatprep.subr.bf16.mxu0 0
      %4790 = vmatpush1.bf16.msra.mxu0 0
      %4791 = vmatprep.subr.bf16.mxu0 0
      %4792 = vmatpush1.bf16.msra.mxu0 0
      %4793 = vmatprep.subr.bf16.mxu0 0
      %4794 = vmatpush1.bf16.msra.mxu0 0
      %4795 = vmatprep.subr.bf16.mxu0 0
      %4796 = vmatpush1.bf16.msra.mxu0 0
      %4797 = vmatprep.subr.bf16.mxu0 0
      %4798 = vmatpush1.bf16.msra.mxu0 %v4714
      %4799 = vmatprep.subr.bf16.mxu0 0
      %4800 = vmatpush1.bf16.msra.mxu0 %v4705
      %4801 = vmatprep.subr.bf16.mxu0 0
      %4802 = vmatpush1.bf16.msra.mxu0 %v4704
      %4803 = vmatprep.subr.bf16.mxu0 0
      %4804 = vmatpush2.bf16.msra.mxu0 0
      %4805 = vmatprep.subr.bf16.mxu0 0
      %4806 = vmatpush2.bf16.msra.mxu0 0
      %4807 = vmatprep.subr.bf16.mxu0 0
      %4808 = vmatpush2.bf16.msra.mxu0 0
      %4809 = vmatprep.subr.bf16.mxu0 0
      %4810 = vmatpush2.bf16.msra.mxu0 0
      %4811 = vmatprep.subr.bf16.mxu0 0
      %4812 = vmatpush2.bf16.msra.mxu0 0
      %4813 = vmatprep.subr.bf16.mxu0 0
      %4814 = vmatpush2.bf16.msra.mxu0 0
      %4815 = vmatprep.subr.bf16.mxu0 0
      %4816 = vmatpush2.bf16.msra.mxu0 0
      %4817 = vmatprep.subr.bf16.mxu0 0
      %4818 = vmatpush2.bf16.msra.mxu0 0
      %4819 = vmatprep.mubr.bf16.mxu0 0
      %4820 = vmatmul.mubr.bf16.gmra.mxu0 %v4783
      %v4821 = vpop.f32.mrf.mxu0
      %v4822 = vadd.f32 0.0, %v4821
      %v4823 = vpop.f32.mrf.mxu0
      %v4824 = vpop.f32.mrf.mxu0
      %v4825 = vadd.f32 0.0, %v4824
      %v4826 = vpop.f32.mrf.mxu0
      %4827 = vmatprep.mubr.bf16.mxu0 0
      %4828 = vmatmul.mubr.bf16.gmra.mxu0 %v4785
      %v4829 = vpop.f32.mrf.mxu0
      %v4830 = vadd.f32 0.0, %v4829
      %v4831 = vpop.f32.mrf.mxu0
      %v4832 = vpop.f32.mrf.mxu0
      %v4833 = vadd.f32 0.0, %v4832
      %v4834 = vpop.f32.mrf.mxu0
      %4835 = vdwg.mxu0
      %v4836 = vmax.f32 %v4751, %v4822
      %v4837 = vmax.f32 %v4754, %v4825
      %v4838 = vmax.f32 %v4759, %v4830
      %v4839 = vmax.f32 %v4762, %v4833
      %4840 = vrot.lane.b32.xlu0 %v2076, 12
      %v4841 = vpop.permute.xlu0 %4840
      %4842 = vrot.lane.b32.xlu0 %v2078, 12
      %v4843 = vpop.permute.xlu0 %4842
      %4846 = vrot.lane.b32.xlu0 %v2134, 24
      %v4847 = vpop.permute.xlu0 %4846
      %4848 = vrot.lane.b32.xlu0 %v2136, 24
      %v4849 = vpop.permute.xlu0 %4848
      %v4851 = vsel %vm2149, %v2018, %v4841
      %v4853 = vsel %vm2149, %v2020, %v4843
      %v4855 = vsel %vm2154, %v4851, %v4847
      %v4857 = vsel %vm2154, %v4853, %v4849
      %v4858 = vsel %vm2179, %v4855, 0
      %v4860 = vsel %vm2179, %v4857, 0
      %4862 = vmatprep.subr.bf16.mxu0 0
      %4863 = vmatpush1.bf16.msra.mxu0 0
      %4864 = vmatprep.subr.bf16.mxu0 0
      %4865 = vmatpush1.bf16.msra.mxu0 0
      %4866 = vmatprep.subr.bf16.mxu0 0
      %4867 = vmatpush1.bf16.msra.mxu0 0
      %4868 = vmatprep.subr.bf16.mxu0 0
      %4869 = vmatpush1.bf16.msra.mxu0 0
      %4870 = vmatprep.subr.bf16.mxu0 0
      %4871 = vmatpush1.bf16.msra.mxu0 0
      %4872 = vmatprep.subr.bf16.mxu0 0
      %4873 = vmatpush1.bf16.msra.mxu0 %v4714
      %4874 = vmatprep.subr.bf16.mxu0 0
      %4875 = vmatpush1.bf16.msra.mxu0 %v4705
      %4876 = vmatprep.subr.bf16.mxu0 0
      %4877 = vmatpush1.bf16.msra.mxu0 %v4704
      %4878 = vmatprep.subr.bf16.mxu0 0
      %4879 = vmatpush2.bf16.msra.mxu0 0
      %4880 = vmatprep.subr.bf16.mxu0 0
      %4881 = vmatpush2.bf16.msra.mxu0 0
      %4882 = vmatprep.subr.bf16.mxu0 0
      %4883 = vmatpush2.bf16.msra.mxu0 0
      %4884 = vmatprep.subr.bf16.mxu0 0
      %4885 = vmatpush2.bf16.msra.mxu0 0
      %4886 = vmatprep.subr.bf16.mxu0 0
      %4887 = vmatpush2.bf16.msra.mxu0 0
      %4888 = vmatprep.subr.bf16.mxu0 0
      %4889 = vmatpush2.bf16.msra.mxu0 0
      %4890 = vmatprep.subr.bf16.mxu0 0
      %4891 = vmatpush2.bf16.msra.mxu0 0
      %4892 = vmatprep.subr.bf16.mxu0 0
      %4893 = vmatpush2.bf16.msra.mxu0 0
      %4894 = vmatprep.mubr.bf16.mxu0 0
      %4895 = vmatmul.mubr.bf16.gmra.mxu0 %v4858
      %v4896 = vpop.f32.mrf.mxu0
      %v4897 = vadd.f32 0.0, %v4896
      %v4898 = vpop.f32.mrf.mxu0
      %v4899 = vpop.f32.mrf.mxu0
      %v4900 = vadd.f32 0.0, %v4899
      %v4901 = vpop.f32.mrf.mxu0
      %4902 = vmatprep.mubr.bf16.mxu0 0
      %4903 = vmatmul.mubr.bf16.gmra.mxu0 %v4860
      %v4904 = vpop.f32.mrf.mxu0
      %v4905 = vadd.f32 0.0, %v4904
      %v4906 = vpop.f32.mrf.mxu0
      %v4907 = vpop.f32.mrf.mxu0
      %v4908 = vadd.f32 0.0, %v4907
      %v4909 = vpop.f32.mrf.mxu0
      %4910 = vdwg.mxu0
      %v4911 = vmax.f32 %v4836, %v4897
      %v4912 = vmax.f32 %v4837, %v4900
      %v4913 = vmax.f32 %v4838, %v4905
      %v4914 = vmax.f32 %v4839, %v4908
      %4915 = vst.msk [vmem:[#allocation2] sm:$0xff] %vm2387, %v4911
      %4916 = vst.msk [vmem:[#allocation2 + $0x8] sm:$0xff] %vm2387, %v4912
      %4917 = vst.msk [vmem:[#allocation2 + $0x10] sm:$0xff] %vm2387, %v4913
      %4918 = vst.msk [vmem:[#allocation2 + $0x18] sm:$0x3f] %vm2391, %v4914
      %v4919 = vld [vmem:[#allocation2] ss:$3 sm:$0xff]
      %v4920 = vld [vmem:[%s2394] ss:$3 sm:$0x3]
      %v4921 = vld [vmem:[%s2396] ss:$3 sm:$0xff]
      %v4922 = vld [vmem:[%s2398] ss:$3 sm:$0x3]
      %v4923 = vmax.f32 %v4919, %v4921
      %v4924 = vmax.f32 %v4920, %v4922
      %v4925 = vld [vmem:[%s2402] ss:$3 sm:$0xff]
      %v4926 = vld [vmem:[%s2404] ss:$3 sm:$0x3]
      %v4927 = vmax.f32 %v4923, %v4925
      %v4928 = vmax.f32 %v4924, %v4926
      %v4929 = vld [vmem:[%s2] sm:$0x1]
      %v4931 = vlaneseq
      %v4932 = vshrl.u32 %v4931, 7
      %v4933 = vsub.s32 0, %v4932
      %v4934 = vrot.slane %v4929, %v4933
      %v4936 = vadd.f32 %v4927, %v4934
      %v4937 = vadd.f32 %v4928, %v4934
      %v4938 = vmax.f32 %v4936, 0.0
      %v4939 = vmax.f32 %v4937, 0.0
      %v4940 = vpack.c.bf16 %v4939, %v4938
      %v4942 = vunpack.c.l.b16 %v4940
      %v4943 = vunpack.c.h.b16 %v4940
      %v4944 = vpack.c.b16 %v4942, %v4942
      %v4945 = vpack.c.b16 %v4943, %v4943
      %s4948 = scalar_lea.vmem [#allocation3], 72
      %4949 = vst.msk [vmem:[%s4948] sm:$0xf] %vm2427, %v4944
      %4950 = vst.msk [vmem:[%s4948 + $0x4] sm:$0x1] %vm2429, %v4945
      %v4951 = vld [vmem:[#allocation3] sm:$0xf]
      %v4952 = vld [vmem:[#allocation3 + $0x4] sm:$0x1]
      %v4953 = vld [vmem:[#allocation3] sm:$0xe]
      %v4956 = vunpack.c.l.b16 %v4951
      %v4957 = vunpack.c.l.b16 %v4952
      %v4958 = vpack.c.b16 %v4957, %v4956
      %v4960 = vshrl.u32 %v4958, 16
      %v4962 = vshll.u32 %v4958, 16
      %v4964 = vrot.slane %v4962, 1
      %v4965 = vor.u32 %v4960, %v4964
      %4966 = vrot.lane.b32.xlu0 %v4965, 64
      %v4967 = vpop.permute.xlu0 %4966
      %v4969 = vunpack.c.l.b16 %v4953
      %v4970 = vpack.c.b16 %v4957, %v4969
      %v4971 = vrot.slane %v4970, 1
      %v4974 = vsel %vm2387, %v4951, %v4967
      %v4976 = vld [vmem:[%s2708] sm:$0xf]
      %v4977 = vld [vmem:[%s2708 + $0x4] sm:$0x1]
      %v4978 = vld [vmem:[%s2708] sm:$0xe]
      %v4981 = vunpack.c.l.b16 %v4976
      %v4982 = vunpack.c.l.b16 %v4977
      %v4983 = vpack.c.b16 %v4982, %v4981
      %v4985 = vshrl.u32 %v4983, 16
      %v4987 = vshll.u32 %v4983, 16
      %v4989 = vrot.slane %v4987, 1
      %v4990 = vor.u32 %v4985, %v4989
      %4991 = vrot.lane.b32.xlu0 %v4990, 64
      %v4992 = vpop.permute.xlu0 %4991
      %v4994 = vunpack.c.l.b16 %v4978
      %v4995 = vpack.c.b16 %v4982, %v4994
      %v4996 = vrot.slane %v4995, 1
      %v4999 = vsel %vm2387, %v4976, %v4992
      %v5001 = vld [vmem:[%s2988] sm:$0xf]
      %v5002 = vld [vmem:[%s2988 + $0x4] sm:$0x1]
      %v5003 = vld [vmem:[%s2988] sm:$0xe]
      %v5006 = vunpack.c.l.b16 %v5001
      %v5007 = vunpack.c.l.b16 %v5002
      %v5008 = vpack.c.b16 %v5007, %v5006
      %v5010 = vshrl.u32 %v5008, 16
      %v5012 = vshll.u32 %v5008, 16
      %v5014 = vrot.slane %v5012, 1
      %v5015 = vor.u32 %v5010, %v5014
      %5016 = vrot.lane.b32.xlu0 %v5015, 64
      %v5017 = vpop.permute.xlu0 %5016
      %v5019 = vunpack.c.l.b16 %v5003
      %v5020 = vpack.c.b16 %v5007, %v5019
      %v5021 = vrot.slane %v5020, 1
      %v5024 = vsel %vm2387, %v5001, %v5017
      %v5026 = vld [vmem:[%s3268] sm:$0xf]
      %v5027 = vld [vmem:[%s3268 + $0x4] sm:$0x1]
      %v5028 = vld [vmem:[%s3268] sm:$0xe]
      %v5031 = vunpack.c.l.b16 %v5026
      %v5032 = vunpack.c.l.b16 %v5027
      %v5033 = vpack.c.b16 %v5032, %v5031
      %v5035 = vshrl.u32 %v5033, 16
      %v5037 = vshll.u32 %v5033, 16
      %v5039 = vrot.slane %v5037, 1
      %v5040 = vor.u32 %v5035, %v5039
      %5041 = vrot.lane.b32.xlu0 %v5040, 64
      %v5042 = vpop.permute.xlu0 %5041
      %v5044 = vunpack.c.l.b16 %v5028
      %v5045 = vpack.c.b16 %v5032, %v5044
      %v5046 = vrot.slane %v5045, 1
      %v5049 = vsel %vm2387, %v5026, %v5042
      %v5051 = vld [vmem:[%s3548] sm:$0xf]
      %v5052 = vld [vmem:[%s3548 + $0x4] sm:$0x1]
      %v5053 = vld [vmem:[%s3548] sm:$0xe]
      %v5056 = vunpack.c.l.b16 %v5051
      %v5057 = vunpack.c.l.b16 %v5052
      %v5058 = vpack.c.b16 %v5057, %v5056
      %v5060 = vshrl.u32 %v5058, 16
      %v5062 = vshll.u32 %v5058, 16
      %v5064 = vrot.slane %v5062, 1
      %v5065 = vor.u32 %v5060, %v5064
      %5066 = vrot.lane.b32.xlu0 %v5065, 64
      %v5067 = vpop.permute.xlu0 %5066
      %v5069 = vunpack.c.l.b16 %v5053
      %v5070 = vpack.c.b16 %v5057, %v5069
      %v5071 = vrot.slane %v5070, 1
      %v5074 = vsel %vm2387, %v5051, %v5067
      %v5076 = vld [vmem:[%s3828] sm:$0xf]
      %v5077 = vld [vmem:[%s3828 + $0x4] sm:$0x1]
      %v5078 = vld [vmem:[%s3828] sm:$0xe]
      %v5081 = vunpack.c.l.b16 %v5076
      %v5082 = vunpack.c.l.b16 %v5077
      %v5083 = vpack.c.b16 %v5082, %v5081
      %v5085 = vshrl.u32 %v5083, 16
      %v5087 = vshll.u32 %v5083, 16
      %v5089 = vrot.slane %v5087, 1
      %v5090 = vor.u32 %v5085, %v5089
      %5091 = vrot.lane.b32.xlu0 %v5090, 64
      %v5092 = vpop.permute.xlu0 %5091
      %v5094 = vunpack.c.l.b16 %v5078
      %v5095 = vpack.c.b16 %v5082, %v5094
      %v5096 = vrot.slane %v5095, 1
      %v5099 = vsel %vm2387, %v5076, %v5092
      %v5101 = vld [vmem:[%s4108] sm:$0xf]
      %v5102 = vld [vmem:[%s4108 + $0x4] sm:$0x1]
      %v5103 = vld [vmem:[%s4108] sm:$0xe]
      %v5106 = vunpack.c.l.b16 %v5101
      %v5107 = vunpack.c.l.b16 %v5102
      %v5108 = vpack.c.b16 %v5107, %v5106
      %v5110 = vshrl.u32 %v5108, 16
      %v5112 = vshll.u32 %v5108, 16
      %v5114 = vrot.slane %v5112, 1
      %v5115 = vor.u32 %v5110, %v5114
      %5116 = vrot.lane.b32.xlu0 %v5115, 64
      %v5117 = vpop.permute.xlu0 %5116
      %v5119 = vunpack.c.l.b16 %v5103
      %v5120 = vpack.c.b16 %v5107, %v5119
      %v5121 = vrot.slane %v5120, 1
      %v5124 = vsel %vm2387, %v5101, %v5117
      %v5126 = vld [vmem:[%s4388] sm:$0xf]
      %v5127 = vld [vmem:[%s4388 + $0x4] sm:$0x1]
      %v5128 = vld [vmem:[%s4388] sm:$0xe]
      %v5131 = vunpack.c.l.b16 %v5126
      %v5132 = vunpack.c.l.b16 %v5127
      %v5133 = vpack.c.b16 %v5132, %v5131
      %v5135 = vshrl.u32 %v5133, 16
      %v5137 = vshll.u32 %v5133, 16
      %v5139 = vrot.slane %v5137, 1
      %v5140 = vor.u32 %v5135, %v5139
      %5141 = vrot.lane.b32.xlu0 %v5140, 64
      %v5142 = vpop.permute.xlu0 %5141
      %v5144 = vunpack.c.l.b16 %v5128
      %v5145 = vpack.c.b16 %v5132, %v5144
      %v5146 = vrot.slane %v5145, 1
      %v5149 = vsel %vm2387, %v5126, %v5142
      %5152 = vrot.lane.b32.xlu0 %v4999, 64
      %v5153 = vpop.permute.xlu0 %5152
      %5154 = vrot.lane.b32.xlu0 %v4996, 64
      %v5155 = vpop.permute.xlu0 %5154
      %vm5156 = vcmask 523264
      %v5157 = vsel %vm5156, %v5153, %v5155
      %v5161 = vsel %vm2387, %v4971, %v5153
      %v5163 = vld [vmem:[%s3] sm:$0xf]
      %v5164 = vld [vmem:[%s3 + $0x4] sm:$0xf]
      %v5165 = vld [vmem:[%s3 + $0x8] sm:$0xf]
      %v5166 = vld [vmem:[%s3 + $0xc] sm:$0xf]
      %v5167 = vld [vmem:[%s3 + $0x10] sm:$0xf]
      %v5168 = vld [vmem:[%s3 + $0x14] sm:$0xf]
      %v5169 = vld [vmem:[%s3 + $0x18] sm:$0xf]
      %v5170 = vld [vmem:[%s3 + $0x1c] sm:$0xf]
      %v5171 = vld [vmem:[%s3 + $0x20] sm:$0xf]
      %v5172 = vld [vmem:[%s3 + $0x24] sm:$0xf]
      %v5173 = vld [vmem:[%s3 + $0x28] sm:$0xf]
      %v5174 = vld [vmem:[%s3 + $0x2c] sm:$0xf]
      %v5175 = vld [vmem:[%s3 + $0x30] sm:$0xf]
      %v5176 = vld [vmem:[%s3 + $0x34] sm:$0xf]
      %v5177 = vld [vmem:[%s3 + $0x38] sm:$0xf]
      %v5178 = vld [vmem:[%s3 + $0x3c] sm:$0xf]
      %v5179 = vld [vmem:[%s3 + $0x40] sm:$0xf]
      %v5180 = vld [vmem:[%s3 + $0x44] sm:$0xf]
      %v5181 = vld [vmem:[%s3 + $0x48] sm:$0xf]
      %v5182 = vld [vmem:[%s3 + $0x4c] sm:$0xf]
      %v5183 = vld [vmem:[%s3 + $0x50] sm:$0xf]
      %v5184 = vld [vmem:[%s3 + $0x54] sm:$0xf]
      %v5185 = vld [vmem:[%s3 + $0x58] sm:$0xf]
      %v5186 = vld [vmem:[%s3 + $0x5c] sm:$0xf]
      %v5187 = vld [vmem:[%s3 + $0x60] sm:$0xf]
      %v5188 = vld [vmem:[%s3 + $0x64] sm:$0xf]
      %v5189 = vld [vmem:[%s3 + $0x68] sm:$0xf]
      %v5190 = vld [vmem:[%s3 + $0x6c] sm:$0xf]
      %v5191 = vld [vmem:[%s3 + $0x70] sm:$0xf]
      %v5192 = vld [vmem:[%s3 + $0x74] sm:$0xf]
      %v5193 = vld [vmem:[%s3 + $0x78] sm:$0xf]
      %v5194 = vld [vmem:[%s3 + $0x7c] sm:$0xf]
      %v5195 = vld [vmem:[%s3 + $0x80] sm:$0xf]
      %v5196 = vld [vmem:[%s3 + $0x84] sm:$0xf]
      %v5197 = vld [vmem:[%s3 + $0x88] sm:$0xf]
      %v5198 = vld [vmem:[%s3 + $0x8c] sm:$0xf]
      %v5199 = vld [vmem:[%s3 + $0x90] sm:$0xf]
      %v5200 = vld [vmem:[%s3 + $0x94] sm:$0xf]
      %v5201 = vld [vmem:[%s3 + $0x98] sm:$0xf]
      %v5202 = vld [vmem:[%s3 + $0x9c] sm:$0xf]
      %v5203 = vld [vmem:[%s3 + $0xa0] sm:$0xf]
      %v5204 = vld [vmem:[%s3 + $0xa4] sm:$0xf]
      %v5205 = vld [vmem:[%s3 + $0xa8] sm:$0xf]
      %v5206 = vld [vmem:[%s3 + $0xac] sm:$0xf]
      %v5207 = vld [vmem:[%s3 + $0xb0] sm:$0xf]
      %v5208 = vld [vmem:[%s3 + $0xb4] sm:$0xf]
      %v5209 = vld [vmem:[%s3 + $0xb8] sm:$0xf]
      %v5210 = vld [vmem:[%s3 + $0xbc] sm:$0xf]
      %v5211 = vld [vmem:[%s3 + $0xc0] sm:$0xf]
      %v5212 = vld [vmem:[%s3 + $0xc4] sm:$0xf]
      %v5213 = vld [vmem:[%s3 + $0xc8] sm:$0xf]
      %v5214 = vld [vmem:[%s3 + $0xcc] sm:$0xf]
      %v5215 = vld [vmem:[%s3 + $0xd0] sm:$0xf]
      %v5216 = vld [vmem:[%s3 + $0xd4] sm:$0xf]
      %v5217 = vld [vmem:[%s3 + $0xd8] sm:$0xf]
      %v5218 = vld [vmem:[%s3 + $0xdc] sm:$0xf]
      %v5219 = vld [vmem:[%s3 + $0xe0] sm:$0xf]
      %v5220 = vld [vmem:[%s3 + $0xe4] sm:$0xf]
      %v5221 = vld [vmem:[%s3 + $0xe8] sm:$0xf]
      %v5222 = vld [vmem:[%s3 + $0xec] sm:$0xf]
      %v5223 = vld [vmem:[%s3 + $0xf0] sm:$0xf]
      %v5224 = vld [vmem:[%s3 + $0xf4] sm:$0xf]
      %v5225 = vld [vmem:[%s3 + $0xf8] sm:$0xf]
      %v5226 = vld [vmem:[%s3 + $0xfc] sm:$0xf]
      %v5227 = vld [vmem:[%s3 + $0x100] sm:$0xf]
      %v5228 = vld [vmem:[%s3 + $0x104] sm:$0xf]
      %v5229 = vld [vmem:[%s3 + $0x108] sm:$0xf]
      %v5230 = vld [vmem:[%s3 + $0x10c] sm:$0xf]
      %v5231 = vld [vmem:[%s3 + $0x110] sm:$0xf]
      %v5232 = vld [vmem:[%s3 + $0x114] sm:$0xf]
      %v5233 = vld [vmem:[%s3 + $0x118] sm:$0xf]
      %v5234 = vld [vmem:[%s3 + $0x11c] sm:$0xf]
      %v5307 = vunpack.c.l.b16 %v5163
      %v5308 = vunpack.c.l.b16 %v5164
      %v5309 = vunpack.c.l.b16 %v5165
      %v5310 = vunpack.c.l.b16 %v5166
      %v5311 = vunpack.c.l.b16 %v5167
      %v5312 = vunpack.c.l.b16 %v5168
      %v5313 = vunpack.c.l.b16 %v5169
      %v5314 = vunpack.c.l.b16 %v5170
      %v5315 = vunpack.c.l.b16 %v5171
      %v5316 = vunpack.c.l.b16 %v5172
      %v5317 = vunpack.c.l.b16 %v5173
      %v5318 = vunpack.c.l.b16 %v5174
      %v5319 = vunpack.c.l.b16 %v5175
      %v5320 = vunpack.c.l.b16 %v5176
      %v5321 = vunpack.c.l.b16 %v5177
      %v5322 = vunpack.c.l.b16 %v5178
      %v5323 = vunpack.c.l.b16 %v5179
      %v5324 = vunpack.c.l.b16 %v5180
      %v5325 = vunpack.c.l.b16 %v5181
      %v5326 = vunpack.c.l.b16 %v5182
      %v5327 = vunpack.c.l.b16 %v5183
      %v5328 = vunpack.c.l.b16 %v5184
      %v5329 = vunpack.c.l.b16 %v5185
      %v5330 = vunpack.c.l.b16 %v5186
      %v5331 = vunpack.c.l.b16 %v5187
      %v5332 = vunpack.c.l.b16 %v5188
      %v5333 = vunpack.c.l.b16 %v5189
      %v5334 = vunpack.c.l.b16 %v5190
      %v5335 = vunpack.c.l.b16 %v5191
      %v5336 = vunpack.c.l.b16 %v5192
      %v5337 = vunpack.c.l.b16 %v5193
      %v5338 = vunpack.c.l.b16 %v5194
      %v5339 = vunpack.c.l.b16 %v5195
      %v5340 = vunpack.c.l.b16 %v5196
      %v5341 = vunpack.c.l.b16 %v5197
      %v5342 = vunpack.c.l.b16 %v5198
      %v5343 = vunpack.c.l.b16 %v5199
      %v5344 = vunpack.c.l.b16 %v5200
      %v5345 = vunpack.c.l.b16 %v5201
      %v5346 = vunpack.c.l.b16 %v5202
      %v5347 = vunpack.c.l.b16 %v5203
      %v5348 = vunpack.c.l.b16 %v5204
      %v5349 = vunpack.c.l.b16 %v5205
      %v5350 = vunpack.c.l.b16 %v5206
      %v5351 = vunpack.c.l.b16 %v5207
      %v5352 = vunpack.c.l.b16 %v5208
      %v5353 = vunpack.c.l.b16 %v5209
      %v5354 = vunpack.c.l.b16 %v5210
      %v5355 = vunpack.c.l.b16 %v5211
      %v5356 = vunpack.c.l.b16 %v5212
      %v5357 = vunpack.c.l.b16 %v5213
      %v5358 = vunpack.c.l.b16 %v5214
      %v5359 = vunpack.c.l.b16 %v5215
      %v5360 = vunpack.c.l.b16 %v5216
      %v5361 = vunpack.c.l.b16 %v5217
      %v5362 = vunpack.c.l.b16 %v5218
      %v5363 = vunpack.c.l.b16 %v5219
      %v5364 = vunpack.c.l.b16 %v5220
      %v5365 = vunpack.c.l.b16 %v5221
      %v5366 = vunpack.c.l.b16 %v5222
      %v5367 = vunpack.c.l.b16 %v5223
      %v5368 = vunpack.c.l.b16 %v5224
      %v5369 = vunpack.c.l.b16 %v5225
      %v5370 = vunpack.c.l.b16 %v5226
      %v5371 = vunpack.c.l.b16 %v5227
      %v5372 = vunpack.c.l.b16 %v5228
      %v5373 = vunpack.c.l.b16 %v5229
      %v5374 = vunpack.c.l.b16 %v5230
      %v5375 = vunpack.c.l.b16 %v5231
      %v5376 = vunpack.c.l.b16 %v5232
      %v5377 = vunpack.c.l.b16 %v5233
      %v5378 = vunpack.c.l.b16 %v5234
      %v5379 = vpack.c.b16 %v5308, %v5307
      %v5380 = vpack.c.b16 %v5310, %v5309
      %v5381 = vpack.c.b16 %v5312, %v5311
      %v5382 = vpack.c.b16 %v5314, %v5313
      %v5383 = vpack.c.b16 %v5316, %v5315
      %v5384 = vpack.c.b16 %v5318, %v5317
      %v5385 = vpack.c.b16 %v5320, %v5319
      %v5386 = vpack.c.b16 %v5322, %v5321
      %v5387 = vpack.c.b16 %v5324, %v5323
      %v5388 = vpack.c.b16 %v5326, %v5325
      %v5389 = vpack.c.b16 %v5328, %v5327
      %v5390 = vpack.c.b16 %v5330, %v5329
      %v5391 = vpack.c.b16 %v5332, %v5331
      %v5392 = vpack.c.b16 %v5334, %v5333
      %v5393 = vpack.c.b16 %v5336, %v5335
      %v5394 = vpack.c.b16 %v5338, %v5337
      %v5395 = vpack.c.b16 %v5340, %v5339
      %v5396 = vpack.c.b16 %v5342, %v5341
      %v5397 = vpack.c.b16 %v5344, %v5343
      %v5398 = vpack.c.b16 %v5346, %v5345
      %v5399 = vpack.c.b16 %v5348, %v5347
      %v5400 = vpack.c.b16 %v5350, %v5349
      %v5401 = vpack.c.b16 %v5352, %v5351
      %v5402 = vpack.c.b16 %v5354, %v5353
      %v5403 = vpack.c.b16 %v5356, %v5355
      %v5404 = vpack.c.b16 %v5358, %v5357
      %v5405 = vpack.c.b16 %v5360, %v5359
      %v5406 = vpack.c.b16 %v5362, %v5361
      %v5407 = vpack.c.b16 %v5364, %v5363
      %v5408 = vpack.c.b16 %v5366, %v5365
      %v5409 = vpack.c.b16 %v5368, %v5367
      %v5410 = vpack.c.b16 %v5370, %v5369
      %v5411 = vpack.c.b16 %v5372, %v5371
      %v5412 = vpack.c.b16 %v5374, %v5373
      %v5413 = vpack.c.b16 %v5376, %v5375
      %v5414 = vpack.c.b16 %v5378, %v5377
      %v5452 = vsel %vm2387, %v5021, 0
      %5454 = vmatprep.subr.bf16.mxu0 0
      %5455 = vmatpush1.bf16.msra.mxu0 %v5386
      %5456 = vmatprep.subr.bf16.mxu0 0
      %5457 = vmatpush1.bf16.msra.mxu0 %v5385
      %5458 = vmatprep.subr.bf16.mxu0 0
      %5459 = vmatpush1.bf16.msra.mxu0 %v5384
      %5460 = vmatprep.subr.bf16.mxu0 0
      %5461 = vmatpush1.bf16.msra.mxu0 %v5383
      %5462 = vmatprep.subr.bf16.mxu0 0
      %5463 = vmatpush1.bf16.msra.mxu0 %v5382
      %5464 = vmatprep.subr.bf16.mxu0 0
      %5465 = vmatpush1.bf16.msra.mxu0 %v5381
      %5466 = vmatprep.subr.bf16.mxu0 0
      %5467 = vmatpush1.bf16.msra.mxu0 %v5380
      %5468 = vmatprep.subr.bf16.mxu0 0
      %5469 = vmatpush1.bf16.msra.mxu0 %v5379
      %5470 = vmatprep.subr.bf16.mxu0 0
      %5471 = vmatpush2.bf16.msra.mxu0 %v5394
      %5472 = vmatprep.subr.bf16.mxu0 0
      %5473 = vmatpush2.bf16.msra.mxu0 %v5393
      %5474 = vmatprep.subr.bf16.mxu0 0
      %5475 = vmatpush2.bf16.msra.mxu0 %v5392
      %5476 = vmatprep.subr.bf16.mxu0 0
      %5477 = vmatpush2.bf16.msra.mxu0 %v5391
      %5478 = vmatprep.subr.bf16.mxu0 0
      %5479 = vmatpush2.bf16.msra.mxu0 %v5390
      %5480 = vmatprep.subr.bf16.mxu0 0
      %5481 = vmatpush2.bf16.msra.mxu0 %v5389
      %5482 = vmatprep.subr.bf16.mxu0 0
      %5483 = vmatpush2.bf16.msra.mxu0 %v5388
      %5484 = vmatprep.subr.bf16.mxu0 0
      %5485 = vmatpush2.bf16.msra.mxu0 %v5387
      %5486 = vmatprep.mubr.bf16.mxu0 %v5161
      %5487 = vmatmul.mubr.bf16.gmra.mxu0 %v4974
      %v5488 = vpop.f32.mrf.mxu0
      %v5489 = vadd.f32 0.0, %v5488
      %v5490 = vpop.f32.mrf.mxu0
      %v5491 = vpop.f32.mrf.mxu0
      %v5492 = vpop.f32.mrf.mxu0
      %5493 = vdwg.mxu0
      %5494 = vmatprep.subr.bf16.mxu0 0
      %5495 = vmatpush1.bf16.msra.mxu0 %v5402
      %5496 = vmatprep.subr.bf16.mxu0 0
      %5497 = vmatpush1.bf16.msra.mxu0 %v5401
      %5498 = vmatprep.subr.bf16.mxu0 0
      %5499 = vmatpush1.bf16.msra.mxu0 %v5400
      %5500 = vmatprep.subr.bf16.mxu0 0
      %5501 = vmatpush1.bf16.msra.mxu0 %v5399
      %5502 = vmatprep.subr.bf16.mxu0 0
      %5503 = vmatpush1.bf16.msra.mxu0 %v5398
      %5504 = vmatprep.subr.bf16.mxu0 0
      %5505 = vmatpush1.bf16.msra.mxu0 %v5397
      %5506 = vmatprep.subr.bf16.mxu0 0
      %5507 = vmatpush1.bf16.msra.mxu0 %v5396
      %5508 = vmatprep.subr.bf16.mxu0 0
      %5509 = vmatpush1.bf16.msra.mxu0 %v5395
      %5510 = vmatprep.subr.bf16.mxu0 0
      %5511 = vmatpush2.bf16.msra.mxu0 %v5410
      %5512 = vmatprep.subr.bf16.mxu0 0
      %5513 = vmatpush2.bf16.msra.mxu0 %v5409
      %5514 = vmatprep.subr.bf16.mxu0 0
      %5515 = vmatpush2.bf16.msra.mxu0 %v5408
      %5516 = vmatprep.subr.bf16.mxu0 0
      %5517 = vmatpush2.bf16.msra.mxu0 %v5407
      %5518 = vmatprep.subr.bf16.mxu0 0
      %5519 = vmatpush2.bf16.msra.mxu0 %v5406
      %5520 = vmatprep.subr.bf16.mxu0 0
      %5521 = vmatpush2.bf16.msra.mxu0 %v5405
      %5522 = vmatprep.subr.bf16.mxu0 0
      %5523 = vmatpush2.bf16.msra.mxu0 %v5404
      %5524 = vmatprep.subr.bf16.mxu0 0
      %5525 = vmatpush2.bf16.msra.mxu0 %v5403
      %5526 = vmatprep.mubr.bf16.mxu0 %v5024
      %5527 = vmatmul.mubr.bf16.gmra.mxu0 %v5157
      %v5528 = vpop.f32.mrf.mxu0
      %v5529 = vadd.f32 %v5489, %v5528
      %v5530 = vpop.f32.mrf.mxu0
      %v5531 = vpop.f32.mrf.mxu0
      %v5532 = vpop.f32.mrf.mxu0
      %5533 = vdwg.mxu0
      %5534 = vmatprep.subr.bf16.mxu0 0
      %5535 = vmatpush1.bf16.msra.mxu0 0
      %5536 = vmatprep.subr.bf16.mxu0 0
      %5537 = vmatpush1.bf16.msra.mxu0 0
      %5538 = vmatprep.subr.bf16.mxu0 0
      %5539 = vmatpush1.bf16.msra.mxu0 0
      %5540 = vmatprep.subr.bf16.mxu0 0
      %5541 = vmatpush1.bf16.msra.mxu0 0
      %5542 = vmatprep.subr.bf16.mxu0 0
      %5543 = vmatpush1.bf16.msra.mxu0 %v5414
      %5544 = vmatprep.subr.bf16.mxu0 0
      %5545 = vmatpush1.bf16.msra.mxu0 %v5413
      %5546 = vmatprep.subr.bf16.mxu0 0
      %5547 = vmatpush1.bf16.msra.mxu0 %v5412
      %5548 = vmatprep.subr.bf16.mxu0 0
      %5549 = vmatpush1.bf16.msra.mxu0 %v5411
      %5550 = vmatprep.subr.bf16.mxu0 0
      %5551 = vmatpush2.bf16.msra.mxu0 0
      %5552 = vmatprep.subr.bf16.mxu0 0
      %5553 = vmatpush2.bf16.msra.mxu0 0
      %5554 = vmatprep.subr.bf16.mxu0 0
      %5555 = vmatpush2.bf16.msra.mxu0 0
      %5556 = vmatprep.subr.bf16.mxu0 0
      %5557 = vmatpush2.bf16.msra.mxu0 0
      %5558 = vmatprep.subr.bf16.mxu0 0
      %5559 = vmatpush2.bf16.msra.mxu0 0
      %5560 = vmatprep.subr.bf16.mxu0 0
      %5561 = vmatpush2.bf16.msra.mxu0 0
      %5562 = vmatprep.subr.bf16.mxu0 0
      %5563 = vmatpush2.bf16.msra.mxu0 0
      %5564 = vmatprep.subr.bf16.mxu0 0
      %5565 = vmatpush2.bf16.msra.mxu0 0
      %5566 = vmatprep.mubr.bf16.mxu0 0
      %5567 = vmatmul.mubr.bf16.gmra.mxu0 %v5452
      %v5568 = vpop.f32.mrf.mxu0
      %v5569 = vadd.f32 %v5529, %v5568
      %v5570 = vpop.f32.mrf.mxu0
      %v5571 = vpop.f32.mrf.mxu0
      %v5572 = vpop.f32.mrf.mxu0
      %5573 = vdwg.mxu0
      %5575 = vrot.lane.b32.xlu0 %v5024, 64
      %v5576 = vpop.permute.xlu0 %5575
      %5577 = vrot.lane.b32.xlu0 %v5021, 64
      %v5578 = vpop.permute.xlu0 %5577
      %v5579 = vsel %vm5156, %v5576, %v5578
      %v5583 = vsel %vm2387, %v4996, %v5576
      %v5586 = vsel %vm2387, %v5046, 0
      %5588 = vmatprep.subr.bf16.mxu0 0
      %5589 = vmatpush1.bf16.msra.mxu0 %v5386
      %5590 = vmatprep.subr.bf16.mxu0 0
      %5591 = vmatpush1.bf16.msra.mxu0 %v5385
      %5592 = vmatprep.subr.bf16.mxu0 0
      %5593 = vmatpush1.bf16.msra.mxu0 %v5384
      %5594 = vmatprep.subr.bf16.mxu0 0
      %5595 = vmatpush1.bf16.msra.mxu0 %v5383
      %5596 = vmatprep.subr.bf16.mxu0 0
      %5597 = vmatpush1.bf16.msra.mxu0 %v5382
      %5598 = vmatprep.subr.bf16.mxu0 0
      %5599 = vmatpush1.bf16.msra.mxu0 %v5381
      %5600 = vmatprep.subr.bf16.mxu0 0
      %5601 = vmatpush1.bf16.msra.mxu0 %v5380
      %5602 = vmatprep.subr.bf16.mxu0 0
      %5603 = vmatpush1.bf16.msra.mxu0 %v5379
      %5604 = vmatprep.subr.bf16.mxu0 0
      %5605 = vmatpush2.bf16.msra.mxu0 %v5394
      %5606 = vmatprep.subr.bf16.mxu0 0
      %5607 = vmatpush2.bf16.msra.mxu0 %v5393
      %5608 = vmatprep.subr.bf16.mxu0 0
      %5609 = vmatpush2.bf16.msra.mxu0 %v5392
      %5610 = vmatprep.subr.bf16.mxu0 0
      %5611 = vmatpush2.bf16.msra.mxu0 %v5391
      %5612 = vmatprep.subr.bf16.mxu0 0
      %5613 = vmatpush2.bf16.msra.mxu0 %v5390
      %5614 = vmatprep.subr.bf16.mxu0 0
      %5615 = vmatpush2.bf16.msra.mxu0 %v5389
      %5616 = vmatprep.subr.bf16.mxu0 0
      %5617 = vmatpush2.bf16.msra.mxu0 %v5388
      %5618 = vmatprep.subr.bf16.mxu0 0
      %5619 = vmatpush2.bf16.msra.mxu0 %v5387
      %5620 = vmatprep.mubr.bf16.mxu0 %v5583
      %5621 = vmatmul.mubr.bf16.gmra.mxu0 %v4999
      %v5622 = vpop.f32.mrf.mxu0
      %v5623 = vadd.f32 0.0, %v5622
      %v5624 = vpop.f32.mrf.mxu0
      %v5625 = vpop.f32.mrf.mxu0
      %v5626 = vpop.f32.mrf.mxu0
      %5627 = vdwg.mxu0
      %5628 = vmatprep.subr.bf16.mxu0 0
      %5629 = vmatpush1.bf16.msra.mxu0 %v5402
      %5630 = vmatprep.subr.bf16.mxu0 0
      %5631 = vmatpush1.bf16.msra.mxu0 %v5401
      %5632 = vmatprep.subr.bf16.mxu0 0
      %5633 = vmatpush1.bf16.msra.mxu0 %v5400
      %5634 = vmatprep.subr.bf16.mxu0 0
      %5635 = vmatpush1.bf16.msra.mxu0 %v5399
      %5636 = vmatprep.subr.bf16.mxu0 0
      %5637 = vmatpush1.bf16.msra.mxu0 %v5398
      %5638 = vmatprep.subr.bf16.mxu0 0
      %5639 = vmatpush1.bf16.msra.mxu0 %v5397
      %5640 = vmatprep.subr.bf16.mxu0 0
      %5641 = vmatpush1.bf16.msra.mxu0 %v5396
      %5642 = vmatprep.subr.bf16.mxu0 0
      %5643 = vmatpush1.bf16.msra.mxu0 %v5395
      %5644 = vmatprep.subr.bf16.mxu0 0
      %5645 = vmatpush2.bf16.msra.mxu0 %v5410
      %5646 = vmatprep.subr.bf16.mxu0 0
      %5647 = vmatpush2.bf16.msra.mxu0 %v5409
      %5648 = vmatprep.subr.bf16.mxu0 0
      %5649 = vmatpush2.bf16.msra.mxu0 %v5408
      %5650 = vmatprep.subr.bf16.mxu0 0
      %5651 = vmatpush2.bf16.msra.mxu0 %v5407
      %5652 = vmatprep.subr.bf16.mxu0 0
      %5653 = vmatpush2.bf16.msra.mxu0 %v5406
      %5654 = vmatprep.subr.bf16.mxu0 0
      %5655 = vmatpush2.bf16.msra.mxu0 %v5405
      %5656 = vmatprep.subr.bf16.mxu0 0
      %5657 = vmatpush2.bf16.msra.mxu0 %v5404
      %5658 = vmatprep.subr.bf16.mxu0 0
      %5659 = vmatpush2.bf16.msra.mxu0 %v5403
      %5660 = vmatprep.mubr.bf16.mxu0 %v5049
      %5661 = vmatmul.mubr.bf16.gmra.mxu0 %v5579
      %v5662 = vpop.f32.mrf.mxu0
      %v5663 = vadd.f32 %v5623, %v5662
      %v5664 = vpop.f32.mrf.mxu0
      %v5665 = vpop.f32.mrf.mxu0
      %v5666 = vpop.f32.mrf.mxu0
      %5667 = vdwg.mxu0
      %5668 = vmatprep.subr.bf16.mxu0 0
      %5669 = vmatpush1.bf16.msra.mxu0 0
      %5670 = vmatprep.subr.bf16.mxu0 0
      %5671 = vmatpush1.bf16.msra.mxu0 0
      %5672 = vmatprep.subr.bf16.mxu0 0
      %5673 = vmatpush1.bf16.msra.mxu0 0
      %5674 = vmatprep.subr.bf16.mxu0 0
      %5675 = vmatpush1.bf16.msra.mxu0 0
      %5676 = vmatprep.subr.bf16.mxu0 0
      %5677 = vmatpush1.bf16.msra.mxu0 %v5414
      %5678 = vmatprep.subr.bf16.mxu0 0
      %5679 = vmatpush1.bf16.msra.mxu0 %v5413
      %5680 = vmatprep.subr.bf16.mxu0 0
      %5681 = vmatpush1.bf16.msra.mxu0 %v5412
      %5682 = vmatprep.subr.bf16.mxu0 0
      %5683 = vmatpush1.bf16.msra.mxu0 %v5411
      %5684 = vmatprep.subr.bf16.mxu0 0
      %5685 = vmatpush2.bf16.msra.mxu0 0
      %5686 = vmatprep.subr.bf16.mxu0 0
      %5687 = vmatpush2.bf16.msra.mxu0 0
      %5688 = vmatprep.subr.bf16.mxu0 0
      %5689 = vmatpush2.bf16.msra.mxu0 0
      %5690 = vmatprep.subr.bf16.mxu0 0
      %5691 = vmatpush2.bf16.msra.mxu0 0
      %5692 = vmatprep.subr.bf16.mxu0 0
      %5693 = vmatpush2.bf16.msra.mxu0 0
      %5694 = vmatprep.subr.bf16.mxu0 0
      %5695 = vmatpush2.bf16.msra.mxu0 0
      %5696 = vmatprep.subr.bf16.mxu0 0
      %5697 = vmatpush2.bf16.msra.mxu0 0
      %5698 = vmatprep.subr.bf16.mxu0 0
      %5699 = vmatpush2.bf16.msra.mxu0 0
      %5700 = vmatprep.mubr.bf16.mxu0 0
      %5701 = vmatmul.mubr.bf16.gmra.mxu0 %v5586
      %v5702 = vpop.f32.mrf.mxu0
      %v5703 = vadd.f32 %v5663, %v5702
      %v5704 = vpop.f32.mrf.mxu0
      %v5705 = vpop.f32.mrf.mxu0
      %v5706 = vpop.f32.mrf.mxu0
      %5707 = vdwg.mxu0
      %v5708 = vmax.f32 %v5569, %v5703
      %5710 = vrot.lane.b32.xlu0 %v5049, 64
      %v5711 = vpop.permute.xlu0 %5710
      %5712 = vrot.lane.b32.xlu0 %v5046, 64
      %v5713 = vpop.permute.xlu0 %5712
      %v5714 = vsel %vm5156, %v5711, %v5713
      %v5717 = vsel %vm2387, %v5021, %v5711
      %v5720 = vsel %vm2387, %v5071, 0
      %5722 = vmatprep.subr.bf16.mxu0 0
      %5723 = vmatpush1.bf16.msra.mxu0 %v5386
      %5724 = vmatprep.subr.bf16.mxu0 0
      %5725 = vmatpush1.bf16.msra.mxu0 %v5385
      %5726 = vmatprep.subr.bf16.mxu0 0
      %5727 = vmatpush1.bf16.msra.mxu0 %v5384
      %5728 = vmatprep.subr.bf16.mxu0 0
      %5729 = vmatpush1.bf16.msra.mxu0 %v5383
      %5730 = vmatprep.subr.bf16.mxu0 0
      %5731 = vmatpush1.bf16.msra.mxu0 %v5382
      %5732 = vmatprep.subr.bf16.mxu0 0
      %5733 = vmatpush1.bf16.msra.mxu0 %v5381
      %5734 = vmatprep.subr.bf16.mxu0 0
      %5735 = vmatpush1.bf16.msra.mxu0 %v5380
      %5736 = vmatprep.subr.bf16.mxu0 0
      %5737 = vmatpush1.bf16.msra.mxu0 %v5379
      %5738 = vmatprep.subr.bf16.mxu0 0
      %5739 = vmatpush2.bf16.msra.mxu0 %v5394
      %5740 = vmatprep.subr.bf16.mxu0 0
      %5741 = vmatpush2.bf16.msra.mxu0 %v5393
      %5742 = vmatprep.subr.bf16.mxu0 0
      %5743 = vmatpush2.bf16.msra.mxu0 %v5392
      %5744 = vmatprep.subr.bf16.mxu0 0
      %5745 = vmatpush2.bf16.msra.mxu0 %v5391
      %5746 = vmatprep.subr.bf16.mxu0 0
      %5747 = vmatpush2.bf16.msra.mxu0 %v5390
      %5748 = vmatprep.subr.bf16.mxu0 0
      %5749 = vmatpush2.bf16.msra.mxu0 %v5389
      %5750 = vmatprep.subr.bf16.mxu0 0
      %5751 = vmatpush2.bf16.msra.mxu0 %v5388
      %5752 = vmatprep.subr.bf16.mxu0 0
      %5753 = vmatpush2.bf16.msra.mxu0 %v5387
      %5754 = vmatprep.mubr.bf16.mxu0 %v5717
      %5755 = vmatmul.mubr.bf16.gmra.mxu0 %v5024
      %v5756 = vpop.f32.mrf.mxu0
      %v5757 = vadd.f32 0.0, %v5756
      %v5758 = vpop.f32.mrf.mxu0
      %v5759 = vpop.f32.mrf.mxu0
      %v5760 = vpop.f32.mrf.mxu0
      %5761 = vdwg.mxu0
      %5762 = vmatprep.subr.bf16.mxu0 0
      %5763 = vmatpush1.bf16.msra.mxu0 %v5402
      %5764 = vmatprep.subr.bf16.mxu0 0
      %5765 = vmatpush1.bf16.msra.mxu0 %v5401
      %5766 = vmatprep.subr.bf16.mxu0 0
      %5767 = vmatpush1.bf16.msra.mxu0 %v5400
      %5768 = vmatprep.subr.bf16.mxu0 0
      %5769 = vmatpush1.bf16.msra.mxu0 %v5399
      %5770 = vmatprep.subr.bf16.mxu0 0
      %5771 = vmatpush1.bf16.msra.mxu0 %v5398
      %5772 = vmatprep.subr.bf16.mxu0 0
      %5773 = vmatpush1.bf16.msra.mxu0 %v5397
      %5774 = vmatprep.subr.bf16.mxu0 0
      %5775 = vmatpush1.bf16.msra.mxu0 %v5396
      %5776 = vmatprep.subr.bf16.mxu0 0
      %5777 = vmatpush1.bf16.msra.mxu0 %v5395
      %5778 = vmatprep.subr.bf16.mxu0 0
      %5779 = vmatpush2.bf16.msra.mxu0 %v5410
      %5780 = vmatprep.subr.bf16.mxu0 0
      %5781 = vmatpush2.bf16.msra.mxu0 %v5409
      %5782 = vmatprep.subr.bf16.mxu0 0
      %5783 = vmatpush2.bf16.msra.mxu0 %v5408
      %5784 = vmatprep.subr.bf16.mxu0 0
      %5785 = vmatpush2.bf16.msra.mxu0 %v5407
      %5786 = vmatprep.subr.bf16.mxu0 0
      %5787 = vmatpush2.bf16.msra.mxu0 %v5406
      %5788 = vmatprep.subr.bf16.mxu0 0
      %5789 = vmatpush2.bf16.msra.mxu0 %v5405
      %5790 = vmatprep.subr.bf16.mxu0 0
      %5791 = vmatpush2.bf16.msra.mxu0 %v5404
      %5792 = vmatprep.subr.bf16.mxu0 0
      %5793 = vmatpush2.bf16.msra.mxu0 %v5403
      %5794 = vmatprep.mubr.bf16.mxu0 %v5074
      %5795 = vmatmul.mubr.bf16.gmra.mxu0 %v5714
      %v5796 = vpop.f32.mrf.mxu0
      %v5797 = vadd.f32 %v5757, %v5796
      %v5798 = vpop.f32.mrf.mxu0
      %v5799 = vpop.f32.mrf.mxu0
      %v5800 = vpop.f32.mrf.mxu0
      %5801 = vdwg.mxu0
      %5802 = vmatprep.subr.bf16.mxu0 0
      %5803 = vmatpush1.bf16.msra.mxu0 0
      %5804 = vmatprep.subr.bf16.mxu0 0
      %5805 = vmatpush1.bf16.msra.mxu0 0
      %5806 = vmatprep.subr.bf16.mxu0 0
      %5807 = vmatpush1.bf16.msra.mxu0 0
      %5808 = vmatprep.subr.bf16.mxu0 0
      %5809 = vmatpush1.bf16.msra.mxu0 0
      %5810 = vmatprep.subr.bf16.mxu0 0
      %5811 = vmatpush1.bf16.msra.mxu0 %v5414
      %5812 = vmatprep.subr.bf16.mxu0 0
      %5813 = vmatpush1.bf16.msra.mxu0 %v5413
      %5814 = vmatprep.subr.bf16.mxu0 0
      %5815 = vmatpush1.bf16.msra.mxu0 %v5412
      %5816 = vmatprep.subr.bf16.mxu0 0
      %5817 = vmatpush1.bf16.msra.mxu0 %v5411
      %5818 = vmatprep.subr.bf16.mxu0 0
      %5819 = vmatpush2.bf16.msra.mxu0 0
      %5820 = vmatprep.subr.bf16.mxu0 0
      %5821 = vmatpush2.bf16.msra.mxu0 0
      %5822 = vmatprep.subr.bf16.mxu0 0
      %5823 = vmatpush2.bf16.msra.mxu0 0
      %5824 = vmatprep.subr.bf16.mxu0 0
      %5825 = vmatpush2.bf16.msra.mxu0 0
      %5826 = vmatprep.subr.bf16.mxu0 0
      %5827 = vmatpush2.bf16.msra.mxu0 0
      %5828 = vmatprep.subr.bf16.mxu0 0
      %5829 = vmatpush2.bf16.msra.mxu0 0
      %5830 = vmatprep.subr.bf16.mxu0 0
      %5831 = vmatpush2.bf16.msra.mxu0 0
      %5832 = vmatprep.subr.bf16.mxu0 0
      %5833 = vmatpush2.bf16.msra.mxu0 0
      %5834 = vmatprep.mubr.bf16.mxu0 0
      %5835 = vmatmul.mubr.bf16.gmra.mxu0 %v5720
      %v5836 = vpop.f32.mrf.mxu0
      %v5837 = vadd.f32 %v5797, %v5836
      %v5838 = vpop.f32.mrf.mxu0
      %v5839 = vpop.f32.mrf.mxu0
      %v5840 = vpop.f32.mrf.mxu0
      %5841 = vdwg.mxu0
      %v5842 = vmax.f32 %v5708, %v5837
      %5843 = vst [vmem:[#allocation4] sm:$0xff] %v5842
      %v5844 = vld [vmem:[#allocation4] ss:$3 sm:$0x3]
      %s5845 = scalar_lea.vmem [#allocation4], 1
      %v5846 = vld [vmem:[%s5845] ss:$3 sm:$0x3]
      %v5847 = vmax.f32 %v5844, %v5846
      %s5848 = scalar_lea.vmem [#allocation4], 2
      %v5849 = vld [vmem:[%s5848] ss:$3 sm:$0x3]
      %v5850 = vmax.f32 %v5847, %v5849
      %v5851 = vld [vmem:[%s4] sm:$0x1]
      %v5853 = vlaneseq
      %v5854 = vshrl.u32 %v5853, 7
      %v5855 = vsub.s32 0, %v5854
      %v5856 = vrot.slane %v5851, %v5855
      %v5858 = vadd.f32 %v5850, %v5856
      %v5859 = vmax.f32 %v5858, 0.0
      %5861 = vrot.lane.b32.xlu0 %v5074, 64
      %v5862 = vpop.permute.xlu0 %5861
      %5863 = vrot.lane.b32.xlu0 %v5071, 64
      %v5864 = vpop.permute.xlu0 %5863
      %v5865 = vsel %vm5156, %v5862, %v5864
      %v5868 = vsel %vm2387, %v5046, %v5862
      %v5870 = vld [vmem:[%s3] sm:$0xf]
      %v5871 = vld [vmem:[%s3 + $0x4] sm:$0xf]
      %v5872 = vld [vmem:[%s3 + $0x8] sm:$0xf]
      %v5873 = vld [vmem:[%s3 + $0xc] sm:$0xf]
      %v5874 = vld [vmem:[%s3 + $0x10] sm:$0xf]
      %v5875 = vld [vmem:[%s3 + $0x14] sm:$0xf]
      %v5876 = vld [vmem:[%s3 + $0x18] sm:$0xf]
      %v5877 = vld [vmem:[%s3 + $0x1c] sm:$0xf]
      %v5878 = vld [vmem:[%s3 + $0x20] sm:$0xf]
      %v5879 = vld [vmem:[%s3 + $0x24] sm:$0xf]
      %v5880 = vld [vmem:[%s3 + $0x28] sm:$0xf]
      %v5881 = vld [vmem:[%s3 + $0x2c] sm:$0xf]
      %v5882 = vld [vmem:[%s3 + $0x30] sm:$0xf]
      %v5883 = vld [vmem:[%s3 + $0x34] sm:$0xf]
      %v5884 = vld [vmem:[%s3 + $0x38] sm:$0xf]
      %v5885 = vld [vmem:[%s3 + $0x3c] sm:$0xf]
      %v5886 = vld [vmem:[%s3 + $0x40] sm:$0xf]
      %v5887 = vld [vmem:[%s3 + $0x44] sm:$0xf]
      %v5888 = vld [vmem:[%s3 + $0x48] sm:$0xf]
      %v5889 = vld [vmem:[%s3 + $0x4c] sm:$0xf]
      %v5890 = vld [vmem:[%s3 + $0x50] sm:$0xf]
      %v5891 = vld [vmem:[%s3 + $0x54] sm:$0xf]
      %v5892 = vld [vmem:[%s3 + $0x58] sm:$0xf]
      %v5893 = vld [vmem:[%s3 + $0x5c] sm:$0xf]
      %v5894 = vld [vmem:[%s3 + $0x60] sm:$0xf]
      %v5895 = vld [vmem:[%s3 + $0x64] sm:$0xf]
      %v5896 = vld [vmem:[%s3 + $0x68] sm:$0xf]
      %v5897 = vld [vmem:[%s3 + $0x6c] sm:$0xf]
      %v5898 = vld [vmem:[%s3 + $0x70] sm:$0xf]
      %v5899 = vld [vmem:[%s3 + $0x74] sm:$0xf]
      %v5900 = vld [vmem:[%s3 + $0x78] sm:$0xf]
      %v5901 = vld [vmem:[%s3 + $0x7c] sm:$0xf]
      %v5902 = vld [vmem:[%s3 + $0x80] sm:$0xf]
      %v5903 = vld [vmem:[%s3 + $0x84] sm:$0xf]
      %v5904 = vld [vmem:[%s3 + $0x88] sm:$0xf]
      %v5905 = vld [vmem:[%s3 + $0x8c] sm:$0xf]
      %v5906 = vld [vmem:[%s3 + $0x90] sm:$0xf]
      %v5907 = vld [vmem:[%s3 + $0x94] sm:$0xf]
      %v5908 = vld [vmem:[%s3 + $0x98] sm:$0xf]
      %v5909 = vld [vmem:[%s3 + $0x9c] sm:$0xf]
      %v5910 = vld [vmem:[%s3 + $0xa0] sm:$0xf]
      %v5911 = vld [vmem:[%s3 + $0xa4] sm:$0xf]
      %v5912 = vld [vmem:[%s3 + $0xa8] sm:$0xf]
      %v5913 = vld [vmem:[%s3 + $0xac] sm:$0xf]
      %v5914 = vld [vmem:[%s3 + $0xb0] sm:$0xf]
      %v5915 = vld [vmem:[%s3 + $0xb4] sm:$0xf]
      %v5916 = vld [vmem:[%s3 + $0xb8] sm:$0xf]
      %v5917 = vld [vmem:[%s3 + $0xbc] sm:$0xf]
      %v5918 = vld [vmem:[%s3 + $0xc0] sm:$0xf]
      %v5919 = vld [vmem:[%s3 + $0xc4] sm:$0xf]
      %v5920 = vld [vmem:[%s3 + $0xc8] sm:$0xf]
      %v5921 = vld [vmem:[%s3 + $0xcc] sm:$0xf]
      %v5922 = vld [vmem:[%s3 + $0xd0] sm:$0xf]
      %v5923 = vld [vmem:[%s3 + $0xd4] sm:$0xf]
      %v5924 = vld [vmem:[%s3 + $0xd8] sm:$0xf]
      %v5925 = vld [vmem:[%s3 + $0xdc] sm:$0xf]
      %v5926 = vld [vmem:[%s3 + $0xe0] sm:$0xf]
      %v5927 = vld [vmem:[%s3 + $0xe4] sm:$0xf]
      %v5928 = vld [vmem:[%s3 + $0xe8] sm:$0xf]
      %v5929 = vld [vmem:[%s3 + $0xec] sm:$0xf]
      %v5930 = vld [vmem:[%s3 + $0xf0] sm:$0xf]
      %v5931 = vld [vmem:[%s3 + $0xf4] sm:$0xf]
      %v5932 = vld [vmem:[%s3 + $0xf8] sm:$0xf]
      %v5933 = vld [vmem:[%s3 + $0xfc] sm:$0xf]
      %v5934 = vld [vmem:[%s3 + $0x100] sm:$0xf]
      %v5935 = vld [vmem:[%s3 + $0x104] sm:$0xf]
      %v5936 = vld [vmem:[%s3 + $0x108] sm:$0xf]
      %v5937 = vld [vmem:[%s3 + $0x10c] sm:$0xf]
      %v5938 = vld [vmem:[%s3 + $0x110] sm:$0xf]
      %v5939 = vld [vmem:[%s3 + $0x114] sm:$0xf]
      %v5940 = vld [vmem:[%s3 + $0x118] sm:$0xf]
      %v5941 = vld [vmem:[%s3 + $0x11c] sm:$0xf]
      %v6014 = vunpack.c.l.b16 %v5870
      %v6015 = vunpack.c.l.b16 %v5871
      %v6016 = vunpack.c.l.b16 %v5872
      %v6017 = vunpack.c.l.b16 %v5873
      %v6018 = vunpack.c.l.b16 %v5874
      %v6019 = vunpack.c.l.b16 %v5875
      %v6020 = vunpack.c.l.b16 %v5876
      %v6021 = vunpack.c.l.b16 %v5877
      %v6022 = vunpack.c.l.b16 %v5878
      %v6023 = vunpack.c.l.b16 %v5879
      %v6024 = vunpack.c.l.b16 %v5880
      %v6025 = vunpack.c.l.b16 %v5881
      %v6026 = vunpack.c.l.b16 %v5882
      %v6027 = vunpack.c.l.b16 %v5883
      %v6028 = vunpack.c.l.b16 %v5884
      %v6029 = vunpack.c.l.b16 %v5885
      %v6030 = vunpack.c.l.b16 %v5886
      %v6031 = vunpack.c.l.b16 %v5887
      %v6032 = vunpack.c.l.b16 %v5888
      %v6033 = vunpack.c.l.b16 %v5889
      %v6034 = vunpack.c.l.b16 %v5890
      %v6035 = vunpack.c.l.b16 %v5891
      %v6036 = vunpack.c.l.b16 %v5892
      %v6037 = vunpack.c.l.b16 %v5893
      %v6038 = vunpack.c.l.b16 %v5894
      %v6039 = vunpack.c.l.b16 %v5895
      %v6040 = vunpack.c.l.b16 %v5896
      %v6041 = vunpack.c.l.b16 %v5897
      %v6042 = vunpack.c.l.b16 %v5898
      %v6043 = vunpack.c.l.b16 %v5899
      %v6044 = vunpack.c.l.b16 %v5900
      %v6045 = vunpack.c.l.b16 %v5901
      %v6046 = vunpack.c.l.b16 %v5902
      %v6047 = vunpack.c.l.b16 %v5903
      %v6048 = vunpack.c.l.b16 %v5904
      %v6049 = vunpack.c.l.b16 %v5905
      %v6050 = vunpack.c.l.b16 %v5906
      %v6051 = vunpack.c.l.b16 %v5907
      %v6052 = vunpack.c.l.b16 %v5908
      %v6053 = vunpack.c.l.b16 %v5909
      %v6054 = vunpack.c.l.b16 %v5910
      %v6055 = vunpack.c.l.b16 %v5911
      %v6056 = vunpack.c.l.b16 %v5912
      %v6057 = vunpack.c.l.b16 %v5913
      %v6058 = vunpack.c.l.b16 %v5914
      %v6059 = vunpack.c.l.b16 %v5915
      %v6060 = vunpack.c.l.b16 %v5916
      %v6061 = vunpack.c.l.b16 %v5917
      %v6062 = vunpack.c.l.b16 %v5918
      %v6063 = vunpack.c.l.b16 %v5919
      %v6064 = vunpack.c.l.b16 %v5920
      %v6065 = vunpack.c.l.b16 %v5921
      %v6066 = vunpack.c.l.b16 %v5922
      %v6067 = vunpack.c.l.b16 %v5923
      %v6068 = vunpack.c.l.b16 %v5924
      %v6069 = vunpack.c.l.b16 %v5925
      %v6070 = vunpack.c.l.b16 %v5926
      %v6071 = vunpack.c.l.b16 %v5927
      %v6072 = vunpack.c.l.b16 %v5928
      %v6073 = vunpack.c.l.b16 %v5929
      %v6074 = vunpack.c.l.b16 %v5930
      %v6075 = vunpack.c.l.b16 %v5931
      %v6076 = vunpack.c.l.b16 %v5932
      %v6077 = vunpack.c.l.b16 %v5933
      %v6078 = vunpack.c.l.b16 %v5934
      %v6079 = vunpack.c.l.b16 %v5935
      %v6080 = vunpack.c.l.b16 %v5936
      %v6081 = vunpack.c.l.b16 %v5937
      %v6082 = vunpack.c.l.b16 %v5938
      %v6083 = vunpack.c.l.b16 %v5939
      %v6084 = vunpack.c.l.b16 %v5940
      %v6085 = vunpack.c.l.b16 %v5941
      %v6086 = vpack.c.b16 %v6015, %v6014
      %v6087 = vpack.c.b16 %v6017, %v6016
      %v6088 = vpack.c.b16 %v6019, %v6018
      %v6089 = vpack.c.b16 %v6021, %v6020
      %v6090 = vpack.c.b16 %v6023, %v6022
      %v6091 = vpack.c.b16 %v6025, %v6024
      %v6092 = vpack.c.b16 %v6027, %v6026
      %v6093 = vpack.c.b16 %v6029, %v6028
      %v6094 = vpack.c.b16 %v6031, %v6030
      %v6095 = vpack.c.b16 %v6033, %v6032
      %v6096 = vpack.c.b16 %v6035, %v6034
      %v6097 = vpack.c.b16 %v6037, %v6036
      %v6098 = vpack.c.b16 %v6039, %v6038
      %v6099 = vpack.c.b16 %v6041, %v6040
      %v6100 = vpack.c.b16 %v6043, %v6042
      %v6101 = vpack.c.b16 %v6045, %v6044
      %v6102 = vpack.c.b16 %v6047, %v6046
      %v6103 = vpack.c.b16 %v6049, %v6048
      %v6104 = vpack.c.b16 %v6051, %v6050
      %v6105 = vpack.c.b16 %v6053, %v6052
      %v6106 = vpack.c.b16 %v6055, %v6054
      %v6107 = vpack.c.b16 %v6057, %v6056
      %v6108 = vpack.c.b16 %v6059, %v6058
      %v6109 = vpack.c.b16 %v6061, %v6060
      %v6110 = vpack.c.b16 %v6063, %v6062
      %v6111 = vpack.c.b16 %v6065, %v6064
      %v6112 = vpack.c.b16 %v6067, %v6066
      %v6113 = vpack.c.b16 %v6069, %v6068
      %v6114 = vpack.c.b16 %v6071, %v6070
      %v6115 = vpack.c.b16 %v6073, %v6072
      %v6116 = vpack.c.b16 %v6075, %v6074
      %v6117 = vpack.c.b16 %v6077, %v6076
      %v6118 = vpack.c.b16 %v6079, %v6078
      %v6119 = vpack.c.b16 %v6081, %v6080
      %v6120 = vpack.c.b16 %v6083, %v6082
      %v6121 = vpack.c.b16 %v6085, %v6084
      %v6159 = vsel %vm2387, %v5096, 0
      %6161 = vmatprep.subr.bf16.mxu0 0
      %6162 = vmatpush1.bf16.msra.mxu0 %v6093
      %6163 = vmatprep.subr.bf16.mxu0 0
      %6164 = vmatpush1.bf16.msra.mxu0 %v6092
      %6165 = vmatprep.subr.bf16.mxu0 0
      %6166 = vmatpush1.bf16.msra.mxu0 %v6091
      %6167 = vmatprep.subr.bf16.mxu0 0
      %6168 = vmatpush1.bf16.msra.mxu0 %v6090
      %6169 = vmatprep.subr.bf16.mxu0 0
      %6170 = vmatpush1.bf16.msra.mxu0 %v6089
      %6171 = vmatprep.subr.bf16.mxu0 0
      %6172 = vmatpush1.bf16.msra.mxu0 %v6088
      %6173 = vmatprep.subr.bf16.mxu0 0
      %6174 = vmatpush1.bf16.msra.mxu0 %v6087
      %6175 = vmatprep.subr.bf16.mxu0 0
      %6176 = vmatpush1.bf16.msra.mxu0 %v6086
      %6177 = vmatprep.subr.bf16.mxu0 0
      %6178 = vmatpush2.bf16.msra.mxu0 %v6101
      %6179 = vmatprep.subr.bf16.mxu0 0
      %6180 = vmatpush2.bf16.msra.mxu0 %v6100
      %6181 = vmatprep.subr.bf16.mxu0 0
      %6182 = vmatpush2.bf16.msra.mxu0 %v6099
      %6183 = vmatprep.subr.bf16.mxu0 0
      %6184 = vmatpush2.bf16.msra.mxu0 %v6098
      %6185 = vmatprep.subr.bf16.mxu0 0
      %6186 = vmatpush2.bf16.msra.mxu0 %v6097
      %6187 = vmatprep.subr.bf16.mxu0 0
      %6188 = vmatpush2.bf16.msra.mxu0 %v6096
      %6189 = vmatprep.subr.bf16.mxu0 0
      %6190 = vmatpush2.bf16.msra.mxu0 %v6095
      %6191 = vmatprep.subr.bf16.mxu0 0
      %6192 = vmatpush2.bf16.msra.mxu0 %v6094
      %6193 = vmatprep.mubr.bf16.mxu0 %v5868
      %6194 = vmatmul.mubr.bf16.gmra.mxu0 %v5049
      %v6195 = vpop.f32.mrf.mxu0
      %v6196 = vadd.f32 0.0, %v6195
      %v6197 = vpop.f32.mrf.mxu0
      %v6198 = vpop.f32.mrf.mxu0
      %v6199 = vpop.f32.mrf.mxu0
      %6200 = vdwg.mxu0
      %6201 = vmatprep.subr.bf16.mxu0 0
      %6202 = vmatpush1.bf16.msra.mxu0 %v6109
      %6203 = vmatprep.subr.bf16.mxu0 0
      %6204 = vmatpush1.bf16.msra.mxu0 %v6108
      %6205 = vmatprep.subr.bf16.mxu0 0
      %6206 = vmatpush1.bf16.msra.mxu0 %v6107
      %6207 = vmatprep.subr.bf16.mxu0 0
      %6208 = vmatpush1.bf16.msra.mxu0 %v6106
      %6209 = vmatprep.subr.bf16.mxu0 0
      %6210 = vmatpush1.bf16.msra.mxu0 %v6105
      %6211 = vmatprep.subr.bf16.mxu0 0
      %6212 = vmatpush1.bf16.msra.mxu0 %v6104
      %6213 = vmatprep.subr.bf16.mxu0 0
      %6214 = vmatpush1.bf16.msra.mxu0 %v6103
      %6215 = vmatprep.subr.bf16.mxu0 0
      %6216 = vmatpush1.bf16.msra.mxu0 %v6102
      %6217 = vmatprep.subr.bf16.mxu0 0
      %6218 = vmatpush2.bf16.msra.mxu0 %v6117
      %6219 = vmatprep.subr.bf16.mxu0 0
      %6220 = vmatpush2.bf16.msra.mxu0 %v6116
      %6221 = vmatprep.subr.bf16.mxu0 0
      %6222 = vmatpush2.bf16.msra.mxu0 %v6115
      %6223 = vmatprep.subr.bf16.mxu0 0
      %6224 = vmatpush2.bf16.msra.mxu0 %v6114
      %6225 = vmatprep.subr.bf16.mxu0 0
      %6226 = vmatpush2.bf16.msra.mxu0 %v6113
      %6227 = vmatprep.subr.bf16.mxu0 0
      %6228 = vmatpush2.bf16.msra.mxu0 %v6112
      %6229 = vmatprep.subr.bf16.mxu0 0
      %6230 = vmatpush2.bf16.msra.mxu0 %v6111
      %6231 = vmatprep.subr.bf16.mxu0 0
      %6232 = vmatpush2.bf16.msra.mxu0 %v6110
      %6233 = vmatprep.mubr.bf16.mxu0 %v5099
      %6234 = vmatmul.mubr.bf16.gmra.mxu0 %v5865
      %v6235 = vpop.f32.mrf.mxu0
      %v6236 = vadd.f32 %v6196, %v6235
      %v6237 = vpop.f32.mrf.mxu0
      %v6238 = vpop.f32.mrf.mxu0
      %v6239 = vpop.f32.mrf.mxu0
      %6240 = vdwg.mxu0
      %6241 = vmatprep.subr.bf16.mxu0 0
      %6242 = vmatpush1.bf16.msra.mxu0 0
      %6243 = vmatprep.subr.bf16.mxu0 0
      %6244 = vmatpush1.bf16.msra.mxu0 0
      %6245 = vmatprep.subr.bf16.mxu0 0
      %6246 = vmatpush1.bf16.msra.mxu0 0
      %6247 = vmatprep.subr.bf16.mxu0 0
      %6248 = vmatpush1.bf16.msra.mxu0 0
      %6249 = vmatprep.subr.bf16.mxu0 0
      %6250 = vmatpush1.bf16.msra.mxu0 %v6121
      %6251 = vmatprep.subr.bf16.mxu0 0
      %6252 = vmatpush1.bf16.msra.mxu0 %v6120
      %6253 = vmatprep.subr.bf16.mxu0 0
      %6254 = vmatpush1.bf16.msra.mxu0 %v6119
      %6255 = vmatprep.subr.bf16.mxu0 0
      %6256 = vmatpush1.bf16.msra.mxu0 %v6118
      %6257 = vmatprep.subr.bf16.mxu0 0
      %6258 = vmatpush2.bf16.msra.mxu0 0
      %6259 = vmatprep.subr.bf16.mxu0 0
      %6260 = vmatpush2.bf16.msra.mxu0 0
      %6261 = vmatprep.subr.bf16.mxu0 0
      %6262 = vmatpush2.bf16.msra.mxu0 0
      %6263 = vmatprep.subr.bf16.mxu0 0
      %6264 = vmatpush2.bf16.msra.mxu0 0
      %6265 = vmatprep.subr.bf16.mxu0 0
      %6266 = vmatpush2.bf16.msra.mxu0 0
      %6267 = vmatprep.subr.bf16.mxu0 0
      %6268 = vmatpush2.bf16.msra.mxu0 0
      %6269 = vmatprep.subr.bf16.mxu0 0
      %6270 = vmatpush2.bf16.msra.mxu0 0
      %6271 = vmatprep.subr.bf16.mxu0 0
      %6272 = vmatpush2.bf16.msra.mxu0 0
      %6273 = vmatprep.mubr.bf16.mxu0 0
      %6274 = vmatmul.mubr.bf16.gmra.mxu0 %v6159
      %v6275 = vpop.f32.mrf.mxu0
      %v6276 = vadd.f32 %v6236, %v6275
      %v6277 = vpop.f32.mrf.mxu0
      %v6278 = vpop.f32.mrf.mxu0
      %v6279 = vpop.f32.mrf.mxu0
      %6280 = vdwg.mxu0
      %6282 = vrot.lane.b32.xlu0 %v5099, 64
      %v6283 = vpop.permute.xlu0 %6282
      %6284 = vrot.lane.b32.xlu0 %v5096, 64
      %v6285 = vpop.permute.xlu0 %6284
      %v6286 = vsel %vm5156, %v6283, %v6285
      %v6289 = vsel %vm2387, %v5071, %v6283
      %v6292 = vsel %vm2387, %v5121, 0
      %6294 = vmatprep.subr.bf16.mxu0 0
      %6295 = vmatpush1.bf16.msra.mxu0 %v6093
      %6296 = vmatprep.subr.bf16.mxu0 0
      %6297 = vmatpush1.bf16.msra.mxu0 %v6092
      %6298 = vmatprep.subr.bf16.mxu0 0
      %6299 = vmatpush1.bf16.msra.mxu0 %v6091
      %6300 = vmatprep.subr.bf16.mxu0 0
      %6301 = vmatpush1.bf16.msra.mxu0 %v6090
      %6302 = vmatprep.subr.bf16.mxu0 0
      %6303 = vmatpush1.bf16.msra.mxu0 %v6089
      %6304 = vmatprep.subr.bf16.mxu0 0
      %6305 = vmatpush1.bf16.msra.mxu0 %v6088
      %6306 = vmatprep.subr.bf16.mxu0 0
      %6307 = vmatpush1.bf16.msra.mxu0 %v6087
      %6308 = vmatprep.subr.bf16.mxu0 0
      %6309 = vmatpush1.bf16.msra.mxu0 %v6086
      %6310 = vmatprep.subr.bf16.mxu0 0
      %6311 = vmatpush2.bf16.msra.mxu0 %v6101
      %6312 = vmatprep.subr.bf16.mxu0 0
      %6313 = vmatpush2.bf16.msra.mxu0 %v6100
      %6314 = vmatprep.subr.bf16.mxu0 0
      %6315 = vmatpush2.bf16.msra.mxu0 %v6099
      %6316 = vmatprep.subr.bf16.mxu0 0
      %6317 = vmatpush2.bf16.msra.mxu0 %v6098
      %6318 = vmatprep.subr.bf16.mxu0 0
      %6319 = vmatpush2.bf16.msra.mxu0 %v6097
      %6320 = vmatprep.subr.bf16.mxu0 0
      %6321 = vmatpush2.bf16.msra.mxu0 %v6096
      %6322 = vmatprep.subr.bf16.mxu0 0
      %6323 = vmatpush2.bf16.msra.mxu0 %v6095
      %6324 = vmatprep.subr.bf16.mxu0 0
      %6325 = vmatpush2.bf16.msra.mxu0 %v6094
      %6326 = vmatprep.mubr.bf16.mxu0 %v6289
      %6327 = vmatmul.mubr.bf16.gmra.mxu0 %v5074
      %v6328 = vpop.f32.mrf.mxu0
      %v6329 = vadd.f32 0.0, %v6328
      %v6330 = vpop.f32.mrf.mxu0
      %v6331 = vpop.f32.mrf.mxu0
      %v6332 = vpop.f32.mrf.mxu0
      %6333 = vdwg.mxu0
      %6334 = vmatprep.subr.bf16.mxu0 0
      %6335 = vmatpush1.bf16.msra.mxu0 %v6109
      %6336 = vmatprep.subr.bf16.mxu0 0
      %6337 = vmatpush1.bf16.msra.mxu0 %v6108
      %6338 = vmatprep.subr.bf16.mxu0 0
      %6339 = vmatpush1.bf16.msra.mxu0 %v6107
      %6340 = vmatprep.subr.bf16.mxu0 0
      %6341 = vmatpush1.bf16.msra.mxu0 %v6106
      %6342 = vmatprep.subr.bf16.mxu0 0
      %6343 = vmatpush1.bf16.msra.mxu0 %v6105
      %6344 = vmatprep.subr.bf16.mxu0 0
      %6345 = vmatpush1.bf16.msra.mxu0 %v6104
      %6346 = vmatprep.subr.bf16.mxu0 0
      %6347 = vmatpush1.bf16.msra.mxu0 %v6103
      %6348 = vmatprep.subr.bf16.mxu0 0
      %6349 = vmatpush1.bf16.msra.mxu0 %v6102
      %6350 = vmatprep.subr.bf16.mxu0 0
      %6351 = vmatpush2.bf16.msra.mxu0 %v6117
      %6352 = vmatprep.subr.bf16.mxu0 0
      %6353 = vmatpush2.bf16.msra.mxu0 %v6116
      %6354 = vmatprep.subr.bf16.mxu0 0
      %6355 = vmatpush2.bf16.msra.mxu0 %v6115
      %6356 = vmatprep.subr.bf16.mxu0 0
      %6357 = vmatpush2.bf16.msra.mxu0 %v6114
      %6358 = vmatprep.subr.bf16.mxu0 0
      %6359 = vmatpush2.bf16.msra.mxu0 %v6113
      %6360 = vmatprep.subr.bf16.mxu0 0
      %6361 = vmatpush2.bf16.msra.mxu0 %v6112
      %6362 = vmatprep.subr.bf16.mxu0 0
      %6363 = vmatpush2.bf16.msra.mxu0 %v6111
      %6364 = vmatprep.subr.bf16.mxu0 0
      %6365 = vmatpush2.bf16.msra.mxu0 %v6110
      %6366 = vmatprep.mubr.bf16.mxu0 %v5124
      %6367 = vmatmul.mubr.bf16.gmra.mxu0 %v6286
      %v6368 = vpop.f32.mrf.mxu0
      %v6369 = vadd.f32 %v6329, %v6368
      %v6370 = vpop.f32.mrf.mxu0
      %v6371 = vpop.f32.mrf.mxu0
      %v6372 = vpop.f32.mrf.mxu0
      %6373 = vdwg.mxu0
      %6374 = vmatprep.subr.bf16.mxu0 0
      %6375 = vmatpush1.bf16.msra.mxu0 0
      %6376 = vmatprep.subr.bf16.mxu0 0
      %6377 = vmatpush1.bf16.msra.mxu0 0
      %6378 = vmatprep.subr.bf16.mxu0 0
      %6379 = vmatpush1.bf16.msra.mxu0 0
      %6380 = vmatprep.subr.bf16.mxu0 0
      %6381 = vmatpush1.bf16.msra.mxu0 0
      %6382 = vmatprep.subr.bf16.mxu0 0
      %6383 = vmatpush1.bf16.msra.mxu0 %v6121
      %6384 = vmatprep.subr.bf16.mxu0 0
      %6385 = vmatpush1.bf16.msra.mxu0 %v6120
      %6386 = vmatprep.subr.bf16.mxu0 0
      %6387 = vmatpush1.bf16.msra.mxu0 %v6119
      %6388 = vmatprep.subr.bf16.mxu0 0
      %6389 = vmatpush1.bf16.msra.mxu0 %v6118
      %6390 = vmatprep.subr.bf16.mxu0 0
      %6391 = vmatpush2.bf16.msra.mxu0 0
      %6392 = vmatprep.subr.bf16.mxu0 0
      %6393 = vmatpush2.bf16.msra.mxu0 0
      %6394 = vmatprep.subr.bf16.mxu0 0
      %6395 = vmatpush2.bf16.msra.mxu0 0
      %6396 = vmatprep.subr.bf16.mxu0 0
      %6397 = vmatpush2.bf16.msra.mxu0 0
      %6398 = vmatprep.subr.bf16.mxu0 0
      %6399 = vmatpush2.bf16.msra.mxu0 0
      %6400 = vmatprep.subr.bf16.mxu0 0
      %6401 = vmatpush2.bf16.msra.mxu0 0
      %6402 = vmatprep.subr.bf16.mxu0 0
      %6403 = vmatpush2.bf16.msra.mxu0 0
      %6404 = vmatprep.subr.bf16.mxu0 0
      %6405 = vmatpush2.bf16.msra.mxu0 0
      %6406 = vmatprep.mubr.bf16.mxu0 0
      %6407 = vmatmul.mubr.bf16.gmra.mxu0 %v6292
      %v6408 = vpop.f32.mrf.mxu0
      %v6409 = vadd.f32 %v6369, %v6408
      %v6410 = vpop.f32.mrf.mxu0
      %v6411 = vpop.f32.mrf.mxu0
      %v6412 = vpop.f32.mrf.mxu0
      %6413 = vdwg.mxu0
      %v6414 = vmax.f32 %v6276, %v6409
      %6416 = vrot.lane.b32.xlu0 %v5124, 64
      %v6417 = vpop.permute.xlu0 %6416
      %6418 = vrot.lane.b32.xlu0 %v5121, 64
      %v6419 = vpop.permute.xlu0 %6418
      %v6420 = vsel %vm5156, %v6417, %v6419
      %v6423 = vsel %vm2387, %v5096, %v6417
      %v6426 = vsel %vm2387, %v5146, 0
      %6428 = vmatprep.subr.bf16.mxu0 0
      %6429 = vmatpush1.bf16.msra.mxu0 %v6093
      %6430 = vmatprep.subr.bf16.mxu0 0
      %6431 = vmatpush1.bf16.msra.mxu0 %v6092
      %6432 = vmatprep.subr.bf16.mxu0 0
      %6433 = vmatpush1.bf16.msra.mxu0 %v6091
      %6434 = vmatprep.subr.bf16.mxu0 0
      %6435 = vmatpush1.bf16.msra.mxu0 %v6090
      %6436 = vmatprep.subr.bf16.mxu0 0
      %6437 = vmatpush1.bf16.msra.mxu0 %v6089
      %6438 = vmatprep.subr.bf16.mxu0 0
      %6439 = vmatpush1.bf16.msra.mxu0 %v6088
      %6440 = vmatprep.subr.bf16.mxu0 0
      %6441 = vmatpush1.bf16.msra.mxu0 %v6087
      %6442 = vmatprep.subr.bf16.mxu0 0
      %6443 = vmatpush1.bf16.msra.mxu0 %v6086
      %6444 = vmatprep.subr.bf16.mxu0 0
      %6445 = vmatpush2.bf16.msra.mxu0 %v6101
      %6446 = vmatprep.subr.bf16.mxu0 0
      %6447 = vmatpush2.bf16.msra.mxu0 %v6100
      %6448 = vmatprep.subr.bf16.mxu0 0
      %6449 = vmatpush2.bf16.msra.mxu0 %v6099
      %6450 = vmatprep.subr.bf16.mxu0 0
      %6451 = vmatpush2.bf16.msra.mxu0 %v6098
      %6452 = vmatprep.subr.bf16.mxu0 0
      %6453 = vmatpush2.bf16.msra.mxu0 %v6097
      %6454 = vmatprep.subr.bf16.mxu0 0
      %6455 = vmatpush2.bf16.msra.mxu0 %v6096
      %6456 = vmatprep.subr.bf16.mxu0 0
      %6457 = vmatpush2.bf16.msra.mxu0 %v6095
      %6458 = vmatprep.subr.bf16.mxu0 0
      %6459 = vmatpush2.bf16.msra.mxu0 %v6094
      %6460 = vmatprep.mubr.bf16.mxu0 %v6423
      %6461 = vmatmul.mubr.bf16.gmra.mxu0 %v5099
      %v6462 = vpop.f32.mrf.mxu0
      %v6463 = vadd.f32 0.0, %v6462
      %v6464 = vpop.f32.mrf.mxu0
      %v6465 = vpop.f32.mrf.mxu0
      %v6466 = vpop.f32.mrf.mxu0
      %6467 = vdwg.mxu0
      %6468 = vmatprep.subr.bf16.mxu0 0
      %6469 = vmatpush1.bf16.msra.mxu0 %v6109
      %6470 = vmatprep.subr.bf16.mxu0 0
      %6471 = vmatpush1.bf16.msra.mxu0 %v6108
      %6472 = vmatprep.subr.bf16.mxu0 0
      %6473 = vmatpush1.bf16.msra.mxu0 %v6107
      %6474 = vmatprep.subr.bf16.mxu0 0
      %6475 = vmatpush1.bf16.msra.mxu0 %v6106
      %6476 = vmatprep.subr.bf16.mxu0 0
      %6477 = vmatpush1.bf16.msra.mxu0 %v6105
      %6478 = vmatprep.subr.bf16.mxu0 0
      %6479 = vmatpush1.bf16.msra.mxu0 %v6104
      %6480 = vmatprep.subr.bf16.mxu0 0
      %6481 = vmatpush1.bf16.msra.mxu0 %v6103
      %6482 = vmatprep.subr.bf16.mxu0 0
      %6483 = vmatpush1.bf16.msra.mxu0 %v6102
      %6484 = vmatprep.subr.bf16.mxu0 0
      %6485 = vmatpush2.bf16.msra.mxu0 %v6117
      %6486 = vmatprep.subr.bf16.mxu0 0
      %6487 = vmatpush2.bf16.msra.mxu0 %v6116
      %6488 = vmatprep.subr.bf16.mxu0 0
      %6489 = vmatpush2.bf16.msra.mxu0 %v6115
      %6490 = vmatprep.subr.bf16.mxu0 0
      %6491 = vmatpush2.bf16.msra.mxu0 %v6114
      %6492 = vmatprep.subr.bf16.mxu0 0
      %6493 = vmatpush2.bf16.msra.mxu0 %v6113
      %6494 = vmatprep.subr.bf16.mxu0 0
      %6495 = vmatpush2.bf16.msra.mxu0 %v6112
      %6496 = vmatprep.subr.bf16.mxu0 0
      %6497 = vmatpush2.bf16.msra.mxu0 %v6111
      %6498 = vmatprep.subr.bf16.mxu0 0
      %6499 = vmatpush2.bf16.msra.mxu0 %v6110
      %6500 = vmatprep.mubr.bf16.mxu0 %v5149
      %6501 = vmatmul.mubr.bf16.gmra.mxu0 %v6420
      %v6502 = vpop.f32.mrf.mxu0
      %v6503 = vadd.f32 %v6463, %v6502
      %v6504 = vpop.f32.mrf.mxu0
      %v6505 = vpop.f32.mrf.mxu0
      %v6506 = vpop.f32.mrf.mxu0
      %6507 = vdwg.mxu0
      %6508 = vmatprep.subr.bf16.mxu0 0
      %6509 = vmatpush1.bf16.msra.mxu0 0
      %6510 = vmatprep.subr.bf16.mxu0 0
      %6511 = vmatpush1.bf16.msra.mxu0 0
      %6512 = vmatprep.subr.bf16.mxu0 0
      %6513 = vmatpush1.bf16.msra.mxu0 0
      %6514 = vmatprep.subr.bf16.mxu0 0
      %6515 = vmatpush1.bf16.msra.mxu0 0
      %6516 = vmatprep.subr.bf16.mxu0 0
      %6517 = vmatpush1.bf16.msra.mxu0 %v6121
      %6518 = vmatprep.subr.bf16.mxu0 0
      %6519 = vmatpush1.bf16.msra.mxu0 %v6120
      %6520 = vmatprep.subr.bf16.mxu0 0
      %6521 = vmatpush1.bf16.msra.mxu0 %v6119
      %6522 = vmatprep.subr.bf16.mxu0 0
      %6523 = vmatpush1.bf16.msra.mxu0 %v6118
      %6524 = vmatprep.subr.bf16.mxu0 0
      %6525 = vmatpush2.bf16.msra.mxu0 0
      %6526 = vmatprep.subr.bf16.mxu0 0
      %6527 = vmatpush2.bf16.msra.mxu0 0
      %6528 = vmatprep.subr.bf16.mxu0 0
      %6529 = vmatpush2.bf16.msra.mxu0 0
      %6530 = vmatprep.subr.bf16.mxu0 0
      %6531 = vmatpush2.bf16.msra.mxu0 0
      %6532 = vmatprep.subr.bf16.mxu0 0
      %6533 = vmatpush2.bf16.msra.mxu0 0
      %6534 = vmatprep.subr.bf16.mxu0 0
      %6535 = vmatpush2.bf16.msra.mxu0 0
      %6536 = vmatprep.subr.bf16.mxu0 0
      %6537 = vmatpush2.bf16.msra.mxu0 0
      %6538 = vmatprep.subr.bf16.mxu0 0
      %6539 = vmatpush2.bf16.msra.mxu0 0
      %6540 = vmatprep.mubr.bf16.mxu0 0
      %6541 = vmatmul.mubr.bf16.gmra.mxu0 %v6426
      %v6542 = vpop.f32.mrf.mxu0
      %v6543 = vadd.f32 %v6503, %v6542
      %v6544 = vpop.f32.mrf.mxu0
      %v6545 = vpop.f32.mrf.mxu0
      %v6546 = vpop.f32.mrf.mxu0
      %6547 = vdwg.mxu0
      %v6548 = vmax.f32 %v6414, %v6543
      %6549 = vst [vmem:[#allocation4] sm:$0xff] %v6548
      %v6550 = vld [vmem:[#allocation4] ss:$3 sm:$0x3]
      %v6551 = vld [vmem:[%s5845] ss:$3 sm:$0x3]
      %v6552 = vmax.f32 %v6550, %v6551
      %v6553 = vld [vmem:[%s5848] ss:$3 sm:$0x3]
      %v6554 = vmax.f32 %v6552, %v6553
      %v6555 = vld [vmem:[%s4] sm:$0x1]
      %v6557 = vlaneseq
      %v6558 = vshrl.u32 %v6557, 7
      %v6559 = vsub.s32 0, %v6558
      %v6560 = vrot.slane %v6555, %v6559
      %v6562 = vadd.f32 %v6554, %v6560
      %v6563 = vmax.f32 %v6562, 0.0
      %v6564 = vld [vmem:[%s6] sm:$0x1]
      %v6565 = vpack.c.bf16 %v5859, %v5859
      %v6566 = vld [vmem:[%s5] sm:$0xf]
      %v6567 = vld [vmem:[%s5 + $0x4] sm:$0xf]
      %v6568 = vld [vmem:[%s5 + $0x8] sm:$0xf]
      %v6569 = vld [vmem:[%s5 + $0xc] sm:$0xf]
      %v6570 = vld [vmem:[%s5 + $0x10] sm:$0xf]
      %v6571 = vld [vmem:[%s5 + $0x14] sm:$0xf]
      %v6572 = vld [vmem:[%s5 + $0x18] sm:$0xf]
      %v6573 = vld [vmem:[%s5 + $0x1c] sm:$0xf]
      %v6574 = vld [vmem:[%s5 + $0x20] sm:$0xf]
      %v6575 = vld [vmem:[%s5 + $0x24] sm:$0xf]
      %v6576 = vld [vmem:[%s5 + $0x28] sm:$0xf]
      %v6577 = vld [vmem:[%s5 + $0x2c] sm:$0xf]
      %v6578 = vld [vmem:[%s5 + $0x30] sm:$0xf]
      %v6579 = vld [vmem:[%s5 + $0x34] sm:$0xf]
      %v6580 = vld [vmem:[%s5 + $0x38] sm:$0xf]
      %v6581 = vld [vmem:[%s5 + $0x3c] sm:$0xf]
      %v6598 = vunpack.c.l.b16 %v6566
      %v6599 = vunpack.c.l.b16 %v6567
      %v6600 = vunpack.c.l.b16 %v6568
      %v6601 = vunpack.c.l.b16 %v6569
      %v6602 = vunpack.c.l.b16 %v6570
      %v6603 = vunpack.c.l.b16 %v6571
      %v6604 = vunpack.c.l.b16 %v6572
      %v6605 = vunpack.c.l.b16 %v6573
      %v6606 = vunpack.c.l.b16 %v6574
      %v6607 = vunpack.c.l.b16 %v6575
      %v6608 = vunpack.c.l.b16 %v6576
      %v6609 = vunpack.c.l.b16 %v6577
      %v6610 = vunpack.c.l.b16 %v6578
      %v6611 = vunpack.c.l.b16 %v6579
      %v6612 = vunpack.c.l.b16 %v6580
      %v6613 = vunpack.c.l.b16 %v6581
      %v6614 = vpack.c.b16 %v6599, %v6598
      %v6615 = vpack.c.b16 %v6601, %v6600
      %v6616 = vpack.c.b16 %v6603, %v6602
      %v6617 = vpack.c.b16 %v6605, %v6604
      %v6618 = vpack.c.b16 %v6607, %v6606
      %v6619 = vpack.c.b16 %v6609, %v6608
      %v6620 = vpack.c.b16 %v6611, %v6610
      %v6621 = vpack.c.b16 %v6613, %v6612
      %6630 = vmatprep.subr.bf16.mxu0 0
      %6631 = vmatpush1.bf16.msra.mxu0 %v6621
      %6632 = vmatprep.subr.bf16.mxu0 0
      %6633 = vmatpush1.bf16.msra.mxu0 %v6620
      %6634 = vmatprep.subr.bf16.mxu0 0
      %6635 = vmatpush1.bf16.msra.mxu0 %v6619
      %6636 = vmatprep.subr.bf16.mxu0 0
      %6637 = vmatpush1.bf16.msra.mxu0 %v6618
      %6638 = vmatprep.subr.bf16.mxu0 0
      %6639 = vmatpush1.bf16.msra.mxu0 %v6617
      %6640 = vmatprep.subr.bf16.mxu0 0
      %6641 = vmatpush1.bf16.msra.mxu0 %v6616
      %6642 = vmatprep.subr.bf16.mxu0 0
      %6643 = vmatpush1.bf16.msra.mxu0 %v6615
      %6644 = vmatprep.subr.bf16.mxu0 0
      %6645 = vmatpush1.bf16.msra.mxu0 %v6614
      %6646 = vmatprep.subr.bf16.mxu0 0
      %6647 = vmatpush2.bf16.msra.mxu0 0
      %6648 = vmatprep.subr.bf16.mxu0 0
      %6649 = vmatpush2.bf16.msra.mxu0 0
      %6650 = vmatprep.subr.bf16.mxu0 0
      %6651 = vmatpush2.bf16.msra.mxu0 0
      %6652 = vmatprep.subr.bf16.mxu0 0
      %6653 = vmatpush2.bf16.msra.mxu0 0
      %6654 = vmatprep.subr.bf16.mxu0 0
      %6655 = vmatpush2.bf16.msra.mxu0 0
      %6656 = vmatprep.subr.bf16.mxu0 0
      %6657 = vmatpush2.bf16.msra.mxu0 0
      %6658 = vmatprep.subr.bf16.mxu0 0
      %6659 = vmatpush2.bf16.msra.mxu0 0
      %6660 = vmatprep.subr.bf16.mxu0 0
      %6661 = vmatpush2.bf16.msra.mxu0 0
      %6662 = vmatprep.mubr.bf16.mxu0 0
      %6663 = vmatmul.mubr.bf16.gmra.mxu0 %v6565
      %v6664 = vpop.f32.mrf.mxu0
      %v6665 = vadd.f32 0.0, %v6664
      %v6666 = vpop.f32.mrf.mxu0
      %v6667 = vpop.f32.mrf.mxu0
      %v6668 = vpop.f32.mrf.mxu0
      %6669 = vdwg.mxu0
      %v6670 = vadd.f32 %v6564, %v6665
      %s6671 = scalar_lea.vmem %s5, 64
      %v6672 = vld [vmem:[%s6671] sm:$0xf]
      %v6673 = vld [vmem:[%s6671 + $0x4] sm:$0xf]
      %v6674 = vld [vmem:[%s6671 + $0x8] sm:$0xf]
      %v6675 = vld [vmem:[%s6671 + $0xc] sm:$0xf]
      %v6676 = vld [vmem:[%s6671 + $0x10] sm:$0xf]
      %v6677 = vld [vmem:[%s6671 + $0x14] sm:$0xf]
      %v6678 = vld [vmem:[%s6671 + $0x18] sm:$0xf]
      %v6679 = vld [vmem:[%s6671 + $0x1c] sm:$0xf]
      %v6680 = vld [vmem:[%s6671 + $0x20] sm:$0xf]
      %v6681 = vld [vmem:[%s6671 + $0x24] sm:$0xf]
      %v6682 = vld [vmem:[%s6671 + $0x28] sm:$0xf]
      %v6683 = vld [vmem:[%s6671 + $0x2c] sm:$0xf]
      %v6684 = vld [vmem:[%s6671 + $0x30] sm:$0xf]
      %v6685 = vld [vmem:[%s6671 + $0x34] sm:$0xf]
      %v6686 = vld [vmem:[%s6671 + $0x38] sm:$0xf]
      %v6687 = vld [vmem:[%s6671 + $0x3c] sm:$0xf]
      %v6689 = vshrl.u32 %v6565, 16
      %v6708 = vunpack.c.l.b16 %v6672
      %v6709 = vunpack.c.l.b16 %v6673
      %v6710 = vunpack.c.l.b16 %v6674
      %v6711 = vunpack.c.l.b16 %v6675
      %v6712 = vunpack.c.l.b16 %v6676
      %v6713 = vunpack.c.l.b16 %v6677
      %v6714 = vunpack.c.l.b16 %v6678
      %v6715 = vunpack.c.l.b16 %v6679
      %v6716 = vunpack.c.l.b16 %v6680
      %v6717 = vunpack.c.l.b16 %v6681
      %v6718 = vunpack.c.l.b16 %v6682
      %v6719 = vunpack.c.l.b16 %v6683
      %v6720 = vunpack.c.l.b16 %v6684
      %v6721 = vunpack.c.l.b16 %v6685
      %v6722 = vunpack.c.l.b16 %v6686
      %v6723 = vunpack.c.l.b16 %v6687
      %v6724 = vpack.c.b16 %v6709, %v6708
      %v6725 = vpack.c.b16 %v6711, %v6710
      %v6726 = vpack.c.b16 %v6713, %v6712
      %v6727 = vpack.c.b16 %v6715, %v6714
      %v6728 = vpack.c.b16 %v6717, %v6716
      %v6729 = vpack.c.b16 %v6719, %v6718
      %v6730 = vpack.c.b16 %v6721, %v6720
      %v6731 = vpack.c.b16 %v6723, %v6722
      %6740 = vmatprep.subr.bf16.mxu0 0
      %6741 = vmatpush1.bf16.msra.mxu0 %v6731
      %6742 = vmatprep.subr.bf16.mxu0 0
      %6743 = vmatpush1.bf16.msra.mxu0 %v6730
      %6744 = vmatprep.subr.bf16.mxu0 0
      %6745 = vmatpush1.bf16.msra.mxu0 %v6729
      %6746 = vmatprep.subr.bf16.mxu0 0
      %6747 = vmatpush1.bf16.msra.mxu0 %v6728
      %6748 = vmatprep.subr.bf16.mxu0 0
      %6749 = vmatpush1.bf16.msra.mxu0 %v6727
      %6750 = vmatprep.subr.bf16.mxu0 0
      %6751 = vmatpush1.bf16.msra.mxu0 %v6726
      %6752 = vmatprep.subr.bf16.mxu0 0
      %6753 = vmatpush1.bf16.msra.mxu0 %v6725
      %6754 = vmatprep.subr.bf16.mxu0 0
      %6755 = vmatpush1.bf16.msra.mxu0 %v6724
      %6756 = vmatprep.subr.bf16.mxu0 0
      %6757 = vmatpush2.bf16.msra.mxu0 0
      %6758 = vmatprep.subr.bf16.mxu0 0
      %6759 = vmatpush2.bf16.msra.mxu0 0
      %6760 = vmatprep.subr.bf16.mxu0 0
      %6761 = vmatpush2.bf16.msra.mxu0 0
      %6762 = vmatprep.subr.bf16.mxu0 0
      %6763 = vmatpush2.bf16.msra.mxu0 0
      %6764 = vmatprep.subr.bf16.mxu0 0
      %6765 = vmatpush2.bf16.msra.mxu0 0
      %6766 = vmatprep.subr.bf16.mxu0 0
      %6767 = vmatpush2.bf16.msra.mxu0 0
      %6768 = vmatprep.subr.bf16.mxu0 0
      %6769 = vmatpush2.bf16.msra.mxu0 0
      %6770 = vmatprep.subr.bf16.mxu0 0
      %6771 = vmatpush2.bf16.msra.mxu0 0
      %6772 = vmatprep.mubr.bf16.mxu0 0
      %6773 = vmatmul.mubr.bf16.gmra.mxu0 %v6689
      %v6774 = vpop.f32.mrf.mxu0
      %v6775 = vadd.f32 0.0, %v6774
      %v6776 = vpop.f32.mrf.mxu0
      %v6777 = vpop.f32.mrf.mxu0
      %v6778 = vpop.f32.mrf.mxu0
      %6779 = vdwg.mxu0
      %v6780 = vadd.f32 %v6670, %v6775
      %v6781 = vpack.c.bf16 %v6563, %v6563
      %s6782 = scalar_lea.vmem %s5, 128
      %v6783 = vld [vmem:[%s6782] sm:$0xf]
      %v6784 = vld [vmem:[%s6782 + $0x4] sm:$0xf]
      %v6785 = vld [vmem:[%s6782 + $0x8] sm:$0xf]
      %v6786 = vld [vmem:[%s6782 + $0xc] sm:$0xf]
      %v6787 = vld [vmem:[%s6782 + $0x10] sm:$0xf]
      %v6788 = vld [vmem:[%s6782 + $0x14] sm:$0xf]
      %v6789 = vld [vmem:[%s6782 + $0x18] sm:$0xf]
      %v6790 = vld [vmem:[%s6782 + $0x1c] sm:$0xf]
      %v6791 = vld [vmem:[%s6782 + $0x20] sm:$0xf]
      %v6792 = vld [vmem:[%s6782 + $0x24] sm:$0xf]
      %v6793 = vld [vmem:[%s6782 + $0x28] sm:$0xf]
      %v6794 = vld [vmem:[%s6782 + $0x2c] sm:$0xf]
      %v6795 = vld [vmem:[%s6782 + $0x30] sm:$0xf]
      %v6796 = vld [vmem:[%s6782 + $0x34] sm:$0xf]
      %v6797 = vld [vmem:[%s6782 + $0x38] sm:$0xf]
      %v6798 = vld [vmem:[%s6782 + $0x3c] sm:$0xf]
      %v6815 = vunpack.c.l.b16 %v6783
      %v6816 = vunpack.c.l.b16 %v6784
      %v6817 = vunpack.c.l.b16 %v6785
      %v6818 = vunpack.c.l.b16 %v6786
      %v6819 = vunpack.c.l.b16 %v6787
      %v6820 = vunpack.c.l.b16 %v6788
      %v6821 = vunpack.c.l.b16 %v6789
      %v6822 = vunpack.c.l.b16 %v6790
      %v6823 = vunpack.c.l.b16 %v6791
      %v6824 = vunpack.c.l.b16 %v6792
      %v6825 = vunpack.c.l.b16 %v6793
      %v6826 = vunpack.c.l.b16 %v6794
      %v6827 = vunpack.c.l.b16 %v6795
      %v6828 = vunpack.c.l.b16 %v6796
      %v6829 = vunpack.c.l.b16 %v6797
      %v6830 = vunpack.c.l.b16 %v6798
      %v6831 = vpack.c.b16 %v6816, %v6815
      %v6832 = vpack.c.b16 %v6818, %v6817
      %v6833 = vpack.c.b16 %v6820, %v6819
      %v6834 = vpack.c.b16 %v6822, %v6821
      %v6835 = vpack.c.b16 %v6824, %v6823
      %v6836 = vpack.c.b16 %v6826, %v6825
      %v6837 = vpack.c.b16 %v6828, %v6827
      %v6838 = vpack.c.b16 %v6830, %v6829
      %6847 = vmatprep.subr.bf16.mxu0 0
      %6848 = vmatpush1.bf16.msra.mxu0 %v6838
      %6849 = vmatprep.subr.bf16.mxu0 0
      %6850 = vmatpush1.bf16.msra.mxu0 %v6837
      %6851 = vmatprep.subr.bf16.mxu0 0
      %6852 = vmatpush1.bf16.msra.mxu0 %v6836
      %6853 = vmatprep.subr.bf16.mxu0 0
      %6854 = vmatpush1.bf16.msra.mxu0 %v6835
      %6855 = vmatprep.subr.bf16.mxu0 0
      %6856 = vmatpush1.bf16.msra.mxu0 %v6834
      %6857 = vmatprep.subr.bf16.mxu0 0
      %6858 = vmatpush1.bf16.msra.mxu0 %v6833
      %6859 = vmatprep.subr.bf16.mxu0 0
      %6860 = vmatpush1.bf16.msra.mxu0 %v6832
      %6861 = vmatprep.subr.bf16.mxu0 0
      %6862 = vmatpush1.bf16.msra.mxu0 %v6831
      %6863 = vmatprep.subr.bf16.mxu0 0
      %6864 = vmatpush2.bf16.msra.mxu0 0
      %6865 = vmatprep.subr.bf16.mxu0 0
      %6866 = vmatpush2.bf16.msra.mxu0 0
      %6867 = vmatprep.subr.bf16.mxu0 0
      %6868 = vmatpush2.bf16.msra.mxu0 0
      %6869 = vmatprep.subr.bf16.mxu0 0
      %6870 = vmatpush2.bf16.msra.mxu0 0
      %6871 = vmatprep.subr.bf16.mxu0 0
      %6872 = vmatpush2.bf16.msra.mxu0 0
      %6873 = vmatprep.subr.bf16.mxu0 0
      %6874 = vmatpush2.bf16.msra.mxu0 0
      %6875 = vmatprep.subr.bf16.mxu0 0
      %6876 = vmatpush2.bf16.msra.mxu0 0
      %6877 = vmatprep.subr.bf16.mxu0 0
      %6878 = vmatpush2.bf16.msra.mxu0 0
      %6879 = vmatprep.mubr.bf16.mxu0 0
      %6880 = vmatmul.mubr.bf16.gmra.mxu0 %v6781
      %v6881 = vpop.f32.mrf.mxu0
      %v6882 = vadd.f32 0.0, %v6881
      %v6883 = vpop.f32.mrf.mxu0
      %v6884 = vpop.f32.mrf.mxu0
      %v6885 = vpop.f32.mrf.mxu0
      %6886 = vdwg.mxu0
      %v6887 = vadd.f32 %v6780, %v6882
      %s6888 = scalar_lea.vmem %s5, 192
      %v6889 = vld [vmem:[%s6888] sm:$0xf]
      %v6890 = vld [vmem:[%s6888 + $0x4] sm:$0xf]
      %v6891 = vld [vmem:[%s6888 + $0x8] sm:$0xf]
      %v6892 = vld [vmem:[%s6888 + $0xc] sm:$0xf]
      %v6893 = vld [vmem:[%s6888 + $0x10] sm:$0xf]
      %v6894 = vld [vmem:[%s6888 + $0x14] sm:$0xf]
      %v6895 = vld [vmem:[%s6888 + $0x18] sm:$0xf]
      %v6896 = vld [vmem:[%s6888 + $0x1c] sm:$0xf]
      %v6897 = vld [vmem:[%s6888 + $0x20] sm:$0xf]
      %v6898 = vld [vmem:[%s6888 + $0x24] sm:$0xf]
      %v6899 = vld [vmem:[%s6888 + $0x28] sm:$0xf]
      %v6900 = vld [vmem:[%s6888 + $0x2c] sm:$0xf]
      %v6901 = vld [vmem:[%s6888 + $0x30] sm:$0xf]
      %v6902 = vld [vmem:[%s6888 + $0x34] sm:$0xf]
      %v6903 = vld [vmem:[%s6888 + $0x38] sm:$0xf]
      %v6904 = vld [vmem:[%s6888 + $0x3c] sm:$0xf]
      %v6906 = vshrl.u32 %v6781, 16
      %v6925 = vunpack.c.l.b16 %v6889
      %v6926 = vunpack.c.l.b16 %v6890
      %v6927 = vunpack.c.l.b16 %v6891
      %v6928 = vunpack.c.l.b16 %v6892
      %v6929 = vunpack.c.l.b16 %v6893
      %v6930 = vunpack.c.l.b16 %v6894
      %v6931 = vunpack.c.l.b16 %v6895
      %v6932 = vunpack.c.l.b16 %v6896
      %v6933 = vunpack.c.l.b16 %v6897
      %v6934 = vunpack.c.l.b16 %v6898
      %v6935 = vunpack.c.l.b16 %v6899
      %v6936 = vunpack.c.l.b16 %v6900
      %v6937 = vunpack.c.l.b16 %v6901
      %v6938 = vunpack.c.l.b16 %v6902
      %v6939 = vunpack.c.l.b16 %v6903
      %v6940 = vunpack.c.l.b16 %v6904
      %v6941 = vpack.c.b16 %v6926, %v6925
      %v6942 = vpack.c.b16 %v6928, %v6927
      %v6943 = vpack.c.b16 %v6930, %v6929
      %v6944 = vpack.c.b16 %v6932, %v6931
      %v6945 = vpack.c.b16 %v6934, %v6933
      %v6946 = vpack.c.b16 %v6936, %v6935
      %v6947 = vpack.c.b16 %v6938, %v6937
      %v6948 = vpack.c.b16 %v6940, %v6939
      %6957 = vmatprep.subr.bf16.mxu0 0
      %6958 = vmatpush1.bf16.msra.mxu0 %v6948
      %6959 = vmatprep.subr.bf16.mxu0 0
      %6960 = vmatpush1.bf16.msra.mxu0 %v6947
      %6961 = vmatprep.subr.bf16.mxu0 0
      %6962 = vmatpush1.bf16.msra.mxu0 %v6946
      %6963 = vmatprep.subr.bf16.mxu0 0
      %6964 = vmatpush1.bf16.msra.mxu0 %v6945
      %6965 = vmatprep.subr.bf16.mxu0 0
      %6966 = vmatpush1.bf16.msra.mxu0 %v6944
      %6967 = vmatprep.subr.bf16.mxu0 0
      %6968 = vmatpush1.bf16.msra.mxu0 %v6943
      %6969 = vmatprep.subr.bf16.mxu0 0
      %6970 = vmatpush1.bf16.msra.mxu0 %v6942
      %6971 = vmatprep.subr.bf16.mxu0 0
      %6972 = vmatpush1.bf16.msra.mxu0 %v6941
      %6973 = vmatprep.subr.bf16.mxu0 0
      %6974 = vmatpush2.bf16.msra.mxu0 0
      %6975 = vmatprep.subr.bf16.mxu0 0
      %6976 = vmatpush2.bf16.msra.mxu0 0
      %6977 = vmatprep.subr.bf16.mxu0 0
      %6978 = vmatpush2.bf16.msra.mxu0 0
      %6979 = vmatprep.subr.bf16.mxu0 0
      %6980 = vmatpush2.bf16.msra.mxu0 0
      %6981 = vmatprep.subr.bf16.mxu0 0
      %6982 = vmatpush2.bf16.msra.mxu0 0
      %6983 = vmatprep.subr.bf16.mxu0 0
      %6984 = vmatpush2.bf16.msra.mxu0 0
      %6985 = vmatprep.subr.bf16.mxu0 0
      %6986 = vmatpush2.bf16.msra.mxu0 0
      %6987 = vmatprep.subr.bf16.mxu0 0
      %6988 = vmatpush2.bf16.msra.mxu0 0
      %6989 = vmatprep.mubr.bf16.mxu0 0
      %6990 = vmatmul.mubr.bf16.gmra.mxu0 %v6906
      %v6991 = vpop.f32.mrf.mxu0
      %v6992 = vadd.f32 0.0, %v6991
      %v6993 = vpop.f32.mrf.mxu0
      %v6994 = vpop.f32.mrf.mxu0
      %v6995 = vpop.f32.mrf.mxu0
      %6996 = vdwg.mxu0
      %v6997 = vadd.f32 %v6887, %v6992
      %v6998 = vsub.f32 0.0, %v6997
      %v6999 = vmul.f32 %v6998, 1.442695
      %v7000 = vpow.pop %v6999
      %v7001 = vadd.f32 %v7000, 1.0
      %v7002 = vrcp.pop %v7001
      %vm7003 = vcmp.gt.f32.partialorder %v6997, 0.0
      %v7004 = vmin.f32 %v6997, 0.0
      %v7005 = vmul.f32 %v7004, 1.442695
      %v7006 = vpow.pop %v7005
      %v7007 = vsub.f32 %v7006, 1.0
      %v7008 = vmul.f32 %v7007, 0.2
      %v7009 = vsel %vm7003, %v6997, %v7008
      %v7010 = vadd.f32 %v7009, 1.0
      %v7012 = vlaneseq
      %v7013 = vshrl.u32 %v7012, 7
      %v7014 = vsub.s32 0, %v7013
      %v7015 = vrot.slane %v7010, %v7014
      %vm7017 = vcmask 1040384
      %v7018 = vsel %vm7017, %v7002, %v7015
      %7019 = vst [vmem:[%s276] sm:$0x3] %v7018
      %p7020 = scmp.lt.s32.totalorder %s18, 1
      %s7021 = scalar_select %p7020, %s18, 1
      %s7022 = smul.addr %s7021, 2
      %s7023 = scalar_lea.vmem %s7, %s7022
      // Predicated region
      $region49: #{autocalibration11_forward.1} parent=47 // pred_check
        %p7024 = pneg %p188
      $region50: #{autocalibration11_forward.1} parent=47 // pred_check_branch
        %7026 = sbr.rel (%p7024) target = $region52
      $region51: #{autocalibration11_forward.1} parent=47 // pred_region
        _
      $region52: #{autocalibration11_forward.1} parent=47 // pred_fallthru
        _
    $region48: #{autocalibration11_forward.1} parent=5 // pred_fallthru
      _
    %p7027 = scmp.le.s32.totalorder 2, %s13
    // Predicated region
    $region53: #{autocalibration11_forward.1} parent=5 // pred_check
      %p7028 = pneg %p7027
    $region54: #{autocalibration11_forward.1} parent=5 // pred_check_branch
      %7030 = sbr.rel (%p7028) target = $region56
    $region55: #{autocalibration11_forward.1} parent=5 // pred_region
      %s7031 = ssub.s32 %s13, 2
      // Predicated region
      $region57: #{autocalibration11_forward.1} parent=55 // pred_check
        %p7032 = pneg %p194
      $region58: #{autocalibration11_forward.1} parent=55 // pred_check_branch
        %7034 = sbr.rel (%p7032) target = $region60
      $region59: #{autocalibration11_forward.1} parent=55 // pred_region
        %p7035 = scmp.lt.s32.totalorder %s19, 1
        %s7036 = scalar_select %p7035, %s19, 1
        %s7037 = smul.addr %s7036, 2
        %s7038 = scalar_lea.vmem %s7, %s7037
      $region60: #{autocalibration11_forward.1} parent=55 // pred_fallthru
        _
    $region56: #{autocalibration11_forward.1} parent=5 // pred_fallthru
      _
  $region6: #{autocalibration11_forward.1} parent=0 // loop_footer
    %s17 = sadd.s32 1, %s13
  $region7: #{autocalibration11_forward.1} parent=0 // loop_footer_branch
    %12 = sbr.rel target = $region3
  $region8: #{autocalibration11_forward.1} parent=0 // loop_exit
    _

</llo_original>
